<compile_context>
chip_gen: v7x
topology: tpu7x:2x2x1
jax: 0.10.0
libtpu: 0.0.40
codegen_flags: <defaults>
</compile_context>

<pallas_src>
import functools

import jax
import jax.numpy as jnp
from jax.experimental import pallas as pl
from jax.experimental.pallas import tpu as pltpu

# Make the pure-JAX reference use full-precision f32 matmuls (matches the
# in-kernel MXU f32 path for the correctness check).
jax.config.update("jax_default_matmul_precision", "highest")


# ---------------------------------------------------------------------------
# Fused kernel
# ---------------------------------------------------------------------------
def _energy_kernel(
    xT_ref,                                            # (D, TB) input block, batch on lanes
    ang_w1_ref, ang_b1_ref, ang_w2_ref, ang_b2_ref,    # stacked angular FCNN params,
    ang_w3_ref, ang_b3_ref,                            #   (n_ang, ...), applied in order
    mnn_w1_ref, mnn_b1_ref, mnn_w2_ref, mnn_b2_ref,    # stacked MNN FCNN params,
    mnn_w3_ref, mnn_b3_ref,                            #   index 0/1/2 = a/w/b nets
    out_ref,                                           # (1, TB) energy ** 0.1
    *, n_ang, input_dim,
):
    f32 = jnp.float32
    x = xT_ref[...].astype(f32)                        # (D, TB)

    # ---- Angular modulation: n_ang successive 2-D rotations of rows 0 and 1 ----
    x1 = x[0:1, :]                                     # (1, TB)
    x2 = x[1:2, :]                                     # (1, TB)
    for j in range(n_ang):                             # n_ang = D - 1, tiny and static
        r = jnp.sqrt(x1 * x1 + x2 * x2)                # (1, TB)
        # FCNN(1 -> H3 -> H3 -> 1); the K=1 first layer is a VPU broadcast, not a matmul.
        h1 = jax.nn.sigmoid(ang_w1_ref[j] * r + ang_b1_ref[j])             # (H3, TB)
        h2 = jax.nn.sigmoid(
            jnp.dot(ang_w2_ref[j], h1, preferred_element_type=f32)
            + ang_b2_ref[j])                                               # (H3, TB)
        f_r = (jnp.dot(ang_w3_ref[j], h2, preferred_element_type=f32)
               + ang_b3_ref[j])                                            # (1, TB)
        c = jnp.cos(f_r)
        s = jnp.sin(f_r)
        x1, x2 = c * x1 + s * x2, -s * x1 + c * x2

    # Write rotated values back into rows 0 / 1 (mask-select; rows >= 2 unchanged).
    row = jax.lax.broadcasted_iota(jnp.int32, x.shape, 0)
    x = jnp.where(row == 0, x1, jnp.where(row == 1, x2, x))                # (D, TB)

    # ---- Amplitude modulation (monotonic NN) ----
    r = jnp.sqrt(jnp.sum(x * x, axis=0, keepdims=True))                    # (1, TB)
    y = x / r                                                              # (D, TB)

    def fcnn(idx):  # FCNN(D -> H1 -> H1 -> H2); weights kept in PyTorch (out, in) layout.
        h1 = jax.nn.sigmoid(
            jnp.dot(mnn_w1_ref[idx], y, preferred_element_type=f32) + mnn_b1_ref[idx])
        h2 = jax.nn.sigmoid(
            jnp.dot(mnn_w2_ref[idx], h1, preferred_element_type=f32) + mnn_b2_ref[idx])
        return jnp.dot(mnn_w3_ref[idx], h2, preferred_element_type=f32) + mnn_b3_ref[idx]

    W = 10.0 * jax.nn.sigmoid(jnp.exp(fcnn(0)))        # from self.a   (H2, TB)
    A = 10.0 * jax.nn.sigmoid(jnp.exp(fcnn(1)))        # from self.w   (H2, TB)
    Bv = fcnn(2)                                       # from self.b   (H2, TB)

    k = (jnp.sum(W * jnp.tanh(A * r + Bv), axis=0, keepdims=True)
         - jnp.sum(W * jnp.tanh(Bv), axis=0, keepdims=True))               # (1, TB)

    xm = k * x                                                             # (D, TB)
    energy = jnp.sum(xm * xm, axis=0, keepdims=True)                       # (1, TB)
    # energy ** 0.1 (energy > 0 away from the origin; padded lanes are discarded).
    out_ref[...] = jnp.exp(0.1 * jnp.log(energy)).astype(out_ref.dtype)


# ---------------------------------------------------------------------------
# Wrapper
# ---------------------------------------------------------------------------
@functools.partial(jax.jit, static_argnames=("input_dim", "block_b"))
def energy_forward(x, packed, *, input_dim, block_b=128):
    """Pallas forward of EnergyFunction: returns (sum(x_mod**2, -1)) ** 0.1, shape (B,)."""
    x = x.reshape(-1, input_dim).astype(jnp.float32)
    B = x.shape[0]
    n_blocks = pl.cdiv(B, block_b)
    b_pad = n_blocks * block_b
    if b_pad != B:
        # Pad with ones so r > 0 in the padded lanes; padded results are dropped.
        x = jnp.concatenate([x, jnp.ones((b_pad - B, input_dim), x.dtype)], axis=0)
    xT = x.T  # (D, b_pad): tiny layout transpose so batch sits on the lane axis.

    weights = tuple(packed)

    def const_spec(a):  # whole array resident in VMEM, never re-fetched across batch tiles
        nd = a.ndim
        return pl.BlockSpec(tuple(a.shape), lambda i, nd=nd: (0,) * nd)

    kernel = functools.partial(
        _energy_kernel, n_ang=input_dim - 1, input_dim=input_dim)

    out = pl.pallas_call(
        kernel,
        out_shape=jax.ShapeDtypeStruct((1, b_pad), jnp.float32),
        grid=(n_blocks,),
        in_specs=[pl.BlockSpec((input_dim, block_b), lambda i: (0, i))]
        + [const_spec(a) for a in weights],
        out_specs=pl.BlockSpec((1, block_b), lambda i: (0, i)),
        compiler_params=pltpu.CompilerParams(
            dimension_semantics=("parallel",),
            vmem_limit_bytes=32 * 1024 * 1024,
        ),
    )(xT, *weights)
    return out[0, :B]


# ---------------------------------------------------------------------------
# Parameter construction / packing (done ONCE, outside jit)
# ---------------------------------------------------------------------------
def _init_fcnn(key, in_dim, hidden, out_dim):
    ks = jax.random.split(key, 6)

    def lin(kw, kb, fan_in, fan_out):
        bound = 1.0 / (fan_in ** 0.5)
        w = jax.random.uniform(kw, (fan_out, fan_in), jnp.float32, -bound, bound)
        b = jax.random.uniform(kb, (fan_out,), jnp.float32, -bound, bound)
        return w, b

    w1, b1 = lin(ks[0], ks[1], in_dim, hidden)
    w2, b2 = lin(ks[2], ks[3], hidden, hidden)
    w3, b3 = lin(ks[4], ks[5], hidden, out_dim)
    return dict(w1=w1, b1=b1, w2=w2, b2=b2, w3=w3, b3=b3)


def init_params(key, input_dim, hidden_dim_1, hidden_dim_2, hidden_dim_3):
    keys = jax.random.split(key, (input_dim - 1) + 3)
    ang = [_init_fcnn(keys[i], 1, hidden_dim_3, 1) for i in range(input_dim - 1)]
    a = _init_fcnn(keys[input_dim - 1], input_dim, hidden_dim_1, hidden_dim_2)
    w = _init_fcnn(keys[input_dim], input_dim, hidden_dim_1, hidden_dim_2)
    b = _init_fcnn(keys[input_dim + 1], input_dim, hidden_dim_1, hidden_dim_2)
    return dict(ang=ang, a=a, w=w, b=b)


def pack_params(params):
    """One-time packing into kernel layout.

    Angular modules are stacked in the (reversed) order the PyTorch forward applies
    them; MNN nets are stacked as [a, w, b].  Weights keep the PyTorch (out, in)
    layout -- no transposes; biases become (out, 1) columns for lane broadcast.
    """
    def col(b):
        return b.reshape(-1, 1)

    ang = list(reversed(params["ang"]))
    mnn = [params["a"], params["w"], params["b"]]
    return (
        jnp.stack([m["w1"] for m in ang]),        # (n_ang, H3, 1)
        jnp.stack([col(m["b1"]) for m in ang]),   # (n_ang, H3, 1)
        jnp.stack([m["w2"] for m in ang]),        # (n_ang, H3, H3)
        jnp.stack([col(m["b2"]) for m in ang]),   # (n_ang, H3, 1)
        jnp.stack([m["w3"] for m in ang]),        # (n_ang, 1, H3)
        jnp.stack([col(m["b3"]) for m in ang]),   # (n_ang, 1, 1)
        jnp.stack([m["w1"] for m in mnn]),        # (3, H1, D)
        jnp.stack([col(m["b1"]) for m in mnn]),   # (3, H1, 1)
        jnp.stack([m["w2"] for m in mnn]),        # (3, H1, H1)
        jnp.stack([col(m["b2"]) for m in mnn]),   # (3, H1, 1)
        jnp.stack([m["w3"] for m in mnn]),        # (3, H2, H1)
        jnp.stack([col(m["b3"]) for m in mnn]),   # (3, H2, 1)
    )


# ---------------------------------------------------------------------------
# Pure-JAX reference mirroring the PyTorch module
# ---------------------------------------------------------------------------
def _fcnn_ref(p, x):
    h = jax.nn.sigmoid(x @ p["w1"].T + p["b1"])
    h = jax.nn.sigmoid(h @ p["w2"].T + p["b2"])
    return h @ p["w3"].T + p["b3"]


def energy_reference(params, x, input_dim):
    x = x.reshape(-1, input_dim).astype(jnp.float32)
    # Angular modulation: modules applied in reversed order (the `z` roll in the
    # original code never feeds back and is therefore omitted).
    for mod in reversed(params["ang"]):
        x1 = x[:, 0]
        x2 = x[:, 1]
        r = jnp.sqrt(x1 * x1 + x2 * x2)
        f_r = _fcnn_ref(mod, r.reshape(-1, 1)).reshape(-1)
        y0 = jnp.cos(f_r) * x1 + jnp.sin(f_r) * x2
        y1 = -jnp.sin(f_r) * x1 + jnp.cos(f_r) * x2
        x = x.at[:, 0].set(y0)
        x = x.at[:, 1].set(y1)
    # Amplitude modulation (monotonic NN).
    r = jnp.sqrt(jnp.sum(x * x, axis=1, keepdims=True))
    y = x / r
    W = 10.0 * jax.nn.sigmoid(jnp.exp(_fcnn_ref(params["a"], y)))
    A = 10.0 * jax.nn.sigmoid(jnp.exp(_fcnn_ref(params["w"], y)))
    Bv = _fcnn_ref(params["b"], y)
    k = (jnp.sum(W * jnp.tanh(A * r + Bv), axis=1)
         - jnp.sum(W * jnp.tanh(Bv), axis=1))
    xm = k.reshape(-1, 1) * x
    energy = jnp.sum(xm * xm, axis=1)
    return energy ** 0.1


# TODO(synk): jacobian / jacobian_numpy / plot_v are host-side finite-difference and
# plotting helpers, not part of the forward pass; they are not implemented here.

if __name__ == "__main__":
    key = jax.random.PRNGKey(0)

    input_dim = 3        # -> 2 angular-modulation stages
    hidden_dim_1 = 32    # MNN FCNN hidden width
    hidden_dim_2 = 32    # MNN FCNN output width
    hidden_dim_3 = 16    # angular FCNN hidden width
    batch = 200          # pads to 256 -> exercises a 2-step batch grid

    k_par, k_x = jax.random.split(key)
    params = init_params(k_par, input_dim, hidden_dim_1, hidden_dim_2, hidden_dim_3)
    packed = pack_params(params)   # one-time packing outside jit ("clamped" weights)

    x = jax.random.normal(k_x, (batch, input_dim), dtype=jnp.float32)

    out = energy_forward(x, packed, input_dim=input_dim)
    out = jax.block_until_ready(out)

    ref = energy_reference(params, x, input_dim)
    assert out.shape == (batch,)
    err = float(jnp.max(jnp.abs(out - ref)))
    rel = err / max(float(jnp.max(jnp.abs(ref))), 1e-12)
    assert err < 1e-3 and rel < 1e-3, f"mismatch: abs_err={err} rel_err={rel}"

    print("KERNEL_OK")
</pallas_src>

<mosaic_0001>
module attributes {stable_mosaic.version = 11 : i64} {
  func.func @_energy_kernel(%arg0: i32, %arg1: memref<3x128xf32, #tpu.memory_space<vmem>>, %arg2: memref<2x16x1xf32, #tpu.memory_space<vmem>>, %arg3: memref<2x16x1xf32, #tpu.memory_space<vmem>>, %arg4: memref<2x16x16xf32, #tpu.memory_space<vmem>>, %arg5: memref<2x16x1xf32, #tpu.memory_space<vmem>>, %arg6: memref<2x1x16xf32, #tpu.memory_space<vmem>>, %arg7: memref<2x1x1xf32, #tpu.memory_space<vmem>>, %arg8: memref<3x32x3xf32, #tpu.memory_space<vmem>>, %arg9: memref<3x32x1xf32, #tpu.memory_space<vmem>>, %arg10: memref<3x32x32xf32, #tpu.memory_space<vmem>>, %arg11: memref<3x32x1xf32, #tpu.memory_space<vmem>>, %arg12: memref<3x32x32xf32, #tpu.memory_space<vmem>>, %arg13: memref<3x32x1xf32, #tpu.memory_space<vmem>>, %arg14: memref<1x128xf32, #tpu.memory_space<vmem>>) attributes {dimension_semantics = [#tpu.dimension_semantics<parallel>], iteration_bounds = array<i64: 2>, scalar_prefetch = 0 : i64, scratch_operands = 0 : i64, tpu.core_type = #tpu.core_type<tc>, window_params = [{transform_indices = @transform_0, window_bounds = array<i64: 3, 128>}, {pipeline_mode = #tpu.pipeline_mode<synchronous>, transform_indices = @transform_1, window_bounds = array<i64: 2, 16, 1>}, {pipeline_mode = #tpu.pipeline_mode<synchronous>, transform_indices = @transform_2, window_bounds = array<i64: 2, 16, 1>}, {pipeline_mode = #tpu.pipeline_mode<synchronous>, transform_indices = @transform_3, window_bounds = array<i64: 2, 16, 16>}, {pipeline_mode = #tpu.pipeline_mode<synchronous>, transform_indices = @transform_4, window_bounds = array<i64: 2, 16, 1>}, {pipeline_mode = #tpu.pipeline_mode<synchronous>, transform_indices = @transform_5, window_bounds = array<i64: 2, 1, 16>}, {pipeline_mode = #tpu.pipeline_mode<synchronous>, transform_indices = @transform_6, window_bounds = array<i64: 2, 1, 1>}, {pipeline_mode = #tpu.pipeline_mode<synchronous>, transform_indices = @transform_7, window_bounds = array<i64: 3, 32, 3>}, {pipeline_mode = #tpu.pipeline_mode<synchronous>, transform_indices = @transform_8, window_bounds = array<i64: 3, 32, 1>}, {pipeline_mode = #tpu.pipeline_mode<synchronous>, transform_indices = @transform_9, window_bounds = array<i64: 3, 32, 32>}, {pipeline_mode = #tpu.pipeline_mode<synchronous>, transform_indices = @transform_10, window_bounds = array<i64: 3, 32, 1>}, {pipeline_mode = #tpu.pipeline_mode<synchronous>, transform_indices = @transform_11, window_bounds = array<i64: 3, 32, 32>}, {pipeline_mode = #tpu.pipeline_mode<synchronous>, transform_indices = @transform_12, window_bounds = array<i64: 3, 32, 1>}, {transform_indices = @transform_13, window_bounds = array<i64: 1, 128>}]} {
    %c0 = arith.constant 0 : index
    %c0_0 = arith.constant 0 : index
    %0 = vector.load %arg1[%c0, %c0_0] : memref<3x128xf32, #tpu.memory_space<vmem>>, vector<3x128xf32>
    %1 = vector.extract_strided_slice %0 {offsets = [0, 0], sizes = [1, 128], strides = [1, 1]} : vector<3x128xf32> to vector<1x128xf32>
    %2 = vector.extract_strided_slice %0 {offsets = [1, 0], sizes = [1, 128], strides = [1, 1]} : vector<3x128xf32> to vector<1x128xf32>
    %3 = arith.mulf %1, %1 : vector<1x128xf32>
    %4 = arith.mulf %2, %2 : vector<1x128xf32>
    %5 = arith.addf %3, %4 : vector<1x128xf32>
    %6 = math.sqrt %5 : vector<1x128xf32>
    %c0_1 = arith.constant 0 : index
    %c0_2 = arith.constant 0 : index
    %c0_3 = arith.constant 0 : index
    %7 = vector.load %arg2[%c0_1, %c0_2, %c0_3] : memref<2x16x1xf32, #tpu.memory_space<vmem>>, vector<1x16x1xf32>
    %8 = vector.shape_cast %7 : vector<1x16x1xf32> to vector<16x1xf32>
    %9 = vector.broadcast %8 : vector<16x1xf32> to vector<16x128xf32>
    %10 = vector.broadcast %6 : vector<1x128xf32> to vector<16x128xf32>
    %11 = arith.mulf %9, %10 : vector<16x128xf32>
    %c0_4 = arith.constant 0 : index
    %c0_5 = arith.constant 0 : index
    %c0_6 = arith.constant 0 : index
    %12 = vector.load %arg3[%c0_4, %c0_5, %c0_6] : memref<2x16x1xf32, #tpu.memory_space<vmem>>, vector<1x16x1xf32>
    %13 = vector.shape_cast %12 : vector<1x16x1xf32> to vector<16x1xf32>
    %14 = vector.broadcast %13 : vector<16x1xf32> to vector<16x128xf32>
    %15 = arith.addf %11, %14 : vector<16x128xf32>
    %16 = arith.negf %15 : vector<16x128xf32>
    %17 = math.exp %16 : vector<16x128xf32>
    %cst = arith.constant 1.000000e+00 : f32
    %18 = vector.broadcast %cst : f32 to vector<16x128xf32>
    %19 = arith.addf %18, %17 : vector<16x128xf32>
    %20 = arith.divf %18, %19 : vector<16x128xf32>
    %c0_7 = arith.constant 0 : index
    %c0_8 = arith.constant 0 : index
    %c0_9 = arith.constant 0 : index
    %21 = vector.load %arg4[%c0_7, %c0_8, %c0_9] : memref<2x16x16xf32, #tpu.memory_space<vmem>>, vector<1x16x16xf32>
    %22 = vector.shape_cast %21 : vector<1x16x16xf32> to vector<16x16xf32>
    %cst_10 = arith.constant dense<0.000000e+00> : vector<16x128xf32>
    %23 = tpu.matmul %22, %20, %cst_10 {dimension_numbers = #tpu.dot_dimension_numbers<[1], [0], [0], [1], [0, 0, 1, 1], [], []>, precision = #tpu.contract_precision<fp32>} : vector<16x16xf32>, vector<16x128xf32>, vector<16x128xf32> -> vector<16x128xf32>
    %c0_11 = arith.constant 0 : index
    %c0_12 = arith.constant 0 : index
    %c0_13 = arith.constant 0 : index
    %24 = vector.load %arg5[%c0_11, %c0_12, %c0_13] : memref<2x16x1xf32, #tpu.memory_space<vmem>>, vector<1x16x1xf32>
    %25 = vector.shape_cast %24 : vector<1x16x1xf32> to vector<16x1xf32>
    %26 = vector.broadcast %25 : vector<16x1xf32> to vector<16x128xf32>
    %27 = arith.addf %23, %26 : vector<16x128xf32>
    %28 = arith.negf %27 : vector<16x128xf32>
    %29 = math.exp %28 : vector<16x128xf32>
    %cst_14 = arith.constant 1.000000e+00 : f32
    %30 = vector.broadcast %cst_14 : f32 to vector<16x128xf32>
    %31 = arith.addf %30, %29 : vector<16x128xf32>
    %32 = arith.divf %30, %31 : vector<16x128xf32>
    %c0_15 = arith.constant 0 : index
    %c0_16 = arith.constant 0 : index
    %c0_17 = arith.constant 0 : index
    %33 = vector.load %arg6[%c0_15, %c0_16, %c0_17] : memref<2x1x16xf32, #tpu.memory_space<vmem>>, vector<1x1x16xf32>
    %34 = vector.shape_cast %33 : vector<1x1x16xf32> to vector<1x16xf32>
    %cst_18 = arith.constant dense<0.000000e+00> : vector<1x128xf32>
    %35 = tpu.matmul %34, %32, %cst_18 {dimension_numbers = #tpu.dot_dimension_numbers<[1], [0], [0], [1], [0, 0, 1, 1], [], []>, precision = #tpu.contract_precision<fp32>} : vector<1x16xf32>, vector<16x128xf32>, vector<1x128xf32> -> vector<1x128xf32>
    %c0_19 = arith.constant 0 : index
    %c0_20 = arith.constant 0 : index
    %c0_21 = arith.constant 0 : index
    %36 = vector.load %arg7[%c0_19, %c0_20, %c0_21] : memref<2x1x1xf32, #tpu.memory_space<vmem>>, vector<1x1x1xf32>
    %37 = vector.shape_cast %36 : vector<1x1x1xf32> to vector<1x1xf32>
    %38 = vector.broadcast %37 : vector<1x1xf32> to vector<1x128xf32>
    %39 = arith.addf %35, %38 : vector<1x128xf32>
    %40 = math.cos %39 : vector<1x128xf32>
    %41 = math.sin %39 : vector<1x128xf32>
    %42 = arith.mulf %40, %1 : vector<1x128xf32>
    %43 = arith.mulf %41, %2 : vector<1x128xf32>
    %44 = arith.addf %42, %43 : vector<1x128xf32>
    %cst_22 = arith.constant 0.000000e+00 : f32
    %45 = vector.broadcast %cst_22 : f32 to vector<1x128xf32>
    %46 = arith.subf %45, %41 : vector<1x128xf32>
    %47 = arith.mulf %46, %1 : vector<1x128xf32>
    %48 = arith.mulf %40, %2 : vector<1x128xf32>
    %49 = arith.addf %47, %48 : vector<1x128xf32>
    %50 = arith.mulf %44, %44 : vector<1x128xf32>
    %51 = arith.mulf %49, %49 : vector<1x128xf32>
    %52 = arith.addf %50, %51 : vector<1x128xf32>
    %53 = math.sqrt %52 : vector<1x128xf32>
    %c1 = arith.constant 1 : index
    %c0_23 = arith.constant 0 : index
    %c0_24 = arith.constant 0 : index
    %54 = vector.load %arg2[%c1, %c0_23, %c0_24] : memref<2x16x1xf32, #tpu.memory_space<vmem>>, vector<1x16x1xf32>
    %55 = vector.shape_cast %54 : vector<1x16x1xf32> to vector<16x1xf32>
    %56 = vector.broadcast %55 : vector<16x1xf32> to vector<16x128xf32>
    %57 = vector.broadcast %53 : vector<1x128xf32> to vector<16x128xf32>
    %58 = arith.mulf %56, %57 : vector<16x128xf32>
    %c1_25 = arith.constant 1 : index
    %c0_26 = arith.constant 0 : index
    %c0_27 = arith.constant 0 : index
    %59 = vector.load %arg3[%c1_25, %c0_26, %c0_27] : memref<2x16x1xf32, #tpu.memory_space<vmem>>, vector<1x16x1xf32>
    %60 = vector.shape_cast %59 : vector<1x16x1xf32> to vector<16x1xf32>
    %61 = vector.broadcast %60 : vector<16x1xf32> to vector<16x128xf32>
    %62 = arith.addf %58, %61 : vector<16x128xf32>
    %63 = arith.negf %62 : vector<16x128xf32>
    %64 = math.exp %63 : vector<16x128xf32>
    %cst_28 = arith.constant 1.000000e+00 : f32
    %65 = vector.broadcast %cst_28 : f32 to vector<16x128xf32>
    %66 = arith.addf %65, %64 : vector<16x128xf32>
    %67 = arith.divf %65, %66 : vector<16x128xf32>
    %c1_29 = arith.constant 1 : index
    %c0_30 = arith.constant 0 : index
    %c0_31 = arith.constant 0 : index
    %68 = vector.load %arg4[%c1_29, %c0_30, %c0_31] : memref<2x16x16xf32, #tpu.memory_space<vmem>>, vector<1x16x16xf32>
    %69 = vector.shape_cast %68 : vector<1x16x16xf32> to vector<16x16xf32>
    %cst_32 = arith.constant dense<0.000000e+00> : vector<16x128xf32>
    %70 = tpu.matmul %69, %67, %cst_32 {dimension_numbers = #tpu.dot_dimension_numbers<[1], [0], [0], [1], [0, 0, 1, 1], [], []>, precision = #tpu.contract_precision<fp32>} : vector<16x16xf32>, vector<16x128xf32>, vector<16x128xf32> -> vector<16x128xf32>
    %c1_33 = arith.constant 1 : index
    %c0_34 = arith.constant 0 : index
    %c0_35 = arith.constant 0 : index
    %71 = vector.load %arg5[%c1_33, %c0_34, %c0_35] : memref<2x16x1xf32, #tpu.memory_space<vmem>>, vector<1x16x1xf32>
    %72 = vector.shape_cast %71 : vector<1x16x1xf32> to vector<16x1xf32>
    %73 = vector.broadcast %72 : vector<16x1xf32> to vector<16x128xf32>
    %74 = arith.addf %70, %73 : vector<16x128xf32>
    %75 = arith.negf %74 : vector<16x128xf32>
    %76 = math.exp %75 : vector<16x128xf32>
    %cst_36 = arith.constant 1.000000e+00 : f32
    %77 = vector.broadcast %cst_36 : f32 to vector<16x128xf32>
    %78 = arith.addf %77, %76 : vector<16x128xf32>
    %79 = arith.divf %77, %78 : vector<16x128xf32>
    %c1_37 = arith.constant 1 : index
    %c0_38 = arith.constant 0 : index
    %c0_39 = arith.constant 0 : index
    %80 = vector.load %arg6[%c1_37, %c0_38, %c0_39] : memref<2x1x16xf32, #tpu.memory_space<vmem>>, vector<1x1x16xf32>
    %81 = vector.shape_cast %80 : vector<1x1x16xf32> to vector<1x16xf32>
    %cst_40 = arith.constant dense<0.000000e+00> : vector<1x128xf32>
    %82 = tpu.matmul %81, %79, %cst_40 {dimension_numbers = #tpu.dot_dimension_numbers<[1], [0], [0], [1], [0, 0, 1, 1], [], []>, precision = #tpu.contract_precision<fp32>} : vector<1x16xf32>, vector<16x128xf32>, vector<1x128xf32> -> vector<1x128xf32>
    %c1_41 = arith.constant 1 : index
    %c0_42 = arith.constant 0 : index
    %c0_43 = arith.constant 0 : index
    %83 = vector.load %arg7[%c1_41, %c0_42, %c0_43] : memref<2x1x1xf32, #tpu.memory_space<vmem>>, vector<1x1x1xf32>
    %84 = vector.shape_cast %83 : vector<1x1x1xf32> to vector<1x1xf32>
    %85 = vector.broadcast %84 : vector<1x1xf32> to vector<1x128xf32>
    %86 = arith.addf %82, %85 : vector<1x128xf32>
    %87 = math.cos %86 : vector<1x128xf32>
    %88 = math.sin %86 : vector<1x128xf32>
    %89 = arith.mulf %87, %44 : vector<1x128xf32>
    %90 = arith.mulf %88, %49 : vector<1x128xf32>
    %91 = arith.addf %89, %90 : vector<1x128xf32>
    %cst_44 = arith.constant 0.000000e+00 : f32
    %92 = vector.broadcast %cst_44 : f32 to vector<1x128xf32>
    %93 = arith.subf %92, %88 : vector<1x128xf32>
    %94 = arith.mulf %93, %44 : vector<1x128xf32>
    %95 = arith.mulf %87, %49 : vector<1x128xf32>
    %96 = arith.addf %94, %95 : vector<1x128xf32>
    %97 = tpu.iota {dimensions = array<i32: 0>} : vector<3x128xi32>
    %c0_i32 = arith.constant 0 : i32
    %98 = vector.broadcast %c0_i32 : i32 to vector<3x128xi32>
    %99 = arith.cmpi eq, %97, %98 : vector<3x128xi32>
    %c1_i32 = arith.constant 1 : i32
    %100 = vector.broadcast %c1_i32 : i32 to vector<3x128xi32>
    %101 = arith.cmpi eq, %97, %100 : vector<3x128xi32>
    %102 = vector.shape_cast %96 : vector<1x128xf32> to vector<1x128xf32>
    %103 = vector.broadcast %102 : vector<1x128xf32> to vector<3x128xf32>
    %104 = arith.select %101, %103, %0 : vector<3x128xi1>, vector<3x128xf32>
    %105 = vector.shape_cast %91 : vector<1x128xf32> to vector<1x128xf32>
    %106 = vector.broadcast %105 : vector<1x128xf32> to vector<3x128xf32>
    %107 = arith.select %99, %106, %104 : vector<3x128xi1>, vector<3x128xf32>
    %108 = arith.mulf %107, %107 : vector<3x128xf32>
    %cst_45 = arith.constant dense<0.000000e+00> : vector<128xf32>
    %109 = vector.multi_reduction <add>, %108, %cst_45 [0] : vector<3x128xf32> to vector<128xf32>
    %110 = vector.shape_cast %109 : vector<128xf32> to vector<1x128xf32>
    %111 = math.sqrt %110 : vector<1x128xf32>
    %112 = vector.broadcast %111 : vector<1x128xf32> to vector<3x128xf32>
    %113 = arith.divf %107, %112 : vector<3x128xf32>
    %c0_46 = arith.constant 0 : index
    %c0_47 = arith.constant 0 : index
    %c0_48 = arith.constant 0 : index
    %114 = vector.load %arg8[%c0_46, %c0_47, %c0_48] : memref<3x32x3xf32, #tpu.memory_space<vmem>>, vector<1x32x3xf32>
    %115 = vector.shape_cast %114 : vector<1x32x3xf32> to vector<32x3xf32>
    %cst_49 = arith.constant dense<0.000000e+00> : vector<32x128xf32>
    %116 = tpu.matmul %115, %113, %cst_49 {dimension_numbers = #tpu.dot_dimension_numbers<[1], [0], [0], [1], [0, 0, 1, 1], [], []>, precision = #tpu.contract_precision<fp32>} : vector<32x3xf32>, vector<3x128xf32>, vector<32x128xf32> -> vector<32x128xf32>
    %c0_50 = arith.constant 0 : index
    %c0_51 = arith.constant 0 : index
    %c0_52 = arith.constant 0 : index
    %117 = vector.load %arg9[%c0_50, %c0_51, %c0_52] : memref<3x32x1xf32, #tpu.memory_space<vmem>>, vector<1x32x1xf32>
    %118 = vector.shape_cast %117 : vector<1x32x1xf32> to vector<32x1xf32>
    %119 = vector.broadcast %118 : vector<32x1xf32> to vector<32x128xf32>
    %120 = arith.addf %116, %119 : vector<32x128xf32>
    %121 = arith.negf %120 : vector<32x128xf32>
    %122 = math.exp %121 : vector<32x128xf32>
    %cst_53 = arith.constant 1.000000e+00 : f32
    %123 = vector.broadcast %cst_53 : f32 to vector<32x128xf32>
    %124 = arith.addf %123, %122 : vector<32x128xf32>
    %125 = arith.divf %123, %124 : vector<32x128xf32>
    %c0_54 = arith.constant 0 : index
    %c0_55 = arith.constant 0 : index
    %c0_56 = arith.constant 0 : index
    %126 = vector.load %arg10[%c0_54, %c0_55, %c0_56] : memref<3x32x32xf32, #tpu.memory_space<vmem>>, vector<1x32x32xf32>
    %127 = vector.shape_cast %126 : vector<1x32x32xf32> to vector<32x32xf32>
    %cst_57 = arith.constant dense<0.000000e+00> : vector<32x128xf32>
    %128 = tpu.matmul %127, %125, %cst_57 {dimension_numbers = #tpu.dot_dimension_numbers<[1], [0], [0], [1], [0, 0, 1, 1], [], []>, precision = #tpu.contract_precision<fp32>} : vector<32x32xf32>, vector<32x128xf32>, vector<32x128xf32> -> vector<32x128xf32>
    %c0_58 = arith.constant 0 : index
    %c0_59 = arith.constant 0 : index
    %c0_60 = arith.constant 0 : index
    %129 = vector.load %arg11[%c0_58, %c0_59, %c0_60] : memref<3x32x1xf32, #tpu.memory_space<vmem>>, vector<1x32x1xf32>
    %130 = vector.shape_cast %129 : vector<1x32x1xf32> to vector<32x1xf32>
    %131 = vector.broadcast %130 : vector<32x1xf32> to vector<32x128xf32>
    %132 = arith.addf %128, %131 : vector<32x128xf32>
    %133 = arith.negf %132 : vector<32x128xf32>
    %134 = math.exp %133 : vector<32x128xf32>
    %cst_61 = arith.constant 1.000000e+00 : f32
    %135 = vector.broadcast %cst_61 : f32 to vector<32x128xf32>
    %136 = arith.addf %135, %134 : vector<32x128xf32>
    %137 = arith.divf %135, %136 : vector<32x128xf32>
    %c0_62 = arith.constant 0 : index
    %c0_63 = arith.constant 0 : index
    %c0_64 = arith.constant 0 : index
    %138 = vector.load %arg12[%c0_62, %c0_63, %c0_64] : memref<3x32x32xf32, #tpu.memory_space<vmem>>, vector<1x32x32xf32>
    %139 = vector.shape_cast %138 : vector<1x32x32xf32> to vector<32x32xf32>
    %cst_65 = arith.constant dense<0.000000e+00> : vector<32x128xf32>
    %140 = tpu.matmul %139, %137, %cst_65 {dimension_numbers = #tpu.dot_dimension_numbers<[1], [0], [0], [1], [0, 0, 1, 1], [], []>, precision = #tpu.contract_precision<fp32>} : vector<32x32xf32>, vector<32x128xf32>, vector<32x128xf32> -> vector<32x128xf32>
    %c0_66 = arith.constant 0 : index
    %c0_67 = arith.constant 0 : index
    %c0_68 = arith.constant 0 : index
    %141 = vector.load %arg13[%c0_66, %c0_67, %c0_68] : memref<3x32x1xf32, #tpu.memory_space<vmem>>, vector<1x32x1xf32>
    %142 = vector.shape_cast %141 : vector<1x32x1xf32> to vector<32x1xf32>
    %143 = vector.broadcast %142 : vector<32x1xf32> to vector<32x128xf32>
    %144 = arith.addf %140, %143 : vector<32x128xf32>
    %145 = math.exp %144 : vector<32x128xf32>
    %146 = arith.negf %145 : vector<32x128xf32>
    %147 = math.exp %146 : vector<32x128xf32>
    %cst_69 = arith.constant 1.000000e+00 : f32
    %148 = vector.broadcast %cst_69 : f32 to vector<32x128xf32>
    %149 = arith.addf %148, %147 : vector<32x128xf32>
    %150 = arith.divf %148, %149 : vector<32x128xf32>
    %cst_70 = arith.constant 1.000000e+01 : f32
    %151 = vector.broadcast %cst_70 : f32 to vector<32x128xf32>
    %152 = arith.mulf %151, %150 : vector<32x128xf32>
    %c1_71 = arith.constant 1 : index
    %c0_72 = arith.constant 0 : index
    %c0_73 = arith.constant 0 : index
    %153 = vector.load %arg8[%c1_71, %c0_72, %c0_73] : memref<3x32x3xf32, #tpu.memory_space<vmem>>, vector<1x32x3xf32>
    %154 = vector.shape_cast %153 : vector<1x32x3xf32> to vector<32x3xf32>
    %cst_74 = arith.constant dense<0.000000e+00> : vector<32x128xf32>
    %155 = tpu.matmul %154, %113, %cst_74 {dimension_numbers = #tpu.dot_dimension_numbers<[1], [0], [0], [1], [0, 0, 1, 1], [], []>, precision = #tpu.contract_precision<fp32>} : vector<32x3xf32>, vector<3x128xf32>, vector<32x128xf32> -> vector<32x128xf32>
    %c1_75 = arith.constant 1 : index
    %c0_76 = arith.constant 0 : index
    %c0_77 = arith.constant 0 : index
    %156 = vector.load %arg9[%c1_75, %c0_76, %c0_77] : memref<3x32x1xf32, #tpu.memory_space<vmem>>, vector<1x32x1xf32>
    %157 = vector.shape_cast %156 : vector<1x32x1xf32> to vector<32x1xf32>
    %158 = vector.broadcast %157 : vector<32x1xf32> to vector<32x128xf32>
    %159 = arith.addf %155, %158 : vector<32x128xf32>
    %160 = arith.negf %159 : vector<32x128xf32>
    %161 = math.exp %160 : vector<32x128xf32>
    %cst_78 = arith.constant 1.000000e+00 : f32
    %162 = vector.broadcast %cst_78 : f32 to vector<32x128xf32>
    %163 = arith.addf %162, %161 : vector<32x128xf32>
    %164 = arith.divf %162, %163 : vector<32x128xf32>
    %c1_79 = arith.constant 1 : index
    %c0_80 = arith.constant 0 : index
    %c0_81 = arith.constant 0 : index
    %165 = vector.load %arg10[%c1_79, %c0_80, %c0_81] : memref<3x32x32xf32, #tpu.memory_space<vmem>>, vector<1x32x32xf32>
    %166 = vector.shape_cast %165 : vector<1x32x32xf32> to vector<32x32xf32>
    %cst_82 = arith.constant dense<0.000000e+00> : vector<32x128xf32>
    %167 = tpu.matmul %166, %164, %cst_82 {dimension_numbers = #tpu.dot_dimension_numbers<[1], [0], [0], [1], [0, 0, 1, 1], [], []>, precision = #tpu.contract_precision<fp32>} : vector<32x32xf32>, vector<32x128xf32>, vector<32x128xf32> -> vector<32x128xf32>
    %c1_83 = arith.constant 1 : index
    %c0_84 = arith.constant 0 : index
    %c0_85 = arith.constant 0 : index
    %168 = vector.load %arg11[%c1_83, %c0_84, %c0_85] : memref<3x32x1xf32, #tpu.memory_space<vmem>>, vector<1x32x1xf32>
    %169 = vector.shape_cast %168 : vector<1x32x1xf32> to vector<32x1xf32>
    %170 = vector.broadcast %169 : vector<32x1xf32> to vector<32x128xf32>
    %171 = arith.addf %167, %170 : vector<32x128xf32>
    %172 = arith.negf %171 : vector<32x128xf32>
    %173 = math.exp %172 : vector<32x128xf32>
    %cst_86 = arith.constant 1.000000e+00 : f32
    %174 = vector.broadcast %cst_86 : f32 to vector<32x128xf32>
    %175 = arith.addf %174, %173 : vector<32x128xf32>
    %176 = arith.divf %174, %175 : vector<32x128xf32>
    %c1_87 = arith.constant 1 : index
    %c0_88 = arith.constant 0 : index
    %c0_89 = arith.constant 0 : index
    %177 = vector.load %arg12[%c1_87, %c0_88, %c0_89] : memref<3x32x32xf32, #tpu.memory_space<vmem>>, vector<1x32x32xf32>
    %178 = vector.shape_cast %177 : vector<1x32x32xf32> to vector<32x32xf32>
    %cst_90 = arith.constant dense<0.000000e+00> : vector<32x128xf32>
    %179 = tpu.matmul %178, %176, %cst_90 {dimension_numbers = #tpu.dot_dimension_numbers<[1], [0], [0], [1], [0, 0, 1, 1], [], []>, precision = #tpu.contract_precision<fp32>} : vector<32x32xf32>, vector<32x128xf32>, vector<32x128xf32> -> vector<32x128xf32>
    %c1_91 = arith.constant 1 : index
    %c0_92 = arith.constant 0 : index
    %c0_93 = arith.constant 0 : index
    %180 = vector.load %arg13[%c1_91, %c0_92, %c0_93] : memref<3x32x1xf32, #tpu.memory_space<vmem>>, vector<1x32x1xf32>
    %181 = vector.shape_cast %180 : vector<1x32x1xf32> to vector<32x1xf32>
    %182 = vector.broadcast %181 : vector<32x1xf32> to vector<32x128xf32>
    %183 = arith.addf %179, %182 : vector<32x128xf32>
    %184 = math.exp %183 : vector<32x128xf32>
    %185 = arith.negf %184 : vector<32x128xf32>
    %186 = math.exp %185 : vector<32x128xf32>
    %cst_94 = arith.constant 1.000000e+00 : f32
    %187 = vector.broadcast %cst_94 : f32 to vector<32x128xf32>
    %188 = arith.addf %187, %186 : vector<32x128xf32>
    %189 = arith.divf %187, %188 : vector<32x128xf32>
    %cst_95 = arith.constant 1.000000e+01 : f32
    %190 = vector.broadcast %cst_95 : f32 to vector<32x128xf32>
    %191 = arith.mulf %190, %189 : vector<32x128xf32>
    %c2 = arith.constant 2 : index
    %c0_96 = arith.constant 0 : index
    %c0_97 = arith.constant 0 : index
    %192 = vector.load %arg8[%c2, %c0_96, %c0_97] : memref<3x32x3xf32, #tpu.memory_space<vmem>>, vector<1x32x3xf32>
    %193 = vector.shape_cast %192 : vector<1x32x3xf32> to vector<32x3xf32>
    %cst_98 = arith.constant dense<0.000000e+00> : vector<32x128xf32>
    %194 = tpu.matmul %193, %113, %cst_98 {dimension_numbers = #tpu.dot_dimension_numbers<[1], [0], [0], [1], [0, 0, 1, 1], [], []>, precision = #tpu.contract_precision<fp32>} : vector<32x3xf32>, vector<3x128xf32>, vector<32x128xf32> -> vector<32x128xf32>
    %c2_99 = arith.constant 2 : index
    %c0_100 = arith.constant 0 : index
    %c0_101 = arith.constant 0 : index
    %195 = vector.load %arg9[%c2_99, %c0_100, %c0_101] : memref<3x32x1xf32, #tpu.memory_space<vmem>>, vector<1x32x1xf32>
    %196 = vector.shape_cast %195 : vector<1x32x1xf32> to vector<32x1xf32>
    %197 = vector.broadcast %196 : vector<32x1xf32> to vector<32x128xf32>
    %198 = arith.addf %194, %197 : vector<32x128xf32>
    %199 = arith.negf %198 : vector<32x128xf32>
    %200 = math.exp %199 : vector<32x128xf32>
    %cst_102 = arith.constant 1.000000e+00 : f32
    %201 = vector.broadcast %cst_102 : f32 to vector<32x128xf32>
    %202 = arith.addf %201, %200 : vector<32x128xf32>
    %203 = arith.divf %201, %202 : vector<32x128xf32>
    %c2_103 = arith.constant 2 : index
    %c0_104 = arith.constant 0 : index
    %c0_105 = arith.constant 0 : index
    %204 = vector.load %arg10[%c2_103, %c0_104, %c0_105] : memref<3x32x32xf32, #tpu.memory_space<vmem>>, vector<1x32x32xf32>
    %205 = vector.shape_cast %204 : vector<1x32x32xf32> to vector<32x32xf32>
    %cst_106 = arith.constant dense<0.000000e+00> : vector<32x128xf32>
    %206 = tpu.matmul %205, %203, %cst_106 {dimension_numbers = #tpu.dot_dimension_numbers<[1], [0], [0], [1], [0, 0, 1, 1], [], []>, precision = #tpu.contract_precision<fp32>} : vector<32x32xf32>, vector<32x128xf32>, vector<32x128xf32> -> vector<32x128xf32>
    %c2_107 = arith.constant 2 : index
    %c0_108 = arith.constant 0 : index
    %c0_109 = arith.constant 0 : index
    %207 = vector.load %arg11[%c2_107, %c0_108, %c0_109] : memref<3x32x1xf32, #tpu.memory_space<vmem>>, vector<1x32x1xf32>
    %208 = vector.shape_cast %207 : vector<1x32x1xf32> to vector<32x1xf32>
    %209 = vector.broadcast %208 : vector<32x1xf32> to vector<32x128xf32>
    %210 = arith.addf %206, %209 : vector<32x128xf32>
    %211 = arith.negf %210 : vector<32x128xf32>
    %212 = math.exp %211 : vector<32x128xf32>
    %cst_110 = arith.constant 1.000000e+00 : f32
    %213 = vector.broadcast %cst_110 : f32 to vector<32x128xf32>
    %214 = arith.addf %213, %212 : vector<32x128xf32>
    %215 = arith.divf %213, %214 : vector<32x128xf32>
    %c2_111 = arith.constant 2 : index
    %c0_112 = arith.constant 0 : index
    %c0_113 = arith.constant 0 : index
    %216 = vector.load %arg12[%c2_111, %c0_112, %c0_113] : memref<3x32x32xf32, #tpu.memory_space<vmem>>, vector<1x32x32xf32>
    %217 = vector.shape_cast %216 : vector<1x32x32xf32> to vector<32x32xf32>
    %cst_114 = arith.constant dense<0.000000e+00> : vector<32x128xf32>
    %218 = tpu.matmul %217, %215, %cst_114 {dimension_numbers = #tpu.dot_dimension_numbers<[1], [0], [0], [1], [0, 0, 1, 1], [], []>, precision = #tpu.contract_precision<fp32>} : vector<32x32xf32>, vector<32x128xf32>, vector<32x128xf32> -> vector<32x128xf32>
    %c2_115 = arith.constant 2 : index
    %c0_116 = arith.constant 0 : index
    %c0_117 = arith.constant 0 : index
    %219 = vector.load %arg13[%c2_115, %c0_116, %c0_117] : memref<3x32x1xf32, #tpu.memory_space<vmem>>, vector<1x32x1xf32>
    %220 = vector.shape_cast %219 : vector<1x32x1xf32> to vector<32x1xf32>
    %221 = vector.broadcast %220 : vector<32x1xf32> to vector<32x128xf32>
    %222 = arith.addf %218, %221 : vector<32x128xf32>
    %223 = vector.broadcast %111 : vector<1x128xf32> to vector<32x128xf32>
    %224 = arith.mulf %191, %223 : vector<32x128xf32>
    %225 = arith.addf %224, %222 : vector<32x128xf32>
    %226 = math.tanh %225 : vector<32x128xf32>
    %227 = arith.mulf %152, %226 : vector<32x128xf32>
    %cst_118 = arith.constant dense<0.000000e+00> : vector<128xf32>
    %228 = vector.multi_reduction <add>, %227, %cst_118 [0] : vector<32x128xf32> to vector<128xf32>
    %229 = vector.shape_cast %228 : vector<128xf32> to vector<1x128xf32>
    %230 = math.tanh %222 : vector<32x128xf32>
    %231 = arith.mulf %152, %230 : vector<32x128xf32>
    %cst_119 = arith.constant dense<0.000000e+00> : vector<128xf32>
    %232 = vector.multi_reduction <add>, %231, %cst_119 [0] : vector<32x128xf32> to vector<128xf32>
    %233 = vector.shape_cast %232 : vector<128xf32> to vector<1x128xf32>
    %234 = arith.subf %229, %233 : vector<1x128xf32>
    %235 = vector.broadcast %234 : vector<1x128xf32> to vector<3x128xf32>
    %236 = arith.mulf %235, %107 : vector<3x128xf32>
    %237 = arith.mulf %236, %236 : vector<3x128xf32>
    %cst_120 = arith.constant dense<0.000000e+00> : vector<128xf32>
    %238 = vector.multi_reduction <add>, %237, %cst_120 [0] : vector<3x128xf32> to vector<128xf32>
    %239 = vector.shape_cast %238 : vector<128xf32> to vector<1x128xf32>
    %240 = math.log %239 : vector<1x128xf32>
    %cst_121 = arith.constant 1.000000e-01 : f32
    %241 = vector.broadcast %cst_121 : f32 to vector<1x128xf32>
    %242 = arith.mulf %241, %240 : vector<1x128xf32>
    %243 = math.exp %242 : vector<1x128xf32>
    %c0_122 = arith.constant 0 : index
    %c0_123 = arith.constant 0 : index
    %244 = vector.load %arg14[%c0_122, %c0_123] : memref<1x128xf32, #tpu.memory_space<vmem>>, vector<1x128xf32>
    tpu.vector_store %arg14[%c0_122, %c0_123], %243 {strides = array<i32>} : memref<1x128xf32, #tpu.memory_space<vmem>>, vector<1x128xf32>,
    return
  }
  func.func @transform_0(%arg0: i32) -> (i32, i32) {
    %c0_i32 = arith.constant 0 : i32
    %c0_i32_0 = arith.constant 0 : i32
    return %c0_i32, %arg0 : i32, i32
  }
  func.func @transform_1(%arg0: i32) -> (i32, i32, i32) {
    %c0_i32 = arith.constant 0 : i32
    %c0_i32_0 = arith.constant 0 : i32
    %c0_i32_1 = arith.constant 0 : i32
    %c0_i32_2 = arith.constant 0 : i32
    return %c0_i32, %c0_i32_0, %c0_i32_1 : i32, i32, i32
  }
  func.func @transform_2(%arg0: i32) -> (i32, i32, i32) {
    %c0_i32 = arith.constant 0 : i32
    %c0_i32_0 = arith.constant 0 : i32
    %c0_i32_1 = arith.constant 0 : i32
    %c0_i32_2 = arith.constant 0 : i32
    return %c0_i32, %c0_i32_0, %c0_i32_1 : i32, i32, i32
  }
  func.func @transform_3(%arg0: i32) -> (i32, i32, i32) {
    %c0_i32 = arith.constant 0 : i32
    %c0_i32_0 = arith.constant 0 : i32
    %c0_i32_1 = arith.constant 0 : i32
    %c0_i32_2 = arith.constant 0 : i32
    return %c0_i32, %c0_i32_0, %c0_i32_1 : i32, i32, i32
  }
  func.func @transform_4(%arg0: i32) -> (i32, i32, i32) {
    %c0_i32 = arith.constant 0 : i32
    %c0_i32_0 = arith.constant 0 : i32
    %c0_i32_1 = arith.constant 0 : i32
    %c0_i32_2 = arith.constant 0 : i32
    return %c0_i32, %c0_i32_0, %c0_i32_1 : i32, i32, i32
  }
  func.func @transform_5(%arg0: i32) -> (i32, i32, i32) {
    %c0_i32 = arith.constant 0 : i32
    %c0_i32_0 = arith.constant 0 : i32
    %c0_i32_1 = arith.constant 0 : i32
    %c0_i32_2 = arith.constant 0 : i32
    return %c0_i32, %c0_i32_0, %c0_i32_1 : i32, i32, i32
  }
  func.func @transform_6(%arg0: i32) -> (i32, i32, i32) {
    %c0_i32 = arith.constant 0 : i32
    %c0_i32_0 = arith.constant 0 : i32
    %c0_i32_1 = arith.constant 0 : i32
    %c0_i32_2 = arith.constant 0 : i32
    return %c0_i32, %c0_i32_0, %c0_i32_1 : i32, i32, i32
  }
  func.func @transform_7(%arg0: i32) -> (i32, i32, i32) {
    %c0_i32 = arith.constant 0 : i32
    %c0_i32_0 = arith.constant 0 : i32
    %c0_i32_1 = arith.constant 0 : i32
    %c0_i32_2 = arith.constant 0 : i32
    return %c0_i32, %c0_i32_0, %c0_i32_1 : i32, i32, i32
  }
  func.func @transform_8(%arg0: i32) -> (i32, i32, i32) {
    %c0_i32 = arith.constant 0 : i32
    %c0_i32_0 = arith.constant 0 : i32
    %c0_i32_1 = arith.constant 0 : i32
    %c0_i32_2 = arith.constant 0 : i32
    return %c0_i32, %c0_i32_0, %c0_i32_1 : i32, i32, i32
  }
  func.func @transform_9(%arg0: i32) -> (i32, i32, i32) {
    %c0_i32 = arith.constant 0 : i32
    %c0_i32_0 = arith.constant 0 : i32
    %c0_i32_1 = arith.constant 0 : i32
    %c0_i32_2 = arith.constant 0 : i32
    return %c0_i32, %c0_i32_0, %c0_i32_1 : i32, i32, i32
  }
  func.func @transform_10(%arg0: i32) -> (i32, i32, i32) {
    %c0_i32 = arith.constant 0 : i32
    %c0_i32_0 = arith.constant 0 : i32
    %c0_i32_1 = arith.constant 0 : i32
    %c0_i32_2 = arith.constant 0 : i32
    return %c0_i32, %c0_i32_0, %c0_i32_1 : i32, i32, i32
  }
  func.func @transform_11(%arg0: i32) -> (i32, i32, i32) {
    %c0_i32 = arith.constant 0 : i32
    %c0_i32_0 = arith.constant 0 : i32
    %c0_i32_1 = arith.constant 0 : i32
    %c0_i32_2 = arith.constant 0 : i32
    return %c0_i32, %c0_i32_0, %c0_i32_1 : i32, i32, i32
  }
  func.func @transform_12(%arg0: i32) -> (i32, i32, i32) {
    %c0_i32 = arith.constant 0 : i32
    %c0_i32_0 = arith.constant 0 : i32
    %c0_i32_1 = arith.constant 0 : i32
    %c0_i32_2 = arith.constant 0 : i32
    return %c0_i32, %c0_i32_0, %c0_i32_1 : i32, i32, i32
  }
  func.func @transform_13(%arg0: i32) -> (i32, i32) {
    %c0_i32 = arith.constant 0 : i32
    %c0_i32_0 = arith.constant 0 : i32
    return %c0_i32, %arg0 : i32, i32
  }
}

</mosaic_0001>

<llo_original>
// kernel: energy_forward.1
$region0: #{energy_forward.1}
  #allocation0 [shape = 'u32[]', space=smem, size = 0x4, offset = 0x4, fixed_abs, tag = 'smem constant byte address 0x4 - core index']
  #allocation1 [shape = 'u32[144,128]{1,0:T(1,128)}', space=vmem, size = 0x12000, scoped, tag = 'internal scratch']
  %s0 = inlined_call_operand.vmem [shape: f32[3,256], index: 0, kind: input, shape index: {}]
  %s1 = inlined_call_operand.vmem [shape: f32[2,16,1], index: 1, kind: input, shape index: {}]
  %s2 = inlined_call_operand.vmem [shape: f32[2,16,1], index: 2, kind: input, shape index: {}]
  %s3 = inlined_call_operand.vmem [shape: f32[2,16,16], index: 3, kind: input, shape index: {}]
  %s4 = inlined_call_operand.vmem [shape: f32[2,16,1], index: 4, kind: input, shape index: {}]
  %s5 = inlined_call_operand.vmem [shape: f32[2,1,16], index: 5, kind: input, shape index: {}]
  %s6 = inlined_call_operand.vmem [shape: f32[2,1,1], index: 6, kind: input, shape index: {}]
  %s7 = inlined_call_operand.vmem [shape: f32[3,32,3], index: 7, kind: input, shape index: {}]
  %s8 = inlined_call_operand.vmem [shape: f32[3,32,1], index: 8, kind: input, shape index: {}]
  %s9 = inlined_call_operand.vmem [shape: f32[3,32,32], index: 9, kind: input, shape index: {}]
  %s10 = inlined_call_operand.vmem [shape: f32[3,32,1], index: 10, kind: input, shape index: {}]
  %s11 = inlined_call_operand.vmem [shape: f32[3,32,32], index: 11, kind: input, shape index: {}]
  %s12 = inlined_call_operand.vmem [shape: f32[3,32,1], index: 12, kind: input, shape index: {}]
  %s13 = inlined_call_operand.hbm [shape: f32[1,256], index: 13, kind: output, shape index: {}]
  %s14 = sld [smem:[#allocation0]]
  $region85: #{energy_forward.1} parent=0
    _
  %s16 = ssub.s32 1, %s14
  %s17 = scalar_select 0, %s16, %s14
  $region1: #{energy_forward.1} parent=0
    #allocation2 [shape = 'u8[1024]{0}', space=vmem, size = 0x400, scoped, tag = 'output window, operand 0']
    #allocation3 [shape = 's32[2]{0}', space=sflag, size = 0x8, scoped, tag = 'scoped memory for energy_forward.1']
    %18 = vsyncpa [#allocation3], 0
    %s19 = scalar_lea.sflag [#allocation3], 1
    %20 = vsyncpa %s19, 0
    loop: start=0, step=1, limit=4
    $region2: #{energy_forward.1} parent=1 // loop_pre_header
      _
    $region3: #{energy_forward.1} parent=1 // loop_header
      %s22 = sphi 0, %s26
      %p23 = scmp.ge.s32.totalorder %s22, 4
      %s32 = sphi 0, %s34
      %s35 = sphi 0, %s32
      %s36 = sphi 0, %s35
      %s52 = sphi 0, %s36
      %s56 = sphi 0, %s56
      %s58 = sphi 0, %s56
      %s59 = sphi 0, %s58
      %s73 = sphi 0, %s59
      %s77 = sphi 0, %s77
      %s79 = sphi 0, %s77
      %s80 = sphi 0, %s79
      %s94 = sphi 0, %s80
      %s98 = sphi 0, %s98
      %s100 = sphi 0, %s98
      %s101 = sphi 0, %s100
      %s115 = sphi 0, %s101
      %s119 = sphi 0, %s119
      %s121 = sphi 0, %s119
      %s122 = sphi 0, %s121
      %s136 = sphi 0, %s122
      %s140 = sphi 0, %s140
      %s142 = sphi 0, %s140
      %s143 = sphi 0, %s142
      %s157 = sphi 0, %s143
      %s161 = sphi 0, %s161
      %s163 = sphi 0, %s161
      %s164 = sphi 0, %s163
      %s178 = sphi 0, %s164
      %s182 = sphi 0, %s182
      %s184 = sphi 0, %s182
      %s185 = sphi 0, %s184
      %s199 = sphi 0, %s185
      %s203 = sphi 0, %s203
      %s205 = sphi 0, %s203
      %s206 = sphi 0, %s205
      %s220 = sphi 0, %s206
      %s224 = sphi 0, %s224
      %s226 = sphi 0, %s224
      %s227 = sphi 0, %s226
      %s241 = sphi 0, %s227
      %s245 = sphi 0, %s245
      %s247 = sphi 0, %s245
      %s248 = sphi 0, %s247
      %s262 = sphi 0, %s248
      %s266 = sphi 0, %s266
      %s268 = sphi 0, %s266
      %s269 = sphi 0, %s268
      %s283 = sphi 0, %s269
      %s287 = sphi 0, %s287
      %s289 = sphi 0, %s287
      %s290 = sphi 0, %s289
      %s304 = sphi 0, %s290
      %s310 = sphi 0, %s312
      %s313 = sphi 0, %s310
      %s314 = sphi 0, %s313
      %s330 = sphi 0, %s314
    $region4: #{energy_forward.1} parent=1 // loop_header_branch
      %25 = sbr.rel (%p23) target = $region8
    $region5: #{energy_forward.1} parent=1 // loop_body
      %s27 = ssub.s32 %s22, 1
      %s28 = ssub.s32 %s22, 2
      %s29 = sadd.s32 %s22, 1
      %s30 = ssub.s32 %s22, %s29
      %p31 = scmp.eq.s32.totalorder %s30, 0
      %s33 = sadd.s32 %s32, 1
      %s34 = scalar_select %p31, %s32, %s33
      %p37 = pneg %p31
      %p38 = scmp.eq.s32.totalorder %s22, 1
      %p39 = por %p37, %p38
      %p40 = scmp.ne.s32.totalorder %s32, %s35
      %p41 = scmp.eq.s32.totalorder %s22, 0
      %p42 = por %p40, %p41
      %p43 = scmp.ne.s32.totalorder %s32, %s35
      %p44 = scmp.eq.s32.totalorder %s27, 1
      %p45 = por %p43, %p44
      %p46 = scmp.ne.s32.totalorder %s35, %s36
      %p47 = scmp.eq.s32.totalorder %s27, 0
      %p48 = por %p46, %p47
      %p49 = scmp.ne.s32.totalorder %s35, %s36
      %p50 = scmp.eq.s32.totalorder %s28, 1
      %p51 = por %p49, %p50
      %p53 = scmp.ne.s32.totalorder %s36, %s52
      %p54 = scmp.eq.s32.totalorder %s28, 0
      %p55 = por %p53, %p54
      %s57 = sadd.s32 %s56, 1
      %p60 = scmp.eq.s32.totalorder %s22, 1
      %p61 = scmp.ne.s32.totalorder %s56, %s58
      %p62 = scmp.eq.s32.totalorder %s22, 0
      %p63 = por %p61, %p62
      %p64 = scmp.ne.s32.totalorder %s56, %s58
      %p65 = scmp.eq.s32.totalorder %s27, 1
      %p66 = por %p64, %p65
      %p67 = scmp.ne.s32.totalorder %s58, %s59
      %p68 = scmp.eq.s32.totalorder %s27, 0
      %p69 = por %p67, %p68
      %p70 = scmp.ne.s32.totalorder %s58, %s59
      %p71 = scmp.eq.s32.totalorder %s28, 1
      %p72 = por %p70, %p71
      %p74 = scmp.ne.s32.totalorder %s59, %s73
      %p75 = scmp.eq.s32.totalorder %s28, 0
      %p76 = por %p74, %p75
      %s78 = sadd.s32 %s77, 1
      %p81 = scmp.eq.s32.totalorder %s22, 1
      %p82 = scmp.ne.s32.totalorder %s77, %s79
      %p83 = scmp.eq.s32.totalorder %s22, 0
      %p84 = por %p82, %p83
      %p85 = scmp.ne.s32.totalorder %s77, %s79
      %p86 = scmp.eq.s32.totalorder %s27, 1
      %p87 = por %p85, %p86
      %p88 = scmp.ne.s32.totalorder %s79, %s80
      %p89 = scmp.eq.s32.totalorder %s27, 0
      %p90 = por %p88, %p89
      %p91 = scmp.ne.s32.totalorder %s79, %s80
      %p92 = scmp.eq.s32.totalorder %s28, 1
      %p93 = por %p91, %p92
      %p95 = scmp.ne.s32.totalorder %s80, %s94
      %p96 = scmp.eq.s32.totalorder %s28, 0
      %p97 = por %p95, %p96
      %s99 = sadd.s32 %s98, 1
      %p102 = scmp.eq.s32.totalorder %s22, 1
      %p103 = scmp.ne.s32.totalorder %s98, %s100
      %p104 = scmp.eq.s32.totalorder %s22, 0
      %p105 = por %p103, %p104
      %p106 = scmp.ne.s32.totalorder %s98, %s100
      %p107 = scmp.eq.s32.totalorder %s27, 1
      %p108 = por %p106, %p107
      %p109 = scmp.ne.s32.totalorder %s100, %s101
      %p110 = scmp.eq.s32.totalorder %s27, 0
      %p111 = por %p109, %p110
      %p112 = scmp.ne.s32.totalorder %s100, %s101
      %p113 = scmp.eq.s32.totalorder %s28, 1
      %p114 = por %p112, %p113
      %p116 = scmp.ne.s32.totalorder %s101, %s115
      %p117 = scmp.eq.s32.totalorder %s28, 0
      %p118 = por %p116, %p117
      %s120 = sadd.s32 %s119, 1
      %p123 = scmp.eq.s32.totalorder %s22, 1
      %p124 = scmp.ne.s32.totalorder %s119, %s121
      %p125 = scmp.eq.s32.totalorder %s22, 0
      %p126 = por %p124, %p125
      %p127 = scmp.ne.s32.totalorder %s119, %s121
      %p128 = scmp.eq.s32.totalorder %s27, 1
      %p129 = por %p127, %p128
      %p130 = scmp.ne.s32.totalorder %s121, %s122
      %p131 = scmp.eq.s32.totalorder %s27, 0
      %p132 = por %p130, %p131
      %p133 = scmp.ne.s32.totalorder %s121, %s122
      %p134 = scmp.eq.s32.totalorder %s28, 1
      %p135 = por %p133, %p134
      %p137 = scmp.ne.s32.totalorder %s122, %s136
      %p138 = scmp.eq.s32.totalorder %s28, 0
      %p139 = por %p137, %p138
      %s141 = sadd.s32 %s140, 1
      %p144 = scmp.eq.s32.totalorder %s22, 1
      %p145 = scmp.ne.s32.totalorder %s140, %s142
      %p146 = scmp.eq.s32.totalorder %s22, 0
      %p147 = por %p145, %p146
      %p148 = scmp.ne.s32.totalorder %s140, %s142
      %p149 = scmp.eq.s32.totalorder %s27, 1
      %p150 = por %p148, %p149
      %p151 = scmp.ne.s32.totalorder %s142, %s143
      %p152 = scmp.eq.s32.totalorder %s27, 0
      %p153 = por %p151, %p152
      %p154 = scmp.ne.s32.totalorder %s142, %s143
      %p155 = scmp.eq.s32.totalorder %s28, 1
      %p156 = por %p154, %p155
      %p158 = scmp.ne.s32.totalorder %s143, %s157
      %p159 = scmp.eq.s32.totalorder %s28, 0
      %p160 = por %p158, %p159
      %s162 = sadd.s32 %s161, 1
      %p165 = scmp.eq.s32.totalorder %s22, 1
      %p166 = scmp.ne.s32.totalorder %s161, %s163
      %p167 = scmp.eq.s32.totalorder %s22, 0
      %p168 = por %p166, %p167
      %p169 = scmp.ne.s32.totalorder %s161, %s163
      %p170 = scmp.eq.s32.totalorder %s27, 1
      %p171 = por %p169, %p170
      %p172 = scmp.ne.s32.totalorder %s163, %s164
      %p173 = scmp.eq.s32.totalorder %s27, 0
      %p174 = por %p172, %p173
      %p175 = scmp.ne.s32.totalorder %s163, %s164
      %p176 = scmp.eq.s32.totalorder %s28, 1
      %p177 = por %p175, %p176
      %p179 = scmp.ne.s32.totalorder %s164, %s178
      %p180 = scmp.eq.s32.totalorder %s28, 0
      %p181 = por %p179, %p180
      %s183 = sadd.s32 %s182, 1
      %p186 = scmp.eq.s32.totalorder %s22, 1
      %p187 = scmp.ne.s32.totalorder %s182, %s184
      %p188 = scmp.eq.s32.totalorder %s22, 0
      %p189 = por %p187, %p188
      %p190 = scmp.ne.s32.totalorder %s182, %s184
      %p191 = scmp.eq.s32.totalorder %s27, 1
      %p192 = por %p190, %p191
      %p193 = scmp.ne.s32.totalorder %s184, %s185
      %p194 = scmp.eq.s32.totalorder %s27, 0
      %p195 = por %p193, %p194
      %p196 = scmp.ne.s32.totalorder %s184, %s185
      %p197 = scmp.eq.s32.totalorder %s28, 1
      %p198 = por %p196, %p197
      %p200 = scmp.ne.s32.totalorder %s185, %s199
      %p201 = scmp.eq.s32.totalorder %s28, 0
      %p202 = por %p200, %p201
      %s204 = sadd.s32 %s203, 1
      %p207 = scmp.eq.s32.totalorder %s22, 1
      %p208 = scmp.ne.s32.totalorder %s203, %s205
      %p209 = scmp.eq.s32.totalorder %s22, 0
      %p210 = por %p208, %p209
      %p211 = scmp.ne.s32.totalorder %s203, %s205
      %p212 = scmp.eq.s32.totalorder %s27, 1
      %p213 = por %p211, %p212
      %p214 = scmp.ne.s32.totalorder %s205, %s206
      %p215 = scmp.eq.s32.totalorder %s27, 0
      %p216 = por %p214, %p215
      %p217 = scmp.ne.s32.totalorder %s205, %s206
      %p218 = scmp.eq.s32.totalorder %s28, 1
      %p219 = por %p217, %p218
      %p221 = scmp.ne.s32.totalorder %s206, %s220
      %p222 = scmp.eq.s32.totalorder %s28, 0
      %p223 = por %p221, %p222
      %s225 = sadd.s32 %s224, 1
      %p228 = scmp.eq.s32.totalorder %s22, 1
      %p229 = scmp.ne.s32.totalorder %s224, %s226
      %p230 = scmp.eq.s32.totalorder %s22, 0
      %p231 = por %p229, %p230
      %p232 = scmp.ne.s32.totalorder %s224, %s226
      %p233 = scmp.eq.s32.totalorder %s27, 1
      %p234 = por %p232, %p233
      %p235 = scmp.ne.s32.totalorder %s226, %s227
      %p236 = scmp.eq.s32.totalorder %s27, 0
      %p237 = por %p235, %p236
      %p238 = scmp.ne.s32.totalorder %s226, %s227
      %p239 = scmp.eq.s32.totalorder %s28, 1
      %p240 = por %p238, %p239
      %p242 = scmp.ne.s32.totalorder %s227, %s241
      %p243 = scmp.eq.s32.totalorder %s28, 0
      %p244 = por %p242, %p243
      %s246 = sadd.s32 %s245, 1
      %p249 = scmp.eq.s32.totalorder %s22, 1
      %p250 = scmp.ne.s32.totalorder %s245, %s247
      %p251 = scmp.eq.s32.totalorder %s22, 0
      %p252 = por %p250, %p251
      %p253 = scmp.ne.s32.totalorder %s245, %s247
      %p254 = scmp.eq.s32.totalorder %s27, 1
      %p255 = por %p253, %p254
      %p256 = scmp.ne.s32.totalorder %s247, %s248
      %p257 = scmp.eq.s32.totalorder %s27, 0
      %p258 = por %p256, %p257
      %p259 = scmp.ne.s32.totalorder %s247, %s248
      %p260 = scmp.eq.s32.totalorder %s28, 1
      %p261 = por %p259, %p260
      %p263 = scmp.ne.s32.totalorder %s248, %s262
      %p264 = scmp.eq.s32.totalorder %s28, 0
      %p265 = por %p263, %p264
      %s267 = sadd.s32 %s266, 1
      %p270 = scmp.eq.s32.totalorder %s22, 1
      %p271 = scmp.ne.s32.totalorder %s266, %s268
      %p272 = scmp.eq.s32.totalorder %s22, 0
      %p273 = por %p271, %p272
      %p274 = scmp.ne.s32.totalorder %s266, %s268
      %p275 = scmp.eq.s32.totalorder %s27, 1
      %p276 = por %p274, %p275
      %p277 = scmp.ne.s32.totalorder %s268, %s269
      %p278 = scmp.eq.s32.totalorder %s27, 0
      %p279 = por %p277, %p278
      %p280 = scmp.ne.s32.totalorder %s268, %s269
      %p281 = scmp.eq.s32.totalorder %s28, 1
      %p282 = por %p280, %p281
      %p284 = scmp.ne.s32.totalorder %s269, %s283
      %p285 = scmp.eq.s32.totalorder %s28, 0
      %p286 = por %p284, %p285
      %s288 = sadd.s32 %s287, 1
      %p291 = scmp.eq.s32.totalorder %s22, 1
      %p292 = scmp.ne.s32.totalorder %s287, %s289
      %p293 = scmp.eq.s32.totalorder %s22, 0
      %p294 = por %p292, %p293
      %p295 = scmp.ne.s32.totalorder %s287, %s289
      %p296 = scmp.eq.s32.totalorder %s27, 1
      %p297 = por %p295, %p296
      %p298 = scmp.ne.s32.totalorder %s289, %s290
      %p299 = scmp.eq.s32.totalorder %s27, 0
      %p300 = por %p298, %p299
      %p301 = scmp.ne.s32.totalorder %s289, %s290
      %p302 = scmp.eq.s32.totalorder %s28, 1
      %p303 = por %p301, %p302
      %p305 = scmp.ne.s32.totalorder %s290, %s304
      %p306 = scmp.eq.s32.totalorder %s28, 0
      %p307 = por %p305, %p306
      %s308 = ssub.s32 %s22, %s29
      %p309 = scmp.eq.s32.totalorder %s308, 0
      %s311 = sadd.s32 %s310, 1
      %s312 = scalar_select %p309, %s310, %s311
      %p315 = pneg %p309
      %p316 = scmp.eq.s32.totalorder %s22, 1
      %p317 = por %p315, %p316
      %p318 = scmp.ne.s32.totalorder %s310, %s313
      %p319 = scmp.eq.s32.totalorder %s22, 0
      %p320 = por %p318, %p319
      %p321 = scmp.ne.s32.totalorder %s310, %s313
      %p322 = scmp.eq.s32.totalorder %s27, 1
      %p323 = por %p321, %p322
      %p324 = scmp.ne.s32.totalorder %s313, %s314
      %p325 = scmp.eq.s32.totalorder %s27, 0
      %p326 = por %p324, %p325
      %p327 = scmp.ne.s32.totalorder %s313, %s314
      %p328 = scmp.eq.s32.totalorder %s28, 1
      %p329 = por %p327, %p328
      %p331 = scmp.ne.s32.totalorder %s314, %s330
      %p332 = scmp.eq.s32.totalorder %s28, 0
      %p333 = por %p331, %p332
      %p334 = scmp.le.s32.totalorder 1, %s22
      %p335 = scmp.lt.s32.totalorder %s22, 3
      %p336 = pnand %p334, %p335
      %p337 = pneg %p336
      // Predicated region
      $region9: #{energy_forward.1} parent=5 // pred_check
        _
      $region10: #{energy_forward.1} parent=5 // pred_check_branch
        %339 = sbr.rel (%p336) target = $region12
      $region11: #{energy_forward.1} parent=5 // pred_region
        %s340 = ssub.s32 %s22, 1
        // Predicated region
        $region13: #{energy_forward.1} parent=11 // pred_check
          %p341 = pneg %p69
        $region14: #{energy_forward.1} parent=11 // pred_check_branch
          %343 = sbr.rel (%p341) target = $region16
        $region15: #{energy_forward.1} parent=11 // pred_region
          _
        $region16: #{energy_forward.1} parent=11 // pred_fallthru
          _
        // Predicated region
        $region17: #{energy_forward.1} parent=11 // pred_check
          %p344 = pneg %p90
        $region18: #{energy_forward.1} parent=11 // pred_check_branch
          %346 = sbr.rel (%p344) target = $region20
        $region19: #{energy_forward.1} parent=11 // pred_region
          _
        $region20: #{energy_forward.1} parent=11 // pred_fallthru
          _
        // Predicated region
        $region21: #{energy_forward.1} parent=11 // pred_check
          %p347 = pneg %p111
        $region22: #{energy_forward.1} parent=11 // pred_check_branch
          %349 = sbr.rel (%p347) target = $region24
        $region23: #{energy_forward.1} parent=11 // pred_region
          _
        $region24: #{energy_forward.1} parent=11 // pred_fallthru
          _
        // Predicated region
        $region25: #{energy_forward.1} parent=11 // pred_check
          %p350 = pneg %p132
        $region26: #{energy_forward.1} parent=11 // pred_check_branch
          %352 = sbr.rel (%p350) target = $region28
        $region27: #{energy_forward.1} parent=11 // pred_region
          _
        $region28: #{energy_forward.1} parent=11 // pred_fallthru
          _
        // Predicated region
        $region29: #{energy_forward.1} parent=11 // pred_check
          %p353 = pneg %p153
        $region30: #{energy_forward.1} parent=11 // pred_check_branch
          %355 = sbr.rel (%p353) target = $region32
        $region31: #{energy_forward.1} parent=11 // pred_region
          _
        $region32: #{energy_forward.1} parent=11 // pred_fallthru
          _
        // Predicated region
        $region33: #{energy_forward.1} parent=11 // pred_check
          %p356 = pneg %p174
        $region34: #{energy_forward.1} parent=11 // pred_check_branch
          %358 = sbr.rel (%p356) target = $region36
        $region35: #{energy_forward.1} parent=11 // pred_region
          _
        $region36: #{energy_forward.1} parent=11 // pred_fallthru
          _
        // Predicated region
        $region37: #{energy_forward.1} parent=11 // pred_check
          %p359 = pneg %p195
        $region38: #{energy_forward.1} parent=11 // pred_check_branch
          %361 = sbr.rel (%p359) target = $region40
        $region39: #{energy_forward.1} parent=11 // pred_region
          _
        $region40: #{energy_forward.1} parent=11 // pred_fallthru
          _
        // Predicated region
        $region41: #{energy_forward.1} parent=11 // pred_check
          %p362 = pneg %p216
        $region42: #{energy_forward.1} parent=11 // pred_check_branch
          %364 = sbr.rel (%p362) target = $region44
        $region43: #{energy_forward.1} parent=11 // pred_region
          _
        $region44: #{energy_forward.1} parent=11 // pred_fallthru
          _
        // Predicated region
        $region45: #{energy_forward.1} parent=11 // pred_check
          %p365 = pneg %p237
        $region46: #{energy_forward.1} parent=11 // pred_check_branch
          %367 = sbr.rel (%p365) target = $region48
        $region47: #{energy_forward.1} parent=11 // pred_region
          _
        $region48: #{energy_forward.1} parent=11 // pred_fallthru
          _
        // Predicated region
        $region49: #{energy_forward.1} parent=11 // pred_check
          %p368 = pneg %p258
        $region50: #{energy_forward.1} parent=11 // pred_check_branch
          %370 = sbr.rel (%p368) target = $region52
        $region51: #{energy_forward.1} parent=11 // pred_region
          _
        $region52: #{energy_forward.1} parent=11 // pred_fallthru
          _
        // Predicated region
        $region53: #{energy_forward.1} parent=11 // pred_check
          %p371 = pneg %p279
        $region54: #{energy_forward.1} parent=11 // pred_check_branch
          %373 = sbr.rel (%p371) target = $region56
        $region55: #{energy_forward.1} parent=11 // pred_region
          _
        $region56: #{energy_forward.1} parent=11 // pred_fallthru
          _
        // Predicated region
        $region57: #{energy_forward.1} parent=11 // pred_check
          %p374 = pneg %p300
        $region58: #{energy_forward.1} parent=11 // pred_check_branch
          %376 = sbr.rel (%p374) target = $region60
        $region59: #{energy_forward.1} parent=11 // pred_region
          _
        $region60: #{energy_forward.1} parent=11 // pred_fallthru
          _
      $region12: #{energy_forward.1} parent=5 // pred_fallthru
        _
      %p377 = scmp.lt.s32.totalorder %s22, 2
      // Predicated region
      $region61: #{energy_forward.1} parent=5 // pred_check
        %p378 = pneg %p377
      $region62: #{energy_forward.1} parent=5 // pred_check_branch
        %380 = sbr.rel (%p378) target = $region64
      $region63: #{energy_forward.1} parent=5 // pred_region
        // Predicated region
        $region65: #{energy_forward.1} parent=63 // pred_check
          %p381 = pneg %p42
        $region66: #{energy_forward.1} parent=63 // pred_check_branch
          %383 = sbr.rel (%p381) target = $region68
        $region67: #{energy_forward.1} parent=63 // pred_region
          %p384 = scmp.lt.s32.totalorder %s22, 1
          %s385 = scalar_select %p384, %s22, 1
          %s386 = smul.addr %s385, 4
          %s387 = scalar_lea.vmem %s0, %s386
        $region68: #{energy_forward.1} parent=63 // pred_fallthru
          _
      $region64: #{energy_forward.1} parent=5 // pred_fallthru
        _
      %p388 = scmp.le.s32.totalorder 1, %s22
      %p389 = scmp.lt.s32.totalorder %s22, 3
      %p390 = pnand %p388, %p389
      %p391 = pneg %p390
      // Predicated region
      $region69: #{energy_forward.1} parent=5 // pred_check
        _
      $region70: #{energy_forward.1} parent=5 // pred_check_branch
        %393 = sbr.rel (%p390) target = $region72
      $region71: #{energy_forward.1} parent=5 // pred_region
        %s394 = ssub.s32 %s22, 1
        %p395 = scmp.lt.s32.totalorder %s27, 1
        %s396 = scalar_select %p395, %s27, 1
        %s397 = smul.addr %s396, 4
        %s398 = scalar_lea.vmem %s0, %s397
        %p399 = pneg %p48
        %p400 = pneg %p45
        %p401 = pneg %p69
        %p402 = pneg %p66
        %p403 = pneg %p90
        %p404 = pneg %p87
        %p405 = pneg %p111
        %p406 = pneg %p108
        %p407 = pneg %p132
        %p408 = pneg %p129
        %p409 = pneg %p153
        %p410 = pneg %p150
        %p411 = pneg %p174
        %p412 = pneg %p171
        %p413 = pneg %p195
        %p414 = pneg %p192
        %p415 = pneg %p216
        %p416 = pneg %p213
        %p417 = pneg %p237
        %p418 = pneg %p234
        %p419 = pneg %p258
        %p420 = pneg %p255
        %p421 = pneg %p279
        %p422 = pneg %p276
        %p423 = pneg %p300
        %p424 = pneg %p297
        %p425 = pneg %p326
        %p426 = pneg %p323
        %s427 = sand.u32 %s313, 1
        %s428 = scalar_lea.sflag [#allocation3], %s427
        %s429 = sand.u32 %s313, 1
        %s430 = scalar_lea.vmem [#allocation2], %s429
        %p431 = scmp.lt.s32.totalorder %s27, 1
        %s432 = scalar_select %p431, %s27, 1
        %s433 = smul.addr %s432, 4
        %s434 = scalar_lea.vmem %s0, %s433
        %v435 = vld [vmem:[%s434] sm:$0x7]
        %v436 = vmul.f32 %v435, %v435
        %v438 = vrot.slane %v436, 1
        %v440 = vadd.f32 %v436, %v438
        %v441 = vrsqrt.pop %v440
        %v442 = vmul.f32 %v440, %v441
        %vm443 = vcmp.eq.f32.partialorder %v440, inf
        %v444 = vsel %vm443, %v440, %v442
        %vm445 = vcmp.eq.f32.partialorder %v440, 0.0
        %v446 = vand.u32 %v440, 2147483648
        %v447 = vsel %vm445, %v446, %v444
        %v448 = vld [vmem:[%s1] sm:$0xff]
        %v449 = vld [vmem:[%s1 + $0x8] sm:$0xff]
        %451 = vset.pattern.permute.xlu0 0
        %452 = vperm.xlu0 %451, %v448
        %v453 = vpop.permute.xlu0 %452
        %456 = vset.pattern.permute.xlu0 0
        %457 = vperm.xlu0 %456, %v449
        %v458 = vpop.permute.xlu0 %457
        %v460 = vlaneseq
        %v461 = vshrl.u32 %v460, 7
        %v462 = vsub.s32 0, %v461
        %v463 = vrot.slane %v447, %v462
        %v464 = vmul.f32 %v453, %v463
        %v465 = vmul.f32 %v458, %v463
        %v466 = vld [vmem:[%s2] sm:$0xff]
        %v467 = vld [vmem:[%s2 + $0x8] sm:$0xff]
        %469 = vset.pattern.permute.xlu0 0
        %470 = vperm.xlu0 %469, %v466
        %v471 = vpop.permute.xlu0 %470
        %474 = vset.pattern.permute.xlu0 0
        %475 = vperm.xlu0 %474, %v467
        %v476 = vpop.permute.xlu0 %475
        %v478 = vadd.f32 %v464, %v471
        %v479 = vadd.f32 %v465, %v476
        %v480 = vxor.u32 %v478, 2147483648
        %v481 = vxor.u32 %v479, 2147483648
        %v482 = vmul.f32 %v480, 1.442695
        %v483 = vpow.pop %v482
        %v484 = vmul.f32 %v481, 1.442695
        %v485 = vpow.pop %v484
        %v486 = vadd.f32 %v483, 1.0
        %v487 = vadd.f32 %v485, 1.0
        %v488 = vrcp.pop %v486
        %v489 = vmul.f32 1.0, %v488
        %v490 = vrcp.pop %v487
        %v491 = vmul.f32 1.0, %v490
        %v492 = vld [vmem:[%s3] sm:$0xff]
        %v493 = vld [vmem:[%s3 + $0x8] sm:$0xff]
        %v494 = vld [vmem:[%s4] sm:$0xff]
        %v495 = vld [vmem:[%s4 + $0x8] sm:$0xff]
        %497 = vset.pattern.permute.xlu0 0
        %498 = vperm.xlu0 %497, %v494
        %v499 = vpop.permute.xlu0 %498
        %502 = vset.pattern.permute.xlu0 0
        %503 = vperm.xlu0 %502, %v495
        %v504 = vpop.permute.xlu0 %503
        %vm506 = vcmask 130048
        %v508 = vsel %vm506, %v492, 0
        %v511 = vsel %vm506, %v493, 0
        %513 = vmatprep.subr.mxu0 0.0
        %v514 = vand.u32 %v489, 4294901760
        %515 = vmatpush1.msra.mxu0 %v514
        %516 = vmatprep.subr.mxu0 0.0
        %v517 = vand.u32 %v491, 4294901760
        %518 = vmatpush1.msra.mxu0 %v517
        %519 = vmatprep.subr.mxu0 0.0
        %520 = vmatpush1.msra.mxu0 0.0
        %521 = vmatprep.subr.mxu0 0.0
        %522 = vmatpush1.msra.mxu0 0.0
        %523 = vmatprep.subr.mxu0 0.0
        %524 = vmatpush1.msra.mxu0 0.0
        %525 = vmatprep.subr.mxu0 0.0
        %526 = vmatpush1.msra.mxu0 0.0
        %527 = vmatprep.subr.mxu0 0.0
        %528 = vmatpush1.msra.mxu0 0.0
        %529 = vmatprep.subr.mxu0 0.0
        %530 = vmatpush1.msra.mxu0 0.0
        %531 = vmatprep.subr.mxu0 0.0
        %532 = vmatpush1.msra.mxu0 0.0
        %533 = vmatprep.subr.mxu0 0.0
        %534 = vmatpush1.msra.mxu0 0.0
        %535 = vmatprep.subr.mxu0 0.0
        %536 = vmatpush1.msra.mxu0 0.0
        %537 = vmatprep.subr.mxu0 0.0
        %538 = vmatpush1.msra.mxu0 0.0
        %539 = vmatprep.subr.mxu0 0.0
        %540 = vmatpush1.msra.mxu0 0.0
        %541 = vmatprep.subr.mxu0 0.0
        %542 = vmatpush1.msra.mxu0 0.0
        %543 = vmatprep.subr.mxu0 0.0
        %544 = vmatpush1.msra.mxu0 0.0
        %545 = vmatprep.subr.mxu0 0.0
        %546 = vmatpush1.msra.mxu0 0.0
        %547 = vmatprep.subr.mxu0 0.0
        %548 = vmatpush1.msra.mxu0 0.0
        %549 = vmatprep.subr.mxu0 0.0
        %550 = vmatpush1.msra.mxu0 0.0
        %551 = vmatprep.subr.mxu0 0.0
        %552 = vmatpush1.msra.mxu0 0.0
        %553 = vmatprep.subr.mxu0 0.0
        %554 = vmatpush1.msra.mxu0 0.0
        %555 = vmatprep.subr.mxu0 0.0
        %556 = vmatpush1.msra.mxu0 0.0
        %557 = vmatprep.subr.mxu0 0.0
        %558 = vmatpush1.msra.mxu0 0.0
        %559 = vmatprep.subr.mxu0 0.0
        %560 = vmatpush1.msra.mxu0 0.0
        %561 = vmatprep.subr.mxu0 0.0
        %562 = vmatpush1.msra.mxu0 0.0
        %563 = vmatprep.subr.mxu0 0.0
        %564 = vmatpush1.msra.mxu0 0.0
        %565 = vmatprep.subr.mxu0 0.0
        %566 = vmatpush1.msra.mxu0 0.0
        %567 = vmatprep.subr.mxu0 0.0
        %568 = vmatpush1.msra.mxu0 0.0
        %569 = vmatprep.subr.mxu0 0.0
        %570 = vmatpush1.msra.mxu0 0.0
        %571 = vmatprep.subr.mxu0 0.0
        %572 = vmatpush1.msra.mxu0 0.0
        %573 = vmatprep.subr.mxu0 0.0
        %574 = vmatpush1.msra.mxu0 0.0
        %575 = vmatprep.subr.mxu0 0.0
        %576 = vmatpush1.msra.mxu0 0.0
        %577 = vmatprep.subr.mxu0 0.0
        %578 = vmatpush1.msra.mxu0 0.0
        %579 = vmatprep.mubr.f32.mxu0 0.0
        %v580 = vand.u32 %v508, 4294901760
        %v581 = vsub.f32 %v508, %v580
        %v582 = vand.u32 %v581, 4294901760
        %v583 = vsub.f32 %v581, %v582
        %v584 = vand.u32 %v583, 4294901760
        %585 = vmatmul.mubr.f32.gmra.mrb[0].mxu0 %v584
        %v586 = vpop.f32.mrb[0].mxu0
        %v587 = vadd.f32 %v499, %v586
        %v588 = vpop.f32.mrb[0].mxu0
        %589 = vmatprep.mubr.f32.mxu0 0.0
        %v590 = vand.u32 %v511, 4294901760
        %v591 = vsub.f32 %v511, %v590
        %v592 = vand.u32 %v591, 4294901760
        %v593 = vsub.f32 %v591, %v592
        %v594 = vand.u32 %v593, 4294901760
        %595 = vmatmul.mubr.f32.gmra.mrb[0].mxu0 %v594
        %v596 = vpop.f32.mrb[0].mxu0
        %v597 = vadd.f32 %v504, %v596
        %v598 = vpop.f32.mrb[0].mxu0
        %599 = vdwg.mxu0
        %600 = vmatprep.subr.mxu0 0.0
        %v601 = vand.u32 %v489, 4294901760
        %v602 = vsub.f32 %v489, %v601
        %v603 = vand.u32 %v602, 4294901760
        %v604 = vsub.f32 %v602, %v603
        %v605 = vand.u32 %v604, 4294901760
        %606 = vmatpush1.msra.mxu0 %v605
        %607 = vmatprep.subr.mxu0 0.0
        %v608 = vand.u32 %v491, 4294901760
        %v609 = vsub.f32 %v491, %v608
        %v610 = vand.u32 %v609, 4294901760
        %v611 = vsub.f32 %v609, %v610
        %v612 = vand.u32 %v611, 4294901760
        %613 = vmatpush1.msra.mxu0 %v612
        %614 = vmatprep.subr.mxu0 0.0
        %615 = vmatpush1.msra.mxu0 0.0
        %616 = vmatprep.subr.mxu0 0.0
        %617 = vmatpush1.msra.mxu0 0.0
        %618 = vmatprep.subr.mxu0 0.0
        %619 = vmatpush1.msra.mxu0 0.0
        %620 = vmatprep.subr.mxu0 0.0
        %621 = vmatpush1.msra.mxu0 0.0
        %622 = vmatprep.subr.mxu0 0.0
        %623 = vmatpush1.msra.mxu0 0.0
        %624 = vmatprep.subr.mxu0 0.0
        %625 = vmatpush1.msra.mxu0 0.0
        %626 = vmatprep.subr.mxu0 0.0
        %627 = vmatpush1.msra.mxu0 0.0
        %628 = vmatprep.subr.mxu0 0.0
        %629 = vmatpush1.msra.mxu0 0.0
        %630 = vmatprep.subr.mxu0 0.0
        %631 = vmatpush1.msra.mxu0 0.0
        %632 = vmatprep.subr.mxu0 0.0
        %633 = vmatpush1.msra.mxu0 0.0
        %634 = vmatprep.subr.mxu0 0.0
        %635 = vmatpush1.msra.mxu0 0.0
        %636 = vmatprep.subr.mxu0 0.0
        %637 = vmatpush1.msra.mxu0 0.0
        %638 = vmatprep.subr.mxu0 0.0
        %639 = vmatpush1.msra.mxu0 0.0
        %640 = vmatprep.subr.mxu0 0.0
        %641 = vmatpush1.msra.mxu0 0.0
        %642 = vmatprep.subr.mxu0 0.0
        %643 = vmatpush1.msra.mxu0 0.0
        %644 = vmatprep.subr.mxu0 0.0
        %645 = vmatpush1.msra.mxu0 0.0
        %646 = vmatprep.subr.mxu0 0.0
        %647 = vmatpush1.msra.mxu0 0.0
        %648 = vmatprep.subr.mxu0 0.0
        %649 = vmatpush1.msra.mxu0 0.0
        %650 = vmatprep.subr.mxu0 0.0
        %651 = vmatpush1.msra.mxu0 0.0
        %652 = vmatprep.subr.mxu0 0.0
        %653 = vmatpush1.msra.mxu0 0.0
        %654 = vmatprep.subr.mxu0 0.0
        %655 = vmatpush1.msra.mxu0 0.0
        %656 = vmatprep.subr.mxu0 0.0
        %657 = vmatpush1.msra.mxu0 0.0
        %658 = vmatprep.subr.mxu0 0.0
        %659 = vmatpush1.msra.mxu0 0.0
        %660 = vmatprep.subr.mxu0 0.0
        %661 = vmatpush1.msra.mxu0 0.0
        %662 = vmatprep.subr.mxu0 0.0
        %663 = vmatpush1.msra.mxu0 0.0
        %664 = vmatprep.subr.mxu0 0.0
        %665 = vmatpush1.msra.mxu0 0.0
        %666 = vmatprep.subr.mxu0 0.0
        %667 = vmatpush1.msra.mxu0 0.0
        %668 = vmatprep.subr.mxu0 0.0
        %669 = vmatpush1.msra.mxu0 0.0
        %670 = vmatprep.subr.mxu0 0.0
        %671 = vmatpush1.msra.mxu0 0.0
        %672 = vmatprep.subr.mxu0 0.0
        %673 = vmatpush1.msra.mxu0 0.0
        %674 = vmatprep.mubr.f32.mxu0 0.0
        %v675 = vand.u32 %v508, 4294901760
        %676 = vmatmul.mubr.f32.gmra.mrb[0].mxu0 %v675
        %v677 = vpop.f32.mrb[0].mxu0
        %v678 = vadd.f32 %v587, %v677
        %v679 = vpop.f32.mrb[0].mxu0
        %680 = vmatprep.mubr.f32.mxu0 0.0
        %v681 = vand.u32 %v511, 4294901760
        %682 = vmatmul.mubr.f32.gmra.mrb[0].mxu0 %v681
        %v683 = vpop.f32.mrb[0].mxu0
        %v684 = vadd.f32 %v597, %v683
        %v685 = vpop.f32.mrb[0].mxu0
        %686 = vdwg.mxu0
        %687 = vmatprep.subr.mxu0 0.0
        %v688 = vand.u32 %v489, 4294901760
        %v689 = vsub.f32 %v489, %v688
        %690 = vmatpush1.msra.mxu0 %v689
        %691 = vmatprep.subr.mxu0 0.0
        %v692 = vand.u32 %v491, 4294901760
        %v693 = vsub.f32 %v491, %v692
        %694 = vmatpush1.msra.mxu0 %v693
        %695 = vmatprep.subr.mxu0 0.0
        %696 = vmatpush1.msra.mxu0 0.0
        %697 = vmatprep.subr.mxu0 0.0
        %698 = vmatpush1.msra.mxu0 0.0
        %699 = vmatprep.subr.mxu0 0.0
        %700 = vmatpush1.msra.mxu0 0.0
        %701 = vmatprep.subr.mxu0 0.0
        %702 = vmatpush1.msra.mxu0 0.0
        %703 = vmatprep.subr.mxu0 0.0
        %704 = vmatpush1.msra.mxu0 0.0
        %705 = vmatprep.subr.mxu0 0.0
        %706 = vmatpush1.msra.mxu0 0.0
        %707 = vmatprep.subr.mxu0 0.0
        %708 = vmatpush1.msra.mxu0 0.0
        %709 = vmatprep.subr.mxu0 0.0
        %710 = vmatpush1.msra.mxu0 0.0
        %711 = vmatprep.subr.mxu0 0.0
        %712 = vmatpush1.msra.mxu0 0.0
        %713 = vmatprep.subr.mxu0 0.0
        %714 = vmatpush1.msra.mxu0 0.0
        %715 = vmatprep.subr.mxu0 0.0
        %716 = vmatpush1.msra.mxu0 0.0
        %717 = vmatprep.subr.mxu0 0.0
        %718 = vmatpush1.msra.mxu0 0.0
        %719 = vmatprep.subr.mxu0 0.0
        %720 = vmatpush1.msra.mxu0 0.0
        %721 = vmatprep.subr.mxu0 0.0
        %722 = vmatpush1.msra.mxu0 0.0
        %723 = vmatprep.subr.mxu0 0.0
        %724 = vmatpush1.msra.mxu0 0.0
        %725 = vmatprep.subr.mxu0 0.0
        %726 = vmatpush1.msra.mxu0 0.0
        %727 = vmatprep.subr.mxu0 0.0
        %728 = vmatpush1.msra.mxu0 0.0
        %729 = vmatprep.subr.mxu0 0.0
        %730 = vmatpush1.msra.mxu0 0.0
        %731 = vmatprep.subr.mxu0 0.0
        %732 = vmatpush1.msra.mxu0 0.0
        %733 = vmatprep.subr.mxu0 0.0
        %734 = vmatpush1.msra.mxu0 0.0
        %735 = vmatprep.subr.mxu0 0.0
        %736 = vmatpush1.msra.mxu0 0.0
        %737 = vmatprep.subr.mxu0 0.0
        %738 = vmatpush1.msra.mxu0 0.0
        %739 = vmatprep.subr.mxu0 0.0
        %740 = vmatpush1.msra.mxu0 0.0
        %741 = vmatprep.subr.mxu0 0.0
        %742 = vmatpush1.msra.mxu0 0.0
        %743 = vmatprep.subr.mxu0 0.0
        %744 = vmatpush1.msra.mxu0 0.0
        %745 = vmatprep.subr.mxu0 0.0
        %746 = vmatpush1.msra.mxu0 0.0
        %747 = vmatprep.subr.mxu0 0.0
        %748 = vmatpush1.msra.mxu0 0.0
        %749 = vmatprep.subr.mxu0 0.0
        %750 = vmatpush1.msra.mxu0 0.0
        %751 = vmatprep.subr.mxu0 0.0
        %752 = vmatpush1.msra.mxu0 0.0
        %753 = vmatprep.subr.mxu0 0.0
        %754 = vmatpush1.msra.mxu0 0.0
        %755 = vmatprep.mubr.f32.mxu0 0.0
        %v756 = vand.u32 %v508, 4294901760
        %v757 = vsub.f32 %v508, %v756
        %758 = vmatmul.mubr.f32.gmra.mrb[0].mxu0 %v757
        %v759 = vpop.f32.mrb[0].mxu0
        %v760 = vadd.f32 %v678, %v759
        %v761 = vpop.f32.mrb[0].mxu0
        %762 = vmatprep.mubr.f32.mxu0 0.0
        %v763 = vand.u32 %v511, 4294901760
        %v764 = vsub.f32 %v511, %v763
        %765 = vmatmul.mubr.f32.gmra.mrb[0].mxu0 %v764
        %v766 = vpop.f32.mrb[0].mxu0
        %v767 = vadd.f32 %v684, %v766
        %v768 = vpop.f32.mrb[0].mxu0
        %769 = vdwg.mxu0
        %770 = vmatprep.subr.mxu0 0.0
        %v771 = vand.u32 %v489, 4294901760
        %772 = vmatpush1.msra.mxu0 %v771
        %773 = vmatprep.subr.mxu0 0.0
        %v774 = vand.u32 %v491, 4294901760
        %775 = vmatpush1.msra.mxu0 %v774
        %776 = vmatprep.subr.mxu0 0.0
        %777 = vmatpush1.msra.mxu0 0.0
        %778 = vmatprep.subr.mxu0 0.0
        %779 = vmatpush1.msra.mxu0 0.0
        %780 = vmatprep.subr.mxu0 0.0
        %781 = vmatpush1.msra.mxu0 0.0
        %782 = vmatprep.subr.mxu0 0.0
        %783 = vmatpush1.msra.mxu0 0.0
        %784 = vmatprep.subr.mxu0 0.0
        %785 = vmatpush1.msra.mxu0 0.0
        %786 = vmatprep.subr.mxu0 0.0
        %787 = vmatpush1.msra.mxu0 0.0
        %788 = vmatprep.subr.mxu0 0.0
        %789 = vmatpush1.msra.mxu0 0.0
        %790 = vmatprep.subr.mxu0 0.0
        %791 = vmatpush1.msra.mxu0 0.0
        %792 = vmatprep.subr.mxu0 0.0
        %793 = vmatpush1.msra.mxu0 0.0
        %794 = vmatprep.subr.mxu0 0.0
        %795 = vmatpush1.msra.mxu0 0.0
        %796 = vmatprep.subr.mxu0 0.0
        %797 = vmatpush1.msra.mxu0 0.0
        %798 = vmatprep.subr.mxu0 0.0
        %799 = vmatpush1.msra.mxu0 0.0
        %800 = vmatprep.subr.mxu0 0.0
        %801 = vmatpush1.msra.mxu0 0.0
        %802 = vmatprep.subr.mxu0 0.0
        %803 = vmatpush1.msra.mxu0 0.0
        %804 = vmatprep.subr.mxu0 0.0
        %805 = vmatpush1.msra.mxu0 0.0
        %806 = vmatprep.subr.mxu0 0.0
        %807 = vmatpush1.msra.mxu0 0.0
        %808 = vmatprep.subr.mxu0 0.0
        %809 = vmatpush1.msra.mxu0 0.0
        %810 = vmatprep.subr.mxu0 0.0
        %811 = vmatpush1.msra.mxu0 0.0
        %812 = vmatprep.subr.mxu0 0.0
        %813 = vmatpush1.msra.mxu0 0.0
        %814 = vmatprep.subr.mxu0 0.0
        %815 = vmatpush1.msra.mxu0 0.0
        %816 = vmatprep.subr.mxu0 0.0
        %817 = vmatpush1.msra.mxu0 0.0
        %818 = vmatprep.subr.mxu0 0.0
        %819 = vmatpush1.msra.mxu0 0.0
        %820 = vmatprep.subr.mxu0 0.0
        %821 = vmatpush1.msra.mxu0 0.0
        %822 = vmatprep.subr.mxu0 0.0
        %823 = vmatpush1.msra.mxu0 0.0
        %824 = vmatprep.subr.mxu0 0.0
        %825 = vmatpush1.msra.mxu0 0.0
        %826 = vmatprep.subr.mxu0 0.0
        %827 = vmatpush1.msra.mxu0 0.0
        %828 = vmatprep.subr.mxu0 0.0
        %829 = vmatpush1.msra.mxu0 0.0
        %830 = vmatprep.subr.mxu0 0.0
        %831 = vmatpush1.msra.mxu0 0.0
        %832 = vmatprep.subr.mxu0 0.0
        %833 = vmatpush1.msra.mxu0 0.0
        %834 = vmatprep.subr.mxu0 0.0
        %835 = vmatpush1.msra.mxu0 0.0
        %836 = vmatprep.mubr.f32.mxu0 0.0
        %v837 = vand.u32 %v508, 4294901760
        %v838 = vsub.f32 %v508, %v837
        %v839 = vand.u32 %v838, 4294901760
        %840 = vmatmul.mubr.f32.gmra.mrb[0].mxu0 %v839
        %v841 = vpop.f32.mrb[0].mxu0
        %v842 = vadd.f32 %v760, %v841
        %v843 = vpop.f32.mrb[0].mxu0
        %844 = vmatprep.mubr.f32.mxu0 0.0
        %v845 = vand.u32 %v511, 4294901760
        %v846 = vsub.f32 %v511, %v845
        %v847 = vand.u32 %v846, 4294901760
        %848 = vmatmul.mubr.f32.gmra.mrb[0].mxu0 %v847
        %v849 = vpop.f32.mrb[0].mxu0
        %v850 = vadd.f32 %v767, %v849
        %v851 = vpop.f32.mrb[0].mxu0
        %852 = vdwg.mxu0
        %853 = vmatprep.subr.mxu0 0.0
        %v854 = vand.u32 %v489, 4294901760
        %v855 = vsub.f32 %v489, %v854
        %v856 = vand.u32 %v855, 4294901760
        %857 = vmatpush1.msra.mxu0 %v856
        %858 = vmatprep.subr.mxu0 0.0
        %v859 = vand.u32 %v491, 4294901760
        %v860 = vsub.f32 %v491, %v859
        %v861 = vand.u32 %v860, 4294901760
        %862 = vmatpush1.msra.mxu0 %v861
        %863 = vmatprep.subr.mxu0 0.0
        %864 = vmatpush1.msra.mxu0 0.0
        %865 = vmatprep.subr.mxu0 0.0
        %866 = vmatpush1.msra.mxu0 0.0
        %867 = vmatprep.subr.mxu0 0.0
        %868 = vmatpush1.msra.mxu0 0.0
        %869 = vmatprep.subr.mxu0 0.0
        %870 = vmatpush1.msra.mxu0 0.0
        %871 = vmatprep.subr.mxu0 0.0
        %872 = vmatpush1.msra.mxu0 0.0
        %873 = vmatprep.subr.mxu0 0.0
        %874 = vmatpush1.msra.mxu0 0.0
        %875 = vmatprep.subr.mxu0 0.0
        %876 = vmatpush1.msra.mxu0 0.0
        %877 = vmatprep.subr.mxu0 0.0
        %878 = vmatpush1.msra.mxu0 0.0
        %879 = vmatprep.subr.mxu0 0.0
        %880 = vmatpush1.msra.mxu0 0.0
        %881 = vmatprep.subr.mxu0 0.0
        %882 = vmatpush1.msra.mxu0 0.0
        %883 = vmatprep.subr.mxu0 0.0
        %884 = vmatpush1.msra.mxu0 0.0
        %885 = vmatprep.subr.mxu0 0.0
        %886 = vmatpush1.msra.mxu0 0.0
        %887 = vmatprep.subr.mxu0 0.0
        %888 = vmatpush1.msra.mxu0 0.0
        %889 = vmatprep.subr.mxu0 0.0
        %890 = vmatpush1.msra.mxu0 0.0
        %891 = vmatprep.subr.mxu0 0.0
        %892 = vmatpush1.msra.mxu0 0.0
        %893 = vmatprep.subr.mxu0 0.0
        %894 = vmatpush1.msra.mxu0 0.0
        %895 = vmatprep.subr.mxu0 0.0
        %896 = vmatpush1.msra.mxu0 0.0
        %897 = vmatprep.subr.mxu0 0.0
        %898 = vmatpush1.msra.mxu0 0.0
        %899 = vmatprep.subr.mxu0 0.0
        %900 = vmatpush1.msra.mxu0 0.0
        %901 = vmatprep.subr.mxu0 0.0
        %902 = vmatpush1.msra.mxu0 0.0
        %903 = vmatprep.subr.mxu0 0.0
        %904 = vmatpush1.msra.mxu0 0.0
        %905 = vmatprep.subr.mxu0 0.0
        %906 = vmatpush1.msra.mxu0 0.0
        %907 = vmatprep.subr.mxu0 0.0
        %908 = vmatpush1.msra.mxu0 0.0
        %909 = vmatprep.subr.mxu0 0.0
        %910 = vmatpush1.msra.mxu0 0.0
        %911 = vmatprep.subr.mxu0 0.0
        %912 = vmatpush1.msra.mxu0 0.0
        %913 = vmatprep.subr.mxu0 0.0
        %914 = vmatpush1.msra.mxu0 0.0
        %915 = vmatprep.subr.mxu0 0.0
        %916 = vmatpush1.msra.mxu0 0.0
        %917 = vmatprep.subr.mxu0 0.0
        %918 = vmatpush1.msra.mxu0 0.0
        %919 = vmatprep.subr.mxu0 0.0
        %920 = vmatpush1.msra.mxu0 0.0
        %921 = vmatprep.subr.mxu0 0.0
        %922 = vmatpush1.msra.mxu0 0.0
        %923 = vmatprep.mubr.f32.mxu0 0.0
        %v924 = vand.u32 %v508, 4294901760
        %925 = vmatmul.mubr.f32.gmra.mrb[0].mxu0 %v924
        %v926 = vpop.f32.mrb[0].mxu0
        %v927 = vadd.f32 %v842, %v926
        %v928 = vpop.f32.mrb[0].mxu0
        %929 = vmatprep.mubr.f32.mxu0 0.0
        %v930 = vand.u32 %v511, 4294901760
        %931 = vmatmul.mubr.f32.gmra.mrb[0].mxu0 %v930
        %v932 = vpop.f32.mrb[0].mxu0
        %v933 = vadd.f32 %v850, %v932
        %v934 = vpop.f32.mrb[0].mxu0
        %935 = vdwg.mxu0
        %936 = vmatprep.subr.mxu0 0.0
        %v937 = vand.u32 %v489, 4294901760
        %938 = vmatpush1.msra.mxu0 %v937
        %939 = vmatprep.subr.mxu0 0.0
        %v940 = vand.u32 %v491, 4294901760
        %941 = vmatpush1.msra.mxu0 %v940
        %942 = vmatprep.subr.mxu0 0.0
        %943 = vmatpush1.msra.mxu0 0.0
        %944 = vmatprep.subr.mxu0 0.0
        %945 = vmatpush1.msra.mxu0 0.0
        %946 = vmatprep.subr.mxu0 0.0
        %947 = vmatpush1.msra.mxu0 0.0
        %948 = vmatprep.subr.mxu0 0.0
        %949 = vmatpush1.msra.mxu0 0.0
        %950 = vmatprep.subr.mxu0 0.0
        %951 = vmatpush1.msra.mxu0 0.0
        %952 = vmatprep.subr.mxu0 0.0
        %953 = vmatpush1.msra.mxu0 0.0
        %954 = vmatprep.subr.mxu0 0.0
        %955 = vmatpush1.msra.mxu0 0.0
        %956 = vmatprep.subr.mxu0 0.0
        %957 = vmatpush1.msra.mxu0 0.0
        %958 = vmatprep.subr.mxu0 0.0
        %959 = vmatpush1.msra.mxu0 0.0
        %960 = vmatprep.subr.mxu0 0.0
        %961 = vmatpush1.msra.mxu0 0.0
        %962 = vmatprep.subr.mxu0 0.0
        %963 = vmatpush1.msra.mxu0 0.0
        %964 = vmatprep.subr.mxu0 0.0
        %965 = vmatpush1.msra.mxu0 0.0
        %966 = vmatprep.subr.mxu0 0.0
        %967 = vmatpush1.msra.mxu0 0.0
        %968 = vmatprep.subr.mxu0 0.0
        %969 = vmatpush1.msra.mxu0 0.0
        %970 = vmatprep.subr.mxu0 0.0
        %971 = vmatpush1.msra.mxu0 0.0
        %972 = vmatprep.subr.mxu0 0.0
        %973 = vmatpush1.msra.mxu0 0.0
        %974 = vmatprep.subr.mxu0 0.0
        %975 = vmatpush1.msra.mxu0 0.0
        %976 = vmatprep.subr.mxu0 0.0
        %977 = vmatpush1.msra.mxu0 0.0
        %978 = vmatprep.subr.mxu0 0.0
        %979 = vmatpush1.msra.mxu0 0.0
        %980 = vmatprep.subr.mxu0 0.0
        %981 = vmatpush1.msra.mxu0 0.0
        %982 = vmatprep.subr.mxu0 0.0
        %983 = vmatpush1.msra.mxu0 0.0
        %984 = vmatprep.subr.mxu0 0.0
        %985 = vmatpush1.msra.mxu0 0.0
        %986 = vmatprep.subr.mxu0 0.0
        %987 = vmatpush1.msra.mxu0 0.0
        %988 = vmatprep.subr.mxu0 0.0
        %989 = vmatpush1.msra.mxu0 0.0
        %990 = vmatprep.subr.mxu0 0.0
        %991 = vmatpush1.msra.mxu0 0.0
        %992 = vmatprep.subr.mxu0 0.0
        %993 = vmatpush1.msra.mxu0 0.0
        %994 = vmatprep.subr.mxu0 0.0
        %995 = vmatpush1.msra.mxu0 0.0
        %996 = vmatprep.subr.mxu0 0.0
        %997 = vmatpush1.msra.mxu0 0.0
        %998 = vmatprep.subr.mxu0 0.0
        %999 = vmatpush1.msra.mxu0 0.0
        %1000 = vmatprep.subr.mxu0 0.0
        %1001 = vmatpush1.msra.mxu0 0.0
        %1002 = vmatprep.mubr.f32.mxu0 0.0
        %v1003 = vand.u32 %v508, 4294901760
        %1004 = vmatmul.mubr.f32.gmra.mrb[0].mxu0 %v1003
        %v1005 = vpop.f32.mrb[0].mxu0
        %v1006 = vadd.f32 %v927, %v1005
        %v1007 = vpop.f32.mrb[0].mxu0
        %1008 = vmatprep.mubr.f32.mxu0 0.0
        %v1009 = vand.u32 %v511, 4294901760
        %1010 = vmatmul.mubr.f32.gmra.mrb[0].mxu0 %v1009
        %v1011 = vpop.f32.mrb[0].mxu0
        %v1012 = vadd.f32 %v933, %v1011
        %v1013 = vpop.f32.mrb[0].mxu0
        %1014 = vdwg.mxu0
        %v1015 = vxor.u32 %v1006, 2147483648
        %v1016 = vxor.u32 %v1012, 2147483648
        %v1017 = vmul.f32 %v1015, 1.442695
        %v1018 = vpow.pop %v1017
        %v1019 = vmul.f32 %v1016, 1.442695
        %v1020 = vpow.pop %v1019
        %v1021 = vadd.f32 %v1018, 1.0
        %v1022 = vadd.f32 %v1020, 1.0
        %v1023 = vrcp.pop %v1021
        %v1024 = vmul.f32 1.0, %v1023
        %v1025 = vrcp.pop %v1022
        %v1026 = vmul.f32 1.0, %v1025
        %v1027 = vld [vmem:[%s5] sm:$0x1]
        %v1028 = vld [vmem:[%s6] sm:$0x1]
        %1030 = vset.pattern.permute.xlu0 0
        %1031 = vperm.xlu0 %1030, %v1028
        %v1032 = vpop.permute.xlu0 %1031
        %v1034 = vlaneseq
        %v1035 = vshrl.u32 %v1034, 7
        %v1036 = vsub.s32 0, %v1035
        %v1037 = vrot.slane %v1032, %v1036
        %v1039 = vsel %vm506, %v1027, 0
        %1041 = vmatprep.subr.mxu0 0.0
        %v1042 = vand.u32 %v1024, 4294901760
        %1043 = vmatpush1.msra.mxu0 %v1042
        %1044 = vmatprep.subr.mxu0 0.0
        %v1045 = vand.u32 %v1026, 4294901760
        %1046 = vmatpush1.msra.mxu0 %v1045
        %1047 = vmatprep.subr.mxu0 0.0
        %1048 = vmatpush1.msra.mxu0 0.0
        %1049 = vmatprep.subr.mxu0 0.0
        %1050 = vmatpush1.msra.mxu0 0.0
        %1051 = vmatprep.subr.mxu0 0.0
        %1052 = vmatpush1.msra.mxu0 0.0
        %1053 = vmatprep.subr.mxu0 0.0
        %1054 = vmatpush1.msra.mxu0 0.0
        %1055 = vmatprep.subr.mxu0 0.0
        %1056 = vmatpush1.msra.mxu0 0.0
        %1057 = vmatprep.subr.mxu0 0.0
        %1058 = vmatpush1.msra.mxu0 0.0
        %1059 = vmatprep.subr.mxu0 0.0
        %1060 = vmatpush1.msra.mxu0 0.0
        %1061 = vmatprep.subr.mxu0 0.0
        %1062 = vmatpush1.msra.mxu0 0.0
        %1063 = vmatprep.subr.mxu0 0.0
        %1064 = vmatpush1.msra.mxu0 0.0
        %1065 = vmatprep.subr.mxu0 0.0
        %1066 = vmatpush1.msra.mxu0 0.0
        %1067 = vmatprep.subr.mxu0 0.0
        %1068 = vmatpush1.msra.mxu0 0.0
        %1069 = vmatprep.subr.mxu0 0.0
        %1070 = vmatpush1.msra.mxu0 0.0
        %1071 = vmatprep.subr.mxu0 0.0
        %1072 = vmatpush1.msra.mxu0 0.0
        %1073 = vmatprep.subr.mxu0 0.0
        %1074 = vmatpush1.msra.mxu0 0.0
        %1075 = vmatprep.subr.mxu0 0.0
        %1076 = vmatpush1.msra.mxu0 0.0
        %1077 = vmatprep.subr.mxu0 0.0
        %1078 = vmatpush1.msra.mxu0 0.0
        %1079 = vmatprep.subr.mxu0 0.0
        %1080 = vmatpush1.msra.mxu0 0.0
        %1081 = vmatprep.subr.mxu0 0.0
        %1082 = vmatpush1.msra.mxu0 0.0
        %1083 = vmatprep.subr.mxu0 0.0
        %1084 = vmatpush1.msra.mxu0 0.0
        %1085 = vmatprep.subr.mxu0 0.0
        %1086 = vmatpush1.msra.mxu0 0.0
        %1087 = vmatprep.subr.mxu0 0.0
        %1088 = vmatpush1.msra.mxu0 0.0
        %1089 = vmatprep.subr.mxu0 0.0
        %1090 = vmatpush1.msra.mxu0 0.0
        %1091 = vmatprep.subr.mxu0 0.0
        %1092 = vmatpush1.msra.mxu0 0.0
        %1093 = vmatprep.subr.mxu0 0.0
        %1094 = vmatpush1.msra.mxu0 0.0
        %1095 = vmatprep.subr.mxu0 0.0
        %1096 = vmatpush1.msra.mxu0 0.0
        %1097 = vmatprep.subr.mxu0 0.0
        %1098 = vmatpush1.msra.mxu0 0.0
        %1099 = vmatprep.subr.mxu0 0.0
        %1100 = vmatpush1.msra.mxu0 0.0
        %1101 = vmatprep.subr.mxu0 0.0
        %1102 = vmatpush1.msra.mxu0 0.0
        %1103 = vmatprep.subr.mxu0 0.0
        %1104 = vmatpush1.msra.mxu0 0.0
        %1105 = vmatprep.subr.mxu0 0.0
        %1106 = vmatpush1.msra.mxu0 0.0
        %1107 = vmatprep.mubr.f32.mxu0 0.0
        %v1108 = vand.u32 %v1039, 4294901760
        %v1109 = vsub.f32 %v1039, %v1108
        %v1110 = vand.u32 %v1109, 4294901760
        %v1111 = vsub.f32 %v1109, %v1110
        %v1112 = vand.u32 %v1111, 4294901760
        %1113 = vmatmul.mubr.f32.gmra.mrb[0].mxu0 %v1112
        %v1114 = vpop.f32.mrb[0].mxu0
        %v1115 = vadd.f32 %v1037, %v1114
        %v1116 = vpop.f32.mrb[0].mxu0
        %1117 = vdwg.mxu0
        %1118 = vmatprep.subr.mxu0 0.0
        %v1119 = vand.u32 %v1024, 4294901760
        %v1120 = vsub.f32 %v1024, %v1119
        %v1121 = vand.u32 %v1120, 4294901760
        %v1122 = vsub.f32 %v1120, %v1121
        %v1123 = vand.u32 %v1122, 4294901760
        %1124 = vmatpush1.msra.mxu0 %v1123
        %1125 = vmatprep.subr.mxu0 0.0
        %v1126 = vand.u32 %v1026, 4294901760
        %v1127 = vsub.f32 %v1026, %v1126
        %v1128 = vand.u32 %v1127, 4294901760
        %v1129 = vsub.f32 %v1127, %v1128
        %v1130 = vand.u32 %v1129, 4294901760
        %1131 = vmatpush1.msra.mxu0 %v1130
        %1132 = vmatprep.subr.mxu0 0.0
        %1133 = vmatpush1.msra.mxu0 0.0
        %1134 = vmatprep.subr.mxu0 0.0
        %1135 = vmatpush1.msra.mxu0 0.0
        %1136 = vmatprep.subr.mxu0 0.0
        %1137 = vmatpush1.msra.mxu0 0.0
        %1138 = vmatprep.subr.mxu0 0.0
        %1139 = vmatpush1.msra.mxu0 0.0
        %1140 = vmatprep.subr.mxu0 0.0
        %1141 = vmatpush1.msra.mxu0 0.0
        %1142 = vmatprep.subr.mxu0 0.0
        %1143 = vmatpush1.msra.mxu0 0.0
        %1144 = vmatprep.subr.mxu0 0.0
        %1145 = vmatpush1.msra.mxu0 0.0
        %1146 = vmatprep.subr.mxu0 0.0
        %1147 = vmatpush1.msra.mxu0 0.0
        %1148 = vmatprep.subr.mxu0 0.0
        %1149 = vmatpush1.msra.mxu0 0.0
        %1150 = vmatprep.subr.mxu0 0.0
        %1151 = vmatpush1.msra.mxu0 0.0
        %1152 = vmatprep.subr.mxu0 0.0
        %1153 = vmatpush1.msra.mxu0 0.0
        %1154 = vmatprep.subr.mxu0 0.0
        %1155 = vmatpush1.msra.mxu0 0.0
        %1156 = vmatprep.subr.mxu0 0.0
        %1157 = vmatpush1.msra.mxu0 0.0
        %1158 = vmatprep.subr.mxu0 0.0
        %1159 = vmatpush1.msra.mxu0 0.0
        %1160 = vmatprep.subr.mxu0 0.0
        %1161 = vmatpush1.msra.mxu0 0.0
        %1162 = vmatprep.subr.mxu0 0.0
        %1163 = vmatpush1.msra.mxu0 0.0
        %1164 = vmatprep.subr.mxu0 0.0
        %1165 = vmatpush1.msra.mxu0 0.0
        %1166 = vmatprep.subr.mxu0 0.0
        %1167 = vmatpush1.msra.mxu0 0.0
        %1168 = vmatprep.subr.mxu0 0.0
        %1169 = vmatpush1.msra.mxu0 0.0
        %1170 = vmatprep.subr.mxu0 0.0
        %1171 = vmatpush1.msra.mxu0 0.0
        %1172 = vmatprep.subr.mxu0 0.0
        %1173 = vmatpush1.msra.mxu0 0.0
        %1174 = vmatprep.subr.mxu0 0.0
        %1175 = vmatpush1.msra.mxu0 0.0
        %1176 = vmatprep.subr.mxu0 0.0
        %1177 = vmatpush1.msra.mxu0 0.0
        %1178 = vmatprep.subr.mxu0 0.0
        %1179 = vmatpush1.msra.mxu0 0.0
        %1180 = vmatprep.subr.mxu0 0.0
        %1181 = vmatpush1.msra.mxu0 0.0
        %1182 = vmatprep.subr.mxu0 0.0
        %1183 = vmatpush1.msra.mxu0 0.0
        %1184 = vmatprep.subr.mxu0 0.0
        %1185 = vmatpush1.msra.mxu0 0.0
        %1186 = vmatprep.subr.mxu0 0.0
        %1187 = vmatpush1.msra.mxu0 0.0
        %1188 = vmatprep.subr.mxu0 0.0
        %1189 = vmatpush1.msra.mxu0 0.0
        %1190 = vmatprep.subr.mxu0 0.0
        %1191 = vmatpush1.msra.mxu0 0.0
        %1192 = vmatprep.mubr.f32.mxu0 0.0
        %v1193 = vand.u32 %v1039, 4294901760
        %1194 = vmatmul.mubr.f32.gmra.mrb[0].mxu0 %v1193
        %v1195 = vpop.f32.mrb[0].mxu0
        %v1196 = vadd.f32 %v1115, %v1195
        %v1197 = vpop.f32.mrb[0].mxu0
        %1198 = vdwg.mxu0
        %1199 = vmatprep.subr.mxu0 0.0
        %v1200 = vand.u32 %v1024, 4294901760
        %v1201 = vsub.f32 %v1024, %v1200
        %1202 = vmatpush1.msra.mxu0 %v1201
        %1203 = vmatprep.subr.mxu0 0.0
        %v1204 = vand.u32 %v1026, 4294901760
        %v1205 = vsub.f32 %v1026, %v1204
        %1206 = vmatpush1.msra.mxu0 %v1205
        %1207 = vmatprep.subr.mxu0 0.0
        %1208 = vmatpush1.msra.mxu0 0.0
        %1209 = vmatprep.subr.mxu0 0.0
        %1210 = vmatpush1.msra.mxu0 0.0
        %1211 = vmatprep.subr.mxu0 0.0
        %1212 = vmatpush1.msra.mxu0 0.0
        %1213 = vmatprep.subr.mxu0 0.0
        %1214 = vmatpush1.msra.mxu0 0.0
        %1215 = vmatprep.subr.mxu0 0.0
        %1216 = vmatpush1.msra.mxu0 0.0
        %1217 = vmatprep.subr.mxu0 0.0
        %1218 = vmatpush1.msra.mxu0 0.0
        %1219 = vmatprep.subr.mxu0 0.0
        %1220 = vmatpush1.msra.mxu0 0.0
        %1221 = vmatprep.subr.mxu0 0.0
        %1222 = vmatpush1.msra.mxu0 0.0
        %1223 = vmatprep.subr.mxu0 0.0
        %1224 = vmatpush1.msra.mxu0 0.0
        %1225 = vmatprep.subr.mxu0 0.0
        %1226 = vmatpush1.msra.mxu0 0.0
        %1227 = vmatprep.subr.mxu0 0.0
        %1228 = vmatpush1.msra.mxu0 0.0
        %1229 = vmatprep.subr.mxu0 0.0
        %1230 = vmatpush1.msra.mxu0 0.0
        %1231 = vmatprep.subr.mxu0 0.0
        %1232 = vmatpush1.msra.mxu0 0.0
        %1233 = vmatprep.subr.mxu0 0.0
        %1234 = vmatpush1.msra.mxu0 0.0
        %1235 = vmatprep.subr.mxu0 0.0
        %1236 = vmatpush1.msra.mxu0 0.0
        %1237 = vmatprep.subr.mxu0 0.0
        %1238 = vmatpush1.msra.mxu0 0.0
        %1239 = vmatprep.subr.mxu0 0.0
        %1240 = vmatpush1.msra.mxu0 0.0
        %1241 = vmatprep.subr.mxu0 0.0
        %1242 = vmatpush1.msra.mxu0 0.0
        %1243 = vmatprep.subr.mxu0 0.0
        %1244 = vmatpush1.msra.mxu0 0.0
        %1245 = vmatprep.subr.mxu0 0.0
        %1246 = vmatpush1.msra.mxu0 0.0
        %1247 = vmatprep.subr.mxu0 0.0
        %1248 = vmatpush1.msra.mxu0 0.0
        %1249 = vmatprep.subr.mxu0 0.0
        %1250 = vmatpush1.msra.mxu0 0.0
        %1251 = vmatprep.subr.mxu0 0.0
        %1252 = vmatpush1.msra.mxu0 0.0
        %1253 = vmatprep.subr.mxu0 0.0
        %1254 = vmatpush1.msra.mxu0 0.0
        %1255 = vmatprep.subr.mxu0 0.0
        %1256 = vmatpush1.msra.mxu0 0.0
        %1257 = vmatprep.subr.mxu0 0.0
        %1258 = vmatpush1.msra.mxu0 0.0
        %1259 = vmatprep.subr.mxu0 0.0
        %1260 = vmatpush1.msra.mxu0 0.0
        %1261 = vmatprep.subr.mxu0 0.0
        %1262 = vmatpush1.msra.mxu0 0.0
        %1263 = vmatprep.subr.mxu0 0.0
        %1264 = vmatpush1.msra.mxu0 0.0
        %1265 = vmatprep.subr.mxu0 0.0
        %1266 = vmatpush1.msra.mxu0 0.0
        %1267 = vmatprep.mubr.f32.mxu0 0.0
        %v1268 = vand.u32 %v1039, 4294901760
        %v1269 = vsub.f32 %v1039, %v1268
        %1270 = vmatmul.mubr.f32.gmra.mrb[0].mxu0 %v1269
        %v1271 = vpop.f32.mrb[0].mxu0
        %v1272 = vadd.f32 %v1196, %v1271
        %v1273 = vpop.f32.mrb[0].mxu0
        %1274 = vdwg.mxu0
        %1275 = vmatprep.subr.mxu0 0.0
        %v1276 = vand.u32 %v1024, 4294901760
        %1277 = vmatpush1.msra.mxu0 %v1276
        %1278 = vmatprep.subr.mxu0 0.0
        %v1279 = vand.u32 %v1026, 4294901760
        %1280 = vmatpush1.msra.mxu0 %v1279
        %1281 = vmatprep.subr.mxu0 0.0
        %1282 = vmatpush1.msra.mxu0 0.0
        %1283 = vmatprep.subr.mxu0 0.0
        %1284 = vmatpush1.msra.mxu0 0.0
        %1285 = vmatprep.subr.mxu0 0.0
        %1286 = vmatpush1.msra.mxu0 0.0
        %1287 = vmatprep.subr.mxu0 0.0
        %1288 = vmatpush1.msra.mxu0 0.0
        %1289 = vmatprep.subr.mxu0 0.0
        %1290 = vmatpush1.msra.mxu0 0.0
        %1291 = vmatprep.subr.mxu0 0.0
        %1292 = vmatpush1.msra.mxu0 0.0
        %1293 = vmatprep.subr.mxu0 0.0
        %1294 = vmatpush1.msra.mxu0 0.0
        %1295 = vmatprep.subr.mxu0 0.0
        %1296 = vmatpush1.msra.mxu0 0.0
        %1297 = vmatprep.subr.mxu0 0.0
        %1298 = vmatpush1.msra.mxu0 0.0
        %1299 = vmatprep.subr.mxu0 0.0
        %1300 = vmatpush1.msra.mxu0 0.0
        %1301 = vmatprep.subr.mxu0 0.0
        %1302 = vmatpush1.msra.mxu0 0.0
        %1303 = vmatprep.subr.mxu0 0.0
        %1304 = vmatpush1.msra.mxu0 0.0
        %1305 = vmatprep.subr.mxu0 0.0
        %1306 = vmatpush1.msra.mxu0 0.0
        %1307 = vmatprep.subr.mxu0 0.0
        %1308 = vmatpush1.msra.mxu0 0.0
        %1309 = vmatprep.subr.mxu0 0.0
        %1310 = vmatpush1.msra.mxu0 0.0
        %1311 = vmatprep.subr.mxu0 0.0
        %1312 = vmatpush1.msra.mxu0 0.0
        %1313 = vmatprep.subr.mxu0 0.0
        %1314 = vmatpush1.msra.mxu0 0.0
        %1315 = vmatprep.subr.mxu0 0.0
        %1316 = vmatpush1.msra.mxu0 0.0
        %1317 = vmatprep.subr.mxu0 0.0
        %1318 = vmatpush1.msra.mxu0 0.0
        %1319 = vmatprep.subr.mxu0 0.0
        %1320 = vmatpush1.msra.mxu0 0.0
        %1321 = vmatprep.subr.mxu0 0.0
        %1322 = vmatpush1.msra.mxu0 0.0
        %1323 = vmatprep.subr.mxu0 0.0
        %1324 = vmatpush1.msra.mxu0 0.0
        %1325 = vmatprep.subr.mxu0 0.0
        %1326 = vmatpush1.msra.mxu0 0.0
        %1327 = vmatprep.subr.mxu0 0.0
        %1328 = vmatpush1.msra.mxu0 0.0
        %1329 = vmatprep.subr.mxu0 0.0
        %1330 = vmatpush1.msra.mxu0 0.0
        %1331 = vmatprep.subr.mxu0 0.0
        %1332 = vmatpush1.msra.mxu0 0.0
        %1333 = vmatprep.subr.mxu0 0.0
        %1334 = vmatpush1.msra.mxu0 0.0
        %1335 = vmatprep.subr.mxu0 0.0
        %1336 = vmatpush1.msra.mxu0 0.0
        %1337 = vmatprep.subr.mxu0 0.0
        %1338 = vmatpush1.msra.mxu0 0.0
        %1339 = vmatprep.subr.mxu0 0.0
        %1340 = vmatpush1.msra.mxu0 0.0
        %1341 = vmatprep.mubr.f32.mxu0 0.0
        %v1342 = vand.u32 %v1039, 4294901760
        %v1343 = vsub.f32 %v1039, %v1342
        %v1344 = vand.u32 %v1343, 4294901760
        %1345 = vmatmul.mubr.f32.gmra.mrb[0].mxu0 %v1344
        %v1346 = vpop.f32.mrb[0].mxu0
        %v1347 = vadd.f32 %v1272, %v1346
        %v1348 = vpop.f32.mrb[0].mxu0
        %1349 = vdwg.mxu0
        %1350 = vmatprep.subr.mxu0 0.0
        %v1351 = vand.u32 %v1024, 4294901760
        %v1352 = vsub.f32 %v1024, %v1351
        %v1353 = vand.u32 %v1352, 4294901760
        %1354 = vmatpush1.msra.mxu0 %v1353
        %1355 = vmatprep.subr.mxu0 0.0
        %v1356 = vand.u32 %v1026, 4294901760
        %v1357 = vsub.f32 %v1026, %v1356
        %v1358 = vand.u32 %v1357, 4294901760
        %1359 = vmatpush1.msra.mxu0 %v1358
        %1360 = vmatprep.subr.mxu0 0.0
        %1361 = vmatpush1.msra.mxu0 0.0
        %1362 = vmatprep.subr.mxu0 0.0
        %1363 = vmatpush1.msra.mxu0 0.0
        %1364 = vmatprep.subr.mxu0 0.0
        %1365 = vmatpush1.msra.mxu0 0.0
        %1366 = vmatprep.subr.mxu0 0.0
        %1367 = vmatpush1.msra.mxu0 0.0
        %1368 = vmatprep.subr.mxu0 0.0
        %1369 = vmatpush1.msra.mxu0 0.0
        %1370 = vmatprep.subr.mxu0 0.0
        %1371 = vmatpush1.msra.mxu0 0.0
        %1372 = vmatprep.subr.mxu0 0.0
        %1373 = vmatpush1.msra.mxu0 0.0
        %1374 = vmatprep.subr.mxu0 0.0
        %1375 = vmatpush1.msra.mxu0 0.0
        %1376 = vmatprep.subr.mxu0 0.0
        %1377 = vmatpush1.msra.mxu0 0.0
        %1378 = vmatprep.subr.mxu0 0.0
        %1379 = vmatpush1.msra.mxu0 0.0
        %1380 = vmatprep.subr.mxu0 0.0
        %1381 = vmatpush1.msra.mxu0 0.0
        %1382 = vmatprep.subr.mxu0 0.0
        %1383 = vmatpush1.msra.mxu0 0.0
        %1384 = vmatprep.subr.mxu0 0.0
        %1385 = vmatpush1.msra.mxu0 0.0
        %1386 = vmatprep.subr.mxu0 0.0
        %1387 = vmatpush1.msra.mxu0 0.0
        %1388 = vmatprep.subr.mxu0 0.0
        %1389 = vmatpush1.msra.mxu0 0.0
        %1390 = vmatprep.subr.mxu0 0.0
        %1391 = vmatpush1.msra.mxu0 0.0
        %1392 = vmatprep.subr.mxu0 0.0
        %1393 = vmatpush1.msra.mxu0 0.0
        %1394 = vmatprep.subr.mxu0 0.0
        %1395 = vmatpush1.msra.mxu0 0.0
        %1396 = vmatprep.subr.mxu0 0.0
        %1397 = vmatpush1.msra.mxu0 0.0
        %1398 = vmatprep.subr.mxu0 0.0
        %1399 = vmatpush1.msra.mxu0 0.0
        %1400 = vmatprep.subr.mxu0 0.0
        %1401 = vmatpush1.msra.mxu0 0.0
        %1402 = vmatprep.subr.mxu0 0.0
        %1403 = vmatpush1.msra.mxu0 0.0
        %1404 = vmatprep.subr.mxu0 0.0
        %1405 = vmatpush1.msra.mxu0 0.0
        %1406 = vmatprep.subr.mxu0 0.0
        %1407 = vmatpush1.msra.mxu0 0.0
        %1408 = vmatprep.subr.mxu0 0.0
        %1409 = vmatpush1.msra.mxu0 0.0
        %1410 = vmatprep.subr.mxu0 0.0
        %1411 = vmatpush1.msra.mxu0 0.0
        %1412 = vmatprep.subr.mxu0 0.0
        %1413 = vmatpush1.msra.mxu0 0.0
        %1414 = vmatprep.subr.mxu0 0.0
        %1415 = vmatpush1.msra.mxu0 0.0
        %1416 = vmatprep.subr.mxu0 0.0
        %1417 = vmatpush1.msra.mxu0 0.0
        %1418 = vmatprep.subr.mxu0 0.0
        %1419 = vmatpush1.msra.mxu0 0.0
        %1420 = vmatprep.mubr.f32.mxu0 0.0
        %v1421 = vand.u32 %v1039, 4294901760
        %1422 = vmatmul.mubr.f32.gmra.mrb[0].mxu0 %v1421
        %v1423 = vpop.f32.mrb[0].mxu0
        %v1424 = vadd.f32 %v1347, %v1423
        %v1425 = vpop.f32.mrb[0].mxu0
        %1426 = vdwg.mxu0
        %1427 = vmatprep.subr.mxu0 0.0
        %v1428 = vand.u32 %v1024, 4294901760
        %1429 = vmatpush1.msra.mxu0 %v1428
        %1430 = vmatprep.subr.mxu0 0.0
        %v1431 = vand.u32 %v1026, 4294901760
        %1432 = vmatpush1.msra.mxu0 %v1431
        %1433 = vmatprep.subr.mxu0 0.0
        %1434 = vmatpush1.msra.mxu0 0.0
        %1435 = vmatprep.subr.mxu0 0.0
        %1436 = vmatpush1.msra.mxu0 0.0
        %1437 = vmatprep.subr.mxu0 0.0
        %1438 = vmatpush1.msra.mxu0 0.0
        %1439 = vmatprep.subr.mxu0 0.0
        %1440 = vmatpush1.msra.mxu0 0.0
        %1441 = vmatprep.subr.mxu0 0.0
        %1442 = vmatpush1.msra.mxu0 0.0
        %1443 = vmatprep.subr.mxu0 0.0
        %1444 = vmatpush1.msra.mxu0 0.0
        %1445 = vmatprep.subr.mxu0 0.0
        %1446 = vmatpush1.msra.mxu0 0.0
        %1447 = vmatprep.subr.mxu0 0.0
        %1448 = vmatpush1.msra.mxu0 0.0
        %1449 = vmatprep.subr.mxu0 0.0
        %1450 = vmatpush1.msra.mxu0 0.0
        %1451 = vmatprep.subr.mxu0 0.0
        %1452 = vmatpush1.msra.mxu0 0.0
        %1453 = vmatprep.subr.mxu0 0.0
        %1454 = vmatpush1.msra.mxu0 0.0
        %1455 = vmatprep.subr.mxu0 0.0
        %1456 = vmatpush1.msra.mxu0 0.0
        %1457 = vmatprep.subr.mxu0 0.0
        %1458 = vmatpush1.msra.mxu0 0.0
        %1459 = vmatprep.subr.mxu0 0.0
        %1460 = vmatpush1.msra.mxu0 0.0
        %1461 = vmatprep.subr.mxu0 0.0
        %1462 = vmatpush1.msra.mxu0 0.0
        %1463 = vmatprep.subr.mxu0 0.0
        %1464 = vmatpush1.msra.mxu0 0.0
        %1465 = vmatprep.subr.mxu0 0.0
        %1466 = vmatpush1.msra.mxu0 0.0
        %1467 = vmatprep.subr.mxu0 0.0
        %1468 = vmatpush1.msra.mxu0 0.0
        %1469 = vmatprep.subr.mxu0 0.0
        %1470 = vmatpush1.msra.mxu0 0.0
        %1471 = vmatprep.subr.mxu0 0.0
        %1472 = vmatpush1.msra.mxu0 0.0
        %1473 = vmatprep.subr.mxu0 0.0
        %1474 = vmatpush1.msra.mxu0 0.0
        %1475 = vmatprep.subr.mxu0 0.0
        %1476 = vmatpush1.msra.mxu0 0.0
        %1477 = vmatprep.subr.mxu0 0.0
        %1478 = vmatpush1.msra.mxu0 0.0
        %1479 = vmatprep.subr.mxu0 0.0
        %1480 = vmatpush1.msra.mxu0 0.0
        %1481 = vmatprep.subr.mxu0 0.0
        %1482 = vmatpush1.msra.mxu0 0.0
        %1483 = vmatprep.subr.mxu0 0.0
        %1484 = vmatpush1.msra.mxu0 0.0
        %1485 = vmatprep.subr.mxu0 0.0
        %1486 = vmatpush1.msra.mxu0 0.0
        %1487 = vmatprep.subr.mxu0 0.0
        %1488 = vmatpush1.msra.mxu0 0.0
        %1489 = vmatprep.subr.mxu0 0.0
        %1490 = vmatpush1.msra.mxu0 0.0
        %1491 = vmatprep.subr.mxu0 0.0
        %1492 = vmatpush1.msra.mxu0 0.0
        %1493 = vmatprep.mubr.f32.mxu0 0.0
        %v1494 = vand.u32 %v1039, 4294901760
        %1495 = vmatmul.mubr.f32.gmra.mrb[0].mxu0 %v1494
        %v1496 = vpop.f32.mrb[0].mxu0
        %v1497 = vadd.f32 %v1424, %v1496
        %v1498 = vpop.f32.mrb[0].mxu0
        %1499 = vdwg.mxu0
        %v1500 = vand.u32 2147483647, %v1497
        %vm1501 = vcmp.le.f32.partialorder %v1500, 0.7853982
        %vm1502 = vcmp.lt.s32.totalorder %v1497, 0
        %v1503 = vand.u32 %v1497, 2139095040
        %v1504 = vshrl.u32 %v1503, 23
        %v1505 = vsub.s32 %v1504, 127
        %v1506 = vand.u32 2147483647, %v1497
        %v1507 = vand.u32 %v1506, 8388607
        %v1508 = vor.u32 %v1507, 8388608
        %v1509 = vsub.s32 0, %v1508
        %v1510 = vadd.s32 %v1505, 1
        %vm1511 = vcmp.gt.s32.totalorder %v1510, 0
        %v1512 = vsel %vm1511, %v1510, 0
        %v1513 = vshrl.u32 %v1512, 5
        %v1514 = vand.u32 %v1512, 31
        %v1515 = vsub.s32 32, %v1514
        %v1516 = vshrl.u32 683565275, %v1515
        %v1517 = vshll.u32 683565275, %v1514
        %v1518 = vshrl.u32 2475754826, %v1515
        %v1519 = vor.u32 %v1517, %v1518
        %v1520 = vshll.u32 2475754826, %v1514
        %v1521 = vshrl.u32 2131351028, %v1515
        %v1522 = vor.u32 %v1520, %v1521
        %v1523 = vshll.u32 2131351028, %v1514
        %v1524 = vshrl.u32 2102212464, %v1515
        %v1525 = vor.u32 %v1523, %v1524
        %v1526 = vshll.u32 2102212464, %v1514
        %v1527 = vshrl.u32 920167782, %v1515
        %v1528 = vor.u32 %v1526, %v1527
        %v1529 = vshll.u32 920167782, %v1514
        %v1530 = vshrl.u32 1326507024, %v1515
        %v1531 = vor.u32 %v1529, %v1530
        %vm1532 = vcmp.lt.s32.totalorder %v1513, 1
        %vm1533 = vcmp.lt.s32.totalorder %v1513, 2
        %vm1534 = vcmp.lt.s32.totalorder %v1513, 3
        %vm1535 = vcmp.lt.s32.totalorder %v1513, 4
        %v1536 = vsel %vm1532, %v1516, %v1519
        %v1537 = vsel %vm1535, %v1525, 2102212464
        %v1538 = vsel %vm1534, %v1522, %v1537
        %v1539 = vsel %vm1533, %v1536, %v1538
        %v1540 = vsel %vm1532, %v1519, %v1522
        %v1541 = vsel %vm1535, %v1528, 920167782
        %v1542 = vsel %vm1534, %v1525, %v1541
        %v1543 = vsel %vm1533, %v1540, %v1542
        %v1544 = vsel %vm1532, %v1522, %v1525
        %v1545 = vsel %vm1535, %v1531, 1326507024
        %v1546 = vsel %vm1534, %v1528, %v1545
        %v1547 = vsel %vm1533, %v1544, %v1546
        %v1548 = vshll.u32 %v1508, 8
        %v1549 = vmul.u32.u64.compose %v1548, %v1547
        %v1550 = vextract.low.u32 %v1549
        %v1551 = vextract.high.u32 %v1549
        %v1552 = vmul.u32.u64.compose %v1548, %v1543
        %v1553 = vextract.low.u32 %v1552
        %v1554 = vextract.high.u32 %v1552
        %v1555 = vmul.u32 %v1548, %v1539
        %v1556 = vadd.s32 %v1551, %v1553
        %vm1557 = vc.u32 %v1551, %v1553
        %v1558 = vadd.s32 %v1554, 1
        %v1559 = vsel %vm1557, %v1558, %v1554
        %v1560 = vadd.s32 %v1555, %v1559
        %v1561 = vadd.s32 %v1560, 536870912
        %v1562 = vshrl.u32 %v1561, 30
        %v1563 = vshll.u32 %v1562, 30
        %v1564 = vsub.s32 %v1560, %v1563
        %vm1565 = vcmp.lt.s32.totalorder %v1564, 0
        %v1566 = vsub.s32 0, %v1564
        %v1567 = vsel %vm1565, %v1566, %v1564
        %v1568 = vclz %v1567
        %v1569 = vsub.s32 %v1568, 2
        %vm1570 = vcmp.gt.s32.totalorder 0, %v1569
        %v1571 = vsel %vm1570, 0, %v1569
        %v1572 = vsub.s32 32, %v1571
        %v1573 = vshll.u32 %v1564, %v1571
        %v1574 = vshrl.u32 %v1556, %v1572
        %v1575 = vor.u32 %v1573, %v1574
        %v1576 = vsub.s32 4294967266, %v1571
        %v1577 = vadd.s32 %v1576, 127
        %v1578 = vshll.u32 %v1577, 23
        %v1579 = vor.u32 4788187, %v1578
        %v1580 = vand.u32 2147483647, %v1579
        %v1582 = vcvt.s32.f32 %v1575
        %v1583 = vmul.f32 %v1582, %v1580
        %v1584 = vxor.u32 %v1583, 2147483648
        %v1585 = vsel %vm1502, %v1584, %v1583
        %v1586 = vsub.s32 4, %v1562
        %v1587 = vsel %vm1502, %v1586, %v1562
        %v1588 = vsel %vm1501, %v1497, %v1585
        %v1589 = vsel %vm1501, 0, %v1587
        %v1590 = vcosq.f32.pop %v1588
        %v1591 = vsinq.f32.pop %v1588
        %vm1592 = vweird.f32 %v1497
        %v1593 = vand.u32 %v1589, 3
        %vm1594 = vcmp.lt.s32.totalorder %v1593, 2
        %vm1595 = vcmp.eq.s32.totalorder %v1593, 0
        %v1596 = vxor.u32 %v1591, 2147483648
        %v1597 = vsel %vm1595, %v1590, %v1596
        %vm1598 = vcmp.eq.s32.totalorder %v1593, 2
        %v1599 = vxor.u32 %v1590, 2147483648
        %v1600 = vsel %vm1598, %v1599, %v1591
        %v1601 = vsel %vm1594, %v1597, %v1600
        %v1602 = vsel %vm1592, nan, %v1601
        %v1603 = vand.u32 2147483647, %v1497
        %vm1604 = vcmp.le.f32.partialorder %v1603, 0.7853982
        %vm1605 = vcmp.lt.s32.totalorder %v1497, 0
        %v1606 = vand.u32 %v1497, 2139095040
        %v1607 = vshrl.u32 %v1606, 23
        %v1608 = vsub.s32 %v1607, 127
        %v1609 = vand.u32 2147483647, %v1497
        %v1610 = vand.u32 %v1609, 8388607
        %v1611 = vor.u32 %v1610, 8388608
        %v1612 = vsub.s32 0, %v1611
        %v1613 = vadd.s32 %v1608, 1
        %vm1614 = vcmp.gt.s32.totalorder %v1613, 0
        %v1615 = vsel %vm1614, %v1613, 0
        %v1616 = vshrl.u32 %v1615, 5
        %v1617 = vand.u32 %v1615, 31
        %v1618 = vsub.s32 32, %v1617
        %v1619 = vshrl.u32 683565275, %v1618
        %v1620 = vshll.u32 683565275, %v1617
        %v1621 = vshrl.u32 2475754826, %v1618
        %v1622 = vor.u32 %v1620, %v1621
        %v1623 = vshll.u32 2475754826, %v1617
        %v1624 = vshrl.u32 2131351028, %v1618
        %v1625 = vor.u32 %v1623, %v1624
        %v1626 = vshll.u32 2131351028, %v1617
        %v1627 = vshrl.u32 2102212464, %v1618
        %v1628 = vor.u32 %v1626, %v1627
        %v1629 = vshll.u32 2102212464, %v1617
        %v1630 = vshrl.u32 920167782, %v1618
        %v1631 = vor.u32 %v1629, %v1630
        %v1632 = vshll.u32 920167782, %v1617
        %v1633 = vshrl.u32 1326507024, %v1618
        %v1634 = vor.u32 %v1632, %v1633
        %vm1635 = vcmp.lt.s32.totalorder %v1616, 1
        %vm1636 = vcmp.lt.s32.totalorder %v1616, 2
        %vm1637 = vcmp.lt.s32.totalorder %v1616, 3
        %vm1638 = vcmp.lt.s32.totalorder %v1616, 4
        %v1639 = vsel %vm1635, %v1619, %v1622
        %v1640 = vsel %vm1638, %v1628, 2102212464
        %v1641 = vsel %vm1637, %v1625, %v1640
        %v1642 = vsel %vm1636, %v1639, %v1641
        %v1643 = vsel %vm1635, %v1622, %v1625
        %v1644 = vsel %vm1638, %v1631, 920167782
        %v1645 = vsel %vm1637, %v1628, %v1644
        %v1646 = vsel %vm1636, %v1643, %v1645
        %v1647 = vsel %vm1635, %v1625, %v1628
        %v1648 = vsel %vm1638, %v1634, 1326507024
        %v1649 = vsel %vm1637, %v1631, %v1648
        %v1650 = vsel %vm1636, %v1647, %v1649
        %v1651 = vshll.u32 %v1611, 8
        %v1652 = vmul.u32.u64.compose %v1651, %v1650
        %v1653 = vextract.low.u32 %v1652
        %v1654 = vextract.high.u32 %v1652
        %v1655 = vmul.u32.u64.compose %v1651, %v1646
        %v1656 = vextract.low.u32 %v1655
        %v1657 = vextract.high.u32 %v1655
        %v1658 = vmul.u32 %v1651, %v1642
        %v1659 = vadd.s32 %v1654, %v1656
        %vm1660 = vc.u32 %v1654, %v1656
        %v1661 = vadd.s32 %v1657, 1
        %v1662 = vsel %vm1660, %v1661, %v1657
        %v1663 = vadd.s32 %v1658, %v1662
        %v1664 = vadd.s32 %v1663, 536870912
        %v1665 = vshrl.u32 %v1664, 30
        %v1666 = vshll.u32 %v1665, 30
        %v1667 = vsub.s32 %v1663, %v1666
        %vm1668 = vcmp.lt.s32.totalorder %v1667, 0
        %v1669 = vsub.s32 0, %v1667
        %v1670 = vsel %vm1668, %v1669, %v1667
        %v1671 = vclz %v1670
        %v1672 = vsub.s32 %v1671, 2
        %vm1673 = vcmp.gt.s32.totalorder 0, %v1672
        %v1674 = vsel %vm1673, 0, %v1672
        %v1675 = vsub.s32 32, %v1674
        %v1676 = vshll.u32 %v1667, %v1674
        %v1677 = vshrl.u32 %v1659, %v1675
        %v1678 = vor.u32 %v1676, %v1677
        %v1679 = vsub.s32 4294967266, %v1674
        %v1680 = vadd.s32 %v1679, 127
        %v1681 = vshll.u32 %v1680, 23
        %v1682 = vor.u32 4788187, %v1681
        %v1683 = vand.u32 2147483647, %v1682
        %v1685 = vcvt.s32.f32 %v1678
        %v1686 = vmul.f32 %v1685, %v1683
        %v1687 = vxor.u32 %v1686, 2147483648
        %v1688 = vsel %vm1605, %v1687, %v1686
        %v1689 = vsub.s32 4, %v1665
        %v1690 = vsel %vm1605, %v1689, %v1665
        %v1691 = vsel %vm1604, %v1497, %v1688
        %v1692 = vsel %vm1604, 0, %v1690
        %v1693 = vcosq.f32.pop %v1691
        %v1694 = vsinq.f32.pop %v1691
        %vm1695 = vweird.f32 %v1497
        %v1696 = vadd.s32 %v1692, 3
        %v1697 = vand.u32 %v1696, 3
        %vm1698 = vcmp.lt.s32.totalorder %v1697, 2
        %vm1699 = vcmp.eq.s32.totalorder %v1697, 0
        %v1700 = vxor.u32 %v1694, 2147483648
        %v1701 = vsel %vm1699, %v1693, %v1700
        %vm1702 = vcmp.eq.s32.totalorder %v1697, 2
        %v1703 = vxor.u32 %v1693, 2147483648
        %v1704 = vsel %vm1702, %v1703, %v1694
        %v1705 = vsel %vm1698, %v1701, %v1704
        %v1706 = vsel %vm1695, nan, %v1705
        %v1707 = vmul.f32 %v1602, %v435
        %v1709 = vrot.slane %v435, 1
        %v1711 = vmul.f32 %v1706, %v1709
        %v1712 = vadd.f32 %v1707, %v1711
        %v1713 = vsub.f32 0.0, %v1706
        %v1714 = vmul.f32 %v1713, %v435
        %v1715 = vmul.f32 %v1602, %v1709
        %v1716 = vadd.f32 %v1714, %v1715
        %v1717 = vmul.f32 %v1712, %v1712
        %v1718 = vmul.f32 %v1716, %v1716
        %v1719 = vadd.f32 %v1717, %v1718
        %v1720 = vrsqrt.pop %v1719
        %v1721 = vmul.f32 %v1719, %v1720
        %vm1722 = vcmp.eq.f32.partialorder %v1719, inf
        %v1723 = vsel %vm1722, %v1719, %v1721
        %vm1724 = vcmp.eq.f32.partialorder %v1719, 0.0
        %v1725 = vand.u32 %v1719, 2147483648
        %v1726 = vsel %vm1724, %v1725, %v1723
        %s1727 = scalar_lea.vmem %s1, 16
        %v1728 = vld [vmem:[%s1727] sm:$0xff]
        %v1729 = vld [vmem:[%s1727 + $0x8] sm:$0xff]
        %1731 = vset.pattern.permute.xlu0 0
        %1732 = vperm.xlu0 %1731, %v1728
        %v1733 = vpop.permute.xlu0 %1732
        %1736 = vset.pattern.permute.xlu0 0
        %1737 = vperm.xlu0 %1736, %v1729
        %v1738 = vpop.permute.xlu0 %1737
        %v1740 = vlaneseq
        %v1741 = vshrl.u32 %v1740, 7
        %v1742 = vsub.s32 0, %v1741
        %v1743 = vrot.slane %v1726, %v1742
        %v1744 = vmul.f32 %v1733, %v1743
        %v1745 = vmul.f32 %v1738, %v1743
        %s1746 = scalar_lea.vmem %s2, 16
        %v1747 = vld [vmem:[%s1746] sm:$0xff]
        %v1748 = vld [vmem:[%s1746 + $0x8] sm:$0xff]
        %1750 = vset.pattern.permute.xlu0 0
        %1751 = vperm.xlu0 %1750, %v1747
        %v1752 = vpop.permute.xlu0 %1751
        %1755 = vset.pattern.permute.xlu0 0
        %1756 = vperm.xlu0 %1755, %v1748
        %v1757 = vpop.permute.xlu0 %1756
        %v1759 = vadd.f32 %v1744, %v1752
        %v1760 = vadd.f32 %v1745, %v1757
        %v1761 = vxor.u32 %v1759, 2147483648
        %v1762 = vxor.u32 %v1760, 2147483648
        %v1763 = vmul.f32 %v1761, 1.442695
        %v1764 = vpow.pop %v1763
        %v1765 = vmul.f32 %v1762, 1.442695
        %v1766 = vpow.pop %v1765
        %v1767 = vadd.f32 %v1764, 1.0
        %v1768 = vadd.f32 %v1766, 1.0
        %v1769 = vrcp.pop %v1767
        %v1770 = vmul.f32 1.0, %v1769
        %v1771 = vrcp.pop %v1768
        %v1772 = vmul.f32 1.0, %v1771
        %s1773 = scalar_lea.vmem %s3, 16
        %v1774 = vld [vmem:[%s1773] sm:$0xff]
        %v1775 = vld [vmem:[%s1773 + $0x8] sm:$0xff]
        %s1776 = scalar_lea.vmem %s4, 16
        %v1777 = vld [vmem:[%s1776] sm:$0xff]
        %v1778 = vld [vmem:[%s1776 + $0x8] sm:$0xff]
        %1780 = vset.pattern.permute.xlu0 0
        %1781 = vperm.xlu0 %1780, %v1777
        %v1782 = vpop.permute.xlu0 %1781
        %1785 = vset.pattern.permute.xlu0 0
        %1786 = vperm.xlu0 %1785, %v1778
        %v1787 = vpop.permute.xlu0 %1786
        %v1790 = vsel %vm506, %v1774, 0
        %v1793 = vsel %vm506, %v1775, 0
        %1795 = vmatprep.subr.mxu0 0.0
        %v1796 = vand.u32 %v1770, 4294901760
        %1797 = vmatpush1.msra.mxu0 %v1796
        %1798 = vmatprep.subr.mxu0 0.0
        %v1799 = vand.u32 %v1772, 4294901760
        %1800 = vmatpush1.msra.mxu0 %v1799
        %1801 = vmatprep.subr.mxu0 0.0
        %1802 = vmatpush1.msra.mxu0 0.0
        %1803 = vmatprep.subr.mxu0 0.0
        %1804 = vmatpush1.msra.mxu0 0.0
        %1805 = vmatprep.subr.mxu0 0.0
        %1806 = vmatpush1.msra.mxu0 0.0
        %1807 = vmatprep.subr.mxu0 0.0
        %1808 = vmatpush1.msra.mxu0 0.0
        %1809 = vmatprep.subr.mxu0 0.0
        %1810 = vmatpush1.msra.mxu0 0.0
        %1811 = vmatprep.subr.mxu0 0.0
        %1812 = vmatpush1.msra.mxu0 0.0
        %1813 = vmatprep.subr.mxu0 0.0
        %1814 = vmatpush1.msra.mxu0 0.0
        %1815 = vmatprep.subr.mxu0 0.0
        %1816 = vmatpush1.msra.mxu0 0.0
        %1817 = vmatprep.subr.mxu0 0.0
        %1818 = vmatpush1.msra.mxu0 0.0
        %1819 = vmatprep.subr.mxu0 0.0
        %1820 = vmatpush1.msra.mxu0 0.0
        %1821 = vmatprep.subr.mxu0 0.0
        %1822 = vmatpush1.msra.mxu0 0.0
        %1823 = vmatprep.subr.mxu0 0.0
        %1824 = vmatpush1.msra.mxu0 0.0
        %1825 = vmatprep.subr.mxu0 0.0
        %1826 = vmatpush1.msra.mxu0 0.0
        %1827 = vmatprep.subr.mxu0 0.0
        %1828 = vmatpush1.msra.mxu0 0.0
        %1829 = vmatprep.subr.mxu0 0.0
        %1830 = vmatpush1.msra.mxu0 0.0
        %1831 = vmatprep.subr.mxu0 0.0
        %1832 = vmatpush1.msra.mxu0 0.0
        %1833 = vmatprep.subr.mxu0 0.0
        %1834 = vmatpush1.msra.mxu0 0.0
        %1835 = vmatprep.subr.mxu0 0.0
        %1836 = vmatpush1.msra.mxu0 0.0
        %1837 = vmatprep.subr.mxu0 0.0
        %1838 = vmatpush1.msra.mxu0 0.0
        %1839 = vmatprep.subr.mxu0 0.0
        %1840 = vmatpush1.msra.mxu0 0.0
        %1841 = vmatprep.subr.mxu0 0.0
        %1842 = vmatpush1.msra.mxu0 0.0
        %1843 = vmatprep.subr.mxu0 0.0
        %1844 = vmatpush1.msra.mxu0 0.0
        %1845 = vmatprep.subr.mxu0 0.0
        %1846 = vmatpush1.msra.mxu0 0.0
        %1847 = vmatprep.subr.mxu0 0.0
        %1848 = vmatpush1.msra.mxu0 0.0
        %1849 = vmatprep.subr.mxu0 0.0
        %1850 = vmatpush1.msra.mxu0 0.0
        %1851 = vmatprep.subr.mxu0 0.0
        %1852 = vmatpush1.msra.mxu0 0.0
        %1853 = vmatprep.subr.mxu0 0.0
        %1854 = vmatpush1.msra.mxu0 0.0
        %1855 = vmatprep.subr.mxu0 0.0
        %1856 = vmatpush1.msra.mxu0 0.0
        %1857 = vmatprep.subr.mxu0 0.0
        %1858 = vmatpush1.msra.mxu0 0.0
        %1859 = vmatprep.subr.mxu0 0.0
        %1860 = vmatpush1.msra.mxu0 0.0
        %1861 = vmatprep.mubr.f32.mxu0 0.0
        %v1862 = vand.u32 %v1790, 4294901760
        %v1863 = vsub.f32 %v1790, %v1862
        %v1864 = vand.u32 %v1863, 4294901760
        %v1865 = vsub.f32 %v1863, %v1864
        %v1866 = vand.u32 %v1865, 4294901760
        %1867 = vmatmul.mubr.f32.gmra.mrb[0].mxu0 %v1866
        %v1868 = vpop.f32.mrb[0].mxu0
        %v1869 = vadd.f32 %v1782, %v1868
        %v1870 = vpop.f32.mrb[0].mxu0
        %1871 = vmatprep.mubr.f32.mxu0 0.0
        %v1872 = vand.u32 %v1793, 4294901760
        %v1873 = vsub.f32 %v1793, %v1872
        %v1874 = vand.u32 %v1873, 4294901760
        %v1875 = vsub.f32 %v1873, %v1874
        %v1876 = vand.u32 %v1875, 4294901760
        %1877 = vmatmul.mubr.f32.gmra.mrb[0].mxu0 %v1876
        %v1878 = vpop.f32.mrb[0].mxu0
        %v1879 = vadd.f32 %v1787, %v1878
        %v1880 = vpop.f32.mrb[0].mxu0
        %1881 = vdwg.mxu0
        %1882 = vmatprep.subr.mxu0 0.0
        %v1883 = vand.u32 %v1770, 4294901760
        %v1884 = vsub.f32 %v1770, %v1883
        %v1885 = vand.u32 %v1884, 4294901760
        %v1886 = vsub.f32 %v1884, %v1885
        %v1887 = vand.u32 %v1886, 4294901760
        %1888 = vmatpush1.msra.mxu0 %v1887
        %1889 = vmatprep.subr.mxu0 0.0
        %v1890 = vand.u32 %v1772, 4294901760
        %v1891 = vsub.f32 %v1772, %v1890
        %v1892 = vand.u32 %v1891, 4294901760
        %v1893 = vsub.f32 %v1891, %v1892
        %v1894 = vand.u32 %v1893, 4294901760
        %1895 = vmatpush1.msra.mxu0 %v1894
        %1896 = vmatprep.subr.mxu0 0.0
        %1897 = vmatpush1.msra.mxu0 0.0
        %1898 = vmatprep.subr.mxu0 0.0
        %1899 = vmatpush1.msra.mxu0 0.0
        %1900 = vmatprep.subr.mxu0 0.0
        %1901 = vmatpush1.msra.mxu0 0.0
        %1902 = vmatprep.subr.mxu0 0.0
        %1903 = vmatpush1.msra.mxu0 0.0
        %1904 = vmatprep.subr.mxu0 0.0
        %1905 = vmatpush1.msra.mxu0 0.0
        %1906 = vmatprep.subr.mxu0 0.0
        %1907 = vmatpush1.msra.mxu0 0.0
        %1908 = vmatprep.subr.mxu0 0.0
        %1909 = vmatpush1.msra.mxu0 0.0
        %1910 = vmatprep.subr.mxu0 0.0
        %1911 = vmatpush1.msra.mxu0 0.0
        %1912 = vmatprep.subr.mxu0 0.0
        %1913 = vmatpush1.msra.mxu0 0.0
        %1914 = vmatprep.subr.mxu0 0.0
        %1915 = vmatpush1.msra.mxu0 0.0
        %1916 = vmatprep.subr.mxu0 0.0
        %1917 = vmatpush1.msra.mxu0 0.0
        %1918 = vmatprep.subr.mxu0 0.0
        %1919 = vmatpush1.msra.mxu0 0.0
        %1920 = vmatprep.subr.mxu0 0.0
        %1921 = vmatpush1.msra.mxu0 0.0
        %1922 = vmatprep.subr.mxu0 0.0
        %1923 = vmatpush1.msra.mxu0 0.0
        %1924 = vmatprep.subr.mxu0 0.0
        %1925 = vmatpush1.msra.mxu0 0.0
        %1926 = vmatprep.subr.mxu0 0.0
        %1927 = vmatpush1.msra.mxu0 0.0
        %1928 = vmatprep.subr.mxu0 0.0
        %1929 = vmatpush1.msra.mxu0 0.0
        %1930 = vmatprep.subr.mxu0 0.0
        %1931 = vmatpush1.msra.mxu0 0.0
        %1932 = vmatprep.subr.mxu0 0.0
        %1933 = vmatpush1.msra.mxu0 0.0
        %1934 = vmatprep.subr.mxu0 0.0
        %1935 = vmatpush1.msra.mxu0 0.0
        %1936 = vmatprep.subr.mxu0 0.0
        %1937 = vmatpush1.msra.mxu0 0.0
        %1938 = vmatprep.subr.mxu0 0.0
        %1939 = vmatpush1.msra.mxu0 0.0
        %1940 = vmatprep.subr.mxu0 0.0
        %1941 = vmatpush1.msra.mxu0 0.0
        %1942 = vmatprep.subr.mxu0 0.0
        %1943 = vmatpush1.msra.mxu0 0.0
        %1944 = vmatprep.subr.mxu0 0.0
        %1945 = vmatpush1.msra.mxu0 0.0
        %1946 = vmatprep.subr.mxu0 0.0
        %1947 = vmatpush1.msra.mxu0 0.0
        %1948 = vmatprep.subr.mxu0 0.0
        %1949 = vmatpush1.msra.mxu0 0.0
        %1950 = vmatprep.subr.mxu0 0.0
        %1951 = vmatpush1.msra.mxu0 0.0
        %1952 = vmatprep.subr.mxu0 0.0
        %1953 = vmatpush1.msra.mxu0 0.0
        %1954 = vmatprep.subr.mxu0 0.0
        %1955 = vmatpush1.msra.mxu0 0.0
        %1956 = vmatprep.mubr.f32.mxu0 0.0
        %v1957 = vand.u32 %v1790, 4294901760
        %1958 = vmatmul.mubr.f32.gmra.mrb[0].mxu0 %v1957
        %v1959 = vpop.f32.mrb[0].mxu0
        %v1960 = vadd.f32 %v1869, %v1959
        %v1961 = vpop.f32.mrb[0].mxu0
        %1962 = vmatprep.mubr.f32.mxu0 0.0
        %v1963 = vand.u32 %v1793, 4294901760
        %1964 = vmatmul.mubr.f32.gmra.mrb[0].mxu0 %v1963
        %v1965 = vpop.f32.mrb[0].mxu0
        %v1966 = vadd.f32 %v1879, %v1965
        %v1967 = vpop.f32.mrb[0].mxu0
        %1968 = vdwg.mxu0
        %1969 = vmatprep.subr.mxu0 0.0
        %v1970 = vand.u32 %v1770, 4294901760
        %v1971 = vsub.f32 %v1770, %v1970
        %1972 = vmatpush1.msra.mxu0 %v1971
        %1973 = vmatprep.subr.mxu0 0.0
        %v1974 = vand.u32 %v1772, 4294901760
        %v1975 = vsub.f32 %v1772, %v1974
        %1976 = vmatpush1.msra.mxu0 %v1975
        %1977 = vmatprep.subr.mxu0 0.0
        %1978 = vmatpush1.msra.mxu0 0.0
        %1979 = vmatprep.subr.mxu0 0.0
        %1980 = vmatpush1.msra.mxu0 0.0
        %1981 = vmatprep.subr.mxu0 0.0
        %1982 = vmatpush1.msra.mxu0 0.0
        %1983 = vmatprep.subr.mxu0 0.0
        %1984 = vmatpush1.msra.mxu0 0.0
        %1985 = vmatprep.subr.mxu0 0.0
        %1986 = vmatpush1.msra.mxu0 0.0
        %1987 = vmatprep.subr.mxu0 0.0
        %1988 = vmatpush1.msra.mxu0 0.0
        %1989 = vmatprep.subr.mxu0 0.0
        %1990 = vmatpush1.msra.mxu0 0.0
        %1991 = vmatprep.subr.mxu0 0.0
        %1992 = vmatpush1.msra.mxu0 0.0
        %1993 = vmatprep.subr.mxu0 0.0
        %1994 = vmatpush1.msra.mxu0 0.0
        %1995 = vmatprep.subr.mxu0 0.0
        %1996 = vmatpush1.msra.mxu0 0.0
        %1997 = vmatprep.subr.mxu0 0.0
        %1998 = vmatpush1.msra.mxu0 0.0
        %1999 = vmatprep.subr.mxu0 0.0
        %2000 = vmatpush1.msra.mxu0 0.0
        %2001 = vmatprep.subr.mxu0 0.0
        %2002 = vmatpush1.msra.mxu0 0.0
        %2003 = vmatprep.subr.mxu0 0.0
        %2004 = vmatpush1.msra.mxu0 0.0
        %2005 = vmatprep.subr.mxu0 0.0
        %2006 = vmatpush1.msra.mxu0 0.0
        %2007 = vmatprep.subr.mxu0 0.0
        %2008 = vmatpush1.msra.mxu0 0.0
        %2009 = vmatprep.subr.mxu0 0.0
        %2010 = vmatpush1.msra.mxu0 0.0
        %2011 = vmatprep.subr.mxu0 0.0
        %2012 = vmatpush1.msra.mxu0 0.0
        %2013 = vmatprep.subr.mxu0 0.0
        %2014 = vmatpush1.msra.mxu0 0.0
        %2015 = vmatprep.subr.mxu0 0.0
        %2016 = vmatpush1.msra.mxu0 0.0
        %2017 = vmatprep.subr.mxu0 0.0
        %2018 = vmatpush1.msra.mxu0 0.0
        %2019 = vmatprep.subr.mxu0 0.0
        %2020 = vmatpush1.msra.mxu0 0.0
        %2021 = vmatprep.subr.mxu0 0.0
        %2022 = vmatpush1.msra.mxu0 0.0
        %2023 = vmatprep.subr.mxu0 0.0
        %2024 = vmatpush1.msra.mxu0 0.0
        %2025 = vmatprep.subr.mxu0 0.0
        %2026 = vmatpush1.msra.mxu0 0.0
        %2027 = vmatprep.subr.mxu0 0.0
        %2028 = vmatpush1.msra.mxu0 0.0
        %2029 = vmatprep.subr.mxu0 0.0
        %2030 = vmatpush1.msra.mxu0 0.0
        %2031 = vmatprep.subr.mxu0 0.0
        %2032 = vmatpush1.msra.mxu0 0.0
        %2033 = vmatprep.subr.mxu0 0.0
        %2034 = vmatpush1.msra.mxu0 0.0
        %2035 = vmatprep.subr.mxu0 0.0
        %2036 = vmatpush1.msra.mxu0 0.0
        %2037 = vmatprep.mubr.f32.mxu0 0.0
        %v2038 = vand.u32 %v1790, 4294901760
        %v2039 = vsub.f32 %v1790, %v2038
        %2040 = vmatmul.mubr.f32.gmra.mrb[0].mxu0 %v2039
        %v2041 = vpop.f32.mrb[0].mxu0
        %v2042 = vadd.f32 %v1960, %v2041
        %v2043 = vpop.f32.mrb[0].mxu0
        %2044 = vmatprep.mubr.f32.mxu0 0.0
        %v2045 = vand.u32 %v1793, 4294901760
        %v2046 = vsub.f32 %v1793, %v2045
        %2047 = vmatmul.mubr.f32.gmra.mrb[0].mxu0 %v2046
        %v2048 = vpop.f32.mrb[0].mxu0
        %v2049 = vadd.f32 %v1966, %v2048
        %v2050 = vpop.f32.mrb[0].mxu0
        %2051 = vdwg.mxu0
        %2052 = vmatprep.subr.mxu0 0.0
        %v2053 = vand.u32 %v1770, 4294901760
        %2054 = vmatpush1.msra.mxu0 %v2053
        %2055 = vmatprep.subr.mxu0 0.0
        %v2056 = vand.u32 %v1772, 4294901760
        %2057 = vmatpush1.msra.mxu0 %v2056
        %2058 = vmatprep.subr.mxu0 0.0
        %2059 = vmatpush1.msra.mxu0 0.0
        %2060 = vmatprep.subr.mxu0 0.0
        %2061 = vmatpush1.msra.mxu0 0.0
        %2062 = vmatprep.subr.mxu0 0.0
        %2063 = vmatpush1.msra.mxu0 0.0
        %2064 = vmatprep.subr.mxu0 0.0
        %2065 = vmatpush1.msra.mxu0 0.0
        %2066 = vmatprep.subr.mxu0 0.0
        %2067 = vmatpush1.msra.mxu0 0.0
        %2068 = vmatprep.subr.mxu0 0.0
        %2069 = vmatpush1.msra.mxu0 0.0
        %2070 = vmatprep.subr.mxu0 0.0
        %2071 = vmatpush1.msra.mxu0 0.0
        %2072 = vmatprep.subr.mxu0 0.0
        %2073 = vmatpush1.msra.mxu0 0.0
        %2074 = vmatprep.subr.mxu0 0.0
        %2075 = vmatpush1.msra.mxu0 0.0
        %2076 = vmatprep.subr.mxu0 0.0
        %2077 = vmatpush1.msra.mxu0 0.0
        %2078 = vmatprep.subr.mxu0 0.0
        %2079 = vmatpush1.msra.mxu0 0.0
        %2080 = vmatprep.subr.mxu0 0.0
        %2081 = vmatpush1.msra.mxu0 0.0
        %2082 = vmatprep.subr.mxu0 0.0
        %2083 = vmatpush1.msra.mxu0 0.0
        %2084 = vmatprep.subr.mxu0 0.0
        %2085 = vmatpush1.msra.mxu0 0.0
        %2086 = vmatprep.subr.mxu0 0.0
        %2087 = vmatpush1.msra.mxu0 0.0
        %2088 = vmatprep.subr.mxu0 0.0
        %2089 = vmatpush1.msra.mxu0 0.0
        %2090 = vmatprep.subr.mxu0 0.0
        %2091 = vmatpush1.msra.mxu0 0.0
        %2092 = vmatprep.subr.mxu0 0.0
        %2093 = vmatpush1.msra.mxu0 0.0
        %2094 = vmatprep.subr.mxu0 0.0
        %2095 = vmatpush1.msra.mxu0 0.0
        %2096 = vmatprep.subr.mxu0 0.0
        %2097 = vmatpush1.msra.mxu0 0.0
        %2098 = vmatprep.subr.mxu0 0.0
        %2099 = vmatpush1.msra.mxu0 0.0
        %2100 = vmatprep.subr.mxu0 0.0
        %2101 = vmatpush1.msra.mxu0 0.0
        %2102 = vmatprep.subr.mxu0 0.0
        %2103 = vmatpush1.msra.mxu0 0.0
        %2104 = vmatprep.subr.mxu0 0.0
        %2105 = vmatpush1.msra.mxu0 0.0
        %2106 = vmatprep.subr.mxu0 0.0
        %2107 = vmatpush1.msra.mxu0 0.0
        %2108 = vmatprep.subr.mxu0 0.0
        %2109 = vmatpush1.msra.mxu0 0.0
        %2110 = vmatprep.subr.mxu0 0.0
        %2111 = vmatpush1.msra.mxu0 0.0
        %2112 = vmatprep.subr.mxu0 0.0
        %2113 = vmatpush1.msra.mxu0 0.0
        %2114 = vmatprep.subr.mxu0 0.0
        %2115 = vmatpush1.msra.mxu0 0.0
        %2116 = vmatprep.subr.mxu0 0.0
        %2117 = vmatpush1.msra.mxu0 0.0
        %2118 = vmatprep.mubr.f32.mxu0 0.0
        %v2119 = vand.u32 %v1790, 4294901760
        %v2120 = vsub.f32 %v1790, %v2119
        %v2121 = vand.u32 %v2120, 4294901760
        %2122 = vmatmul.mubr.f32.gmra.mrb[0].mxu0 %v2121
        %v2123 = vpop.f32.mrb[0].mxu0
        %v2124 = vadd.f32 %v2042, %v2123
        %v2125 = vpop.f32.mrb[0].mxu0
        %2126 = vmatprep.mubr.f32.mxu0 0.0
        %v2127 = vand.u32 %v1793, 4294901760
        %v2128 = vsub.f32 %v1793, %v2127
        %v2129 = vand.u32 %v2128, 4294901760
        %2130 = vmatmul.mubr.f32.gmra.mrb[0].mxu0 %v2129
        %v2131 = vpop.f32.mrb[0].mxu0
        %v2132 = vadd.f32 %v2049, %v2131
        %v2133 = vpop.f32.mrb[0].mxu0
        %2134 = vdwg.mxu0
        %2135 = vmatprep.subr.mxu0 0.0
        %v2136 = vand.u32 %v1770, 4294901760
        %v2137 = vsub.f32 %v1770, %v2136
        %v2138 = vand.u32 %v2137, 4294901760
        %2139 = vmatpush1.msra.mxu0 %v2138
        %2140 = vmatprep.subr.mxu0 0.0
        %v2141 = vand.u32 %v1772, 4294901760
        %v2142 = vsub.f32 %v1772, %v2141
        %v2143 = vand.u32 %v2142, 4294901760
        %2144 = vmatpush1.msra.mxu0 %v2143
        %2145 = vmatprep.subr.mxu0 0.0
        %2146 = vmatpush1.msra.mxu0 0.0
        %2147 = vmatprep.subr.mxu0 0.0
        %2148 = vmatpush1.msra.mxu0 0.0
        %2149 = vmatprep.subr.mxu0 0.0
        %2150 = vmatpush1.msra.mxu0 0.0
        %2151 = vmatprep.subr.mxu0 0.0
        %2152 = vmatpush1.msra.mxu0 0.0
        %2153 = vmatprep.subr.mxu0 0.0
        %2154 = vmatpush1.msra.mxu0 0.0
        %2155 = vmatprep.subr.mxu0 0.0
        %2156 = vmatpush1.msra.mxu0 0.0
        %2157 = vmatprep.subr.mxu0 0.0
        %2158 = vmatpush1.msra.mxu0 0.0
        %2159 = vmatprep.subr.mxu0 0.0
        %2160 = vmatpush1.msra.mxu0 0.0
        %2161 = vmatprep.subr.mxu0 0.0
        %2162 = vmatpush1.msra.mxu0 0.0
        %2163 = vmatprep.subr.mxu0 0.0
        %2164 = vmatpush1.msra.mxu0 0.0
        %2165 = vmatprep.subr.mxu0 0.0
        %2166 = vmatpush1.msra.mxu0 0.0
        %2167 = vmatprep.subr.mxu0 0.0
        %2168 = vmatpush1.msra.mxu0 0.0
        %2169 = vmatprep.subr.mxu0 0.0
        %2170 = vmatpush1.msra.mxu0 0.0
        %2171 = vmatprep.subr.mxu0 0.0
        %2172 = vmatpush1.msra.mxu0 0.0
        %2173 = vmatprep.subr.mxu0 0.0
        %2174 = vmatpush1.msra.mxu0 0.0
        %2175 = vmatprep.subr.mxu0 0.0
        %2176 = vmatpush1.msra.mxu0 0.0
        %2177 = vmatprep.subr.mxu0 0.0
        %2178 = vmatpush1.msra.mxu0 0.0
        %2179 = vmatprep.subr.mxu0 0.0
        %2180 = vmatpush1.msra.mxu0 0.0
        %2181 = vmatprep.subr.mxu0 0.0
        %2182 = vmatpush1.msra.mxu0 0.0
        %2183 = vmatprep.subr.mxu0 0.0
        %2184 = vmatpush1.msra.mxu0 0.0
        %2185 = vmatprep.subr.mxu0 0.0
        %2186 = vmatpush1.msra.mxu0 0.0
        %2187 = vmatprep.subr.mxu0 0.0
        %2188 = vmatpush1.msra.mxu0 0.0
        %2189 = vmatprep.subr.mxu0 0.0
        %2190 = vmatpush1.msra.mxu0 0.0
        %2191 = vmatprep.subr.mxu0 0.0
        %2192 = vmatpush1.msra.mxu0 0.0
        %2193 = vmatprep.subr.mxu0 0.0
        %2194 = vmatpush1.msra.mxu0 0.0
        %2195 = vmatprep.subr.mxu0 0.0
        %2196 = vmatpush1.msra.mxu0 0.0
        %2197 = vmatprep.subr.mxu0 0.0
        %2198 = vmatpush1.msra.mxu0 0.0
        %2199 = vmatprep.subr.mxu0 0.0
        %2200 = vmatpush1.msra.mxu0 0.0
        %2201 = vmatprep.subr.mxu0 0.0
        %2202 = vmatpush1.msra.mxu0 0.0
        %2203 = vmatprep.subr.mxu0 0.0
        %2204 = vmatpush1.msra.mxu0 0.0
        %2205 = vmatprep.mubr.f32.mxu0 0.0
        %v2206 = vand.u32 %v1790, 4294901760
        %2207 = vmatmul.mubr.f32.gmra.mrb[0].mxu0 %v2206
        %v2208 = vpop.f32.mrb[0].mxu0
        %v2209 = vadd.f32 %v2124, %v2208
        %v2210 = vpop.f32.mrb[0].mxu0
        %2211 = vmatprep.mubr.f32.mxu0 0.0
        %v2212 = vand.u32 %v1793, 4294901760
        %2213 = vmatmul.mubr.f32.gmra.mrb[0].mxu0 %v2212
        %v2214 = vpop.f32.mrb[0].mxu0
        %v2215 = vadd.f32 %v2132, %v2214
        %v2216 = vpop.f32.mrb[0].mxu0
        %2217 = vdwg.mxu0
        %2218 = vmatprep.subr.mxu0 0.0
        %v2219 = vand.u32 %v1770, 4294901760
        %2220 = vmatpush1.msra.mxu0 %v2219
        %2221 = vmatprep.subr.mxu0 0.0
        %v2222 = vand.u32 %v1772, 4294901760
        %2223 = vmatpush1.msra.mxu0 %v2222
        %2224 = vmatprep.subr.mxu0 0.0
        %2225 = vmatpush1.msra.mxu0 0.0
        %2226 = vmatprep.subr.mxu0 0.0
        %2227 = vmatpush1.msra.mxu0 0.0
        %2228 = vmatprep.subr.mxu0 0.0
        %2229 = vmatpush1.msra.mxu0 0.0
        %2230 = vmatprep.subr.mxu0 0.0
        %2231 = vmatpush1.msra.mxu0 0.0
        %2232 = vmatprep.subr.mxu0 0.0
        %2233 = vmatpush1.msra.mxu0 0.0
        %2234 = vmatprep.subr.mxu0 0.0
        %2235 = vmatpush1.msra.mxu0 0.0
        %2236 = vmatprep.subr.mxu0 0.0
        %2237 = vmatpush1.msra.mxu0 0.0
        %2238 = vmatprep.subr.mxu0 0.0
        %2239 = vmatpush1.msra.mxu0 0.0
        %2240 = vmatprep.subr.mxu0 0.0
        %2241 = vmatpush1.msra.mxu0 0.0
        %2242 = vmatprep.subr.mxu0 0.0
        %2243 = vmatpush1.msra.mxu0 0.0
        %2244 = vmatprep.subr.mxu0 0.0
        %2245 = vmatpush1.msra.mxu0 0.0
        %2246 = vmatprep.subr.mxu0 0.0
        %2247 = vmatpush1.msra.mxu0 0.0
        %2248 = vmatprep.subr.mxu0 0.0
        %2249 = vmatpush1.msra.mxu0 0.0
        %2250 = vmatprep.subr.mxu0 0.0
        %2251 = vmatpush1.msra.mxu0 0.0
        %2252 = vmatprep.subr.mxu0 0.0
        %2253 = vmatpush1.msra.mxu0 0.0
        %2254 = vmatprep.subr.mxu0 0.0
        %2255 = vmatpush1.msra.mxu0 0.0
        %2256 = vmatprep.subr.mxu0 0.0
        %2257 = vmatpush1.msra.mxu0 0.0
        %2258 = vmatprep.subr.mxu0 0.0
        %2259 = vmatpush1.msra.mxu0 0.0
        %2260 = vmatprep.subr.mxu0 0.0
        %2261 = vmatpush1.msra.mxu0 0.0
        %2262 = vmatprep.subr.mxu0 0.0
        %2263 = vmatpush1.msra.mxu0 0.0
        %2264 = vmatprep.subr.mxu0 0.0
        %2265 = vmatpush1.msra.mxu0 0.0
        %2266 = vmatprep.subr.mxu0 0.0
        %2267 = vmatpush1.msra.mxu0 0.0
        %2268 = vmatprep.subr.mxu0 0.0
        %2269 = vmatpush1.msra.mxu0 0.0
        %2270 = vmatprep.subr.mxu0 0.0
        %2271 = vmatpush1.msra.mxu0 0.0
        %2272 = vmatprep.subr.mxu0 0.0
        %2273 = vmatpush1.msra.mxu0 0.0
        %2274 = vmatprep.subr.mxu0 0.0
        %2275 = vmatpush1.msra.mxu0 0.0
        %2276 = vmatprep.subr.mxu0 0.0
        %2277 = vmatpush1.msra.mxu0 0.0
        %2278 = vmatprep.subr.mxu0 0.0
        %2279 = vmatpush1.msra.mxu0 0.0
        %2280 = vmatprep.subr.mxu0 0.0
        %2281 = vmatpush1.msra.mxu0 0.0
        %2282 = vmatprep.subr.mxu0 0.0
        %2283 = vmatpush1.msra.mxu0 0.0
        %2284 = vmatprep.mubr.f32.mxu0 0.0
        %v2285 = vand.u32 %v1790, 4294901760
        %2286 = vmatmul.mubr.f32.gmra.mrb[0].mxu0 %v2285
        %v2287 = vpop.f32.mrb[0].mxu0
        %v2288 = vadd.f32 %v2209, %v2287
        %v2289 = vpop.f32.mrb[0].mxu0
        %2290 = vmatprep.mubr.f32.mxu0 0.0
        %v2291 = vand.u32 %v1793, 4294901760
        %2292 = vmatmul.mubr.f32.gmra.mrb[0].mxu0 %v2291
        %v2293 = vpop.f32.mrb[0].mxu0
        %v2294 = vadd.f32 %v2215, %v2293
        %v2295 = vpop.f32.mrb[0].mxu0
        %2296 = vdwg.mxu0
        %v2297 = vxor.u32 %v2288, 2147483648
        %v2298 = vxor.u32 %v2294, 2147483648
        %v2299 = vmul.f32 %v2297, 1.442695
        %v2300 = vpow.pop %v2299
        %v2301 = vmul.f32 %v2298, 1.442695
        %v2302 = vpow.pop %v2301
        %v2303 = vadd.f32 %v2300, 1.0
        %v2304 = vadd.f32 %v2302, 1.0
        %v2305 = vrcp.pop %v2303
        %v2306 = vmul.f32 1.0, %v2305
        %v2307 = vrcp.pop %v2304
        %v2308 = vmul.f32 1.0, %v2307
        %s2309 = scalar_lea.vmem %s5, 1
        %v2310 = vld [vmem:[%s2309] sm:$0x1]
        %s2311 = scalar_lea.vmem %s6, 1
        %v2312 = vld [vmem:[%s2311] sm:$0x1]
        %2314 = vset.pattern.permute.xlu0 0
        %2315 = vperm.xlu0 %2314, %v2312
        %v2316 = vpop.permute.xlu0 %2315
        %v2318 = vlaneseq
        %v2319 = vshrl.u32 %v2318, 7
        %v2320 = vsub.s32 0, %v2319
        %v2321 = vrot.slane %v2316, %v2320
        %v2323 = vsel %vm506, %v2310, 0
        %2325 = vmatprep.subr.mxu0 0.0
        %v2326 = vand.u32 %v2306, 4294901760
        %2327 = vmatpush1.msra.mxu0 %v2326
        %2328 = vmatprep.subr.mxu0 0.0
        %v2329 = vand.u32 %v2308, 4294901760
        %2330 = vmatpush1.msra.mxu0 %v2329
        %2331 = vmatprep.subr.mxu0 0.0
        %2332 = vmatpush1.msra.mxu0 0.0
        %2333 = vmatprep.subr.mxu0 0.0
        %2334 = vmatpush1.msra.mxu0 0.0
        %2335 = vmatprep.subr.mxu0 0.0
        %2336 = vmatpush1.msra.mxu0 0.0
        %2337 = vmatprep.subr.mxu0 0.0
        %2338 = vmatpush1.msra.mxu0 0.0
        %2339 = vmatprep.subr.mxu0 0.0
        %2340 = vmatpush1.msra.mxu0 0.0
        %2341 = vmatprep.subr.mxu0 0.0
        %2342 = vmatpush1.msra.mxu0 0.0
        %2343 = vmatprep.subr.mxu0 0.0
        %2344 = vmatpush1.msra.mxu0 0.0
        %2345 = vmatprep.subr.mxu0 0.0
        %2346 = vmatpush1.msra.mxu0 0.0
        %2347 = vmatprep.subr.mxu0 0.0
        %2348 = vmatpush1.msra.mxu0 0.0
        %2349 = vmatprep.subr.mxu0 0.0
        %2350 = vmatpush1.msra.mxu0 0.0
        %2351 = vmatprep.subr.mxu0 0.0
        %2352 = vmatpush1.msra.mxu0 0.0
        %2353 = vmatprep.subr.mxu0 0.0
        %2354 = vmatpush1.msra.mxu0 0.0
        %2355 = vmatprep.subr.mxu0 0.0
        %2356 = vmatpush1.msra.mxu0 0.0
        %2357 = vmatprep.subr.mxu0 0.0
        %2358 = vmatpush1.msra.mxu0 0.0
        %2359 = vmatprep.subr.mxu0 0.0
        %2360 = vmatpush1.msra.mxu0 0.0
        %2361 = vmatprep.subr.mxu0 0.0
        %2362 = vmatpush1.msra.mxu0 0.0
        %2363 = vmatprep.subr.mxu0 0.0
        %2364 = vmatpush1.msra.mxu0 0.0
        %2365 = vmatprep.subr.mxu0 0.0
        %2366 = vmatpush1.msra.mxu0 0.0
        %2367 = vmatprep.subr.mxu0 0.0
        %2368 = vmatpush1.msra.mxu0 0.0
        %2369 = vmatprep.subr.mxu0 0.0
        %2370 = vmatpush1.msra.mxu0 0.0
        %2371 = vmatprep.subr.mxu0 0.0
        %2372 = vmatpush1.msra.mxu0 0.0
        %2373 = vmatprep.subr.mxu0 0.0
        %2374 = vmatpush1.msra.mxu0 0.0
        %2375 = vmatprep.subr.mxu0 0.0
        %2376 = vmatpush1.msra.mxu0 0.0
        %2377 = vmatprep.subr.mxu0 0.0
        %2378 = vmatpush1.msra.mxu0 0.0
        %2379 = vmatprep.subr.mxu0 0.0
        %2380 = vmatpush1.msra.mxu0 0.0
        %2381 = vmatprep.subr.mxu0 0.0
        %2382 = vmatpush1.msra.mxu0 0.0
        %2383 = vmatprep.subr.mxu0 0.0
        %2384 = vmatpush1.msra.mxu0 0.0
        %2385 = vmatprep.subr.mxu0 0.0
        %2386 = vmatpush1.msra.mxu0 0.0
        %2387 = vmatprep.subr.mxu0 0.0
        %2388 = vmatpush1.msra.mxu0 0.0
        %2389 = vmatprep.subr.mxu0 0.0
        %2390 = vmatpush1.msra.mxu0 0.0
        %2391 = vmatprep.mubr.f32.mxu0 0.0
        %v2392 = vand.u32 %v2323, 4294901760
        %v2393 = vsub.f32 %v2323, %v2392
        %v2394 = vand.u32 %v2393, 4294901760
        %v2395 = vsub.f32 %v2393, %v2394
        %v2396 = vand.u32 %v2395, 4294901760
        %2397 = vmatmul.mubr.f32.gmra.mrb[0].mxu0 %v2396
        %v2398 = vpop.f32.mrb[0].mxu0
        %v2399 = vadd.f32 %v2321, %v2398
        %v2400 = vpop.f32.mrb[0].mxu0
        %2401 = vdwg.mxu0
        %2402 = vmatprep.subr.mxu0 0.0
        %v2403 = vand.u32 %v2306, 4294901760
        %v2404 = vsub.f32 %v2306, %v2403
        %v2405 = vand.u32 %v2404, 4294901760
        %v2406 = vsub.f32 %v2404, %v2405
        %v2407 = vand.u32 %v2406, 4294901760
        %2408 = vmatpush1.msra.mxu0 %v2407
        %2409 = vmatprep.subr.mxu0 0.0
        %v2410 = vand.u32 %v2308, 4294901760
        %v2411 = vsub.f32 %v2308, %v2410
        %v2412 = vand.u32 %v2411, 4294901760
        %v2413 = vsub.f32 %v2411, %v2412
        %v2414 = vand.u32 %v2413, 4294901760
        %2415 = vmatpush1.msra.mxu0 %v2414
        %2416 = vmatprep.subr.mxu0 0.0
        %2417 = vmatpush1.msra.mxu0 0.0
        %2418 = vmatprep.subr.mxu0 0.0
        %2419 = vmatpush1.msra.mxu0 0.0
        %2420 = vmatprep.subr.mxu0 0.0
        %2421 = vmatpush1.msra.mxu0 0.0
        %2422 = vmatprep.subr.mxu0 0.0
        %2423 = vmatpush1.msra.mxu0 0.0
        %2424 = vmatprep.subr.mxu0 0.0
        %2425 = vmatpush1.msra.mxu0 0.0
        %2426 = vmatprep.subr.mxu0 0.0
        %2427 = vmatpush1.msra.mxu0 0.0
        %2428 = vmatprep.subr.mxu0 0.0
        %2429 = vmatpush1.msra.mxu0 0.0
        %2430 = vmatprep.subr.mxu0 0.0
        %2431 = vmatpush1.msra.mxu0 0.0
        %2432 = vmatprep.subr.mxu0 0.0
        %2433 = vmatpush1.msra.mxu0 0.0
        %2434 = vmatprep.subr.mxu0 0.0
        %2435 = vmatpush1.msra.mxu0 0.0
        %2436 = vmatprep.subr.mxu0 0.0
        %2437 = vmatpush1.msra.mxu0 0.0
        %2438 = vmatprep.subr.mxu0 0.0
        %2439 = vmatpush1.msra.mxu0 0.0
        %2440 = vmatprep.subr.mxu0 0.0
        %2441 = vmatpush1.msra.mxu0 0.0
        %2442 = vmatprep.subr.mxu0 0.0
        %2443 = vmatpush1.msra.mxu0 0.0
        %2444 = vmatprep.subr.mxu0 0.0
        %2445 = vmatpush1.msra.mxu0 0.0
        %2446 = vmatprep.subr.mxu0 0.0
        %2447 = vmatpush1.msra.mxu0 0.0
        %2448 = vmatprep.subr.mxu0 0.0
        %2449 = vmatpush1.msra.mxu0 0.0
        %2450 = vmatprep.subr.mxu0 0.0
        %2451 = vmatpush1.msra.mxu0 0.0
        %2452 = vmatprep.subr.mxu0 0.0
        %2453 = vmatpush1.msra.mxu0 0.0
        %2454 = vmatprep.subr.mxu0 0.0
        %2455 = vmatpush1.msra.mxu0 0.0
        %2456 = vmatprep.subr.mxu0 0.0
        %2457 = vmatpush1.msra.mxu0 0.0
        %2458 = vmatprep.subr.mxu0 0.0
        %2459 = vmatpush1.msra.mxu0 0.0
        %2460 = vmatprep.subr.mxu0 0.0
        %2461 = vmatpush1.msra.mxu0 0.0
        %2462 = vmatprep.subr.mxu0 0.0
        %2463 = vmatpush1.msra.mxu0 0.0
        %2464 = vmatprep.subr.mxu0 0.0
        %2465 = vmatpush1.msra.mxu0 0.0
        %2466 = vmatprep.subr.mxu0 0.0
        %2467 = vmatpush1.msra.mxu0 0.0
        %2468 = vmatprep.subr.mxu0 0.0
        %2469 = vmatpush1.msra.mxu0 0.0
        %2470 = vmatprep.subr.mxu0 0.0
        %2471 = vmatpush1.msra.mxu0 0.0
        %2472 = vmatprep.subr.mxu0 0.0
        %2473 = vmatpush1.msra.mxu0 0.0
        %2474 = vmatprep.subr.mxu0 0.0
        %2475 = vmatpush1.msra.mxu0 0.0
        %2476 = vmatprep.mubr.f32.mxu0 0.0
        %v2477 = vand.u32 %v2323, 4294901760
        %2478 = vmatmul.mubr.f32.gmra.mrb[0].mxu0 %v2477
        %v2479 = vpop.f32.mrb[0].mxu0
        %v2480 = vadd.f32 %v2399, %v2479
        %v2481 = vpop.f32.mrb[0].mxu0
        %2482 = vdwg.mxu0
        %2483 = vmatprep.subr.mxu0 0.0
        %v2484 = vand.u32 %v2306, 4294901760
        %v2485 = vsub.f32 %v2306, %v2484
        %2486 = vmatpush1.msra.mxu0 %v2485
        %2487 = vmatprep.subr.mxu0 0.0
        %v2488 = vand.u32 %v2308, 4294901760
        %v2489 = vsub.f32 %v2308, %v2488
        %2490 = vmatpush1.msra.mxu0 %v2489
        %2491 = vmatprep.subr.mxu0 0.0
        %2492 = vmatpush1.msra.mxu0 0.0
        %2493 = vmatprep.subr.mxu0 0.0
        %2494 = vmatpush1.msra.mxu0 0.0
        %2495 = vmatprep.subr.mxu0 0.0
        %2496 = vmatpush1.msra.mxu0 0.0
        %2497 = vmatprep.subr.mxu0 0.0
        %2498 = vmatpush1.msra.mxu0 0.0
        %2499 = vmatprep.subr.mxu0 0.0
        %2500 = vmatpush1.msra.mxu0 0.0
        %2501 = vmatprep.subr.mxu0 0.0
        %2502 = vmatpush1.msra.mxu0 0.0
        %2503 = vmatprep.subr.mxu0 0.0
        %2504 = vmatpush1.msra.mxu0 0.0
        %2505 = vmatprep.subr.mxu0 0.0
        %2506 = vmatpush1.msra.mxu0 0.0
        %2507 = vmatprep.subr.mxu0 0.0
        %2508 = vmatpush1.msra.mxu0 0.0
        %2509 = vmatprep.subr.mxu0 0.0
        %2510 = vmatpush1.msra.mxu0 0.0
        %2511 = vmatprep.subr.mxu0 0.0
        %2512 = vmatpush1.msra.mxu0 0.0
        %2513 = vmatprep.subr.mxu0 0.0
        %2514 = vmatpush1.msra.mxu0 0.0
        %2515 = vmatprep.subr.mxu0 0.0
        %2516 = vmatpush1.msra.mxu0 0.0
        %2517 = vmatprep.subr.mxu0 0.0
        %2518 = vmatpush1.msra.mxu0 0.0
        %2519 = vmatprep.subr.mxu0 0.0
        %2520 = vmatpush1.msra.mxu0 0.0
        %2521 = vmatprep.subr.mxu0 0.0
        %2522 = vmatpush1.msra.mxu0 0.0
        %2523 = vmatprep.subr.mxu0 0.0
        %2524 = vmatpush1.msra.mxu0 0.0
        %2525 = vmatprep.subr.mxu0 0.0
        %2526 = vmatpush1.msra.mxu0 0.0
        %2527 = vmatprep.subr.mxu0 0.0
        %2528 = vmatpush1.msra.mxu0 0.0
        %2529 = vmatprep.subr.mxu0 0.0
        %2530 = vmatpush1.msra.mxu0 0.0
        %2531 = vmatprep.subr.mxu0 0.0
        %2532 = vmatpush1.msra.mxu0 0.0
        %2533 = vmatprep.subr.mxu0 0.0
        %2534 = vmatpush1.msra.mxu0 0.0
        %2535 = vmatprep.subr.mxu0 0.0
        %2536 = vmatpush1.msra.mxu0 0.0
        %2537 = vmatprep.subr.mxu0 0.0
        %2538 = vmatpush1.msra.mxu0 0.0
        %2539 = vmatprep.subr.mxu0 0.0
        %2540 = vmatpush1.msra.mxu0 0.0
        %2541 = vmatprep.subr.mxu0 0.0
        %2542 = vmatpush1.msra.mxu0 0.0
        %2543 = vmatprep.subr.mxu0 0.0
        %2544 = vmatpush1.msra.mxu0 0.0
        %2545 = vmatprep.subr.mxu0 0.0
        %2546 = vmatpush1.msra.mxu0 0.0
        %2547 = vmatprep.subr.mxu0 0.0
        %2548 = vmatpush1.msra.mxu0 0.0
        %2549 = vmatprep.subr.mxu0 0.0
        %2550 = vmatpush1.msra.mxu0 0.0
        %2551 = vmatprep.mubr.f32.mxu0 0.0
        %v2552 = vand.u32 %v2323, 4294901760
        %v2553 = vsub.f32 %v2323, %v2552
        %2554 = vmatmul.mubr.f32.gmra.mrb[0].mxu0 %v2553
        %v2555 = vpop.f32.mrb[0].mxu0
        %v2556 = vadd.f32 %v2480, %v2555
        %v2557 = vpop.f32.mrb[0].mxu0
        %2558 = vdwg.mxu0
        %2559 = vmatprep.subr.mxu0 0.0
        %v2560 = vand.u32 %v2306, 4294901760
        %2561 = vmatpush1.msra.mxu0 %v2560
        %2562 = vmatprep.subr.mxu0 0.0
        %v2563 = vand.u32 %v2308, 4294901760
        %2564 = vmatpush1.msra.mxu0 %v2563
        %2565 = vmatprep.subr.mxu0 0.0
        %2566 = vmatpush1.msra.mxu0 0.0
        %2567 = vmatprep.subr.mxu0 0.0
        %2568 = vmatpush1.msra.mxu0 0.0
        %2569 = vmatprep.subr.mxu0 0.0
        %2570 = vmatpush1.msra.mxu0 0.0
        %2571 = vmatprep.subr.mxu0 0.0
        %2572 = vmatpush1.msra.mxu0 0.0
        %2573 = vmatprep.subr.mxu0 0.0
        %2574 = vmatpush1.msra.mxu0 0.0
        %2575 = vmatprep.subr.mxu0 0.0
        %2576 = vmatpush1.msra.mxu0 0.0
        %2577 = vmatprep.subr.mxu0 0.0
        %2578 = vmatpush1.msra.mxu0 0.0
        %2579 = vmatprep.subr.mxu0 0.0
        %2580 = vmatpush1.msra.mxu0 0.0
        %2581 = vmatprep.subr.mxu0 0.0
        %2582 = vmatpush1.msra.mxu0 0.0
        %2583 = vmatprep.subr.mxu0 0.0
        %2584 = vmatpush1.msra.mxu0 0.0
        %2585 = vmatprep.subr.mxu0 0.0
        %2586 = vmatpush1.msra.mxu0 0.0
        %2587 = vmatprep.subr.mxu0 0.0
        %2588 = vmatpush1.msra.mxu0 0.0
        %2589 = vmatprep.subr.mxu0 0.0
        %2590 = vmatpush1.msra.mxu0 0.0
        %2591 = vmatprep.subr.mxu0 0.0
        %2592 = vmatpush1.msra.mxu0 0.0
        %2593 = vmatprep.subr.mxu0 0.0
        %2594 = vmatpush1.msra.mxu0 0.0
        %2595 = vmatprep.subr.mxu0 0.0
        %2596 = vmatpush1.msra.mxu0 0.0
        %2597 = vmatprep.subr.mxu0 0.0
        %2598 = vmatpush1.msra.mxu0 0.0
        %2599 = vmatprep.subr.mxu0 0.0
        %2600 = vmatpush1.msra.mxu0 0.0
        %2601 = vmatprep.subr.mxu0 0.0
        %2602 = vmatpush1.msra.mxu0 0.0
        %2603 = vmatprep.subr.mxu0 0.0
        %2604 = vmatpush1.msra.mxu0 0.0
        %2605 = vmatprep.subr.mxu0 0.0
        %2606 = vmatpush1.msra.mxu0 0.0
        %2607 = vmatprep.subr.mxu0 0.0
        %2608 = vmatpush1.msra.mxu0 0.0
        %2609 = vmatprep.subr.mxu0 0.0
        %2610 = vmatpush1.msra.mxu0 0.0
        %2611 = vmatprep.subr.mxu0 0.0
        %2612 = vmatpush1.msra.mxu0 0.0
        %2613 = vmatprep.subr.mxu0 0.0
        %2614 = vmatpush1.msra.mxu0 0.0
        %2615 = vmatprep.subr.mxu0 0.0
        %2616 = vmatpush1.msra.mxu0 0.0
        %2617 = vmatprep.subr.mxu0 0.0
        %2618 = vmatpush1.msra.mxu0 0.0
        %2619 = vmatprep.subr.mxu0 0.0
        %2620 = vmatpush1.msra.mxu0 0.0
        %2621 = vmatprep.subr.mxu0 0.0
        %2622 = vmatpush1.msra.mxu0 0.0
        %2623 = vmatprep.subr.mxu0 0.0
        %2624 = vmatpush1.msra.mxu0 0.0
        %2625 = vmatprep.mubr.f32.mxu0 0.0
        %v2626 = vand.u32 %v2323, 4294901760
        %v2627 = vsub.f32 %v2323, %v2626
        %v2628 = vand.u32 %v2627, 4294901760
        %2629 = vmatmul.mubr.f32.gmra.mrb[0].mxu0 %v2628
        %v2630 = vpop.f32.mrb[0].mxu0
        %v2631 = vadd.f32 %v2556, %v2630
        %v2632 = vpop.f32.mrb[0].mxu0
        %2633 = vdwg.mxu0
        %2634 = vmatprep.subr.mxu0 0.0
        %v2635 = vand.u32 %v2306, 4294901760
        %v2636 = vsub.f32 %v2306, %v2635
        %v2637 = vand.u32 %v2636, 4294901760
        %2638 = vmatpush1.msra.mxu0 %v2637
        %2639 = vmatprep.subr.mxu0 0.0
        %v2640 = vand.u32 %v2308, 4294901760
        %v2641 = vsub.f32 %v2308, %v2640
        %v2642 = vand.u32 %v2641, 4294901760
        %2643 = vmatpush1.msra.mxu0 %v2642
        %2644 = vmatprep.subr.mxu0 0.0
        %2645 = vmatpush1.msra.mxu0 0.0
        %2646 = vmatprep.subr.mxu0 0.0
        %2647 = vmatpush1.msra.mxu0 0.0
        %2648 = vmatprep.subr.mxu0 0.0
        %2649 = vmatpush1.msra.mxu0 0.0
        %2650 = vmatprep.subr.mxu0 0.0
        %2651 = vmatpush1.msra.mxu0 0.0
        %2652 = vmatprep.subr.mxu0 0.0
        %2653 = vmatpush1.msra.mxu0 0.0
        %2654 = vmatprep.subr.mxu0 0.0
        %2655 = vmatpush1.msra.mxu0 0.0
        %2656 = vmatprep.subr.mxu0 0.0
        %2657 = vmatpush1.msra.mxu0 0.0
        %2658 = vmatprep.subr.mxu0 0.0
        %2659 = vmatpush1.msra.mxu0 0.0
        %2660 = vmatprep.subr.mxu0 0.0
        %2661 = vmatpush1.msra.mxu0 0.0
        %2662 = vmatprep.subr.mxu0 0.0
        %2663 = vmatpush1.msra.mxu0 0.0
        %2664 = vmatprep.subr.mxu0 0.0
        %2665 = vmatpush1.msra.mxu0 0.0
        %2666 = vmatprep.subr.mxu0 0.0
        %2667 = vmatpush1.msra.mxu0 0.0
        %2668 = vmatprep.subr.mxu0 0.0
        %2669 = vmatpush1.msra.mxu0 0.0
        %2670 = vmatprep.subr.mxu0 0.0
        %2671 = vmatpush1.msra.mxu0 0.0
        %2672 = vmatprep.subr.mxu0 0.0
        %2673 = vmatpush1.msra.mxu0 0.0
        %2674 = vmatprep.subr.mxu0 0.0
        %2675 = vmatpush1.msra.mxu0 0.0
        %2676 = vmatprep.subr.mxu0 0.0
        %2677 = vmatpush1.msra.mxu0 0.0
        %2678 = vmatprep.subr.mxu0 0.0
        %2679 = vmatpush1.msra.mxu0 0.0
        %2680 = vmatprep.subr.mxu0 0.0
        %2681 = vmatpush1.msra.mxu0 0.0
        %2682 = vmatprep.subr.mxu0 0.0
        %2683 = vmatpush1.msra.mxu0 0.0
        %2684 = vmatprep.subr.mxu0 0.0
        %2685 = vmatpush1.msra.mxu0 0.0
        %2686 = vmatprep.subr.mxu0 0.0
        %2687 = vmatpush1.msra.mxu0 0.0
        %2688 = vmatprep.subr.mxu0 0.0
        %2689 = vmatpush1.msra.mxu0 0.0
        %2690 = vmatprep.subr.mxu0 0.0
        %2691 = vmatpush1.msra.mxu0 0.0
        %2692 = vmatprep.subr.mxu0 0.0
        %2693 = vmatpush1.msra.mxu0 0.0
        %2694 = vmatprep.subr.mxu0 0.0
        %2695 = vmatpush1.msra.mxu0 0.0
        %2696 = vmatprep.subr.mxu0 0.0
        %2697 = vmatpush1.msra.mxu0 0.0
        %2698 = vmatprep.subr.mxu0 0.0
        %2699 = vmatpush1.msra.mxu0 0.0
        %2700 = vmatprep.subr.mxu0 0.0
        %2701 = vmatpush1.msra.mxu0 0.0
        %2702 = vmatprep.subr.mxu0 0.0
        %2703 = vmatpush1.msra.mxu0 0.0
        %2704 = vmatprep.mubr.f32.mxu0 0.0
        %v2705 = vand.u32 %v2323, 4294901760
        %2706 = vmatmul.mubr.f32.gmra.mrb[0].mxu0 %v2705
        %v2707 = vpop.f32.mrb[0].mxu0
        %v2708 = vadd.f32 %v2631, %v2707
        %v2709 = vpop.f32.mrb[0].mxu0
        %2710 = vdwg.mxu0
        %2711 = vmatprep.subr.mxu0 0.0
        %v2712 = vand.u32 %v2306, 4294901760
        %2713 = vmatpush1.msra.mxu0 %v2712
        %2714 = vmatprep.subr.mxu0 0.0
        %v2715 = vand.u32 %v2308, 4294901760
        %2716 = vmatpush1.msra.mxu0 %v2715
        %2717 = vmatprep.subr.mxu0 0.0
        %2718 = vmatpush1.msra.mxu0 0.0
        %2719 = vmatprep.subr.mxu0 0.0
        %2720 = vmatpush1.msra.mxu0 0.0
        %2721 = vmatprep.subr.mxu0 0.0
        %2722 = vmatpush1.msra.mxu0 0.0
        %2723 = vmatprep.subr.mxu0 0.0
        %2724 = vmatpush1.msra.mxu0 0.0
        %2725 = vmatprep.subr.mxu0 0.0
        %2726 = vmatpush1.msra.mxu0 0.0
        %2727 = vmatprep.subr.mxu0 0.0
        %2728 = vmatpush1.msra.mxu0 0.0
        %2729 = vmatprep.subr.mxu0 0.0
        %2730 = vmatpush1.msra.mxu0 0.0
        %2731 = vmatprep.subr.mxu0 0.0
        %2732 = vmatpush1.msra.mxu0 0.0
        %2733 = vmatprep.subr.mxu0 0.0
        %2734 = vmatpush1.msra.mxu0 0.0
        %2735 = vmatprep.subr.mxu0 0.0
        %2736 = vmatpush1.msra.mxu0 0.0
        %2737 = vmatprep.subr.mxu0 0.0
        %2738 = vmatpush1.msra.mxu0 0.0
        %2739 = vmatprep.subr.mxu0 0.0
        %2740 = vmatpush1.msra.mxu0 0.0
        %2741 = vmatprep.subr.mxu0 0.0
        %2742 = vmatpush1.msra.mxu0 0.0
        %2743 = vmatprep.subr.mxu0 0.0
        %2744 = vmatpush1.msra.mxu0 0.0
        %2745 = vmatprep.subr.mxu0 0.0
        %2746 = vmatpush1.msra.mxu0 0.0
        %2747 = vmatprep.subr.mxu0 0.0
        %2748 = vmatpush1.msra.mxu0 0.0
        %2749 = vmatprep.subr.mxu0 0.0
        %2750 = vmatpush1.msra.mxu0 0.0
        %2751 = vmatprep.subr.mxu0 0.0
        %2752 = vmatpush1.msra.mxu0 0.0
        %2753 = vmatprep.subr.mxu0 0.0
        %2754 = vmatpush1.msra.mxu0 0.0
        %2755 = vmatprep.subr.mxu0 0.0
        %2756 = vmatpush1.msra.mxu0 0.0
        %2757 = vmatprep.subr.mxu0 0.0
        %2758 = vmatpush1.msra.mxu0 0.0
        %2759 = vmatprep.subr.mxu0 0.0
        %2760 = vmatpush1.msra.mxu0 0.0
        %2761 = vmatprep.subr.mxu0 0.0
        %2762 = vmatpush1.msra.mxu0 0.0
        %2763 = vmatprep.subr.mxu0 0.0
        %2764 = vmatpush1.msra.mxu0 0.0
        %2765 = vmatprep.subr.mxu0 0.0
        %2766 = vmatpush1.msra.mxu0 0.0
        %2767 = vmatprep.subr.mxu0 0.0
        %2768 = vmatpush1.msra.mxu0 0.0
        %2769 = vmatprep.subr.mxu0 0.0
        %2770 = vmatpush1.msra.mxu0 0.0
        %2771 = vmatprep.subr.mxu0 0.0
        %2772 = vmatpush1.msra.mxu0 0.0
        %2773 = vmatprep.subr.mxu0 0.0
        %2774 = vmatpush1.msra.mxu0 0.0
        %2775 = vmatprep.subr.mxu0 0.0
        %2776 = vmatpush1.msra.mxu0 0.0
        %2777 = vmatprep.mubr.f32.mxu0 0.0
        %v2778 = vand.u32 %v2323, 4294901760
        %2779 = vmatmul.mubr.f32.gmra.mrb[0].mxu0 %v2778
        %v2780 = vpop.f32.mrb[0].mxu0
        %v2781 = vadd.f32 %v2708, %v2780
        %v2782 = vpop.f32.mrb[0].mxu0
        %2783 = vdwg.mxu0
        %v2784 = vand.u32 2147483647, %v2781
        %vm2785 = vcmp.le.f32.partialorder %v2784, 0.7853982
        %vm2786 = vcmp.lt.s32.totalorder %v2781, 0
        %v2787 = vand.u32 %v2781, 2139095040
        %v2788 = vshrl.u32 %v2787, 23
        %v2789 = vsub.s32 %v2788, 127
        %v2790 = vand.u32 2147483647, %v2781
        %v2791 = vand.u32 %v2790, 8388607
        %v2792 = vor.u32 %v2791, 8388608
        %v2793 = vsub.s32 0, %v2792
        %v2794 = vadd.s32 %v2789, 1
        %vm2795 = vcmp.gt.s32.totalorder %v2794, 0
        %v2796 = vsel %vm2795, %v2794, 0
        %v2797 = vshrl.u32 %v2796, 5
        %v2798 = vand.u32 %v2796, 31
        %v2799 = vsub.s32 32, %v2798
        %v2800 = vshrl.u32 683565275, %v2799
        %v2801 = vshll.u32 683565275, %v2798
        %v2802 = vshrl.u32 2475754826, %v2799
        %v2803 = vor.u32 %v2801, %v2802
        %v2804 = vshll.u32 2475754826, %v2798
        %v2805 = vshrl.u32 2131351028, %v2799
        %v2806 = vor.u32 %v2804, %v2805
        %v2807 = vshll.u32 2131351028, %v2798
        %v2808 = vshrl.u32 2102212464, %v2799
        %v2809 = vor.u32 %v2807, %v2808
        %v2810 = vshll.u32 2102212464, %v2798
        %v2811 = vshrl.u32 920167782, %v2799
        %v2812 = vor.u32 %v2810, %v2811
        %v2813 = vshll.u32 920167782, %v2798
        %v2814 = vshrl.u32 1326507024, %v2799
        %v2815 = vor.u32 %v2813, %v2814
        %vm2816 = vcmp.lt.s32.totalorder %v2797, 1
        %vm2817 = vcmp.lt.s32.totalorder %v2797, 2
        %vm2818 = vcmp.lt.s32.totalorder %v2797, 3
        %vm2819 = vcmp.lt.s32.totalorder %v2797, 4
        %v2820 = vsel %vm2816, %v2800, %v2803
        %v2821 = vsel %vm2819, %v2809, 2102212464
        %v2822 = vsel %vm2818, %v2806, %v2821
        %v2823 = vsel %vm2817, %v2820, %v2822
        %v2824 = vsel %vm2816, %v2803, %v2806
        %v2825 = vsel %vm2819, %v2812, 920167782
        %v2826 = vsel %vm2818, %v2809, %v2825
        %v2827 = vsel %vm2817, %v2824, %v2826
        %v2828 = vsel %vm2816, %v2806, %v2809
        %v2829 = vsel %vm2819, %v2815, 1326507024
        %v2830 = vsel %vm2818, %v2812, %v2829
        %v2831 = vsel %vm2817, %v2828, %v2830
        %v2832 = vshll.u32 %v2792, 8
        %v2833 = vmul.u32.u64.compose %v2832, %v2831
        %v2834 = vextract.low.u32 %v2833
        %v2835 = vextract.high.u32 %v2833
        %v2836 = vmul.u32.u64.compose %v2832, %v2827
        %v2837 = vextract.low.u32 %v2836
        %v2838 = vextract.high.u32 %v2836
        %v2839 = vmul.u32 %v2832, %v2823
        %v2840 = vadd.s32 %v2835, %v2837
        %vm2841 = vc.u32 %v2835, %v2837
        %v2842 = vadd.s32 %v2838, 1
        %v2843 = vsel %vm2841, %v2842, %v2838
        %v2844 = vadd.s32 %v2839, %v2843
        %v2845 = vadd.s32 %v2844, 536870912
        %v2846 = vshrl.u32 %v2845, 30
        %v2847 = vshll.u32 %v2846, 30
        %v2848 = vsub.s32 %v2844, %v2847
        %vm2849 = vcmp.lt.s32.totalorder %v2848, 0
        %v2850 = vsub.s32 0, %v2848
        %v2851 = vsel %vm2849, %v2850, %v2848
        %v2852 = vclz %v2851
        %v2853 = vsub.s32 %v2852, 2
        %vm2854 = vcmp.gt.s32.totalorder 0, %v2853
        %v2855 = vsel %vm2854, 0, %v2853
        %v2856 = vsub.s32 32, %v2855
        %v2857 = vshll.u32 %v2848, %v2855
        %v2858 = vshrl.u32 %v2840, %v2856
        %v2859 = vor.u32 %v2857, %v2858
        %v2860 = vsub.s32 4294967266, %v2855
        %v2861 = vadd.s32 %v2860, 127
        %v2862 = vshll.u32 %v2861, 23
        %v2863 = vor.u32 4788187, %v2862
        %v2864 = vand.u32 2147483647, %v2863
        %v2866 = vcvt.s32.f32 %v2859
        %v2867 = vmul.f32 %v2866, %v2864
        %v2868 = vxor.u32 %v2867, 2147483648
        %v2869 = vsel %vm2786, %v2868, %v2867
        %v2870 = vsub.s32 4, %v2846
        %v2871 = vsel %vm2786, %v2870, %v2846
        %v2872 = vsel %vm2785, %v2781, %v2869
        %v2873 = vsel %vm2785, 0, %v2871
        %v2874 = vcosq.f32.pop %v2872
        %v2875 = vsinq.f32.pop %v2872
        %vm2876 = vweird.f32 %v2781
        %v2877 = vand.u32 %v2873, 3
        %vm2878 = vcmp.lt.s32.totalorder %v2877, 2
        %vm2879 = vcmp.eq.s32.totalorder %v2877, 0
        %v2880 = vxor.u32 %v2875, 2147483648
        %v2881 = vsel %vm2879, %v2874, %v2880
        %vm2882 = vcmp.eq.s32.totalorder %v2877, 2
        %v2883 = vxor.u32 %v2874, 2147483648
        %v2884 = vsel %vm2882, %v2883, %v2875
        %v2885 = vsel %vm2878, %v2881, %v2884
        %v2886 = vsel %vm2876, nan, %v2885
        %v2887 = vand.u32 2147483647, %v2781
        %vm2888 = vcmp.le.f32.partialorder %v2887, 0.7853982
        %vm2889 = vcmp.lt.s32.totalorder %v2781, 0
        %v2890 = vand.u32 %v2781, 2139095040
        %v2891 = vshrl.u32 %v2890, 23
        %v2892 = vsub.s32 %v2891, 127
        %v2893 = vand.u32 2147483647, %v2781
        %v2894 = vand.u32 %v2893, 8388607
        %v2895 = vor.u32 %v2894, 8388608
        %v2896 = vsub.s32 0, %v2895
        %v2897 = vadd.s32 %v2892, 1
        %vm2898 = vcmp.gt.s32.totalorder %v2897, 0
        %v2899 = vsel %vm2898, %v2897, 0
        %v2900 = vshrl.u32 %v2899, 5
        %v2901 = vand.u32 %v2899, 31
        %v2902 = vsub.s32 32, %v2901
        %v2903 = vshrl.u32 683565275, %v2902
        %v2904 = vshll.u32 683565275, %v2901
        %v2905 = vshrl.u32 2475754826, %v2902
        %v2906 = vor.u32 %v2904, %v2905
        %v2907 = vshll.u32 2475754826, %v2901
        %v2908 = vshrl.u32 2131351028, %v2902
        %v2909 = vor.u32 %v2907, %v2908
        %v2910 = vshll.u32 2131351028, %v2901
        %v2911 = vshrl.u32 2102212464, %v2902
        %v2912 = vor.u32 %v2910, %v2911
        %v2913 = vshll.u32 2102212464, %v2901
        %v2914 = vshrl.u32 920167782, %v2902
        %v2915 = vor.u32 %v2913, %v2914
        %v2916 = vshll.u32 920167782, %v2901
        %v2917 = vshrl.u32 1326507024, %v2902
        %v2918 = vor.u32 %v2916, %v2917
        %vm2919 = vcmp.lt.s32.totalorder %v2900, 1
        %vm2920 = vcmp.lt.s32.totalorder %v2900, 2
        %vm2921 = vcmp.lt.s32.totalorder %v2900, 3
        %vm2922 = vcmp.lt.s32.totalorder %v2900, 4
        %v2923 = vsel %vm2919, %v2903, %v2906
        %v2924 = vsel %vm2922, %v2912, 2102212464
        %v2925 = vsel %vm2921, %v2909, %v2924
        %v2926 = vsel %vm2920, %v2923, %v2925
        %v2927 = vsel %vm2919, %v2906, %v2909
        %v2928 = vsel %vm2922, %v2915, 920167782
        %v2929 = vsel %vm2921, %v2912, %v2928
        %v2930 = vsel %vm2920, %v2927, %v2929
        %v2931 = vsel %vm2919, %v2909, %v2912
        %v2932 = vsel %vm2922, %v2918, 1326507024
        %v2933 = vsel %vm2921, %v2915, %v2932
        %v2934 = vsel %vm2920, %v2931, %v2933
        %v2935 = vshll.u32 %v2895, 8
        %v2936 = vmul.u32.u64.compose %v2935, %v2934
        %v2937 = vextract.low.u32 %v2936
        %v2938 = vextract.high.u32 %v2936
        %v2939 = vmul.u32.u64.compose %v2935, %v2930
        %v2940 = vextract.low.u32 %v2939
        %v2941 = vextract.high.u32 %v2939
        %v2942 = vmul.u32 %v2935, %v2926
        %v2943 = vadd.s32 %v2938, %v2940
        %vm2944 = vc.u32 %v2938, %v2940
        %v2945 = vadd.s32 %v2941, 1
        %v2946 = vsel %vm2944, %v2945, %v2941
        %v2947 = vadd.s32 %v2942, %v2946
        %v2948 = vadd.s32 %v2947, 536870912
        %v2949 = vshrl.u32 %v2948, 30
        %v2950 = vshll.u32 %v2949, 30
        %v2951 = vsub.s32 %v2947, %v2950
        %vm2952 = vcmp.lt.s32.totalorder %v2951, 0
        %v2953 = vsub.s32 0, %v2951
        %v2954 = vsel %vm2952, %v2953, %v2951
        %v2955 = vclz %v2954
        %v2956 = vsub.s32 %v2955, 2
        %vm2957 = vcmp.gt.s32.totalorder 0, %v2956
        %v2958 = vsel %vm2957, 0, %v2956
        %v2959 = vsub.s32 32, %v2958
        %v2960 = vshll.u32 %v2951, %v2958
        %v2961 = vshrl.u32 %v2943, %v2959
        %v2962 = vor.u32 %v2960, %v2961
        %v2963 = vsub.s32 4294967266, %v2958
        %v2964 = vadd.s32 %v2963, 127
        %v2965 = vshll.u32 %v2964, 23
        %v2966 = vor.u32 4788187, %v2965
        %v2967 = vand.u32 2147483647, %v2966
        %v2969 = vcvt.s32.f32 %v2962
        %v2970 = vmul.f32 %v2969, %v2967
        %v2971 = vxor.u32 %v2970, 2147483648
        %v2972 = vsel %vm2889, %v2971, %v2970
        %v2973 = vsub.s32 4, %v2949
        %v2974 = vsel %vm2889, %v2973, %v2949
        %v2975 = vsel %vm2888, %v2781, %v2972
        %v2976 = vsel %vm2888, 0, %v2974
        %v2977 = vcosq.f32.pop %v2975
        %v2978 = vsinq.f32.pop %v2975
        %vm2979 = vweird.f32 %v2781
        %v2980 = vadd.s32 %v2976, 3
        %v2981 = vand.u32 %v2980, 3
        %vm2982 = vcmp.lt.s32.totalorder %v2981, 2
        %vm2983 = vcmp.eq.s32.totalorder %v2981, 0
        %v2984 = vxor.u32 %v2978, 2147483648
        %v2985 = vsel %vm2983, %v2977, %v2984
        %vm2986 = vcmp.eq.s32.totalorder %v2981, 2
        %v2987 = vxor.u32 %v2977, 2147483648
        %v2988 = vsel %vm2986, %v2987, %v2978
        %v2989 = vsel %vm2982, %v2985, %v2988
        %v2990 = vsel %vm2979, nan, %v2989
        %v2991 = vmul.f32 %v2886, %v1712
        %v2992 = vmul.f32 %v2990, %v1716
        %v2993 = vadd.f32 %v2991, %v2992
        %v2994 = vsub.f32 0.0, %v2990
        %v2995 = vmul.f32 %v2994, %v1712
        %v2996 = vmul.f32 %v2886, %v1716
        %v2997 = vadd.f32 %v2995, %v2996
        %v2998 = vlaneseq
        %v2999 = vshrl.u32 %v2998, 7
        %vm3000 = vcmp.eq.s32.totalorder %v2999, 0
        %vm3001 = vcmp.eq.s32.totalorder %v2999, 1
        %v3002 = vlaneseq
        %v3003 = vshrl.u32 %v3002, 7
        %v3004 = vsub.s32 0, %v3003
        %v3005 = vrot.slane %v2997, %v3004
        %v3006 = vsel %vm3001, %v3005, %v435
        %v3007 = vlaneseq
        %v3008 = vshrl.u32 %v3007, 7
        %v3009 = vsub.s32 0, %v3008
        %v3010 = vrot.slane %v2993, %v3009
        %v3011 = vsel %vm3000, %v3010, %v3006
        %v3012 = vmul.f32 %v3011, %v3011
        %vm3013 = vcmask 1042432
        %v3014 = vsel %vm3013, %v3012, 0.0
        %v3015 = vrot.slane %v3014, 4
        %v3016 = vadd.f32 %v3014, %v3015
        %v3017 = vrot.slane %v3016, 2
        %v3018 = vadd.f32 %v3016, %v3017
        %v3019 = vrot.slane %v3018, 1
        %v3020 = vadd.f32 %v3018, %v3019
        %v3021 = vrsqrt.pop %v3020
        %v3022 = vmul.f32 %v3020, %v3021
        %vm3023 = vcmp.eq.f32.partialorder %v3020, inf
        %v3024 = vsel %vm3023, %v3020, %v3022
        %vm3025 = vcmp.eq.f32.partialorder %v3020, 0.0
        %v3026 = vand.u32 %v3020, 2147483648
        %v3027 = vsel %vm3025, %v3026, %v3024
        %v3028 = vrcp.pop %v3027
        %v3029 = vmul.f32 %v3011, %v3028
        %v3030 = vld [vmem:[%s7] sm:$0xff]
        %v3031 = vld [vmem:[%s7 + $0x8] sm:$0xff]
        %v3032 = vld [vmem:[%s7 + $0x10] sm:$0xff]
        %v3033 = vld [vmem:[%s7 + $0x18] sm:$0xff]
        %v3034 = vld [vmem:[%s8] sm:$0xff]
        %v3035 = vld [vmem:[%s8 + $0x8] sm:$0xff]
        %v3036 = vld [vmem:[%s8 + $0x10] sm:$0xff]
        %v3037 = vld [vmem:[%s8 + $0x18] sm:$0xff]
        %3039 = vset.pattern.permute.xlu0 0
        %3040 = vperm.xlu0 %3039, %v3034
        %v3041 = vpop.permute.xlu0 %3040
        %3044 = vset.pattern.permute.xlu0 0
        %3045 = vperm.xlu0 %3044, %v3035
        %v3046 = vpop.permute.xlu0 %3045
        %3049 = vset.pattern.permute.xlu0 0
        %3050 = vperm.xlu0 %3049, %v3036
        %v3051 = vpop.permute.xlu0 %3050
        %3054 = vset.pattern.permute.xlu0 0
        %3055 = vperm.xlu0 %3054, %v3037
        %v3056 = vpop.permute.xlu0 %3055
        %vm3058 = vcmask 23552
        %v3060 = vsel %vm3058, %v3030, 0
        %v3063 = vsel %vm3058, %v3031, 0
        %v3066 = vsel %vm3058, %v3032, 0
        %v3069 = vsel %vm3058, %v3033, 0
        %v3072 = vsel %vm3013, %v3029, 0
        %3074 = vmatprep.subr.mxu0 0.0
        %v3075 = vand.u32 %v3072, 4294901760
        %3076 = vmatpush1.msra.mxu0 %v3075
        %3077 = vmatprep.subr.mxu0 0.0
        %3078 = vmatpush1.msra.mxu0 0.0
        %3079 = vmatprep.subr.mxu0 0.0
        %3080 = vmatpush1.msra.mxu0 0.0
        %3081 = vmatprep.subr.mxu0 0.0
        %3082 = vmatpush1.msra.mxu0 0.0
        %3083 = vmatprep.subr.mxu0 0.0
        %3084 = vmatpush1.msra.mxu0 0.0
        %3085 = vmatprep.subr.mxu0 0.0
        %3086 = vmatpush1.msra.mxu0 0.0
        %3087 = vmatprep.subr.mxu0 0.0
        %3088 = vmatpush1.msra.mxu0 0.0
        %3089 = vmatprep.subr.mxu0 0.0
        %3090 = vmatpush1.msra.mxu0 0.0
        %3091 = vmatprep.subr.mxu0 0.0
        %3092 = vmatpush1.msra.mxu0 0.0
        %3093 = vmatprep.subr.mxu0 0.0
        %3094 = vmatpush1.msra.mxu0 0.0
        %3095 = vmatprep.subr.mxu0 0.0
        %3096 = vmatpush1.msra.mxu0 0.0
        %3097 = vmatprep.subr.mxu0 0.0
        %3098 = vmatpush1.msra.mxu0 0.0
        %3099 = vmatprep.subr.mxu0 0.0
        %3100 = vmatpush1.msra.mxu0 0.0
        %3101 = vmatprep.subr.mxu0 0.0
        %3102 = vmatpush1.msra.mxu0 0.0
        %3103 = vmatprep.subr.mxu0 0.0
        %3104 = vmatpush1.msra.mxu0 0.0
        %3105 = vmatprep.subr.mxu0 0.0
        %3106 = vmatpush1.msra.mxu0 0.0
        %3107 = vmatprep.subr.mxu0 0.0
        %3108 = vmatpush1.msra.mxu0 0.0
        %3109 = vmatprep.subr.mxu0 0.0
        %3110 = vmatpush1.msra.mxu0 0.0
        %3111 = vmatprep.subr.mxu0 0.0
        %3112 = vmatpush1.msra.mxu0 0.0
        %3113 = vmatprep.subr.mxu0 0.0
        %3114 = vmatpush1.msra.mxu0 0.0
        %3115 = vmatprep.subr.mxu0 0.0
        %3116 = vmatpush1.msra.mxu0 0.0
        %3117 = vmatprep.subr.mxu0 0.0
        %3118 = vmatpush1.msra.mxu0 0.0
        %3119 = vmatprep.subr.mxu0 0.0
        %3120 = vmatpush1.msra.mxu0 0.0
        %3121 = vmatprep.subr.mxu0 0.0
        %3122 = vmatpush1.msra.mxu0 0.0
        %3123 = vmatprep.subr.mxu0 0.0
        %3124 = vmatpush1.msra.mxu0 0.0
        %3125 = vmatprep.subr.mxu0 0.0
        %3126 = vmatpush1.msra.mxu0 0.0
        %3127 = vmatprep.subr.mxu0 0.0
        %3128 = vmatpush1.msra.mxu0 0.0
        %3129 = vmatprep.subr.mxu0 0.0
        %3130 = vmatpush1.msra.mxu0 0.0
        %3131 = vmatprep.subr.mxu0 0.0
        %3132 = vmatpush1.msra.mxu0 0.0
        %3133 = vmatprep.subr.mxu0 0.0
        %3134 = vmatpush1.msra.mxu0 0.0
        %3135 = vmatprep.subr.mxu0 0.0
        %3136 = vmatpush1.msra.mxu0 0.0
        %3137 = vmatprep.subr.mxu0 0.0
        %3138 = vmatpush1.msra.mxu0 0.0
        %3139 = vmatprep.mubr.f32.mxu0 0.0
        %v3140 = vand.u32 %v3060, 4294901760
        %v3141 = vsub.f32 %v3060, %v3140
        %v3142 = vand.u32 %v3141, 4294901760
        %v3143 = vsub.f32 %v3141, %v3142
        %v3144 = vand.u32 %v3143, 4294901760
        %3145 = vmatmul.mubr.f32.gmra.mrb[0].mxu0 %v3144
        %v3146 = vpop.f32.mrb[0].mxu0
        %v3147 = vadd.f32 %v3041, %v3146
        %v3148 = vpop.f32.mrb[0].mxu0
        %3149 = vmatprep.mubr.f32.mxu0 0.0
        %v3150 = vand.u32 %v3063, 4294901760
        %v3151 = vsub.f32 %v3063, %v3150
        %v3152 = vand.u32 %v3151, 4294901760
        %v3153 = vsub.f32 %v3151, %v3152
        %v3154 = vand.u32 %v3153, 4294901760
        %3155 = vmatmul.mubr.f32.gmra.mrb[0].mxu0 %v3154
        %v3156 = vpop.f32.mrb[0].mxu0
        %v3157 = vadd.f32 %v3046, %v3156
        %v3158 = vpop.f32.mrb[0].mxu0
        %3159 = vmatprep.mubr.f32.mxu0 0.0
        %v3160 = vand.u32 %v3066, 4294901760
        %v3161 = vsub.f32 %v3066, %v3160
        %v3162 = vand.u32 %v3161, 4294901760
        %v3163 = vsub.f32 %v3161, %v3162
        %v3164 = vand.u32 %v3163, 4294901760
        %3165 = vmatmul.mubr.f32.gmra.mrb[0].mxu0 %v3164
        %v3166 = vpop.f32.mrb[0].mxu0
        %v3167 = vadd.f32 %v3051, %v3166
        %v3168 = vpop.f32.mrb[0].mxu0
        %3169 = vmatprep.mubr.f32.mxu0 0.0
        %v3170 = vand.u32 %v3069, 4294901760
        %v3171 = vsub.f32 %v3069, %v3170
        %v3172 = vand.u32 %v3171, 4294901760
        %v3173 = vsub.f32 %v3171, %v3172
        %v3174 = vand.u32 %v3173, 4294901760
        %3175 = vmatmul.mubr.f32.gmra.mrb[0].mxu0 %v3174
        %v3176 = vpop.f32.mrb[0].mxu0
        %v3177 = vadd.f32 %v3056, %v3176
        %v3178 = vpop.f32.mrb[0].mxu0
        %3179 = vdwg.mxu0
        %3180 = vmatprep.subr.mxu0 0.0
        %v3181 = vand.u32 %v3072, 4294901760
        %v3182 = vsub.f32 %v3072, %v3181
        %v3183 = vand.u32 %v3182, 4294901760
        %v3184 = vsub.f32 %v3182, %v3183
        %v3185 = vand.u32 %v3184, 4294901760
        %3186 = vmatpush1.msra.mxu0 %v3185
        %3187 = vmatprep.subr.mxu0 0.0
        %3188 = vmatpush1.msra.mxu0 0.0
        %3189 = vmatprep.subr.mxu0 0.0
        %3190 = vmatpush1.msra.mxu0 0.0
        %3191 = vmatprep.subr.mxu0 0.0
        %3192 = vmatpush1.msra.mxu0 0.0
        %3193 = vmatprep.subr.mxu0 0.0
        %3194 = vmatpush1.msra.mxu0 0.0
        %3195 = vmatprep.subr.mxu0 0.0
        %3196 = vmatpush1.msra.mxu0 0.0
        %3197 = vmatprep.subr.mxu0 0.0
        %3198 = vmatpush1.msra.mxu0 0.0
        %3199 = vmatprep.subr.mxu0 0.0
        %3200 = vmatpush1.msra.mxu0 0.0
        %3201 = vmatprep.subr.mxu0 0.0
        %3202 = vmatpush1.msra.mxu0 0.0
        %3203 = vmatprep.subr.mxu0 0.0
        %3204 = vmatpush1.msra.mxu0 0.0
        %3205 = vmatprep.subr.mxu0 0.0
        %3206 = vmatpush1.msra.mxu0 0.0
        %3207 = vmatprep.subr.mxu0 0.0
        %3208 = vmatpush1.msra.mxu0 0.0
        %3209 = vmatprep.subr.mxu0 0.0
        %3210 = vmatpush1.msra.mxu0 0.0
        %3211 = vmatprep.subr.mxu0 0.0
        %3212 = vmatpush1.msra.mxu0 0.0
        %3213 = vmatprep.subr.mxu0 0.0
        %3214 = vmatpush1.msra.mxu0 0.0
        %3215 = vmatprep.subr.mxu0 0.0
        %3216 = vmatpush1.msra.mxu0 0.0
        %3217 = vmatprep.subr.mxu0 0.0
        %3218 = vmatpush1.msra.mxu0 0.0
        %3219 = vmatprep.subr.mxu0 0.0
        %3220 = vmatpush1.msra.mxu0 0.0
        %3221 = vmatprep.subr.mxu0 0.0
        %3222 = vmatpush1.msra.mxu0 0.0
        %3223 = vmatprep.subr.mxu0 0.0
        %3224 = vmatpush1.msra.mxu0 0.0
        %3225 = vmatprep.subr.mxu0 0.0
        %3226 = vmatpush1.msra.mxu0 0.0
        %3227 = vmatprep.subr.mxu0 0.0
        %3228 = vmatpush1.msra.mxu0 0.0
        %3229 = vmatprep.subr.mxu0 0.0
        %3230 = vmatpush1.msra.mxu0 0.0
        %3231 = vmatprep.subr.mxu0 0.0
        %3232 = vmatpush1.msra.mxu0 0.0
        %3233 = vmatprep.subr.mxu0 0.0
        %3234 = vmatpush1.msra.mxu0 0.0
        %3235 = vmatprep.subr.mxu0 0.0
        %3236 = vmatpush1.msra.mxu0 0.0
        %3237 = vmatprep.subr.mxu0 0.0
        %3238 = vmatpush1.msra.mxu0 0.0
        %3239 = vmatprep.subr.mxu0 0.0
        %3240 = vmatpush1.msra.mxu0 0.0
        %3241 = vmatprep.subr.mxu0 0.0
        %3242 = vmatpush1.msra.mxu0 0.0
        %3243 = vmatprep.subr.mxu0 0.0
        %3244 = vmatpush1.msra.mxu0 0.0
        %3245 = vmatprep.subr.mxu0 0.0
        %3246 = vmatpush1.msra.mxu0 0.0
        %3247 = vmatprep.subr.mxu0 0.0
        %3248 = vmatpush1.msra.mxu0 0.0
        %3249 = vmatprep.mubr.f32.mxu0 0.0
        %v3250 = vand.u32 %v3060, 4294901760
        %3251 = vmatmul.mubr.f32.gmra.mrb[0].mxu0 %v3250
        %v3252 = vpop.f32.mrb[0].mxu0
        %v3253 = vadd.f32 %v3147, %v3252
        %v3254 = vpop.f32.mrb[0].mxu0
        %3255 = vmatprep.mubr.f32.mxu0 0.0
        %v3256 = vand.u32 %v3063, 4294901760
        %3257 = vmatmul.mubr.f32.gmra.mrb[0].mxu0 %v3256
        %v3258 = vpop.f32.mrb[0].mxu0
        %v3259 = vadd.f32 %v3157, %v3258
        %v3260 = vpop.f32.mrb[0].mxu0
        %3261 = vmatprep.mubr.f32.mxu0 0.0
        %v3262 = vand.u32 %v3066, 4294901760
        %3263 = vmatmul.mubr.f32.gmra.mrb[0].mxu0 %v3262
        %v3264 = vpop.f32.mrb[0].mxu0
        %v3265 = vadd.f32 %v3167, %v3264
        %v3266 = vpop.f32.mrb[0].mxu0
        %3267 = vmatprep.mubr.f32.mxu0 0.0
        %v3268 = vand.u32 %v3069, 4294901760
        %3269 = vmatmul.mubr.f32.gmra.mrb[0].mxu0 %v3268
        %v3270 = vpop.f32.mrb[0].mxu0
        %v3271 = vadd.f32 %v3177, %v3270
        %v3272 = vpop.f32.mrb[0].mxu0
        %3273 = vdwg.mxu0
        %3274 = vmatprep.subr.mxu0 0.0
        %v3275 = vand.u32 %v3072, 4294901760
        %v3276 = vsub.f32 %v3072, %v3275
        %3277 = vmatpush1.msra.mxu0 %v3276
        %3278 = vmatprep.subr.mxu0 0.0
        %3279 = vmatpush1.msra.mxu0 0.0
        %3280 = vmatprep.subr.mxu0 0.0
        %3281 = vmatpush1.msra.mxu0 0.0
        %3282 = vmatprep.subr.mxu0 0.0
        %3283 = vmatpush1.msra.mxu0 0.0
        %3284 = vmatprep.subr.mxu0 0.0
        %3285 = vmatpush1.msra.mxu0 0.0
        %3286 = vmatprep.subr.mxu0 0.0
        %3287 = vmatpush1.msra.mxu0 0.0
        %3288 = vmatprep.subr.mxu0 0.0
        %3289 = vmatpush1.msra.mxu0 0.0
        %3290 = vmatprep.subr.mxu0 0.0
        %3291 = vmatpush1.msra.mxu0 0.0
        %3292 = vmatprep.subr.mxu0 0.0
        %3293 = vmatpush1.msra.mxu0 0.0
        %3294 = vmatprep.subr.mxu0 0.0
        %3295 = vmatpush1.msra.mxu0 0.0
        %3296 = vmatprep.subr.mxu0 0.0
        %3297 = vmatpush1.msra.mxu0 0.0
        %3298 = vmatprep.subr.mxu0 0.0
        %3299 = vmatpush1.msra.mxu0 0.0
        %3300 = vmatprep.subr.mxu0 0.0
        %3301 = vmatpush1.msra.mxu0 0.0
        %3302 = vmatprep.subr.mxu0 0.0
        %3303 = vmatpush1.msra.mxu0 0.0
        %3304 = vmatprep.subr.mxu0 0.0
        %3305 = vmatpush1.msra.mxu0 0.0
        %3306 = vmatprep.subr.mxu0 0.0
        %3307 = vmatpush1.msra.mxu0 0.0
        %3308 = vmatprep.subr.mxu0 0.0
        %3309 = vmatpush1.msra.mxu0 0.0
        %3310 = vmatprep.subr.mxu0 0.0
        %3311 = vmatpush1.msra.mxu0 0.0
        %3312 = vmatprep.subr.mxu0 0.0
        %3313 = vmatpush1.msra.mxu0 0.0
        %3314 = vmatprep.subr.mxu0 0.0
        %3315 = vmatpush1.msra.mxu0 0.0
        %3316 = vmatprep.subr.mxu0 0.0
        %3317 = vmatpush1.msra.mxu0 0.0
        %3318 = vmatprep.subr.mxu0 0.0
        %3319 = vmatpush1.msra.mxu0 0.0
        %3320 = vmatprep.subr.mxu0 0.0
        %3321 = vmatpush1.msra.mxu0 0.0
        %3322 = vmatprep.subr.mxu0 0.0
        %3323 = vmatpush1.msra.mxu0 0.0
        %3324 = vmatprep.subr.mxu0 0.0
        %3325 = vmatpush1.msra.mxu0 0.0
        %3326 = vmatprep.subr.mxu0 0.0
        %3327 = vmatpush1.msra.mxu0 0.0
        %3328 = vmatprep.subr.mxu0 0.0
        %3329 = vmatpush1.msra.mxu0 0.0
        %3330 = vmatprep.subr.mxu0 0.0
        %3331 = vmatpush1.msra.mxu0 0.0
        %3332 = vmatprep.subr.mxu0 0.0
        %3333 = vmatpush1.msra.mxu0 0.0
        %3334 = vmatprep.subr.mxu0 0.0
        %3335 = vmatpush1.msra.mxu0 0.0
        %3336 = vmatprep.subr.mxu0 0.0
        %3337 = vmatpush1.msra.mxu0 0.0
        %3338 = vmatprep.subr.mxu0 0.0
        %3339 = vmatpush1.msra.mxu0 0.0
        %3340 = vmatprep.mubr.f32.mxu0 0.0
        %v3341 = vand.u32 %v3060, 4294901760
        %v3342 = vsub.f32 %v3060, %v3341
        %3343 = vmatmul.mubr.f32.gmra.mrb[0].mxu0 %v3342
        %v3344 = vpop.f32.mrb[0].mxu0
        %v3345 = vadd.f32 %v3253, %v3344
        %v3346 = vpop.f32.mrb[0].mxu0
        %3347 = vmatprep.mubr.f32.mxu0 0.0
        %v3348 = vand.u32 %v3063, 4294901760
        %v3349 = vsub.f32 %v3063, %v3348
        %3350 = vmatmul.mubr.f32.gmra.mrb[0].mxu0 %v3349
        %v3351 = vpop.f32.mrb[0].mxu0
        %v3352 = vadd.f32 %v3259, %v3351
        %v3353 = vpop.f32.mrb[0].mxu0
        %3354 = vmatprep.mubr.f32.mxu0 0.0
        %v3355 = vand.u32 %v3066, 4294901760
        %v3356 = vsub.f32 %v3066, %v3355
        %3357 = vmatmul.mubr.f32.gmra.mrb[0].mxu0 %v3356
        %v3358 = vpop.f32.mrb[0].mxu0
        %v3359 = vadd.f32 %v3265, %v3358
        %v3360 = vpop.f32.mrb[0].mxu0
        %3361 = vmatprep.mubr.f32.mxu0 0.0
        %v3362 = vand.u32 %v3069, 4294901760
        %v3363 = vsub.f32 %v3069, %v3362
        %3364 = vmatmul.mubr.f32.gmra.mrb[0].mxu0 %v3363
        %v3365 = vpop.f32.mrb[0].mxu0
        %v3366 = vadd.f32 %v3271, %v3365
        %v3367 = vpop.f32.mrb[0].mxu0
        %3368 = vdwg.mxu0
        %3369 = vmatprep.subr.mxu0 0.0
        %v3370 = vand.u32 %v3072, 4294901760
        %3371 = vmatpush1.msra.mxu0 %v3370
        %3372 = vmatprep.subr.mxu0 0.0
        %3373 = vmatpush1.msra.mxu0 0.0
        %3374 = vmatprep.subr.mxu0 0.0
        %3375 = vmatpush1.msra.mxu0 0.0
        %3376 = vmatprep.subr.mxu0 0.0
        %3377 = vmatpush1.msra.mxu0 0.0
        %3378 = vmatprep.subr.mxu0 0.0
        %3379 = vmatpush1.msra.mxu0 0.0
        %3380 = vmatprep.subr.mxu0 0.0
        %3381 = vmatpush1.msra.mxu0 0.0
        %3382 = vmatprep.subr.mxu0 0.0
        %3383 = vmatpush1.msra.mxu0 0.0
        %3384 = vmatprep.subr.mxu0 0.0
        %3385 = vmatpush1.msra.mxu0 0.0
        %3386 = vmatprep.subr.mxu0 0.0
        %3387 = vmatpush1.msra.mxu0 0.0
        %3388 = vmatprep.subr.mxu0 0.0
        %3389 = vmatpush1.msra.mxu0 0.0
        %3390 = vmatprep.subr.mxu0 0.0
        %3391 = vmatpush1.msra.mxu0 0.0
        %3392 = vmatprep.subr.mxu0 0.0
        %3393 = vmatpush1.msra.mxu0 0.0
        %3394 = vmatprep.subr.mxu0 0.0
        %3395 = vmatpush1.msra.mxu0 0.0
        %3396 = vmatprep.subr.mxu0 0.0
        %3397 = vmatpush1.msra.mxu0 0.0
        %3398 = vmatprep.subr.mxu0 0.0
        %3399 = vmatpush1.msra.mxu0 0.0
        %3400 = vmatprep.subr.mxu0 0.0
        %3401 = vmatpush1.msra.mxu0 0.0
        %3402 = vmatprep.subr.mxu0 0.0
        %3403 = vmatpush1.msra.mxu0 0.0
        %3404 = vmatprep.subr.mxu0 0.0
        %3405 = vmatpush1.msra.mxu0 0.0
        %3406 = vmatprep.subr.mxu0 0.0
        %3407 = vmatpush1.msra.mxu0 0.0
        %3408 = vmatprep.subr.mxu0 0.0
        %3409 = vmatpush1.msra.mxu0 0.0
        %3410 = vmatprep.subr.mxu0 0.0
        %3411 = vmatpush1.msra.mxu0 0.0
        %3412 = vmatprep.subr.mxu0 0.0
        %3413 = vmatpush1.msra.mxu0 0.0
        %3414 = vmatprep.subr.mxu0 0.0
        %3415 = vmatpush1.msra.mxu0 0.0
        %3416 = vmatprep.subr.mxu0 0.0
        %3417 = vmatpush1.msra.mxu0 0.0
        %3418 = vmatprep.subr.mxu0 0.0
        %3419 = vmatpush1.msra.mxu0 0.0
        %3420 = vmatprep.subr.mxu0 0.0
        %3421 = vmatpush1.msra.mxu0 0.0
        %3422 = vmatprep.subr.mxu0 0.0
        %3423 = vmatpush1.msra.mxu0 0.0
        %3424 = vmatprep.subr.mxu0 0.0
        %3425 = vmatpush1.msra.mxu0 0.0
        %3426 = vmatprep.subr.mxu0 0.0
        %3427 = vmatpush1.msra.mxu0 0.0
        %3428 = vmatprep.subr.mxu0 0.0
        %3429 = vmatpush1.msra.mxu0 0.0
        %3430 = vmatprep.subr.mxu0 0.0
        %3431 = vmatpush1.msra.mxu0 0.0
        %3432 = vmatprep.subr.mxu0 0.0
        %3433 = vmatpush1.msra.mxu0 0.0
        %3434 = vmatprep.mubr.f32.mxu0 0.0
        %v3435 = vand.u32 %v3060, 4294901760
        %v3436 = vsub.f32 %v3060, %v3435
        %v3437 = vand.u32 %v3436, 4294901760
        %3438 = vmatmul.mubr.f32.gmra.mrb[0].mxu0 %v3437
        %v3439 = vpop.f32.mrb[0].mxu0
        %v3440 = vadd.f32 %v3345, %v3439
        %v3441 = vpop.f32.mrb[0].mxu0
        %3442 = vmatprep.mubr.f32.mxu0 0.0
        %v3443 = vand.u32 %v3063, 4294901760
        %v3444 = vsub.f32 %v3063, %v3443
        %v3445 = vand.u32 %v3444, 4294901760
        %3446 = vmatmul.mubr.f32.gmra.mrb[0].mxu0 %v3445
        %v3447 = vpop.f32.mrb[0].mxu0
        %v3448 = vadd.f32 %v3352, %v3447
        %v3449 = vpop.f32.mrb[0].mxu0
        %3450 = vmatprep.mubr.f32.mxu0 0.0
        %v3451 = vand.u32 %v3066, 4294901760
        %v3452 = vsub.f32 %v3066, %v3451
        %v3453 = vand.u32 %v3452, 4294901760
        %3454 = vmatmul.mubr.f32.gmra.mrb[0].mxu0 %v3453
        %v3455 = vpop.f32.mrb[0].mxu0
        %v3456 = vadd.f32 %v3359, %v3455
        %v3457 = vpop.f32.mrb[0].mxu0
        %3458 = vmatprep.mubr.f32.mxu0 0.0
        %v3459 = vand.u32 %v3069, 4294901760
        %v3460 = vsub.f32 %v3069, %v3459
        %v3461 = vand.u32 %v3460, 4294901760
        %3462 = vmatmul.mubr.f32.gmra.mrb[0].mxu0 %v3461
        %v3463 = vpop.f32.mrb[0].mxu0
        %v3464 = vadd.f32 %v3366, %v3463
        %v3465 = vpop.f32.mrb[0].mxu0
        %3466 = vdwg.mxu0
        %3467 = vmatprep.subr.mxu0 0.0
        %v3468 = vand.u32 %v3072, 4294901760
        %v3469 = vsub.f32 %v3072, %v3468
        %v3470 = vand.u32 %v3469, 4294901760
        %3471 = vmatpush1.msra.mxu0 %v3470
        %3472 = vmatprep.subr.mxu0 0.0
        %3473 = vmatpush1.msra.mxu0 0.0
        %3474 = vmatprep.subr.mxu0 0.0
        %3475 = vmatpush1.msra.mxu0 0.0
        %3476 = vmatprep.subr.mxu0 0.0
        %3477 = vmatpush1.msra.mxu0 0.0
        %3478 = vmatprep.subr.mxu0 0.0
        %3479 = vmatpush1.msra.mxu0 0.0
        %3480 = vmatprep.subr.mxu0 0.0
        %3481 = vmatpush1.msra.mxu0 0.0
        %3482 = vmatprep.subr.mxu0 0.0
        %3483 = vmatpush1.msra.mxu0 0.0
        %3484 = vmatprep.subr.mxu0 0.0
        %3485 = vmatpush1.msra.mxu0 0.0
        %3486 = vmatprep.subr.mxu0 0.0
        %3487 = vmatpush1.msra.mxu0 0.0
        %3488 = vmatprep.subr.mxu0 0.0
        %3489 = vmatpush1.msra.mxu0 0.0
        %3490 = vmatprep.subr.mxu0 0.0
        %3491 = vmatpush1.msra.mxu0 0.0
        %3492 = vmatprep.subr.mxu0 0.0
        %3493 = vmatpush1.msra.mxu0 0.0
        %3494 = vmatprep.subr.mxu0 0.0
        %3495 = vmatpush1.msra.mxu0 0.0
        %3496 = vmatprep.subr.mxu0 0.0
        %3497 = vmatpush1.msra.mxu0 0.0
        %3498 = vmatprep.subr.mxu0 0.0
        %3499 = vmatpush1.msra.mxu0 0.0
        %3500 = vmatprep.subr.mxu0 0.0
        %3501 = vmatpush1.msra.mxu0 0.0
        %3502 = vmatprep.subr.mxu0 0.0
        %3503 = vmatpush1.msra.mxu0 0.0
        %3504 = vmatprep.subr.mxu0 0.0
        %3505 = vmatpush1.msra.mxu0 0.0
        %3506 = vmatprep.subr.mxu0 0.0
        %3507 = vmatpush1.msra.mxu0 0.0
        %3508 = vmatprep.subr.mxu0 0.0
        %3509 = vmatpush1.msra.mxu0 0.0
        %3510 = vmatprep.subr.mxu0 0.0
        %3511 = vmatpush1.msra.mxu0 0.0
        %3512 = vmatprep.subr.mxu0 0.0
        %3513 = vmatpush1.msra.mxu0 0.0
        %3514 = vmatprep.subr.mxu0 0.0
        %3515 = vmatpush1.msra.mxu0 0.0
        %3516 = vmatprep.subr.mxu0 0.0
        %3517 = vmatpush1.msra.mxu0 0.0
        %3518 = vmatprep.subr.mxu0 0.0
        %3519 = vmatpush1.msra.mxu0 0.0
        %3520 = vmatprep.subr.mxu0 0.0
        %3521 = vmatpush1.msra.mxu0 0.0
        %3522 = vmatprep.subr.mxu0 0.0
        %3523 = vmatpush1.msra.mxu0 0.0
        %3524 = vmatprep.subr.mxu0 0.0
        %3525 = vmatpush1.msra.mxu0 0.0
        %3526 = vmatprep.subr.mxu0 0.0
        %3527 = vmatpush1.msra.mxu0 0.0
        %3528 = vmatprep.subr.mxu0 0.0
        %3529 = vmatpush1.msra.mxu0 0.0
        %3530 = vmatprep.subr.mxu0 0.0
        %3531 = vmatpush1.msra.mxu0 0.0
        %3532 = vmatprep.subr.mxu0 0.0
        %3533 = vmatpush1.msra.mxu0 0.0
        %3534 = vmatprep.mubr.f32.mxu0 0.0
        %v3535 = vand.u32 %v3060, 4294901760
        %3536 = vmatmul.mubr.f32.gmra.mrb[0].mxu0 %v3535
        %v3537 = vpop.f32.mrb[0].mxu0
        %v3538 = vadd.f32 %v3440, %v3537
        %v3539 = vpop.f32.mrb[0].mxu0
        %3540 = vmatprep.mubr.f32.mxu0 0.0
        %v3541 = vand.u32 %v3063, 4294901760
        %3542 = vmatmul.mubr.f32.gmra.mrb[0].mxu0 %v3541
        %v3543 = vpop.f32.mrb[0].mxu0
        %v3544 = vadd.f32 %v3448, %v3543
        %v3545 = vpop.f32.mrb[0].mxu0
        %3546 = vmatprep.mubr.f32.mxu0 0.0
        %v3547 = vand.u32 %v3066, 4294901760
        %3548 = vmatmul.mubr.f32.gmra.mrb[0].mxu0 %v3547
        %v3549 = vpop.f32.mrb[0].mxu0
        %v3550 = vadd.f32 %v3456, %v3549
        %v3551 = vpop.f32.mrb[0].mxu0
        %3552 = vmatprep.mubr.f32.mxu0 0.0
        %v3553 = vand.u32 %v3069, 4294901760
        %3554 = vmatmul.mubr.f32.gmra.mrb[0].mxu0 %v3553
        %v3555 = vpop.f32.mrb[0].mxu0
        %v3556 = vadd.f32 %v3464, %v3555
        %v3557 = vpop.f32.mrb[0].mxu0
        %3558 = vdwg.mxu0
        %3559 = vmatprep.subr.mxu0 0.0
        %v3560 = vand.u32 %v3072, 4294901760
        %3561 = vmatpush1.msra.mxu0 %v3560
        %3562 = vmatprep.subr.mxu0 0.0
        %3563 = vmatpush1.msra.mxu0 0.0
        %3564 = vmatprep.subr.mxu0 0.0
        %3565 = vmatpush1.msra.mxu0 0.0
        %3566 = vmatprep.subr.mxu0 0.0
        %3567 = vmatpush1.msra.mxu0 0.0
        %3568 = vmatprep.subr.mxu0 0.0
        %3569 = vmatpush1.msra.mxu0 0.0
        %3570 = vmatprep.subr.mxu0 0.0
        %3571 = vmatpush1.msra.mxu0 0.0
        %3572 = vmatprep.subr.mxu0 0.0
        %3573 = vmatpush1.msra.mxu0 0.0
        %3574 = vmatprep.subr.mxu0 0.0
        %3575 = vmatpush1.msra.mxu0 0.0
        %3576 = vmatprep.subr.mxu0 0.0
        %3577 = vmatpush1.msra.mxu0 0.0
        %3578 = vmatprep.subr.mxu0 0.0
        %3579 = vmatpush1.msra.mxu0 0.0
        %3580 = vmatprep.subr.mxu0 0.0
        %3581 = vmatpush1.msra.mxu0 0.0
        %3582 = vmatprep.subr.mxu0 0.0
        %3583 = vmatpush1.msra.mxu0 0.0
        %3584 = vmatprep.subr.mxu0 0.0
        %3585 = vmatpush1.msra.mxu0 0.0
        %3586 = vmatprep.subr.mxu0 0.0
        %3587 = vmatpush1.msra.mxu0 0.0
        %3588 = vmatprep.subr.mxu0 0.0
        %3589 = vmatpush1.msra.mxu0 0.0
        %3590 = vmatprep.subr.mxu0 0.0
        %3591 = vmatpush1.msra.mxu0 0.0
        %3592 = vmatprep.subr.mxu0 0.0
        %3593 = vmatpush1.msra.mxu0 0.0
        %3594 = vmatprep.subr.mxu0 0.0
        %3595 = vmatpush1.msra.mxu0 0.0
        %3596 = vmatprep.subr.mxu0 0.0
        %3597 = vmatpush1.msra.mxu0 0.0
        %3598 = vmatprep.subr.mxu0 0.0
        %3599 = vmatpush1.msra.mxu0 0.0
        %3600 = vmatprep.subr.mxu0 0.0
        %3601 = vmatpush1.msra.mxu0 0.0
        %3602 = vmatprep.subr.mxu0 0.0
        %3603 = vmatpush1.msra.mxu0 0.0
        %3604 = vmatprep.subr.mxu0 0.0
        %3605 = vmatpush1.msra.mxu0 0.0
        %3606 = vmatprep.subr.mxu0 0.0
        %3607 = vmatpush1.msra.mxu0 0.0
        %3608 = vmatprep.subr.mxu0 0.0
        %3609 = vmatpush1.msra.mxu0 0.0
        %3610 = vmatprep.subr.mxu0 0.0
        %3611 = vmatpush1.msra.mxu0 0.0
        %3612 = vmatprep.subr.mxu0 0.0
        %3613 = vmatpush1.msra.mxu0 0.0
        %3614 = vmatprep.subr.mxu0 0.0
        %3615 = vmatpush1.msra.mxu0 0.0
        %3616 = vmatprep.subr.mxu0 0.0
        %3617 = vmatpush1.msra.mxu0 0.0
        %3618 = vmatprep.subr.mxu0 0.0
        %3619 = vmatpush1.msra.mxu0 0.0
        %3620 = vmatprep.subr.mxu0 0.0
        %3621 = vmatpush1.msra.mxu0 0.0
        %3622 = vmatprep.subr.mxu0 0.0
        %3623 = vmatpush1.msra.mxu0 0.0
        %3624 = vmatprep.mubr.f32.mxu0 0.0
        %v3625 = vand.u32 %v3060, 4294901760
        %3626 = vmatmul.mubr.f32.gmra.mrb[0].mxu0 %v3625
        %v3627 = vpop.f32.mrb[0].mxu0
        %v3628 = vadd.f32 %v3538, %v3627
        %v3629 = vpop.f32.mrb[0].mxu0
        %3630 = vmatprep.mubr.f32.mxu0 0.0
        %v3631 = vand.u32 %v3063, 4294901760
        %3632 = vmatmul.mubr.f32.gmra.mrb[0].mxu0 %v3631
        %v3633 = vpop.f32.mrb[0].mxu0
        %v3634 = vadd.f32 %v3544, %v3633
        %v3635 = vpop.f32.mrb[0].mxu0
        %3636 = vmatprep.mubr.f32.mxu0 0.0
        %v3637 = vand.u32 %v3066, 4294901760
        %3638 = vmatmul.mubr.f32.gmra.mrb[0].mxu0 %v3637
        %v3639 = vpop.f32.mrb[0].mxu0
        %v3640 = vadd.f32 %v3550, %v3639
        %v3641 = vpop.f32.mrb[0].mxu0
        %3642 = vmatprep.mubr.f32.mxu0 0.0
        %v3643 = vand.u32 %v3069, 4294901760
        %3644 = vmatmul.mubr.f32.gmra.mrb[0].mxu0 %v3643
        %v3645 = vpop.f32.mrb[0].mxu0
        %v3646 = vadd.f32 %v3556, %v3645
        %v3647 = vpop.f32.mrb[0].mxu0
        %3648 = vdwg.mxu0
        %v3649 = vxor.u32 %v3628, 2147483648
        %v3650 = vxor.u32 %v3634, 2147483648
        %v3651 = vxor.u32 %v3640, 2147483648
        %v3652 = vxor.u32 %v3646, 2147483648
        %v3653 = vmul.f32 %v3649, 1.442695
        %v3654 = vpow.pop %v3653
        %v3655 = vmul.f32 %v3650, 1.442695
        %v3656 = vpow.pop %v3655
        %v3657 = vmul.f32 %v3651, 1.442695
        %v3658 = vpow.pop %v3657
        %v3659 = vmul.f32 %v3652, 1.442695
        %v3660 = vpow.pop %v3659
        %v3661 = vadd.f32 %v3654, 1.0
        %v3662 = vadd.f32 %v3656, 1.0
        %v3663 = vadd.f32 %v3658, 1.0
        %v3664 = vadd.f32 %v3660, 1.0
        %v3665 = vrcp.pop %v3661
        %v3666 = vmul.f32 1.0, %v3665
        %v3667 = vrcp.pop %v3662
        %v3668 = vmul.f32 1.0, %v3667
        %v3669 = vrcp.pop %v3663
        %v3670 = vmul.f32 1.0, %v3669
        %v3671 = vrcp.pop %v3664
        %v3672 = vmul.f32 1.0, %v3671
        %v3673 = vld [vmem:[%s9] sm:$0xff]
        %v3674 = vld [vmem:[%s9 + $0x8] sm:$0xff]
        %v3675 = vld [vmem:[%s9 + $0x10] sm:$0xff]
        %v3676 = vld [vmem:[%s9 + $0x18] sm:$0xff]
        %v3677 = vld [vmem:[%s10] sm:$0xff]
        %v3678 = vld [vmem:[%s10 + $0x8] sm:$0xff]
        %v3679 = vld [vmem:[%s10 + $0x10] sm:$0xff]
        %v3680 = vld [vmem:[%s10 + $0x18] sm:$0xff]
        %3682 = vset.pattern.permute.xlu0 0
        %3683 = vperm.xlu0 %3682, %v3677
        %v3684 = vpop.permute.xlu0 %3683
        %3687 = vset.pattern.permute.xlu0 0
        %3688 = vperm.xlu0 %3687, %v3678
        %v3689 = vpop.permute.xlu0 %3688
        %3692 = vset.pattern.permute.xlu0 0
        %3693 = vperm.xlu0 %3692, %v3679
        %v3694 = vpop.permute.xlu0 %3693
        %3697 = vset.pattern.permute.xlu0 0
        %3698 = vperm.xlu0 %3697, %v3680
        %v3699 = vpop.permute.xlu0 %3698
        %vm3701 = vcmask 261120
        %v3703 = vsel %vm3701, %v3673, 0
        %v3706 = vsel %vm3701, %v3674, 0
        %v3709 = vsel %vm3701, %v3675, 0
        %v3712 = vsel %vm3701, %v3676, 0
        %3714 = vmatprep.subr.mxu0 0.0
        %v3715 = vand.u32 %v3666, 4294901760
        %3716 = vmatpush1.msra.mxu0 %v3715
        %3717 = vmatprep.subr.mxu0 0.0
        %v3718 = vand.u32 %v3668, 4294901760
        %3719 = vmatpush1.msra.mxu0 %v3718
        %3720 = vmatprep.subr.mxu0 0.0
        %v3721 = vand.u32 %v3670, 4294901760
        %3722 = vmatpush1.msra.mxu0 %v3721
        %3723 = vmatprep.subr.mxu0 0.0
        %v3724 = vand.u32 %v3672, 4294901760
        %3725 = vmatpush1.msra.mxu0 %v3724
        %3726 = vmatprep.subr.mxu0 0.0
        %3727 = vmatpush1.msra.mxu0 0.0
        %3728 = vmatprep.subr.mxu0 0.0
        %3729 = vmatpush1.msra.mxu0 0.0
        %3730 = vmatprep.subr.mxu0 0.0
        %3731 = vmatpush1.msra.mxu0 0.0
        %3732 = vmatprep.subr.mxu0 0.0
        %3733 = vmatpush1.msra.mxu0 0.0
        %3734 = vmatprep.subr.mxu0 0.0
        %3735 = vmatpush1.msra.mxu0 0.0
        %3736 = vmatprep.subr.mxu0 0.0
        %3737 = vmatpush1.msra.mxu0 0.0
        %3738 = vmatprep.subr.mxu0 0.0
        %3739 = vmatpush1.msra.mxu0 0.0
        %3740 = vmatprep.subr.mxu0 0.0
        %3741 = vmatpush1.msra.mxu0 0.0
        %3742 = vmatprep.subr.mxu0 0.0
        %3743 = vmatpush1.msra.mxu0 0.0
        %3744 = vmatprep.subr.mxu0 0.0
        %3745 = vmatpush1.msra.mxu0 0.0
        %3746 = vmatprep.subr.mxu0 0.0
        %3747 = vmatpush1.msra.mxu0 0.0
        %3748 = vmatprep.subr.mxu0 0.0
        %3749 = vmatpush1.msra.mxu0 0.0
        %3750 = vmatprep.subr.mxu0 0.0
        %3751 = vmatpush1.msra.mxu0 0.0
        %3752 = vmatprep.subr.mxu0 0.0
        %3753 = vmatpush1.msra.mxu0 0.0
        %3754 = vmatprep.subr.mxu0 0.0
        %3755 = vmatpush1.msra.mxu0 0.0
        %3756 = vmatprep.subr.mxu0 0.0
        %3757 = vmatpush1.msra.mxu0 0.0
        %3758 = vmatprep.subr.mxu0 0.0
        %3759 = vmatpush1.msra.mxu0 0.0
        %3760 = vmatprep.subr.mxu0 0.0
        %3761 = vmatpush1.msra.mxu0 0.0
        %3762 = vmatprep.subr.mxu0 0.0
        %3763 = vmatpush1.msra.mxu0 0.0
        %3764 = vmatprep.subr.mxu0 0.0
        %3765 = vmatpush1.msra.mxu0 0.0
        %3766 = vmatprep.subr.mxu0 0.0
        %3767 = vmatpush1.msra.mxu0 0.0
        %3768 = vmatprep.subr.mxu0 0.0
        %3769 = vmatpush1.msra.mxu0 0.0
        %3770 = vmatprep.subr.mxu0 0.0
        %3771 = vmatpush1.msra.mxu0 0.0
        %3772 = vmatprep.subr.mxu0 0.0
        %3773 = vmatpush1.msra.mxu0 0.0
        %3774 = vmatprep.subr.mxu0 0.0
        %3775 = vmatpush1.msra.mxu0 0.0
        %3776 = vmatprep.subr.mxu0 0.0
        %3777 = vmatpush1.msra.mxu0 0.0
        %3778 = vmatprep.subr.mxu0 0.0
        %3779 = vmatpush1.msra.mxu0 0.0
        %3780 = vmatprep.subr.mxu0 0.0
        %3781 = vmatpush1.msra.mxu0 0.0
        %3782 = vmatprep.mubr.f32.mxu0 0.0
        %v3783 = vand.u32 %v3703, 4294901760
        %v3784 = vsub.f32 %v3703, %v3783
        %v3785 = vand.u32 %v3784, 4294901760
        %v3786 = vsub.f32 %v3784, %v3785
        %v3787 = vand.u32 %v3786, 4294901760
        %3788 = vmatmul.mubr.f32.gmra.mrb[0].mxu0 %v3787
        %v3789 = vpop.f32.mrb[0].mxu0
        %v3790 = vadd.f32 %v3684, %v3789
        %v3791 = vpop.f32.mrb[0].mxu0
        %3792 = vmatprep.mubr.f32.mxu0 0.0
        %v3793 = vand.u32 %v3706, 4294901760
        %v3794 = vsub.f32 %v3706, %v3793
        %v3795 = vand.u32 %v3794, 4294901760
        %v3796 = vsub.f32 %v3794, %v3795
        %v3797 = vand.u32 %v3796, 4294901760
        %3798 = vmatmul.mubr.f32.gmra.mrb[0].mxu0 %v3797
        %v3799 = vpop.f32.mrb[0].mxu0
        %v3800 = vadd.f32 %v3689, %v3799
        %v3801 = vpop.f32.mrb[0].mxu0
        %3802 = vmatprep.mubr.f32.mxu0 0.0
        %v3803 = vand.u32 %v3709, 4294901760
        %v3804 = vsub.f32 %v3709, %v3803
        %v3805 = vand.u32 %v3804, 4294901760
        %v3806 = vsub.f32 %v3804, %v3805
        %v3807 = vand.u32 %v3806, 4294901760
        %3808 = vmatmul.mubr.f32.gmra.mrb[0].mxu0 %v3807
        %v3809 = vpop.f32.mrb[0].mxu0
        %v3810 = vadd.f32 %v3694, %v3809
        %v3811 = vpop.f32.mrb[0].mxu0
        %3812 = vmatprep.mubr.f32.mxu0 0.0
        %v3813 = vand.u32 %v3712, 4294901760
        %v3814 = vsub.f32 %v3712, %v3813
        %v3815 = vand.u32 %v3814, 4294901760
        %v3816 = vsub.f32 %v3814, %v3815
        %v3817 = vand.u32 %v3816, 4294901760
        %3818 = vmatmul.mubr.f32.gmra.mrb[0].mxu0 %v3817
        %v3819 = vpop.f32.mrb[0].mxu0
        %v3820 = vadd.f32 %v3699, %v3819
        %v3821 = vpop.f32.mrb[0].mxu0
        %3822 = vdwg.mxu0
        %3823 = vmatprep.subr.mxu0 0.0
        %v3824 = vand.u32 %v3666, 4294901760
        %v3825 = vsub.f32 %v3666, %v3824
        %v3826 = vand.u32 %v3825, 4294901760
        %v3827 = vsub.f32 %v3825, %v3826
        %v3828 = vand.u32 %v3827, 4294901760
        %3829 = vmatpush1.msra.mxu0 %v3828
        %3830 = vmatprep.subr.mxu0 0.0
        %v3831 = vand.u32 %v3668, 4294901760
        %v3832 = vsub.f32 %v3668, %v3831
        %v3833 = vand.u32 %v3832, 4294901760
        %v3834 = vsub.f32 %v3832, %v3833
        %v3835 = vand.u32 %v3834, 4294901760
        %3836 = vmatpush1.msra.mxu0 %v3835
        %3837 = vmatprep.subr.mxu0 0.0
        %v3838 = vand.u32 %v3670, 4294901760
        %v3839 = vsub.f32 %v3670, %v3838
        %v3840 = vand.u32 %v3839, 4294901760
        %v3841 = vsub.f32 %v3839, %v3840
        %v3842 = vand.u32 %v3841, 4294901760
        %3843 = vmatpush1.msra.mxu0 %v3842
        %3844 = vmatprep.subr.mxu0 0.0
        %v3845 = vand.u32 %v3672, 4294901760
        %v3846 = vsub.f32 %v3672, %v3845
        %v3847 = vand.u32 %v3846, 4294901760
        %v3848 = vsub.f32 %v3846, %v3847
        %v3849 = vand.u32 %v3848, 4294901760
        %3850 = vmatpush1.msra.mxu0 %v3849
        %3851 = vmatprep.subr.mxu0 0.0
        %3852 = vmatpush1.msra.mxu0 0.0
        %3853 = vmatprep.subr.mxu0 0.0
        %3854 = vmatpush1.msra.mxu0 0.0
        %3855 = vmatprep.subr.mxu0 0.0
        %3856 = vmatpush1.msra.mxu0 0.0
        %3857 = vmatprep.subr.mxu0 0.0
        %3858 = vmatpush1.msra.mxu0 0.0
        %3859 = vmatprep.subr.mxu0 0.0
        %3860 = vmatpush1.msra.mxu0 0.0
        %3861 = vmatprep.subr.mxu0 0.0
        %3862 = vmatpush1.msra.mxu0 0.0
        %3863 = vmatprep.subr.mxu0 0.0
        %3864 = vmatpush1.msra.mxu0 0.0
        %3865 = vmatprep.subr.mxu0 0.0
        %3866 = vmatpush1.msra.mxu0 0.0
        %3867 = vmatprep.subr.mxu0 0.0
        %3868 = vmatpush1.msra.mxu0 0.0
        %3869 = vmatprep.subr.mxu0 0.0
        %3870 = vmatpush1.msra.mxu0 0.0
        %3871 = vmatprep.subr.mxu0 0.0
        %3872 = vmatpush1.msra.mxu0 0.0
        %3873 = vmatprep.subr.mxu0 0.0
        %3874 = vmatpush1.msra.mxu0 0.0
        %3875 = vmatprep.subr.mxu0 0.0
        %3876 = vmatpush1.msra.mxu0 0.0
        %3877 = vmatprep.subr.mxu0 0.0
        %3878 = vmatpush1.msra.mxu0 0.0
        %3879 = vmatprep.subr.mxu0 0.0
        %3880 = vmatpush1.msra.mxu0 0.0
        %3881 = vmatprep.subr.mxu0 0.0
        %3882 = vmatpush1.msra.mxu0 0.0
        %3883 = vmatprep.subr.mxu0 0.0
        %3884 = vmatpush1.msra.mxu0 0.0
        %3885 = vmatprep.subr.mxu0 0.0
        %3886 = vmatpush1.msra.mxu0 0.0
        %3887 = vmatprep.subr.mxu0 0.0
        %3888 = vmatpush1.msra.mxu0 0.0
        %3889 = vmatprep.subr.mxu0 0.0
        %3890 = vmatpush1.msra.mxu0 0.0
        %3891 = vmatprep.subr.mxu0 0.0
        %3892 = vmatpush1.msra.mxu0 0.0
        %3893 = vmatprep.subr.mxu0 0.0
        %3894 = vmatpush1.msra.mxu0 0.0
        %3895 = vmatprep.subr.mxu0 0.0
        %3896 = vmatpush1.msra.mxu0 0.0
        %3897 = vmatprep.subr.mxu0 0.0
        %3898 = vmatpush1.msra.mxu0 0.0
        %3899 = vmatprep.subr.mxu0 0.0
        %3900 = vmatpush1.msra.mxu0 0.0
        %3901 = vmatprep.subr.mxu0 0.0
        %3902 = vmatpush1.msra.mxu0 0.0
        %3903 = vmatprep.subr.mxu0 0.0
        %3904 = vmatpush1.msra.mxu0 0.0
        %3905 = vmatprep.subr.mxu0 0.0
        %3906 = vmatpush1.msra.mxu0 0.0
        %3907 = vmatprep.mubr.f32.mxu0 0.0
        %v3908 = vand.u32 %v3703, 4294901760
        %3909 = vmatmul.mubr.f32.gmra.mrb[0].mxu0 %v3908
        %v3910 = vpop.f32.mrb[0].mxu0
        %v3911 = vadd.f32 %v3790, %v3910
        %v3912 = vpop.f32.mrb[0].mxu0
        %3913 = vmatprep.mubr.f32.mxu0 0.0
        %v3914 = vand.u32 %v3706, 4294901760
        %3915 = vmatmul.mubr.f32.gmra.mrb[0].mxu0 %v3914
        %v3916 = vpop.f32.mrb[0].mxu0
        %v3917 = vadd.f32 %v3800, %v3916
        %v3918 = vpop.f32.mrb[0].mxu0
        %3919 = vmatprep.mubr.f32.mxu0 0.0
        %v3920 = vand.u32 %v3709, 4294901760
        %3921 = vmatmul.mubr.f32.gmra.mrb[0].mxu0 %v3920
        %v3922 = vpop.f32.mrb[0].mxu0
        %v3923 = vadd.f32 %v3810, %v3922
        %v3924 = vpop.f32.mrb[0].mxu0
        %3925 = vmatprep.mubr.f32.mxu0 0.0
        %v3926 = vand.u32 %v3712, 4294901760
        %3927 = vmatmul.mubr.f32.gmra.mrb[0].mxu0 %v3926
        %v3928 = vpop.f32.mrb[0].mxu0
        %v3929 = vadd.f32 %v3820, %v3928
        %v3930 = vpop.f32.mrb[0].mxu0
        %3931 = vdwg.mxu0
        %3932 = vmatprep.subr.mxu0 0.0
        %v3933 = vand.u32 %v3666, 4294901760
        %v3934 = vsub.f32 %v3666, %v3933
        %3935 = vmatpush1.msra.mxu0 %v3934
        %3936 = vmatprep.subr.mxu0 0.0
        %v3937 = vand.u32 %v3668, 4294901760
        %v3938 = vsub.f32 %v3668, %v3937
        %3939 = vmatpush1.msra.mxu0 %v3938
        %3940 = vmatprep.subr.mxu0 0.0
        %v3941 = vand.u32 %v3670, 4294901760
        %v3942 = vsub.f32 %v3670, %v3941
        %3943 = vmatpush1.msra.mxu0 %v3942
        %3944 = vmatprep.subr.mxu0 0.0
        %v3945 = vand.u32 %v3672, 4294901760
        %v3946 = vsub.f32 %v3672, %v3945
        %3947 = vmatpush1.msra.mxu0 %v3946
        %3948 = vmatprep.subr.mxu0 0.0
        %3949 = vmatpush1.msra.mxu0 0.0
        %3950 = vmatprep.subr.mxu0 0.0
        %3951 = vmatpush1.msra.mxu0 0.0
        %3952 = vmatprep.subr.mxu0 0.0
        %3953 = vmatpush1.msra.mxu0 0.0
        %3954 = vmatprep.subr.mxu0 0.0
        %3955 = vmatpush1.msra.mxu0 0.0
        %3956 = vmatprep.subr.mxu0 0.0
        %3957 = vmatpush1.msra.mxu0 0.0
        %3958 = vmatprep.subr.mxu0 0.0
        %3959 = vmatpush1.msra.mxu0 0.0
        %3960 = vmatprep.subr.mxu0 0.0
        %3961 = vmatpush1.msra.mxu0 0.0
        %3962 = vmatprep.subr.mxu0 0.0
        %3963 = vmatpush1.msra.mxu0 0.0
        %3964 = vmatprep.subr.mxu0 0.0
        %3965 = vmatpush1.msra.mxu0 0.0
        %3966 = vmatprep.subr.mxu0 0.0
        %3967 = vmatpush1.msra.mxu0 0.0
        %3968 = vmatprep.subr.mxu0 0.0
        %3969 = vmatpush1.msra.mxu0 0.0
        %3970 = vmatprep.subr.mxu0 0.0
        %3971 = vmatpush1.msra.mxu0 0.0
        %3972 = vmatprep.subr.mxu0 0.0
        %3973 = vmatpush1.msra.mxu0 0.0
        %3974 = vmatprep.subr.mxu0 0.0
        %3975 = vmatpush1.msra.mxu0 0.0
        %3976 = vmatprep.subr.mxu0 0.0
        %3977 = vmatpush1.msra.mxu0 0.0
        %3978 = vmatprep.subr.mxu0 0.0
        %3979 = vmatpush1.msra.mxu0 0.0
        %3980 = vmatprep.subr.mxu0 0.0
        %3981 = vmatpush1.msra.mxu0 0.0
        %3982 = vmatprep.subr.mxu0 0.0
        %3983 = vmatpush1.msra.mxu0 0.0
        %3984 = vmatprep.subr.mxu0 0.0
        %3985 = vmatpush1.msra.mxu0 0.0
        %3986 = vmatprep.subr.mxu0 0.0
        %3987 = vmatpush1.msra.mxu0 0.0
        %3988 = vmatprep.subr.mxu0 0.0
        %3989 = vmatpush1.msra.mxu0 0.0
        %3990 = vmatprep.subr.mxu0 0.0
        %3991 = vmatpush1.msra.mxu0 0.0
        %3992 = vmatprep.subr.mxu0 0.0
        %3993 = vmatpush1.msra.mxu0 0.0
        %3994 = vmatprep.subr.mxu0 0.0
        %3995 = vmatpush1.msra.mxu0 0.0
        %3996 = vmatprep.subr.mxu0 0.0
        %3997 = vmatpush1.msra.mxu0 0.0
        %3998 = vmatprep.subr.mxu0 0.0
        %3999 = vmatpush1.msra.mxu0 0.0
        %4000 = vmatprep.subr.mxu0 0.0
        %4001 = vmatpush1.msra.mxu0 0.0
        %4002 = vmatprep.subr.mxu0 0.0
        %4003 = vmatpush1.msra.mxu0 0.0
        %4004 = vmatprep.mubr.f32.mxu0 0.0
        %v4005 = vand.u32 %v3703, 4294901760
        %v4006 = vsub.f32 %v3703, %v4005
        %4007 = vmatmul.mubr.f32.gmra.mrb[0].mxu0 %v4006
        %v4008 = vpop.f32.mrb[0].mxu0
        %v4009 = vadd.f32 %v3911, %v4008
        %v4010 = vpop.f32.mrb[0].mxu0
        %4011 = vmatprep.mubr.f32.mxu0 0.0
        %v4012 = vand.u32 %v3706, 4294901760
        %v4013 = vsub.f32 %v3706, %v4012
        %4014 = vmatmul.mubr.f32.gmra.mrb[0].mxu0 %v4013
        %v4015 = vpop.f32.mrb[0].mxu0
        %v4016 = vadd.f32 %v3917, %v4015
        %v4017 = vpop.f32.mrb[0].mxu0
        %4018 = vmatprep.mubr.f32.mxu0 0.0
        %v4019 = vand.u32 %v3709, 4294901760
        %v4020 = vsub.f32 %v3709, %v4019
        %4021 = vmatmul.mubr.f32.gmra.mrb[0].mxu0 %v4020
        %v4022 = vpop.f32.mrb[0].mxu0
        %v4023 = vadd.f32 %v3923, %v4022
        %v4024 = vpop.f32.mrb[0].mxu0
        %4025 = vmatprep.mubr.f32.mxu0 0.0
        %v4026 = vand.u32 %v3712, 4294901760
        %v4027 = vsub.f32 %v3712, %v4026
        %4028 = vmatmul.mubr.f32.gmra.mrb[0].mxu0 %v4027
        %v4029 = vpop.f32.mrb[0].mxu0
        %v4030 = vadd.f32 %v3929, %v4029
        %v4031 = vpop.f32.mrb[0].mxu0
        %4032 = vdwg.mxu0
        %4033 = vmatprep.subr.mxu0 0.0
        %v4034 = vand.u32 %v3666, 4294901760
        %4035 = vmatpush1.msra.mxu0 %v4034
        %4036 = vmatprep.subr.mxu0 0.0
        %v4037 = vand.u32 %v3668, 4294901760
        %4038 = vmatpush1.msra.mxu0 %v4037
        %4039 = vmatprep.subr.mxu0 0.0
        %v4040 = vand.u32 %v3670, 4294901760
        %4041 = vmatpush1.msra.mxu0 %v4040
        %4042 = vmatprep.subr.mxu0 0.0
        %v4043 = vand.u32 %v3672, 4294901760
        %4044 = vmatpush1.msra.mxu0 %v4043
        %4045 = vmatprep.subr.mxu0 0.0
        %4046 = vmatpush1.msra.mxu0 0.0
        %4047 = vmatprep.subr.mxu0 0.0
        %4048 = vmatpush1.msra.mxu0 0.0
        %4049 = vmatprep.subr.mxu0 0.0
        %4050 = vmatpush1.msra.mxu0 0.0
        %4051 = vmatprep.subr.mxu0 0.0
        %4052 = vmatpush1.msra.mxu0 0.0
        %4053 = vmatprep.subr.mxu0 0.0
        %4054 = vmatpush1.msra.mxu0 0.0
        %4055 = vmatprep.subr.mxu0 0.0
        %4056 = vmatpush1.msra.mxu0 0.0
        %4057 = vmatprep.subr.mxu0 0.0
        %4058 = vmatpush1.msra.mxu0 0.0
        %4059 = vmatprep.subr.mxu0 0.0
        %4060 = vmatpush1.msra.mxu0 0.0
        %4061 = vmatprep.subr.mxu0 0.0
        %4062 = vmatpush1.msra.mxu0 0.0
        %4063 = vmatprep.subr.mxu0 0.0
        %4064 = vmatpush1.msra.mxu0 0.0
        %4065 = vmatprep.subr.mxu0 0.0
        %4066 = vmatpush1.msra.mxu0 0.0
        %4067 = vmatprep.subr.mxu0 0.0
        %4068 = vmatpush1.msra.mxu0 0.0
        %4069 = vmatprep.subr.mxu0 0.0
        %4070 = vmatpush1.msra.mxu0 0.0
        %4071 = vmatprep.subr.mxu0 0.0
        %4072 = vmatpush1.msra.mxu0 0.0
        %4073 = vmatprep.subr.mxu0 0.0
        %4074 = vmatpush1.msra.mxu0 0.0
        %4075 = vmatprep.subr.mxu0 0.0
        %4076 = vmatpush1.msra.mxu0 0.0
        %4077 = vmatprep.subr.mxu0 0.0
        %4078 = vmatpush1.msra.mxu0 0.0
        %4079 = vmatprep.subr.mxu0 0.0
        %4080 = vmatpush1.msra.mxu0 0.0
        %4081 = vmatprep.subr.mxu0 0.0
        %4082 = vmatpush1.msra.mxu0 0.0
        %4083 = vmatprep.subr.mxu0 0.0
        %4084 = vmatpush1.msra.mxu0 0.0
        %4085 = vmatprep.subr.mxu0 0.0
        %4086 = vmatpush1.msra.mxu0 0.0
        %4087 = vmatprep.subr.mxu0 0.0
        %4088 = vmatpush1.msra.mxu0 0.0
        %4089 = vmatprep.subr.mxu0 0.0
        %4090 = vmatpush1.msra.mxu0 0.0
        %4091 = vmatprep.subr.mxu0 0.0
        %4092 = vmatpush1.msra.mxu0 0.0
        %4093 = vmatprep.subr.mxu0 0.0
        %4094 = vmatpush1.msra.mxu0 0.0
        %4095 = vmatprep.subr.mxu0 0.0
        %4096 = vmatpush1.msra.mxu0 0.0
        %4097 = vmatprep.subr.mxu0 0.0
        %4098 = vmatpush1.msra.mxu0 0.0
        %4099 = vmatprep.subr.mxu0 0.0
        %4100 = vmatpush1.msra.mxu0 0.0
        %4101 = vmatprep.mubr.f32.mxu0 0.0
        %v4102 = vand.u32 %v3703, 4294901760
        %v4103 = vsub.f32 %v3703, %v4102
        %v4104 = vand.u32 %v4103, 4294901760
        %4105 = vmatmul.mubr.f32.gmra.mrb[0].mxu0 %v4104
        %v4106 = vpop.f32.mrb[0].mxu0
        %v4107 = vadd.f32 %v4009, %v4106
        %v4108 = vpop.f32.mrb[0].mxu0
        %4109 = vmatprep.mubr.f32.mxu0 0.0
        %v4110 = vand.u32 %v3706, 4294901760
        %v4111 = vsub.f32 %v3706, %v4110
        %v4112 = vand.u32 %v4111, 4294901760
        %4113 = vmatmul.mubr.f32.gmra.mrb[0].mxu0 %v4112
        %v4114 = vpop.f32.mrb[0].mxu0
        %v4115 = vadd.f32 %v4016, %v4114
        %v4116 = vpop.f32.mrb[0].mxu0
        %4117 = vmatprep.mubr.f32.mxu0 0.0
        %v4118 = vand.u32 %v3709, 4294901760
        %v4119 = vsub.f32 %v3709, %v4118
        %v4120 = vand.u32 %v4119, 4294901760
        %4121 = vmatmul.mubr.f32.gmra.mrb[0].mxu0 %v4120
        %v4122 = vpop.f32.mrb[0].mxu0
        %v4123 = vadd.f32 %v4023, %v4122
        %v4124 = vpop.f32.mrb[0].mxu0
        %4125 = vmatprep.mubr.f32.mxu0 0.0
        %v4126 = vand.u32 %v3712, 4294901760
        %v4127 = vsub.f32 %v3712, %v4126
        %v4128 = vand.u32 %v4127, 4294901760
        %4129 = vmatmul.mubr.f32.gmra.mrb[0].mxu0 %v4128
        %v4130 = vpop.f32.mrb[0].mxu0
        %v4131 = vadd.f32 %v4030, %v4130
        %v4132 = vpop.f32.mrb[0].mxu0
        %4133 = vdwg.mxu0
        %4134 = vmatprep.subr.mxu0 0.0
        %v4135 = vand.u32 %v3666, 4294901760
        %v4136 = vsub.f32 %v3666, %v4135
        %v4137 = vand.u32 %v4136, 4294901760
        %4138 = vmatpush1.msra.mxu0 %v4137
        %4139 = vmatprep.subr.mxu0 0.0
        %v4140 = vand.u32 %v3668, 4294901760
        %v4141 = vsub.f32 %v3668, %v4140
        %v4142 = vand.u32 %v4141, 4294901760
        %4143 = vmatpush1.msra.mxu0 %v4142
        %4144 = vmatprep.subr.mxu0 0.0
        %v4145 = vand.u32 %v3670, 4294901760
        %v4146 = vsub.f32 %v3670, %v4145
        %v4147 = vand.u32 %v4146, 4294901760
        %4148 = vmatpush1.msra.mxu0 %v4147
        %4149 = vmatprep.subr.mxu0 0.0
        %v4150 = vand.u32 %v3672, 4294901760
        %v4151 = vsub.f32 %v3672, %v4150
        %v4152 = vand.u32 %v4151, 4294901760
        %4153 = vmatpush1.msra.mxu0 %v4152
        %4154 = vmatprep.subr.mxu0 0.0
        %4155 = vmatpush1.msra.mxu0 0.0
        %4156 = vmatprep.subr.mxu0 0.0
        %4157 = vmatpush1.msra.mxu0 0.0
        %4158 = vmatprep.subr.mxu0 0.0
        %4159 = vmatpush1.msra.mxu0 0.0
        %4160 = vmatprep.subr.mxu0 0.0
        %4161 = vmatpush1.msra.mxu0 0.0
        %4162 = vmatprep.subr.mxu0 0.0
        %4163 = vmatpush1.msra.mxu0 0.0
        %4164 = vmatprep.subr.mxu0 0.0
        %4165 = vmatpush1.msra.mxu0 0.0
        %4166 = vmatprep.subr.mxu0 0.0
        %4167 = vmatpush1.msra.mxu0 0.0
        %4168 = vmatprep.subr.mxu0 0.0
        %4169 = vmatpush1.msra.mxu0 0.0
        %4170 = vmatprep.subr.mxu0 0.0
        %4171 = vmatpush1.msra.mxu0 0.0
        %4172 = vmatprep.subr.mxu0 0.0
        %4173 = vmatpush1.msra.mxu0 0.0
        %4174 = vmatprep.subr.mxu0 0.0
        %4175 = vmatpush1.msra.mxu0 0.0
        %4176 = vmatprep.subr.mxu0 0.0
        %4177 = vmatpush1.msra.mxu0 0.0
        %4178 = vmatprep.subr.mxu0 0.0
        %4179 = vmatpush1.msra.mxu0 0.0
        %4180 = vmatprep.subr.mxu0 0.0
        %4181 = vmatpush1.msra.mxu0 0.0
        %4182 = vmatprep.subr.mxu0 0.0
        %4183 = vmatpush1.msra.mxu0 0.0
        %4184 = vmatprep.subr.mxu0 0.0
        %4185 = vmatpush1.msra.mxu0 0.0
        %4186 = vmatprep.subr.mxu0 0.0
        %4187 = vmatpush1.msra.mxu0 0.0
        %4188 = vmatprep.subr.mxu0 0.0
        %4189 = vmatpush1.msra.mxu0 0.0
        %4190 = vmatprep.subr.mxu0 0.0
        %4191 = vmatpush1.msra.mxu0 0.0
        %4192 = vmatprep.subr.mxu0 0.0
        %4193 = vmatpush1.msra.mxu0 0.0
        %4194 = vmatprep.subr.mxu0 0.0
        %4195 = vmatpush1.msra.mxu0 0.0
        %4196 = vmatprep.subr.mxu0 0.0
        %4197 = vmatpush1.msra.mxu0 0.0
        %4198 = vmatprep.subr.mxu0 0.0
        %4199 = vmatpush1.msra.mxu0 0.0
        %4200 = vmatprep.subr.mxu0 0.0
        %4201 = vmatpush1.msra.mxu0 0.0
        %4202 = vmatprep.subr.mxu0 0.0
        %4203 = vmatpush1.msra.mxu0 0.0
        %4204 = vmatprep.subr.mxu0 0.0
        %4205 = vmatpush1.msra.mxu0 0.0
        %4206 = vmatprep.subr.mxu0 0.0
        %4207 = vmatpush1.msra.mxu0 0.0
        %4208 = vmatprep.subr.mxu0 0.0
        %4209 = vmatpush1.msra.mxu0 0.0
        %4210 = vmatprep.mubr.f32.mxu0 0.0
        %v4211 = vand.u32 %v3703, 4294901760
        %4212 = vmatmul.mubr.f32.gmra.mrb[0].mxu0 %v4211
        %v4213 = vpop.f32.mrb[0].mxu0
        %v4214 = vadd.f32 %v4107, %v4213
        %v4215 = vpop.f32.mrb[0].mxu0
        %4216 = vmatprep.mubr.f32.mxu0 0.0
        %v4217 = vand.u32 %v3706, 4294901760
        %4218 = vmatmul.mubr.f32.gmra.mrb[0].mxu0 %v4217
        %v4219 = vpop.f32.mrb[0].mxu0
        %v4220 = vadd.f32 %v4115, %v4219
        %v4221 = vpop.f32.mrb[0].mxu0
        %4222 = vmatprep.mubr.f32.mxu0 0.0
        %v4223 = vand.u32 %v3709, 4294901760
        %4224 = vmatmul.mubr.f32.gmra.mrb[0].mxu0 %v4223
        %v4225 = vpop.f32.mrb[0].mxu0
        %v4226 = vadd.f32 %v4123, %v4225
        %v4227 = vpop.f32.mrb[0].mxu0
        %4228 = vmatprep.mubr.f32.mxu0 0.0
        %v4229 = vand.u32 %v3712, 4294901760
        %4230 = vmatmul.mubr.f32.gmra.mrb[0].mxu0 %v4229
        %v4231 = vpop.f32.mrb[0].mxu0
        %v4232 = vadd.f32 %v4131, %v4231
        %v4233 = vpop.f32.mrb[0].mxu0
        %4234 = vdwg.mxu0
        %4235 = vmatprep.subr.mxu0 0.0
        %v4236 = vand.u32 %v3666, 4294901760
        %4237 = vmatpush1.msra.mxu0 %v4236
        %4238 = vmatprep.subr.mxu0 0.0
        %v4239 = vand.u32 %v3668, 4294901760
        %4240 = vmatpush1.msra.mxu0 %v4239
        %4241 = vmatprep.subr.mxu0 0.0
        %v4242 = vand.u32 %v3670, 4294901760
        %4243 = vmatpush1.msra.mxu0 %v4242
        %4244 = vmatprep.subr.mxu0 0.0
        %v4245 = vand.u32 %v3672, 4294901760
        %4246 = vmatpush1.msra.mxu0 %v4245
        %4247 = vmatprep.subr.mxu0 0.0
        %4248 = vmatpush1.msra.mxu0 0.0
        %4249 = vmatprep.subr.mxu0 0.0
        %4250 = vmatpush1.msra.mxu0 0.0
        %4251 = vmatprep.subr.mxu0 0.0
        %4252 = vmatpush1.msra.mxu0 0.0
        %4253 = vmatprep.subr.mxu0 0.0
        %4254 = vmatpush1.msra.mxu0 0.0
        %4255 = vmatprep.subr.mxu0 0.0
        %4256 = vmatpush1.msra.mxu0 0.0
        %4257 = vmatprep.subr.mxu0 0.0
        %4258 = vmatpush1.msra.mxu0 0.0
        %4259 = vmatprep.subr.mxu0 0.0
        %4260 = vmatpush1.msra.mxu0 0.0
        %4261 = vmatprep.subr.mxu0 0.0
        %4262 = vmatpush1.msra.mxu0 0.0
        %4263 = vmatprep.subr.mxu0 0.0
        %4264 = vmatpush1.msra.mxu0 0.0
        %4265 = vmatprep.subr.mxu0 0.0
        %4266 = vmatpush1.msra.mxu0 0.0
        %4267 = vmatprep.subr.mxu0 0.0
        %4268 = vmatpush1.msra.mxu0 0.0
        %4269 = vmatprep.subr.mxu0 0.0
        %4270 = vmatpush1.msra.mxu0 0.0
        %4271 = vmatprep.subr.mxu0 0.0
        %4272 = vmatpush1.msra.mxu0 0.0
        %4273 = vmatprep.subr.mxu0 0.0
        %4274 = vmatpush1.msra.mxu0 0.0
        %4275 = vmatprep.subr.mxu0 0.0
        %4276 = vmatpush1.msra.mxu0 0.0
        %4277 = vmatprep.subr.mxu0 0.0
        %4278 = vmatpush1.msra.mxu0 0.0
        %4279 = vmatprep.subr.mxu0 0.0
        %4280 = vmatpush1.msra.mxu0 0.0
        %4281 = vmatprep.subr.mxu0 0.0
        %4282 = vmatpush1.msra.mxu0 0.0
        %4283 = vmatprep.subr.mxu0 0.0
        %4284 = vmatpush1.msra.mxu0 0.0
        %4285 = vmatprep.subr.mxu0 0.0
        %4286 = vmatpush1.msra.mxu0 0.0
        %4287 = vmatprep.subr.mxu0 0.0
        %4288 = vmatpush1.msra.mxu0 0.0
        %4289 = vmatprep.subr.mxu0 0.0
        %4290 = vmatpush1.msra.mxu0 0.0
        %4291 = vmatprep.subr.mxu0 0.0
        %4292 = vmatpush1.msra.mxu0 0.0
        %4293 = vmatprep.subr.mxu0 0.0
        %4294 = vmatpush1.msra.mxu0 0.0
        %4295 = vmatprep.subr.mxu0 0.0
        %4296 = vmatpush1.msra.mxu0 0.0
        %4297 = vmatprep.subr.mxu0 0.0
        %4298 = vmatpush1.msra.mxu0 0.0
        %4299 = vmatprep.subr.mxu0 0.0
        %4300 = vmatpush1.msra.mxu0 0.0
        %4301 = vmatprep.subr.mxu0 0.0
        %4302 = vmatpush1.msra.mxu0 0.0
        %4303 = vmatprep.mubr.f32.mxu0 0.0
        %v4304 = vand.u32 %v3703, 4294901760
        %4305 = vmatmul.mubr.f32.gmra.mrb[0].mxu0 %v4304
        %v4306 = vpop.f32.mrb[0].mxu0
        %v4307 = vadd.f32 %v4214, %v4306
        %v4308 = vpop.f32.mrb[0].mxu0
        %4309 = vmatprep.mubr.f32.mxu0 0.0
        %v4310 = vand.u32 %v3706, 4294901760
        %4311 = vmatmul.mubr.f32.gmra.mrb[0].mxu0 %v4310
        %v4312 = vpop.f32.mrb[0].mxu0
        %v4313 = vadd.f32 %v4220, %v4312
        %v4314 = vpop.f32.mrb[0].mxu0
        %4315 = vmatprep.mubr.f32.mxu0 0.0
        %v4316 = vand.u32 %v3709, 4294901760
        %4317 = vmatmul.mubr.f32.gmra.mrb[0].mxu0 %v4316
        %v4318 = vpop.f32.mrb[0].mxu0
        %v4319 = vadd.f32 %v4226, %v4318
        %v4320 = vpop.f32.mrb[0].mxu0
        %4321 = vmatprep.mubr.f32.mxu0 0.0
        %v4322 = vand.u32 %v3712, 4294901760
        %4323 = vmatmul.mubr.f32.gmra.mrb[0].mxu0 %v4322
        %v4324 = vpop.f32.mrb[0].mxu0
        %v4325 = vadd.f32 %v4232, %v4324
        %v4326 = vpop.f32.mrb[0].mxu0
        %4327 = vdwg.mxu0
        %v4328 = vxor.u32 %v4307, 2147483648
        %v4329 = vxor.u32 %v4313, 2147483648
        %v4330 = vxor.u32 %v4319, 2147483648
        %v4331 = vxor.u32 %v4325, 2147483648
        %v4332 = vmul.f32 %v4328, 1.442695
        %v4333 = vpow.pop %v4332
        %v4334 = vmul.f32 %v4329, 1.442695
        %v4335 = vpow.pop %v4334
        %v4336 = vmul.f32 %v4330, 1.442695
        %v4337 = vpow.pop %v4336
        %v4338 = vmul.f32 %v4331, 1.442695
        %v4339 = vpow.pop %v4338
        %v4340 = vadd.f32 %v4333, 1.0
        %v4341 = vadd.f32 %v4335, 1.0
        %v4342 = vadd.f32 %v4337, 1.0
        %v4343 = vadd.f32 %v4339, 1.0
        %v4344 = vrcp.pop %v4340
        %v4345 = vmul.f32 1.0, %v4344
        %v4346 = vrcp.pop %v4341
        %v4347 = vmul.f32 1.0, %v4346
        %v4348 = vrcp.pop %v4342
        %v4349 = vmul.f32 1.0, %v4348
        %v4350 = vrcp.pop %v4343
        %v4351 = vmul.f32 1.0, %v4350
        %v4352 = vld [vmem:[%s11] sm:$0xff]
        %v4353 = vld [vmem:[%s11 + $0x8] sm:$0xff]
        %v4354 = vld [vmem:[%s11 + $0x10] sm:$0xff]
        %v4355 = vld [vmem:[%s11 + $0x18] sm:$0xff]
        %v4356 = vld [vmem:[%s12] sm:$0xff]
        %v4357 = vld [vmem:[%s12 + $0x8] sm:$0xff]
        %v4358 = vld [vmem:[%s12 + $0x10] sm:$0xff]
        %v4359 = vld [vmem:[%s12 + $0x18] sm:$0xff]
        %4361 = vset.pattern.permute.xlu0 0
        %4362 = vperm.xlu0 %4361, %v4356
        %v4363 = vpop.permute.xlu0 %4362
        %4366 = vset.pattern.permute.xlu0 0
        %4367 = vperm.xlu0 %4366, %v4357
        %v4368 = vpop.permute.xlu0 %4367
        %4371 = vset.pattern.permute.xlu0 0
        %4372 = vperm.xlu0 %4371, %v4358
        %v4373 = vpop.permute.xlu0 %4372
        %4376 = vset.pattern.permute.xlu0 0
        %4377 = vperm.xlu0 %4376, %v4359
        %v4378 = vpop.permute.xlu0 %4377
        %v4381 = vsel %vm3701, %v4352, 0
        %v4384 = vsel %vm3701, %v4353, 0
        %v4387 = vsel %vm3701, %v4354, 0
        %v4390 = vsel %vm3701, %v4355, 0
        %4392 = vmatprep.subr.mxu0 0.0
        %v4393 = vand.u32 %v4345, 4294901760
        %4394 = vmatpush1.msra.mxu0 %v4393
        %4395 = vmatprep.subr.mxu0 0.0
        %v4396 = vand.u32 %v4347, 4294901760
        %4397 = vmatpush1.msra.mxu0 %v4396
        %4398 = vmatprep.subr.mxu0 0.0
        %v4399 = vand.u32 %v4349, 4294901760
        %4400 = vmatpush1.msra.mxu0 %v4399
        %4401 = vmatprep.subr.mxu0 0.0
        %v4402 = vand.u32 %v4351, 4294901760
        %4403 = vmatpush1.msra.mxu0 %v4402
        %4404 = vmatprep.subr.mxu0 0.0
        %4405 = vmatpush1.msra.mxu0 0.0
        %4406 = vmatprep.subr.mxu0 0.0
        %4407 = vmatpush1.msra.mxu0 0.0
        %4408 = vmatprep.subr.mxu0 0.0
        %4409 = vmatpush1.msra.mxu0 0.0
        %4410 = vmatprep.subr.mxu0 0.0
        %4411 = vmatpush1.msra.mxu0 0.0
        %4412 = vmatprep.subr.mxu0 0.0
        %4413 = vmatpush1.msra.mxu0 0.0
        %4414 = vmatprep.subr.mxu0 0.0
        %4415 = vmatpush1.msra.mxu0 0.0
        %4416 = vmatprep.subr.mxu0 0.0
        %4417 = vmatpush1.msra.mxu0 0.0
        %4418 = vmatprep.subr.mxu0 0.0
        %4419 = vmatpush1.msra.mxu0 0.0
        %4420 = vmatprep.subr.mxu0 0.0
        %4421 = vmatpush1.msra.mxu0 0.0
        %4422 = vmatprep.subr.mxu0 0.0
        %4423 = vmatpush1.msra.mxu0 0.0
        %4424 = vmatprep.subr.mxu0 0.0
        %4425 = vmatpush1.msra.mxu0 0.0
        %4426 = vmatprep.subr.mxu0 0.0
        %4427 = vmatpush1.msra.mxu0 0.0
        %4428 = vmatprep.subr.mxu0 0.0
        %4429 = vmatpush1.msra.mxu0 0.0
        %4430 = vmatprep.subr.mxu0 0.0
        %4431 = vmatpush1.msra.mxu0 0.0
        %4432 = vmatprep.subr.mxu0 0.0
        %4433 = vmatpush1.msra.mxu0 0.0
        %4434 = vmatprep.subr.mxu0 0.0
        %4435 = vmatpush1.msra.mxu0 0.0
        %4436 = vmatprep.subr.mxu0 0.0
        %4437 = vmatpush1.msra.mxu0 0.0
        %4438 = vmatprep.subr.mxu0 0.0
        %4439 = vmatpush1.msra.mxu0 0.0
        %4440 = vmatprep.subr.mxu0 0.0
        %4441 = vmatpush1.msra.mxu0 0.0
        %4442 = vmatprep.subr.mxu0 0.0
        %4443 = vmatpush1.msra.mxu0 0.0
        %4444 = vmatprep.subr.mxu0 0.0
        %4445 = vmatpush1.msra.mxu0 0.0
        %4446 = vmatprep.subr.mxu0 0.0
        %4447 = vmatpush1.msra.mxu0 0.0
        %4448 = vmatprep.subr.mxu0 0.0
        %4449 = vmatpush1.msra.mxu0 0.0
        %4450 = vmatprep.subr.mxu0 0.0
        %4451 = vmatpush1.msra.mxu0 0.0
        %4452 = vmatprep.subr.mxu0 0.0
        %4453 = vmatpush1.msra.mxu0 0.0
        %4454 = vmatprep.subr.mxu0 0.0
        %4455 = vmatpush1.msra.mxu0 0.0
        %4456 = vmatprep.subr.mxu0 0.0
        %4457 = vmatpush1.msra.mxu0 0.0
        %4458 = vmatprep.subr.mxu0 0.0
        %4459 = vmatpush1.msra.mxu0 0.0
        %4460 = vmatprep.mubr.f32.mxu0 0.0
        %v4461 = vand.u32 %v4381, 4294901760
        %v4462 = vsub.f32 %v4381, %v4461
        %v4463 = vand.u32 %v4462, 4294901760
        %v4464 = vsub.f32 %v4462, %v4463
        %v4465 = vand.u32 %v4464, 4294901760
        %4466 = vmatmul.mubr.f32.gmra.mrb[0].mxu0 %v4465
        %v4467 = vpop.f32.mrb[0].mxu0
        %v4468 = vadd.f32 %v4363, %v4467
        %v4469 = vpop.f32.mrb[0].mxu0
        %4470 = vmatprep.mubr.f32.mxu0 0.0
        %v4471 = vand.u32 %v4384, 4294901760
        %v4472 = vsub.f32 %v4384, %v4471
        %v4473 = vand.u32 %v4472, 4294901760
        %v4474 = vsub.f32 %v4472, %v4473
        %v4475 = vand.u32 %v4474, 4294901760
        %4476 = vmatmul.mubr.f32.gmra.mrb[0].mxu0 %v4475
        %v4477 = vpop.f32.mrb[0].mxu0
        %v4478 = vadd.f32 %v4368, %v4477
        %v4479 = vpop.f32.mrb[0].mxu0
        %4480 = vmatprep.mubr.f32.mxu0 0.0
        %v4481 = vand.u32 %v4387, 4294901760
        %v4482 = vsub.f32 %v4387, %v4481
        %v4483 = vand.u32 %v4482, 4294901760
        %v4484 = vsub.f32 %v4482, %v4483
        %v4485 = vand.u32 %v4484, 4294901760
        %4486 = vmatmul.mubr.f32.gmra.mrb[0].mxu0 %v4485
        %v4487 = vpop.f32.mrb[0].mxu0
        %v4488 = vadd.f32 %v4373, %v4487
        %v4489 = vpop.f32.mrb[0].mxu0
        %4490 = vmatprep.mubr.f32.mxu0 0.0
        %v4491 = vand.u32 %v4390, 4294901760
        %v4492 = vsub.f32 %v4390, %v4491
        %v4493 = vand.u32 %v4492, 4294901760
        %v4494 = vsub.f32 %v4492, %v4493
        %v4495 = vand.u32 %v4494, 4294901760
        %4496 = vmatmul.mubr.f32.gmra.mrb[0].mxu0 %v4495
        %v4497 = vpop.f32.mrb[0].mxu0
        %v4498 = vadd.f32 %v4378, %v4497
        %v4499 = vpop.f32.mrb[0].mxu0
        %4500 = vdwg.mxu0
        %4501 = vmatprep.subr.mxu0 0.0
        %v4502 = vand.u32 %v4345, 4294901760
        %v4503 = vsub.f32 %v4345, %v4502
        %v4504 = vand.u32 %v4503, 4294901760
        %v4505 = vsub.f32 %v4503, %v4504
        %v4506 = vand.u32 %v4505, 4294901760
        %4507 = vmatpush1.msra.mxu0 %v4506
        %4508 = vmatprep.subr.mxu0 0.0
        %v4509 = vand.u32 %v4347, 4294901760
        %v4510 = vsub.f32 %v4347, %v4509
        %v4511 = vand.u32 %v4510, 4294901760
        %v4512 = vsub.f32 %v4510, %v4511
        %v4513 = vand.u32 %v4512, 4294901760
        %4514 = vmatpush1.msra.mxu0 %v4513
        %4515 = vmatprep.subr.mxu0 0.0
        %v4516 = vand.u32 %v4349, 4294901760
        %v4517 = vsub.f32 %v4349, %v4516
        %v4518 = vand.u32 %v4517, 4294901760
        %v4519 = vsub.f32 %v4517, %v4518
        %v4520 = vand.u32 %v4519, 4294901760
        %4521 = vmatpush1.msra.mxu0 %v4520
        %4522 = vmatprep.subr.mxu0 0.0
        %v4523 = vand.u32 %v4351, 4294901760
        %v4524 = vsub.f32 %v4351, %v4523
        %v4525 = vand.u32 %v4524, 4294901760
        %v4526 = vsub.f32 %v4524, %v4525
        %v4527 = vand.u32 %v4526, 4294901760
        %4528 = vmatpush1.msra.mxu0 %v4527
        %4529 = vmatprep.subr.mxu0 0.0
        %4530 = vmatpush1.msra.mxu0 0.0
        %4531 = vmatprep.subr.mxu0 0.0
        %4532 = vmatpush1.msra.mxu0 0.0
        %4533 = vmatprep.subr.mxu0 0.0
        %4534 = vmatpush1.msra.mxu0 0.0
        %4535 = vmatprep.subr.mxu0 0.0
        %4536 = vmatpush1.msra.mxu0 0.0
        %4537 = vmatprep.subr.mxu0 0.0
        %4538 = vmatpush1.msra.mxu0 0.0
        %4539 = vmatprep.subr.mxu0 0.0
        %4540 = vmatpush1.msra.mxu0 0.0
        %4541 = vmatprep.subr.mxu0 0.0
        %4542 = vmatpush1.msra.mxu0 0.0
        %4543 = vmatprep.subr.mxu0 0.0
        %4544 = vmatpush1.msra.mxu0 0.0
        %4545 = vmatprep.subr.mxu0 0.0
        %4546 = vmatpush1.msra.mxu0 0.0
        %4547 = vmatprep.subr.mxu0 0.0
        %4548 = vmatpush1.msra.mxu0 0.0
        %4549 = vmatprep.subr.mxu0 0.0
        %4550 = vmatpush1.msra.mxu0 0.0
        %4551 = vmatprep.subr.mxu0 0.0
        %4552 = vmatpush1.msra.mxu0 0.0
        %4553 = vmatprep.subr.mxu0 0.0
        %4554 = vmatpush1.msra.mxu0 0.0
        %4555 = vmatprep.subr.mxu0 0.0
        %4556 = vmatpush1.msra.mxu0 0.0
        %4557 = vmatprep.subr.mxu0 0.0
        %4558 = vmatpush1.msra.mxu0 0.0
        %4559 = vmatprep.subr.mxu0 0.0
        %4560 = vmatpush1.msra.mxu0 0.0
        %4561 = vmatprep.subr.mxu0 0.0
        %4562 = vmatpush1.msra.mxu0 0.0
        %4563 = vmatprep.subr.mxu0 0.0
        %4564 = vmatpush1.msra.mxu0 0.0
        %4565 = vmatprep.subr.mxu0 0.0
        %4566 = vmatpush1.msra.mxu0 0.0
        %4567 = vmatprep.subr.mxu0 0.0
        %4568 = vmatpush1.msra.mxu0 0.0
        %4569 = vmatprep.subr.mxu0 0.0
        %4570 = vmatpush1.msra.mxu0 0.0
        %4571 = vmatprep.subr.mxu0 0.0
        %4572 = vmatpush1.msra.mxu0 0.0
        %4573 = vmatprep.subr.mxu0 0.0
        %4574 = vmatpush1.msra.mxu0 0.0
        %4575 = vmatprep.subr.mxu0 0.0
        %4576 = vmatpush1.msra.mxu0 0.0
        %4577 = vmatprep.subr.mxu0 0.0
        %4578 = vmatpush1.msra.mxu0 0.0
        %4579 = vmatprep.subr.mxu0 0.0
        %4580 = vmatpush1.msra.mxu0 0.0
        %4581 = vmatprep.subr.mxu0 0.0
        %4582 = vmatpush1.msra.mxu0 0.0
        %4583 = vmatprep.subr.mxu0 0.0
        %4584 = vmatpush1.msra.mxu0 0.0
        %4585 = vmatprep.mubr.f32.mxu0 0.0
        %v4586 = vand.u32 %v4381, 4294901760
        %4587 = vmatmul.mubr.f32.gmra.mrb[0].mxu0 %v4586
        %v4588 = vpop.f32.mrb[0].mxu0
        %v4589 = vadd.f32 %v4468, %v4588
        %v4590 = vpop.f32.mrb[0].mxu0
        %4591 = vmatprep.mubr.f32.mxu0 0.0
        %v4592 = vand.u32 %v4384, 4294901760
        %4593 = vmatmul.mubr.f32.gmra.mrb[0].mxu0 %v4592
        %v4594 = vpop.f32.mrb[0].mxu0
        %v4595 = vadd.f32 %v4478, %v4594
        %v4596 = vpop.f32.mrb[0].mxu0
        %4597 = vmatprep.mubr.f32.mxu0 0.0
        %v4598 = vand.u32 %v4387, 4294901760
        %4599 = vmatmul.mubr.f32.gmra.mrb[0].mxu0 %v4598
        %v4600 = vpop.f32.mrb[0].mxu0
        %v4601 = vadd.f32 %v4488, %v4600
        %v4602 = vpop.f32.mrb[0].mxu0
        %4603 = vmatprep.mubr.f32.mxu0 0.0
        %v4604 = vand.u32 %v4390, 4294901760
        %4605 = vmatmul.mubr.f32.gmra.mrb[0].mxu0 %v4604
        %v4606 = vpop.f32.mrb[0].mxu0
        %v4607 = vadd.f32 %v4498, %v4606
        %v4608 = vpop.f32.mrb[0].mxu0
        %4609 = vdwg.mxu0
        %4610 = vmatprep.subr.mxu0 0.0
        %v4611 = vand.u32 %v4345, 4294901760
        %v4612 = vsub.f32 %v4345, %v4611
        %4613 = vmatpush1.msra.mxu0 %v4612
        %4614 = vmatprep.subr.mxu0 0.0
        %v4615 = vand.u32 %v4347, 4294901760
        %v4616 = vsub.f32 %v4347, %v4615
        %4617 = vmatpush1.msra.mxu0 %v4616
        %4618 = vmatprep.subr.mxu0 0.0
        %v4619 = vand.u32 %v4349, 4294901760
        %v4620 = vsub.f32 %v4349, %v4619
        %4621 = vmatpush1.msra.mxu0 %v4620
        %4622 = vmatprep.subr.mxu0 0.0
        %v4623 = vand.u32 %v4351, 4294901760
        %v4624 = vsub.f32 %v4351, %v4623
        %4625 = vmatpush1.msra.mxu0 %v4624
        %4626 = vmatprep.subr.mxu0 0.0
        %4627 = vmatpush1.msra.mxu0 0.0
        %4628 = vmatprep.subr.mxu0 0.0
        %4629 = vmatpush1.msra.mxu0 0.0
        %4630 = vmatprep.subr.mxu0 0.0
        %4631 = vmatpush1.msra.mxu0 0.0
        %4632 = vmatprep.subr.mxu0 0.0
        %4633 = vmatpush1.msra.mxu0 0.0
        %4634 = vmatprep.subr.mxu0 0.0
        %4635 = vmatpush1.msra.mxu0 0.0
        %4636 = vmatprep.subr.mxu0 0.0
        %4637 = vmatpush1.msra.mxu0 0.0
        %4638 = vmatprep.subr.mxu0 0.0
        %4639 = vmatpush1.msra.mxu0 0.0
        %4640 = vmatprep.subr.mxu0 0.0
        %4641 = vmatpush1.msra.mxu0 0.0
        %4642 = vmatprep.subr.mxu0 0.0
        %4643 = vmatpush1.msra.mxu0 0.0
        %4644 = vmatprep.subr.mxu0 0.0
        %4645 = vmatpush1.msra.mxu0 0.0
        %4646 = vmatprep.subr.mxu0 0.0
        %4647 = vmatpush1.msra.mxu0 0.0
        %4648 = vmatprep.subr.mxu0 0.0
        %4649 = vmatpush1.msra.mxu0 0.0
        %4650 = vmatprep.subr.mxu0 0.0
        %4651 = vmatpush1.msra.mxu0 0.0
        %4652 = vmatprep.subr.mxu0 0.0
        %4653 = vmatpush1.msra.mxu0 0.0
        %4654 = vmatprep.subr.mxu0 0.0
        %4655 = vmatpush1.msra.mxu0 0.0
        %4656 = vmatprep.subr.mxu0 0.0
        %4657 = vmatpush1.msra.mxu0 0.0
        %4658 = vmatprep.subr.mxu0 0.0
        %4659 = vmatpush1.msra.mxu0 0.0
        %4660 = vmatprep.subr.mxu0 0.0
        %4661 = vmatpush1.msra.mxu0 0.0
        %4662 = vmatprep.subr.mxu0 0.0
        %4663 = vmatpush1.msra.mxu0 0.0
        %4664 = vmatprep.subr.mxu0 0.0
        %4665 = vmatpush1.msra.mxu0 0.0
        %4666 = vmatprep.subr.mxu0 0.0
        %4667 = vmatpush1.msra.mxu0 0.0
        %4668 = vmatprep.subr.mxu0 0.0
        %4669 = vmatpush1.msra.mxu0 0.0
        %4670 = vmatprep.subr.mxu0 0.0
        %4671 = vmatpush1.msra.mxu0 0.0
        %4672 = vmatprep.subr.mxu0 0.0
        %4673 = vmatpush1.msra.mxu0 0.0
        %4674 = vmatprep.subr.mxu0 0.0
        %4675 = vmatpush1.msra.mxu0 0.0
        %4676 = vmatprep.subr.mxu0 0.0
        %4677 = vmatpush1.msra.mxu0 0.0
        %4678 = vmatprep.subr.mxu0 0.0
        %4679 = vmatpush1.msra.mxu0 0.0
        %4680 = vmatprep.subr.mxu0 0.0
        %4681 = vmatpush1.msra.mxu0 0.0
        %4682 = vmatprep.mubr.f32.mxu0 0.0
        %v4683 = vand.u32 %v4381, 4294901760
        %v4684 = vsub.f32 %v4381, %v4683
        %4685 = vmatmul.mubr.f32.gmra.mrb[0].mxu0 %v4684
        %v4686 = vpop.f32.mrb[0].mxu0
        %v4687 = vadd.f32 %v4589, %v4686
        %v4688 = vpop.f32.mrb[0].mxu0
        %4689 = vmatprep.mubr.f32.mxu0 0.0
        %v4690 = vand.u32 %v4384, 4294901760
        %v4691 = vsub.f32 %v4384, %v4690
        %4692 = vmatmul.mubr.f32.gmra.mrb[0].mxu0 %v4691
        %v4693 = vpop.f32.mrb[0].mxu0
        %v4694 = vadd.f32 %v4595, %v4693
        %v4695 = vpop.f32.mrb[0].mxu0
        %4696 = vmatprep.mubr.f32.mxu0 0.0
        %v4697 = vand.u32 %v4387, 4294901760
        %v4698 = vsub.f32 %v4387, %v4697
        %4699 = vmatmul.mubr.f32.gmra.mrb[0].mxu0 %v4698
        %v4700 = vpop.f32.mrb[0].mxu0
        %v4701 = vadd.f32 %v4601, %v4700
        %v4702 = vpop.f32.mrb[0].mxu0
        %4703 = vmatprep.mubr.f32.mxu0 0.0
        %v4704 = vand.u32 %v4390, 4294901760
        %v4705 = vsub.f32 %v4390, %v4704
        %4706 = vmatmul.mubr.f32.gmra.mrb[0].mxu0 %v4705
        %v4707 = vpop.f32.mrb[0].mxu0
        %v4708 = vadd.f32 %v4607, %v4707
        %v4709 = vpop.f32.mrb[0].mxu0
        %4710 = vdwg.mxu0
        %4711 = vmatprep.subr.mxu0 0.0
        %v4712 = vand.u32 %v4345, 4294901760
        %4713 = vmatpush1.msra.mxu0 %v4712
        %4714 = vmatprep.subr.mxu0 0.0
        %v4715 = vand.u32 %v4347, 4294901760
        %4716 = vmatpush1.msra.mxu0 %v4715
        %4717 = vmatprep.subr.mxu0 0.0
        %v4718 = vand.u32 %v4349, 4294901760
        %4719 = vmatpush1.msra.mxu0 %v4718
        %4720 = vmatprep.subr.mxu0 0.0
        %v4721 = vand.u32 %v4351, 4294901760
        %4722 = vmatpush1.msra.mxu0 %v4721
        %4723 = vmatprep.subr.mxu0 0.0
        %4724 = vmatpush1.msra.mxu0 0.0
        %4725 = vmatprep.subr.mxu0 0.0
        %4726 = vmatpush1.msra.mxu0 0.0
        %4727 = vmatprep.subr.mxu0 0.0
        %4728 = vmatpush1.msra.mxu0 0.0
        %4729 = vmatprep.subr.mxu0 0.0
        %4730 = vmatpush1.msra.mxu0 0.0
        %4731 = vmatprep.subr.mxu0 0.0
        %4732 = vmatpush1.msra.mxu0 0.0
        %4733 = vmatprep.subr.mxu0 0.0
        %4734 = vmatpush1.msra.mxu0 0.0
        %4735 = vmatprep.subr.mxu0 0.0
        %4736 = vmatpush1.msra.mxu0 0.0
        %4737 = vmatprep.subr.mxu0 0.0
        %4738 = vmatpush1.msra.mxu0 0.0
        %4739 = vmatprep.subr.mxu0 0.0
        %4740 = vmatpush1.msra.mxu0 0.0
        %4741 = vmatprep.subr.mxu0 0.0
        %4742 = vmatpush1.msra.mxu0 0.0
        %4743 = vmatprep.subr.mxu0 0.0
        %4744 = vmatpush1.msra.mxu0 0.0
        %4745 = vmatprep.subr.mxu0 0.0
        %4746 = vmatpush1.msra.mxu0 0.0
        %4747 = vmatprep.subr.mxu0 0.0
        %4748 = vmatpush1.msra.mxu0 0.0
        %4749 = vmatprep.subr.mxu0 0.0
        %4750 = vmatpush1.msra.mxu0 0.0
        %4751 = vmatprep.subr.mxu0 0.0
        %4752 = vmatpush1.msra.mxu0 0.0
        %4753 = vmatprep.subr.mxu0 0.0
        %4754 = vmatpush1.msra.mxu0 0.0
        %4755 = vmatprep.subr.mxu0 0.0
        %4756 = vmatpush1.msra.mxu0 0.0
        %4757 = vmatprep.subr.mxu0 0.0
        %4758 = vmatpush1.msra.mxu0 0.0
        %4759 = vmatprep.subr.mxu0 0.0
        %4760 = vmatpush1.msra.mxu0 0.0
        %4761 = vmatprep.subr.mxu0 0.0
        %4762 = vmatpush1.msra.mxu0 0.0
        %4763 = vmatprep.subr.mxu0 0.0
        %4764 = vmatpush1.msra.mxu0 0.0
        %4765 = vmatprep.subr.mxu0 0.0
        %4766 = vmatpush1.msra.mxu0 0.0
        %4767 = vmatprep.subr.mxu0 0.0
        %4768 = vmatpush1.msra.mxu0 0.0
        %4769 = vmatprep.subr.mxu0 0.0
        %4770 = vmatpush1.msra.mxu0 0.0
        %4771 = vmatprep.subr.mxu0 0.0
        %4772 = vmatpush1.msra.mxu0 0.0
        %4773 = vmatprep.subr.mxu0 0.0
        %4774 = vmatpush1.msra.mxu0 0.0
        %4775 = vmatprep.subr.mxu0 0.0
        %4776 = vmatpush1.msra.mxu0 0.0
        %4777 = vmatprep.subr.mxu0 0.0
        %4778 = vmatpush1.msra.mxu0 0.0
        %4779 = vmatprep.mubr.f32.mxu0 0.0
        %v4780 = vand.u32 %v4381, 4294901760
        %v4781 = vsub.f32 %v4381, %v4780
        %v4782 = vand.u32 %v4781, 4294901760
        %4783 = vmatmul.mubr.f32.gmra.mrb[0].mxu0 %v4782
        %v4784 = vpop.f32.mrb[0].mxu0
        %v4785 = vadd.f32 %v4687, %v4784
        %v4786 = vpop.f32.mrb[0].mxu0
        %4787 = vmatprep.mubr.f32.mxu0 0.0
        %v4788 = vand.u32 %v4384, 4294901760
        %v4789 = vsub.f32 %v4384, %v4788
        %v4790 = vand.u32 %v4789, 4294901760
        %4791 = vmatmul.mubr.f32.gmra.mrb[0].mxu0 %v4790
        %v4792 = vpop.f32.mrb[0].mxu0
        %v4793 = vadd.f32 %v4694, %v4792
        %v4794 = vpop.f32.mrb[0].mxu0
        %4795 = vmatprep.mubr.f32.mxu0 0.0
        %v4796 = vand.u32 %v4387, 4294901760
        %v4797 = vsub.f32 %v4387, %v4796
        %v4798 = vand.u32 %v4797, 4294901760
        %4799 = vmatmul.mubr.f32.gmra.mrb[0].mxu0 %v4798
        %v4800 = vpop.f32.mrb[0].mxu0
        %v4801 = vadd.f32 %v4701, %v4800
        %v4802 = vpop.f32.mrb[0].mxu0
        %4803 = vmatprep.mubr.f32.mxu0 0.0
        %v4804 = vand.u32 %v4390, 4294901760
        %v4805 = vsub.f32 %v4390, %v4804
        %v4806 = vand.u32 %v4805, 4294901760
        %4807 = vmatmul.mubr.f32.gmra.mrb[0].mxu0 %v4806
        %v4808 = vpop.f32.mrb[0].mxu0
        %v4809 = vadd.f32 %v4708, %v4808
        %v4810 = vpop.f32.mrb[0].mxu0
        %4811 = vdwg.mxu0
        %4812 = vmatprep.subr.mxu0 0.0
        %v4813 = vand.u32 %v4345, 4294901760
        %v4814 = vsub.f32 %v4345, %v4813
        %v4815 = vand.u32 %v4814, 4294901760
        %4816 = vmatpush1.msra.mxu0 %v4815
        %4817 = vmatprep.subr.mxu0 0.0
        %v4818 = vand.u32 %v4347, 4294901760
        %v4819 = vsub.f32 %v4347, %v4818
        %v4820 = vand.u32 %v4819, 4294901760
        %4821 = vmatpush1.msra.mxu0 %v4820
        %4822 = vmatprep.subr.mxu0 0.0
        %v4823 = vand.u32 %v4349, 4294901760
        %v4824 = vsub.f32 %v4349, %v4823
        %v4825 = vand.u32 %v4824, 4294901760
        %4826 = vmatpush1.msra.mxu0 %v4825
        %4827 = vmatprep.subr.mxu0 0.0
        %v4828 = vand.u32 %v4351, 4294901760
        %v4829 = vsub.f32 %v4351, %v4828
        %v4830 = vand.u32 %v4829, 4294901760
        %4831 = vmatpush1.msra.mxu0 %v4830
        %4832 = vmatprep.subr.mxu0 0.0
        %4833 = vmatpush1.msra.mxu0 0.0
        %4834 = vmatprep.subr.mxu0 0.0
        %4835 = vmatpush1.msra.mxu0 0.0
        %4836 = vmatprep.subr.mxu0 0.0
        %4837 = vmatpush1.msra.mxu0 0.0
        %4838 = vmatprep.subr.mxu0 0.0
        %4839 = vmatpush1.msra.mxu0 0.0
        %4840 = vmatprep.subr.mxu0 0.0
        %4841 = vmatpush1.msra.mxu0 0.0
        %4842 = vmatprep.subr.mxu0 0.0
        %4843 = vmatpush1.msra.mxu0 0.0
        %4844 = vmatprep.subr.mxu0 0.0
        %4845 = vmatpush1.msra.mxu0 0.0
        %4846 = vmatprep.subr.mxu0 0.0
        %4847 = vmatpush1.msra.mxu0 0.0
        %4848 = vmatprep.subr.mxu0 0.0
        %4849 = vmatpush1.msra.mxu0 0.0
        %4850 = vmatprep.subr.mxu0 0.0
        %4851 = vmatpush1.msra.mxu0 0.0
        %4852 = vmatprep.subr.mxu0 0.0
        %4853 = vmatpush1.msra.mxu0 0.0
        %4854 = vmatprep.subr.mxu0 0.0
        %4855 = vmatpush1.msra.mxu0 0.0
        %4856 = vmatprep.subr.mxu0 0.0
        %4857 = vmatpush1.msra.mxu0 0.0
        %4858 = vmatprep.subr.mxu0 0.0
        %4859 = vmatpush1.msra.mxu0 0.0
        %4860 = vmatprep.subr.mxu0 0.0
        %4861 = vmatpush1.msra.mxu0 0.0
        %4862 = vmatprep.subr.mxu0 0.0
        %4863 = vmatpush1.msra.mxu0 0.0
        %4864 = vmatprep.subr.mxu0 0.0
        %4865 = vmatpush1.msra.mxu0 0.0
        %4866 = vmatprep.subr.mxu0 0.0
        %4867 = vmatpush1.msra.mxu0 0.0
        %4868 = vmatprep.subr.mxu0 0.0
        %4869 = vmatpush1.msra.mxu0 0.0
        %4870 = vmatprep.subr.mxu0 0.0
        %4871 = vmatpush1.msra.mxu0 0.0
        %4872 = vmatprep.subr.mxu0 0.0
        %4873 = vmatpush1.msra.mxu0 0.0
        %4874 = vmatprep.subr.mxu0 0.0
        %4875 = vmatpush1.msra.mxu0 0.0
        %4876 = vmatprep.subr.mxu0 0.0
        %4877 = vmatpush1.msra.mxu0 0.0
        %4878 = vmatprep.subr.mxu0 0.0
        %4879 = vmatpush1.msra.mxu0 0.0
        %4880 = vmatprep.subr.mxu0 0.0
        %4881 = vmatpush1.msra.mxu0 0.0
        %4882 = vmatprep.subr.mxu0 0.0
        %4883 = vmatpush1.msra.mxu0 0.0
        %4884 = vmatprep.subr.mxu0 0.0
        %4885 = vmatpush1.msra.mxu0 0.0
        %4886 = vmatprep.subr.mxu0 0.0
        %4887 = vmatpush1.msra.mxu0 0.0
        %4888 = vmatprep.mubr.f32.mxu0 0.0
        %v4889 = vand.u32 %v4381, 4294901760
        %4890 = vmatmul.mubr.f32.gmra.mrb[0].mxu0 %v4889
        %v4891 = vpop.f32.mrb[0].mxu0
        %v4892 = vadd.f32 %v4785, %v4891
        %v4893 = vpop.f32.mrb[0].mxu0
        %4894 = vmatprep.mubr.f32.mxu0 0.0
        %v4895 = vand.u32 %v4384, 4294901760
        %4896 = vmatmul.mubr.f32.gmra.mrb[0].mxu0 %v4895
        %v4897 = vpop.f32.mrb[0].mxu0
        %v4898 = vadd.f32 %v4793, %v4897
        %v4899 = vpop.f32.mrb[0].mxu0
        %4900 = vmatprep.mubr.f32.mxu0 0.0
        %v4901 = vand.u32 %v4387, 4294901760
        %4902 = vmatmul.mubr.f32.gmra.mrb[0].mxu0 %v4901
        %v4903 = vpop.f32.mrb[0].mxu0
        %v4904 = vadd.f32 %v4801, %v4903
        %v4905 = vpop.f32.mrb[0].mxu0
        %4906 = vmatprep.mubr.f32.mxu0 0.0
        %v4907 = vand.u32 %v4390, 4294901760
        %4908 = vmatmul.mubr.f32.gmra.mrb[0].mxu0 %v4907
        %v4909 = vpop.f32.mrb[0].mxu0
        %v4910 = vadd.f32 %v4809, %v4909
        %v4911 = vpop.f32.mrb[0].mxu0
        %4912 = vdwg.mxu0
        %4913 = vmatprep.subr.mxu0 0.0
        %v4914 = vand.u32 %v4345, 4294901760
        %4915 = vmatpush1.msra.mxu0 %v4914
        %4916 = vmatprep.subr.mxu0 0.0
        %v4917 = vand.u32 %v4347, 4294901760
        %4918 = vmatpush1.msra.mxu0 %v4917
        %4919 = vmatprep.subr.mxu0 0.0
        %v4920 = vand.u32 %v4349, 4294901760
        %4921 = vmatpush1.msra.mxu0 %v4920
        %4922 = vmatprep.subr.mxu0 0.0
        %v4923 = vand.u32 %v4351, 4294901760
        %4924 = vmatpush1.msra.mxu0 %v4923
        %4925 = vmatprep.subr.mxu0 0.0
        %4926 = vmatpush1.msra.mxu0 0.0
        %4927 = vmatprep.subr.mxu0 0.0
        %4928 = vmatpush1.msra.mxu0 0.0
        %4929 = vmatprep.subr.mxu0 0.0
        %4930 = vmatpush1.msra.mxu0 0.0
        %4931 = vmatprep.subr.mxu0 0.0
        %4932 = vmatpush1.msra.mxu0 0.0
        %4933 = vmatprep.subr.mxu0 0.0
        %4934 = vmatpush1.msra.mxu0 0.0
        %4935 = vmatprep.subr.mxu0 0.0
        %4936 = vmatpush1.msra.mxu0 0.0
        %4937 = vmatprep.subr.mxu0 0.0
        %4938 = vmatpush1.msra.mxu0 0.0
        %4939 = vmatprep.subr.mxu0 0.0
        %4940 = vmatpush1.msra.mxu0 0.0
        %4941 = vmatprep.subr.mxu0 0.0
        %4942 = vmatpush1.msra.mxu0 0.0
        %4943 = vmatprep.subr.mxu0 0.0
        %4944 = vmatpush1.msra.mxu0 0.0
        %4945 = vmatprep.subr.mxu0 0.0
        %4946 = vmatpush1.msra.mxu0 0.0
        %4947 = vmatprep.subr.mxu0 0.0
        %4948 = vmatpush1.msra.mxu0 0.0
        %4949 = vmatprep.subr.mxu0 0.0
        %4950 = vmatpush1.msra.mxu0 0.0
        %4951 = vmatprep.subr.mxu0 0.0
        %4952 = vmatpush1.msra.mxu0 0.0
        %4953 = vmatprep.subr.mxu0 0.0
        %4954 = vmatpush1.msra.mxu0 0.0
        %4955 = vmatprep.subr.mxu0 0.0
        %4956 = vmatpush1.msra.mxu0 0.0
        %4957 = vmatprep.subr.mxu0 0.0
        %4958 = vmatpush1.msra.mxu0 0.0
        %4959 = vmatprep.subr.mxu0 0.0
        %4960 = vmatpush1.msra.mxu0 0.0
        %4961 = vmatprep.subr.mxu0 0.0
        %4962 = vmatpush1.msra.mxu0 0.0
        %4963 = vmatprep.subr.mxu0 0.0
        %4964 = vmatpush1.msra.mxu0 0.0
        %4965 = vmatprep.subr.mxu0 0.0
        %4966 = vmatpush1.msra.mxu0 0.0
        %4967 = vmatprep.subr.mxu0 0.0
        %4968 = vmatpush1.msra.mxu0 0.0
        %4969 = vmatprep.subr.mxu0 0.0
        %4970 = vmatpush1.msra.mxu0 0.0
        %4971 = vmatprep.subr.mxu0 0.0
        %4972 = vmatpush1.msra.mxu0 0.0
        %4973 = vmatprep.subr.mxu0 0.0
        %4974 = vmatpush1.msra.mxu0 0.0
        %4975 = vmatprep.subr.mxu0 0.0
        %4976 = vmatpush1.msra.mxu0 0.0
        %4977 = vmatprep.subr.mxu0 0.0
        %4978 = vmatpush1.msra.mxu0 0.0
        %4979 = vmatprep.subr.mxu0 0.0
        %4980 = vmatpush1.msra.mxu0 0.0
        %4981 = vmatprep.mubr.f32.mxu0 0.0
        %v4982 = vand.u32 %v4381, 4294901760
        %4983 = vmatmul.mubr.f32.gmra.mrb[0].mxu0 %v4982
        %v4984 = vpop.f32.mrb[0].mxu0
        %v4985 = vadd.f32 %v4892, %v4984
        %v4986 = vpop.f32.mrb[0].mxu0
        %4987 = vmatprep.mubr.f32.mxu0 0.0
        %v4988 = vand.u32 %v4384, 4294901760
        %4989 = vmatmul.mubr.f32.gmra.mrb[0].mxu0 %v4988
        %v4990 = vpop.f32.mrb[0].mxu0
        %v4991 = vadd.f32 %v4898, %v4990
        %v4992 = vpop.f32.mrb[0].mxu0
        %4993 = vmatprep.mubr.f32.mxu0 0.0
        %v4994 = vand.u32 %v4387, 4294901760
        %4995 = vmatmul.mubr.f32.gmra.mrb[0].mxu0 %v4994
        %v4996 = vpop.f32.mrb[0].mxu0
        %v4997 = vadd.f32 %v4904, %v4996
        %v4998 = vpop.f32.mrb[0].mxu0
        %4999 = vmatprep.mubr.f32.mxu0 0.0
        %v5000 = vand.u32 %v4390, 4294901760
        %5001 = vmatmul.mubr.f32.gmra.mrb[0].mxu0 %v5000
        %v5002 = vpop.f32.mrb[0].mxu0
        %v5003 = vadd.f32 %v4910, %v5002
        %v5004 = vpop.f32.mrb[0].mxu0
        %5005 = vdwg.mxu0
        %v5006 = vmul.f32 %v4985, 1.442695
        %v5007 = vpow.pop %v5006
        %v5008 = vmul.f32 %v4991, 1.442695
        %v5009 = vpow.pop %v5008
        %v5010 = vmul.f32 %v4997, 1.442695
        %v5011 = vpow.pop %v5010
        %v5012 = vmul.f32 %v5003, 1.442695
        %v5013 = vpow.pop %v5012
        %v5014 = vxor.u32 %v5007, 2147483648
        %v5015 = vxor.u32 %v5009, 2147483648
        %v5016 = vxor.u32 %v5011, 2147483648
        %v5017 = vxor.u32 %v5013, 2147483648
        %v5018 = vmul.f32 %v5014, 1.442695
        %v5019 = vpow.pop %v5018
        %v5020 = vmul.f32 %v5015, 1.442695
        %v5021 = vpow.pop %v5020
        %v5022 = vmul.f32 %v5016, 1.442695
        %v5023 = vpow.pop %v5022
        %v5024 = vmul.f32 %v5017, 1.442695
        %v5025 = vpow.pop %v5024
        %v5026 = vadd.f32 %v5019, 1.0
        %v5027 = vadd.f32 %v5021, 1.0
        %v5028 = vadd.f32 %v5023, 1.0
        %v5029 = vadd.f32 %v5025, 1.0
        %v5030 = vrcp.pop %v5026
        %v5031 = vmul.f32 1.0, %v5030
        %v5032 = vrcp.pop %v5027
        %v5033 = vmul.f32 1.0, %v5032
        %v5034 = vrcp.pop %v5028
        %v5035 = vmul.f32 1.0, %v5034
        %v5036 = vrcp.pop %v5029
        %v5037 = vmul.f32 1.0, %v5036
        %v5038 = vmul.f32 %v5031, 10.0
        %v5039 = vmul.f32 %v5033, 10.0
        %v5040 = vmul.f32 %v5035, 10.0
        %v5041 = vmul.f32 %v5037, 10.0
        %s5042 = scalar_lea.vmem %s7, 32
        %v5043 = vld [vmem:[%s5042] sm:$0xff]
        %v5044 = vld [vmem:[%s5042 + $0x8] sm:$0xff]
        %v5045 = vld [vmem:[%s5042 + $0x10] sm:$0xff]
        %v5046 = vld [vmem:[%s5042 + $0x18] sm:$0xff]
        %s5047 = scalar_lea.vmem %s8, 32
        %v5048 = vld [vmem:[%s5047] sm:$0xff]
        %v5049 = vld [vmem:[%s5047 + $0x8] sm:$0xff]
        %v5050 = vld [vmem:[%s5047 + $0x10] sm:$0xff]
        %v5051 = vld [vmem:[%s5047 + $0x18] sm:$0xff]
        %5053 = vset.pattern.permute.xlu0 0
        %5054 = vperm.xlu0 %5053, %v5048
        %v5055 = vpop.permute.xlu0 %5054
        %5058 = vset.pattern.permute.xlu0 0
        %5059 = vperm.xlu0 %5058, %v5049
        %v5060 = vpop.permute.xlu0 %5059
        %5063 = vset.pattern.permute.xlu0 0
        %5064 = vperm.xlu0 %5063, %v5050
        %v5065 = vpop.permute.xlu0 %5064
        %5068 = vset.pattern.permute.xlu0 0
        %5069 = vperm.xlu0 %5068, %v5051
        %v5070 = vpop.permute.xlu0 %5069
        %v5073 = vsel %vm3058, %v5043, 0
        %v5076 = vsel %vm3058, %v5044, 0
        %v5079 = vsel %vm3058, %v5045, 0
        %v5082 = vsel %vm3058, %v5046, 0
        %5084 = vmatprep.subr.mxu0 0.0
        %v5085 = vand.u32 %v3072, 4294901760
        %5086 = vmatpush1.msra.mxu0 %v5085
        %5087 = vmatprep.subr.mxu0 0.0
        %5088 = vmatpush1.msra.mxu0 0.0
        %5089 = vmatprep.subr.mxu0 0.0
        %5090 = vmatpush1.msra.mxu0 0.0
        %5091 = vmatprep.subr.mxu0 0.0
        %5092 = vmatpush1.msra.mxu0 0.0
        %5093 = vmatprep.subr.mxu0 0.0
        %5094 = vmatpush1.msra.mxu0 0.0
        %5095 = vmatprep.subr.mxu0 0.0
        %5096 = vmatpush1.msra.mxu0 0.0
        %5097 = vmatprep.subr.mxu0 0.0
        %5098 = vmatpush1.msra.mxu0 0.0
        %5099 = vmatprep.subr.mxu0 0.0
        %5100 = vmatpush1.msra.mxu0 0.0
        %5101 = vmatprep.subr.mxu0 0.0
        %5102 = vmatpush1.msra.mxu0 0.0
        %5103 = vmatprep.subr.mxu0 0.0
        %5104 = vmatpush1.msra.mxu0 0.0
        %5105 = vmatprep.subr.mxu0 0.0
        %5106 = vmatpush1.msra.mxu0 0.0
        %5107 = vmatprep.subr.mxu0 0.0
        %5108 = vmatpush1.msra.mxu0 0.0
        %5109 = vmatprep.subr.mxu0 0.0
        %5110 = vmatpush1.msra.mxu0 0.0
        %5111 = vmatprep.subr.mxu0 0.0
        %5112 = vmatpush1.msra.mxu0 0.0
        %5113 = vmatprep.subr.mxu0 0.0
        %5114 = vmatpush1.msra.mxu0 0.0
        %5115 = vmatprep.subr.mxu0 0.0
        %5116 = vmatpush1.msra.mxu0 0.0
        %5117 = vmatprep.subr.mxu0 0.0
        %5118 = vmatpush1.msra.mxu0 0.0
        %5119 = vmatprep.subr.mxu0 0.0
        %5120 = vmatpush1.msra.mxu0 0.0
        %5121 = vmatprep.subr.mxu0 0.0
        %5122 = vmatpush1.msra.mxu0 0.0
        %5123 = vmatprep.subr.mxu0 0.0
        %5124 = vmatpush1.msra.mxu0 0.0
        %5125 = vmatprep.subr.mxu0 0.0
        %5126 = vmatpush1.msra.mxu0 0.0
        %5127 = vmatprep.subr.mxu0 0.0
        %5128 = vmatpush1.msra.mxu0 0.0
        %5129 = vmatprep.subr.mxu0 0.0
        %5130 = vmatpush1.msra.mxu0 0.0
        %5131 = vmatprep.subr.mxu0 0.0
        %5132 = vmatpush1.msra.mxu0 0.0
        %5133 = vmatprep.subr.mxu0 0.0
        %5134 = vmatpush1.msra.mxu0 0.0
        %5135 = vmatprep.subr.mxu0 0.0
        %5136 = vmatpush1.msra.mxu0 0.0
        %5137 = vmatprep.subr.mxu0 0.0
        %5138 = vmatpush1.msra.mxu0 0.0
        %5139 = vmatprep.subr.mxu0 0.0
        %5140 = vmatpush1.msra.mxu0 0.0
        %5141 = vmatprep.subr.mxu0 0.0
        %5142 = vmatpush1.msra.mxu0 0.0
        %5143 = vmatprep.subr.mxu0 0.0
        %5144 = vmatpush1.msra.mxu0 0.0
        %5145 = vmatprep.subr.mxu0 0.0
        %5146 = vmatpush1.msra.mxu0 0.0
        %5147 = vmatprep.subr.mxu0 0.0
        %5148 = vmatpush1.msra.mxu0 0.0
        %5149 = vmatprep.mubr.f32.mxu0 0.0
        %v5150 = vand.u32 %v5073, 4294901760
        %v5151 = vsub.f32 %v5073, %v5150
        %v5152 = vand.u32 %v5151, 4294901760
        %v5153 = vsub.f32 %v5151, %v5152
        %v5154 = vand.u32 %v5153, 4294901760
        %5155 = vmatmul.mubr.f32.gmra.mrb[0].mxu0 %v5154
        %v5156 = vpop.f32.mrb[0].mxu0
        %v5157 = vadd.f32 %v5055, %v5156
        %v5158 = vpop.f32.mrb[0].mxu0
        %5159 = vmatprep.mubr.f32.mxu0 0.0
        %v5160 = vand.u32 %v5076, 4294901760
        %v5161 = vsub.f32 %v5076, %v5160
        %v5162 = vand.u32 %v5161, 4294901760
        %v5163 = vsub.f32 %v5161, %v5162
        %v5164 = vand.u32 %v5163, 4294901760
        %5165 = vmatmul.mubr.f32.gmra.mrb[0].mxu0 %v5164
        %v5166 = vpop.f32.mrb[0].mxu0
        %v5167 = vadd.f32 %v5060, %v5166
        %v5168 = vpop.f32.mrb[0].mxu0
        %5169 = vmatprep.mubr.f32.mxu0 0.0
        %v5170 = vand.u32 %v5079, 4294901760
        %v5171 = vsub.f32 %v5079, %v5170
        %v5172 = vand.u32 %v5171, 4294901760
        %v5173 = vsub.f32 %v5171, %v5172
        %v5174 = vand.u32 %v5173, 4294901760
        %5175 = vmatmul.mubr.f32.gmra.mrb[0].mxu0 %v5174
        %v5176 = vpop.f32.mrb[0].mxu0
        %v5177 = vadd.f32 %v5065, %v5176
        %v5178 = vpop.f32.mrb[0].mxu0
        %5179 = vmatprep.mubr.f32.mxu0 0.0
        %v5180 = vand.u32 %v5082, 4294901760
        %v5181 = vsub.f32 %v5082, %v5180
        %v5182 = vand.u32 %v5181, 4294901760
        %v5183 = vsub.f32 %v5181, %v5182
        %v5184 = vand.u32 %v5183, 4294901760
        %5185 = vmatmul.mubr.f32.gmra.mrb[0].mxu0 %v5184
        %v5186 = vpop.f32.mrb[0].mxu0
        %v5187 = vadd.f32 %v5070, %v5186
        %v5188 = vpop.f32.mrb[0].mxu0
        %5189 = vdwg.mxu0
        %5190 = vmatprep.subr.mxu0 0.0
        %v5191 = vand.u32 %v3072, 4294901760
        %v5192 = vsub.f32 %v3072, %v5191
        %v5193 = vand.u32 %v5192, 4294901760
        %v5194 = vsub.f32 %v5192, %v5193
        %v5195 = vand.u32 %v5194, 4294901760
        %5196 = vmatpush1.msra.mxu0 %v5195
        %5197 = vmatprep.subr.mxu0 0.0
        %5198 = vmatpush1.msra.mxu0 0.0
        %5199 = vmatprep.subr.mxu0 0.0
        %5200 = vmatpush1.msra.mxu0 0.0
        %5201 = vmatprep.subr.mxu0 0.0
        %5202 = vmatpush1.msra.mxu0 0.0
        %5203 = vmatprep.subr.mxu0 0.0
        %5204 = vmatpush1.msra.mxu0 0.0
        %5205 = vmatprep.subr.mxu0 0.0
        %5206 = vmatpush1.msra.mxu0 0.0
        %5207 = vmatprep.subr.mxu0 0.0
        %5208 = vmatpush1.msra.mxu0 0.0
        %5209 = vmatprep.subr.mxu0 0.0
        %5210 = vmatpush1.msra.mxu0 0.0
        %5211 = vmatprep.subr.mxu0 0.0
        %5212 = vmatpush1.msra.mxu0 0.0
        %5213 = vmatprep.subr.mxu0 0.0
        %5214 = vmatpush1.msra.mxu0 0.0
        %5215 = vmatprep.subr.mxu0 0.0
        %5216 = vmatpush1.msra.mxu0 0.0
        %5217 = vmatprep.subr.mxu0 0.0
        %5218 = vmatpush1.msra.mxu0 0.0
        %5219 = vmatprep.subr.mxu0 0.0
        %5220 = vmatpush1.msra.mxu0 0.0
        %5221 = vmatprep.subr.mxu0 0.0
        %5222 = vmatpush1.msra.mxu0 0.0
        %5223 = vmatprep.subr.mxu0 0.0
        %5224 = vmatpush1.msra.mxu0 0.0
        %5225 = vmatprep.subr.mxu0 0.0
        %5226 = vmatpush1.msra.mxu0 0.0
        %5227 = vmatprep.subr.mxu0 0.0
        %5228 = vmatpush1.msra.mxu0 0.0
        %5229 = vmatprep.subr.mxu0 0.0
        %5230 = vmatpush1.msra.mxu0 0.0
        %5231 = vmatprep.subr.mxu0 0.0
        %5232 = vmatpush1.msra.mxu0 0.0
        %5233 = vmatprep.subr.mxu0 0.0
        %5234 = vmatpush1.msra.mxu0 0.0
        %5235 = vmatprep.subr.mxu0 0.0
        %5236 = vmatpush1.msra.mxu0 0.0
        %5237 = vmatprep.subr.mxu0 0.0
        %5238 = vmatpush1.msra.mxu0 0.0
        %5239 = vmatprep.subr.mxu0 0.0
        %5240 = vmatpush1.msra.mxu0 0.0
        %5241 = vmatprep.subr.mxu0 0.0
        %5242 = vmatpush1.msra.mxu0 0.0
        %5243 = vmatprep.subr.mxu0 0.0
        %5244 = vmatpush1.msra.mxu0 0.0
        %5245 = vmatprep.subr.mxu0 0.0
        %5246 = vmatpush1.msra.mxu0 0.0
        %5247 = vmatprep.subr.mxu0 0.0
        %5248 = vmatpush1.msra.mxu0 0.0
        %5249 = vmatprep.subr.mxu0 0.0
        %5250 = vmatpush1.msra.mxu0 0.0
        %5251 = vmatprep.subr.mxu0 0.0
        %5252 = vmatpush1.msra.mxu0 0.0
        %5253 = vmatprep.subr.mxu0 0.0
        %5254 = vmatpush1.msra.mxu0 0.0
        %5255 = vmatprep.subr.mxu0 0.0
        %5256 = vmatpush1.msra.mxu0 0.0
        %5257 = vmatprep.subr.mxu0 0.0
        %5258 = vmatpush1.msra.mxu0 0.0
        %5259 = vmatprep.mubr.f32.mxu0 0.0
        %v5260 = vand.u32 %v5073, 4294901760
        %5261 = vmatmul.mubr.f32.gmra.mrb[0].mxu0 %v5260
        %v5262 = vpop.f32.mrb[0].mxu0
        %v5263 = vadd.f32 %v5157, %v5262
        %v5264 = vpop.f32.mrb[0].mxu0
        %5265 = vmatprep.mubr.f32.mxu0 0.0
        %v5266 = vand.u32 %v5076, 4294901760
        %5267 = vmatmul.mubr.f32.gmra.mrb[0].mxu0 %v5266
        %v5268 = vpop.f32.mrb[0].mxu0
        %v5269 = vadd.f32 %v5167, %v5268
        %v5270 = vpop.f32.mrb[0].mxu0
        %5271 = vmatprep.mubr.f32.mxu0 0.0
        %v5272 = vand.u32 %v5079, 4294901760
        %5273 = vmatmul.mubr.f32.gmra.mrb[0].mxu0 %v5272
        %v5274 = vpop.f32.mrb[0].mxu0
        %v5275 = vadd.f32 %v5177, %v5274
        %v5276 = vpop.f32.mrb[0].mxu0
        %5277 = vmatprep.mubr.f32.mxu0 0.0
        %v5278 = vand.u32 %v5082, 4294901760
        %5279 = vmatmul.mubr.f32.gmra.mrb[0].mxu0 %v5278
        %v5280 = vpop.f32.mrb[0].mxu0
        %v5281 = vadd.f32 %v5187, %v5280
        %v5282 = vpop.f32.mrb[0].mxu0
        %5283 = vdwg.mxu0
        %5284 = vmatprep.subr.mxu0 0.0
        %v5285 = vand.u32 %v3072, 4294901760
        %v5286 = vsub.f32 %v3072, %v5285
        %5287 = vmatpush1.msra.mxu0 %v5286
        %5288 = vmatprep.subr.mxu0 0.0
        %5289 = vmatpush1.msra.mxu0 0.0
        %5290 = vmatprep.subr.mxu0 0.0
        %5291 = vmatpush1.msra.mxu0 0.0
        %5292 = vmatprep.subr.mxu0 0.0
        %5293 = vmatpush1.msra.mxu0 0.0
        %5294 = vmatprep.subr.mxu0 0.0
        %5295 = vmatpush1.msra.mxu0 0.0
        %5296 = vmatprep.subr.mxu0 0.0
        %5297 = vmatpush1.msra.mxu0 0.0
        %5298 = vmatprep.subr.mxu0 0.0
        %5299 = vmatpush1.msra.mxu0 0.0
        %5300 = vmatprep.subr.mxu0 0.0
        %5301 = vmatpush1.msra.mxu0 0.0
        %5302 = vmatprep.subr.mxu0 0.0
        %5303 = vmatpush1.msra.mxu0 0.0
        %5304 = vmatprep.subr.mxu0 0.0
        %5305 = vmatpush1.msra.mxu0 0.0
        %5306 = vmatprep.subr.mxu0 0.0
        %5307 = vmatpush1.msra.mxu0 0.0
        %5308 = vmatprep.subr.mxu0 0.0
        %5309 = vmatpush1.msra.mxu0 0.0
        %5310 = vmatprep.subr.mxu0 0.0
        %5311 = vmatpush1.msra.mxu0 0.0
        %5312 = vmatprep.subr.mxu0 0.0
        %5313 = vmatpush1.msra.mxu0 0.0
        %5314 = vmatprep.subr.mxu0 0.0
        %5315 = vmatpush1.msra.mxu0 0.0
        %5316 = vmatprep.subr.mxu0 0.0
        %5317 = vmatpush1.msra.mxu0 0.0
        %5318 = vmatprep.subr.mxu0 0.0
        %5319 = vmatpush1.msra.mxu0 0.0
        %5320 = vmatprep.subr.mxu0 0.0
        %5321 = vmatpush1.msra.mxu0 0.0
        %5322 = vmatprep.subr.mxu0 0.0
        %5323 = vmatpush1.msra.mxu0 0.0
        %5324 = vmatprep.subr.mxu0 0.0
        %5325 = vmatpush1.msra.mxu0 0.0
        %5326 = vmatprep.subr.mxu0 0.0
        %5327 = vmatpush1.msra.mxu0 0.0
        %5328 = vmatprep.subr.mxu0 0.0
        %5329 = vmatpush1.msra.mxu0 0.0
        %5330 = vmatprep.subr.mxu0 0.0
        %5331 = vmatpush1.msra.mxu0 0.0
        %5332 = vmatprep.subr.mxu0 0.0
        %5333 = vmatpush1.msra.mxu0 0.0
        %5334 = vmatprep.subr.mxu0 0.0
        %5335 = vmatpush1.msra.mxu0 0.0
        %5336 = vmatprep.subr.mxu0 0.0
        %5337 = vmatpush1.msra.mxu0 0.0
        %5338 = vmatprep.subr.mxu0 0.0
        %5339 = vmatpush1.msra.mxu0 0.0
        %5340 = vmatprep.subr.mxu0 0.0
        %5341 = vmatpush1.msra.mxu0 0.0
        %5342 = vmatprep.subr.mxu0 0.0
        %5343 = vmatpush1.msra.mxu0 0.0
        %5344 = vmatprep.subr.mxu0 0.0
        %5345 = vmatpush1.msra.mxu0 0.0
        %5346 = vmatprep.subr.mxu0 0.0
        %5347 = vmatpush1.msra.mxu0 0.0
        %5348 = vmatprep.subr.mxu0 0.0
        %5349 = vmatpush1.msra.mxu0 0.0
        %5350 = vmatprep.mubr.f32.mxu0 0.0
        %v5351 = vand.u32 %v5073, 4294901760
        %v5352 = vsub.f32 %v5073, %v5351
        %5353 = vmatmul.mubr.f32.gmra.mrb[0].mxu0 %v5352
        %v5354 = vpop.f32.mrb[0].mxu0
        %v5355 = vadd.f32 %v5263, %v5354
        %v5356 = vpop.f32.mrb[0].mxu0
        %5357 = vmatprep.mubr.f32.mxu0 0.0
        %v5358 = vand.u32 %v5076, 4294901760
        %v5359 = vsub.f32 %v5076, %v5358
        %5360 = vmatmul.mubr.f32.gmra.mrb[0].mxu0 %v5359
        %v5361 = vpop.f32.mrb[0].mxu0
        %v5362 = vadd.f32 %v5269, %v5361
        %v5363 = vpop.f32.mrb[0].mxu0
        %5364 = vmatprep.mubr.f32.mxu0 0.0
        %v5365 = vand.u32 %v5079, 4294901760
        %v5366 = vsub.f32 %v5079, %v5365
        %5367 = vmatmul.mubr.f32.gmra.mrb[0].mxu0 %v5366
        %v5368 = vpop.f32.mrb[0].mxu0
        %v5369 = vadd.f32 %v5275, %v5368
        %v5370 = vpop.f32.mrb[0].mxu0
        %5371 = vmatprep.mubr.f32.mxu0 0.0
        %v5372 = vand.u32 %v5082, 4294901760
        %v5373 = vsub.f32 %v5082, %v5372
        %5374 = vmatmul.mubr.f32.gmra.mrb[0].mxu0 %v5373
        %v5375 = vpop.f32.mrb[0].mxu0
        %v5376 = vadd.f32 %v5281, %v5375
        %v5377 = vpop.f32.mrb[0].mxu0
        %5378 = vdwg.mxu0
        %5379 = vmatprep.subr.mxu0 0.0
        %v5380 = vand.u32 %v3072, 4294901760
        %5381 = vmatpush1.msra.mxu0 %v5380
        %5382 = vmatprep.subr.mxu0 0.0
        %5383 = vmatpush1.msra.mxu0 0.0
        %5384 = vmatprep.subr.mxu0 0.0
        %5385 = vmatpush1.msra.mxu0 0.0
        %5386 = vmatprep.subr.mxu0 0.0
        %5387 = vmatpush1.msra.mxu0 0.0
        %5388 = vmatprep.subr.mxu0 0.0
        %5389 = vmatpush1.msra.mxu0 0.0
        %5390 = vmatprep.subr.mxu0 0.0
        %5391 = vmatpush1.msra.mxu0 0.0
        %5392 = vmatprep.subr.mxu0 0.0
        %5393 = vmatpush1.msra.mxu0 0.0
        %5394 = vmatprep.subr.mxu0 0.0
        %5395 = vmatpush1.msra.mxu0 0.0
        %5396 = vmatprep.subr.mxu0 0.0
        %5397 = vmatpush1.msra.mxu0 0.0
        %5398 = vmatprep.subr.mxu0 0.0
        %5399 = vmatpush1.msra.mxu0 0.0
        %5400 = vmatprep.subr.mxu0 0.0
        %5401 = vmatpush1.msra.mxu0 0.0
        %5402 = vmatprep.subr.mxu0 0.0
        %5403 = vmatpush1.msra.mxu0 0.0
        %5404 = vmatprep.subr.mxu0 0.0
        %5405 = vmatpush1.msra.mxu0 0.0
        %5406 = vmatprep.subr.mxu0 0.0
        %5407 = vmatpush1.msra.mxu0 0.0
        %5408 = vmatprep.subr.mxu0 0.0
        %5409 = vmatpush1.msra.mxu0 0.0
        %5410 = vmatprep.subr.mxu0 0.0
        %5411 = vmatpush1.msra.mxu0 0.0
        %5412 = vmatprep.subr.mxu0 0.0
        %5413 = vmatpush1.msra.mxu0 0.0
        %5414 = vmatprep.subr.mxu0 0.0
        %5415 = vmatpush1.msra.mxu0 0.0
        %5416 = vmatprep.subr.mxu0 0.0
        %5417 = vmatpush1.msra.mxu0 0.0
        %5418 = vmatprep.subr.mxu0 0.0
        %5419 = vmatpush1.msra.mxu0 0.0
        %5420 = vmatprep.subr.mxu0 0.0
        %5421 = vmatpush1.msra.mxu0 0.0
        %5422 = vmatprep.subr.mxu0 0.0
        %5423 = vmatpush1.msra.mxu0 0.0
        %5424 = vmatprep.subr.mxu0 0.0
        %5425 = vmatpush1.msra.mxu0 0.0
        %5426 = vmatprep.subr.mxu0 0.0
        %5427 = vmatpush1.msra.mxu0 0.0
        %5428 = vmatprep.subr.mxu0 0.0
        %5429 = vmatpush1.msra.mxu0 0.0
        %5430 = vmatprep.subr.mxu0 0.0
        %5431 = vmatpush1.msra.mxu0 0.0
        %5432 = vmatprep.subr.mxu0 0.0
        %5433 = vmatpush1.msra.mxu0 0.0
        %5434 = vmatprep.subr.mxu0 0.0
        %5435 = vmatpush1.msra.mxu0 0.0
        %5436 = vmatprep.subr.mxu0 0.0
        %5437 = vmatpush1.msra.mxu0 0.0
        %5438 = vmatprep.subr.mxu0 0.0
        %5439 = vmatpush1.msra.mxu0 0.0
        %5440 = vmatprep.subr.mxu0 0.0
        %5441 = vmatpush1.msra.mxu0 0.0
        %5442 = vmatprep.subr.mxu0 0.0
        %5443 = vmatpush1.msra.mxu0 0.0
        %5444 = vmatprep.mubr.f32.mxu0 0.0
        %v5445 = vand.u32 %v5073, 4294901760
        %v5446 = vsub.f32 %v5073, %v5445
        %v5447 = vand.u32 %v5446, 4294901760
        %5448 = vmatmul.mubr.f32.gmra.mrb[0].mxu0 %v5447
        %v5449 = vpop.f32.mrb[0].mxu0
        %v5450 = vadd.f32 %v5355, %v5449
        %v5451 = vpop.f32.mrb[0].mxu0
        %5452 = vmatprep.mubr.f32.mxu0 0.0
        %v5453 = vand.u32 %v5076, 4294901760
        %v5454 = vsub.f32 %v5076, %v5453
        %v5455 = vand.u32 %v5454, 4294901760
        %5456 = vmatmul.mubr.f32.gmra.mrb[0].mxu0 %v5455
        %v5457 = vpop.f32.mrb[0].mxu0
        %v5458 = vadd.f32 %v5362, %v5457
        %v5459 = vpop.f32.mrb[0].mxu0
        %5460 = vmatprep.mubr.f32.mxu0 0.0
        %v5461 = vand.u32 %v5079, 4294901760
        %v5462 = vsub.f32 %v5079, %v5461
        %v5463 = vand.u32 %v5462, 4294901760
        %5464 = vmatmul.mubr.f32.gmra.mrb[0].mxu0 %v5463
        %v5465 = vpop.f32.mrb[0].mxu0
        %v5466 = vadd.f32 %v5369, %v5465
        %v5467 = vpop.f32.mrb[0].mxu0
        %5468 = vmatprep.mubr.f32.mxu0 0.0
        %v5469 = vand.u32 %v5082, 4294901760
        %v5470 = vsub.f32 %v5082, %v5469
        %v5471 = vand.u32 %v5470, 4294901760
        %5472 = vmatmul.mubr.f32.gmra.mrb[0].mxu0 %v5471
        %v5473 = vpop.f32.mrb[0].mxu0
        %v5474 = vadd.f32 %v5376, %v5473
        %v5475 = vpop.f32.mrb[0].mxu0
        %5476 = vdwg.mxu0
        %5477 = vmatprep.subr.mxu0 0.0
        %v5478 = vand.u32 %v3072, 4294901760
        %v5479 = vsub.f32 %v3072, %v5478
        %v5480 = vand.u32 %v5479, 4294901760
        %5481 = vmatpush1.msra.mxu0 %v5480
        %5482 = vmatprep.subr.mxu0 0.0
        %5483 = vmatpush1.msra.mxu0 0.0
        %5484 = vmatprep.subr.mxu0 0.0
        %5485 = vmatpush1.msra.mxu0 0.0
        %5486 = vmatprep.subr.mxu0 0.0
        %5487 = vmatpush1.msra.mxu0 0.0
        %5488 = vmatprep.subr.mxu0 0.0
        %5489 = vmatpush1.msra.mxu0 0.0
        %5490 = vmatprep.subr.mxu0 0.0
        %5491 = vmatpush1.msra.mxu0 0.0
        %5492 = vmatprep.subr.mxu0 0.0
        %5493 = vmatpush1.msra.mxu0 0.0
        %5494 = vmatprep.subr.mxu0 0.0
        %5495 = vmatpush1.msra.mxu0 0.0
        %5496 = vmatprep.subr.mxu0 0.0
        %5497 = vmatpush1.msra.mxu0 0.0
        %5498 = vmatprep.subr.mxu0 0.0
        %5499 = vmatpush1.msra.mxu0 0.0
        %5500 = vmatprep.subr.mxu0 0.0
        %5501 = vmatpush1.msra.mxu0 0.0
        %5502 = vmatprep.subr.mxu0 0.0
        %5503 = vmatpush1.msra.mxu0 0.0
        %5504 = vmatprep.subr.mxu0 0.0
        %5505 = vmatpush1.msra.mxu0 0.0
        %5506 = vmatprep.subr.mxu0 0.0
        %5507 = vmatpush1.msra.mxu0 0.0
        %5508 = vmatprep.subr.mxu0 0.0
        %5509 = vmatpush1.msra.mxu0 0.0
        %5510 = vmatprep.subr.mxu0 0.0
        %5511 = vmatpush1.msra.mxu0 0.0
        %5512 = vmatprep.subr.mxu0 0.0
        %5513 = vmatpush1.msra.mxu0 0.0
        %5514 = vmatprep.subr.mxu0 0.0
        %5515 = vmatpush1.msra.mxu0 0.0
        %5516 = vmatprep.subr.mxu0 0.0
        %5517 = vmatpush1.msra.mxu0 0.0
        %5518 = vmatprep.subr.mxu0 0.0
        %5519 = vmatpush1.msra.mxu0 0.0
        %5520 = vmatprep.subr.mxu0 0.0
        %5521 = vmatpush1.msra.mxu0 0.0
        %5522 = vmatprep.subr.mxu0 0.0
        %5523 = vmatpush1.msra.mxu0 0.0
        %5524 = vmatprep.subr.mxu0 0.0
        %5525 = vmatpush1.msra.mxu0 0.0
        %5526 = vmatprep.subr.mxu0 0.0
        %5527 = vmatpush1.msra.mxu0 0.0
        %5528 = vmatprep.subr.mxu0 0.0
        %5529 = vmatpush1.msra.mxu0 0.0
        %5530 = vmatprep.subr.mxu0 0.0
        %5531 = vmatpush1.msra.mxu0 0.0
        %5532 = vmatprep.subr.mxu0 0.0
        %5533 = vmatpush1.msra.mxu0 0.0
        %5534 = vmatprep.subr.mxu0 0.0
        %5535 = vmatpush1.msra.mxu0 0.0
        %5536 = vmatprep.subr.mxu0 0.0
        %5537 = vmatpush1.msra.mxu0 0.0
        %5538 = vmatprep.subr.mxu0 0.0
        %5539 = vmatpush1.msra.mxu0 0.0
        %5540 = vmatprep.subr.mxu0 0.0
        %5541 = vmatpush1.msra.mxu0 0.0
        %5542 = vmatprep.subr.mxu0 0.0
        %5543 = vmatpush1.msra.mxu0 0.0
        %5544 = vmatprep.mubr.f32.mxu0 0.0
        %v5545 = vand.u32 %v5073, 4294901760
        %5546 = vmatmul.mubr.f32.gmra.mrb[0].mxu0 %v5545
        %v5547 = vpop.f32.mrb[0].mxu0
        %v5548 = vadd.f32 %v5450, %v5547
        %v5549 = vpop.f32.mrb[0].mxu0
        %5550 = vmatprep.mubr.f32.mxu0 0.0
        %v5551 = vand.u32 %v5076, 4294901760
        %5552 = vmatmul.mubr.f32.gmra.mrb[0].mxu0 %v5551
        %v5553 = vpop.f32.mrb[0].mxu0
        %v5554 = vadd.f32 %v5458, %v5553
        %v5555 = vpop.f32.mrb[0].mxu0
        %5556 = vmatprep.mubr.f32.mxu0 0.0
        %v5557 = vand.u32 %v5079, 4294901760
        %5558 = vmatmul.mubr.f32.gmra.mrb[0].mxu0 %v5557
        %v5559 = vpop.f32.mrb[0].mxu0
        %v5560 = vadd.f32 %v5466, %v5559
        %v5561 = vpop.f32.mrb[0].mxu0
        %5562 = vmatprep.mubr.f32.mxu0 0.0
        %v5563 = vand.u32 %v5082, 4294901760
        %5564 = vmatmul.mubr.f32.gmra.mrb[0].mxu0 %v5563
        %v5565 = vpop.f32.mrb[0].mxu0
        %v5566 = vadd.f32 %v5474, %v5565
        %v5567 = vpop.f32.mrb[0].mxu0
        %5568 = vdwg.mxu0
        %5569 = vmatprep.subr.mxu0 0.0
        %v5570 = vand.u32 %v3072, 4294901760
        %5571 = vmatpush1.msra.mxu0 %v5570
        %5572 = vmatprep.subr.mxu0 0.0
        %5573 = vmatpush1.msra.mxu0 0.0
        %5574 = vmatprep.subr.mxu0 0.0
        %5575 = vmatpush1.msra.mxu0 0.0
        %5576 = vmatprep.subr.mxu0 0.0
        %5577 = vmatpush1.msra.mxu0 0.0
        %5578 = vmatprep.subr.mxu0 0.0
        %5579 = vmatpush1.msra.mxu0 0.0
        %5580 = vmatprep.subr.mxu0 0.0
        %5581 = vmatpush1.msra.mxu0 0.0
        %5582 = vmatprep.subr.mxu0 0.0
        %5583 = vmatpush1.msra.mxu0 0.0
        %5584 = vmatprep.subr.mxu0 0.0
        %5585 = vmatpush1.msra.mxu0 0.0
        %5586 = vmatprep.subr.mxu0 0.0
        %5587 = vmatpush1.msra.mxu0 0.0
        %5588 = vmatprep.subr.mxu0 0.0
        %5589 = vmatpush1.msra.mxu0 0.0
        %5590 = vmatprep.subr.mxu0 0.0
        %5591 = vmatpush1.msra.mxu0 0.0
        %5592 = vmatprep.subr.mxu0 0.0
        %5593 = vmatpush1.msra.mxu0 0.0
        %5594 = vmatprep.subr.mxu0 0.0
        %5595 = vmatpush1.msra.mxu0 0.0
        %5596 = vmatprep.subr.mxu0 0.0
        %5597 = vmatpush1.msra.mxu0 0.0
        %5598 = vmatprep.subr.mxu0 0.0
        %5599 = vmatpush1.msra.mxu0 0.0
        %5600 = vmatprep.subr.mxu0 0.0
        %5601 = vmatpush1.msra.mxu0 0.0
        %5602 = vmatprep.subr.mxu0 0.0
        %5603 = vmatpush1.msra.mxu0 0.0
        %5604 = vmatprep.subr.mxu0 0.0
        %5605 = vmatpush1.msra.mxu0 0.0
        %5606 = vmatprep.subr.mxu0 0.0
        %5607 = vmatpush1.msra.mxu0 0.0
        %5608 = vmatprep.subr.mxu0 0.0
        %5609 = vmatpush1.msra.mxu0 0.0
        %5610 = vmatprep.subr.mxu0 0.0
        %5611 = vmatpush1.msra.mxu0 0.0
        %5612 = vmatprep.subr.mxu0 0.0
        %5613 = vmatpush1.msra.mxu0 0.0
        %5614 = vmatprep.subr.mxu0 0.0
        %5615 = vmatpush1.msra.mxu0 0.0
        %5616 = vmatprep.subr.mxu0 0.0
        %5617 = vmatpush1.msra.mxu0 0.0
        %5618 = vmatprep.subr.mxu0 0.0
        %5619 = vmatpush1.msra.mxu0 0.0
        %5620 = vmatprep.subr.mxu0 0.0
        %5621 = vmatpush1.msra.mxu0 0.0
        %5622 = vmatprep.subr.mxu0 0.0
        %5623 = vmatpush1.msra.mxu0 0.0
        %5624 = vmatprep.subr.mxu0 0.0
        %5625 = vmatpush1.msra.mxu0 0.0
        %5626 = vmatprep.subr.mxu0 0.0
        %5627 = vmatpush1.msra.mxu0 0.0
        %5628 = vmatprep.subr.mxu0 0.0
        %5629 = vmatpush1.msra.mxu0 0.0
        %5630 = vmatprep.subr.mxu0 0.0
        %5631 = vmatpush1.msra.mxu0 0.0
        %5632 = vmatprep.subr.mxu0 0.0
        %5633 = vmatpush1.msra.mxu0 0.0
        %5634 = vmatprep.mubr.f32.mxu0 0.0
        %v5635 = vand.u32 %v5073, 4294901760
        %5636 = vmatmul.mubr.f32.gmra.mrb[0].mxu0 %v5635
        %v5637 = vpop.f32.mrb[0].mxu0
        %v5638 = vadd.f32 %v5548, %v5637
        %v5639 = vpop.f32.mrb[0].mxu0
        %5640 = vmatprep.mubr.f32.mxu0 0.0
        %v5641 = vand.u32 %v5076, 4294901760
        %5642 = vmatmul.mubr.f32.gmra.mrb[0].mxu0 %v5641
        %v5643 = vpop.f32.mrb[0].mxu0
        %v5644 = vadd.f32 %v5554, %v5643
        %v5645 = vpop.f32.mrb[0].mxu0
        %5646 = vmatprep.mubr.f32.mxu0 0.0
        %v5647 = vand.u32 %v5079, 4294901760
        %5648 = vmatmul.mubr.f32.gmra.mrb[0].mxu0 %v5647
        %v5649 = vpop.f32.mrb[0].mxu0
        %v5650 = vadd.f32 %v5560, %v5649
        %v5651 = vpop.f32.mrb[0].mxu0
        %5652 = vmatprep.mubr.f32.mxu0 0.0
        %v5653 = vand.u32 %v5082, 4294901760
        %5654 = vmatmul.mubr.f32.gmra.mrb[0].mxu0 %v5653
        %v5655 = vpop.f32.mrb[0].mxu0
        %v5656 = vadd.f32 %v5566, %v5655
        %v5657 = vpop.f32.mrb[0].mxu0
        %5658 = vdwg.mxu0
        %v5659 = vxor.u32 %v5638, 2147483648
        %v5660 = vxor.u32 %v5644, 2147483648
        %v5661 = vxor.u32 %v5650, 2147483648
        %v5662 = vxor.u32 %v5656, 2147483648
        %v5663 = vmul.f32 %v5659, 1.442695
        %v5664 = vpow.pop %v5663
        %v5665 = vmul.f32 %v5660, 1.442695
        %v5666 = vpow.pop %v5665
        %v5667 = vmul.f32 %v5661, 1.442695
        %v5668 = vpow.pop %v5667
        %v5669 = vmul.f32 %v5662, 1.442695
        %v5670 = vpow.pop %v5669
        %v5671 = vadd.f32 %v5664, 1.0
        %v5672 = vadd.f32 %v5666, 1.0
        %v5673 = vadd.f32 %v5668, 1.0
        %v5674 = vadd.f32 %v5670, 1.0
        %v5675 = vrcp.pop %v5671
        %v5676 = vmul.f32 1.0, %v5675
        %v5677 = vrcp.pop %v5672
        %v5678 = vmul.f32 1.0, %v5677
        %v5679 = vrcp.pop %v5673
        %v5680 = vmul.f32 1.0, %v5679
        %v5681 = vrcp.pop %v5674
        %v5682 = vmul.f32 1.0, %v5681
        %s5683 = scalar_lea.vmem %s9, 32
        %v5684 = vld [vmem:[%s5683] sm:$0xff]
        %v5685 = vld [vmem:[%s5683 + $0x8] sm:$0xff]
        %v5686 = vld [vmem:[%s5683 + $0x10] sm:$0xff]
        %v5687 = vld [vmem:[%s5683 + $0x18] sm:$0xff]
        %s5688 = scalar_lea.vmem %s10, 32
        %v5689 = vld [vmem:[%s5688] sm:$0xff]
        %v5690 = vld [vmem:[%s5688 + $0x8] sm:$0xff]
        %v5691 = vld [vmem:[%s5688 + $0x10] sm:$0xff]
        %v5692 = vld [vmem:[%s5688 + $0x18] sm:$0xff]
        %5694 = vset.pattern.permute.xlu0 0
        %5695 = vperm.xlu0 %5694, %v5689
        %v5696 = vpop.permute.xlu0 %5695
        %5699 = vset.pattern.permute.xlu0 0
        %5700 = vperm.xlu0 %5699, %v5690
        %v5701 = vpop.permute.xlu0 %5700
        %5704 = vset.pattern.permute.xlu0 0
        %5705 = vperm.xlu0 %5704, %v5691
        %v5706 = vpop.permute.xlu0 %5705
        %5709 = vset.pattern.permute.xlu0 0
        %5710 = vperm.xlu0 %5709, %v5692
        %v5711 = vpop.permute.xlu0 %5710
        %v5714 = vsel %vm3701, %v5684, 0
        %v5717 = vsel %vm3701, %v5685, 0
        %v5720 = vsel %vm3701, %v5686, 0
        %v5723 = vsel %vm3701, %v5687, 0
        %5725 = vmatprep.subr.mxu0 0.0
        %v5726 = vand.u32 %v5676, 4294901760
        %5727 = vmatpush1.msra.mxu0 %v5726
        %5728 = vmatprep.subr.mxu0 0.0
        %v5729 = vand.u32 %v5678, 4294901760
        %5730 = vmatpush1.msra.mxu0 %v5729
        %5731 = vmatprep.subr.mxu0 0.0
        %v5732 = vand.u32 %v5680, 4294901760
        %5733 = vmatpush1.msra.mxu0 %v5732
        %5734 = vmatprep.subr.mxu0 0.0
        %v5735 = vand.u32 %v5682, 4294901760
        %5736 = vmatpush1.msra.mxu0 %v5735
        %5737 = vmatprep.subr.mxu0 0.0
        %5738 = vmatpush1.msra.mxu0 0.0
        %5739 = vmatprep.subr.mxu0 0.0
        %5740 = vmatpush1.msra.mxu0 0.0
        %5741 = vmatprep.subr.mxu0 0.0
        %5742 = vmatpush1.msra.mxu0 0.0
        %5743 = vmatprep.subr.mxu0 0.0
        %5744 = vmatpush1.msra.mxu0 0.0
        %5745 = vmatprep.subr.mxu0 0.0
        %5746 = vmatpush1.msra.mxu0 0.0
        %5747 = vmatprep.subr.mxu0 0.0
        %5748 = vmatpush1.msra.mxu0 0.0
        %5749 = vmatprep.subr.mxu0 0.0
        %5750 = vmatpush1.msra.mxu0 0.0
        %5751 = vmatprep.subr.mxu0 0.0
        %5752 = vmatpush1.msra.mxu0 0.0
        %5753 = vmatprep.subr.mxu0 0.0
        %5754 = vmatpush1.msra.mxu0 0.0
        %5755 = vmatprep.subr.mxu0 0.0
        %5756 = vmatpush1.msra.mxu0 0.0
        %5757 = vmatprep.subr.mxu0 0.0
        %5758 = vmatpush1.msra.mxu0 0.0
        %5759 = vmatprep.subr.mxu0 0.0
        %5760 = vmatpush1.msra.mxu0 0.0
        %5761 = vmatprep.subr.mxu0 0.0
        %5762 = vmatpush1.msra.mxu0 0.0
        %5763 = vmatprep.subr.mxu0 0.0
        %5764 = vmatpush1.msra.mxu0 0.0
        %5765 = vmatprep.subr.mxu0 0.0
        %5766 = vmatpush1.msra.mxu0 0.0
        %5767 = vmatprep.subr.mxu0 0.0
        %5768 = vmatpush1.msra.mxu0 0.0
        %5769 = vmatprep.subr.mxu0 0.0
        %5770 = vmatpush1.msra.mxu0 0.0
        %5771 = vmatprep.subr.mxu0 0.0
        %5772 = vmatpush1.msra.mxu0 0.0
        %5773 = vmatprep.subr.mxu0 0.0
        %5774 = vmatpush1.msra.mxu0 0.0
        %5775 = vmatprep.subr.mxu0 0.0
        %5776 = vmatpush1.msra.mxu0 0.0
        %5777 = vmatprep.subr.mxu0 0.0
        %5778 = vmatpush1.msra.mxu0 0.0
        %5779 = vmatprep.subr.mxu0 0.0
        %5780 = vmatpush1.msra.mxu0 0.0
        %5781 = vmatprep.subr.mxu0 0.0
        %5782 = vmatpush1.msra.mxu0 0.0
        %5783 = vmatprep.subr.mxu0 0.0
        %5784 = vmatpush1.msra.mxu0 0.0
        %5785 = vmatprep.subr.mxu0 0.0
        %5786 = vmatpush1.msra.mxu0 0.0
        %5787 = vmatprep.subr.mxu0 0.0
        %5788 = vmatpush1.msra.mxu0 0.0
        %5789 = vmatprep.subr.mxu0 0.0
        %5790 = vmatpush1.msra.mxu0 0.0
        %5791 = vmatprep.subr.mxu0 0.0
        %5792 = vmatpush1.msra.mxu0 0.0
        %5793 = vmatprep.mubr.f32.mxu0 0.0
        %v5794 = vand.u32 %v5714, 4294901760
        %v5795 = vsub.f32 %v5714, %v5794
        %v5796 = vand.u32 %v5795, 4294901760
        %v5797 = vsub.f32 %v5795, %v5796
        %v5798 = vand.u32 %v5797, 4294901760
        %5799 = vmatmul.mubr.f32.gmra.mrb[0].mxu0 %v5798
        %v5800 = vpop.f32.mrb[0].mxu0
        %v5801 = vadd.f32 %v5696, %v5800
        %v5802 = vpop.f32.mrb[0].mxu0
        %5803 = vmatprep.mubr.f32.mxu0 0.0
        %v5804 = vand.u32 %v5717, 4294901760
        %v5805 = vsub.f32 %v5717, %v5804
        %v5806 = vand.u32 %v5805, 4294901760
        %v5807 = vsub.f32 %v5805, %v5806
        %v5808 = vand.u32 %v5807, 4294901760
        %5809 = vmatmul.mubr.f32.gmra.mrb[0].mxu0 %v5808
        %v5810 = vpop.f32.mrb[0].mxu0
        %v5811 = vadd.f32 %v5701, %v5810
        %v5812 = vpop.f32.mrb[0].mxu0
        %5813 = vmatprep.mubr.f32.mxu0 0.0
        %v5814 = vand.u32 %v5720, 4294901760
        %v5815 = vsub.f32 %v5720, %v5814
        %v5816 = vand.u32 %v5815, 4294901760
        %v5817 = vsub.f32 %v5815, %v5816
        %v5818 = vand.u32 %v5817, 4294901760
        %5819 = vmatmul.mubr.f32.gmra.mrb[0].mxu0 %v5818
        %v5820 = vpop.f32.mrb[0].mxu0
        %v5821 = vadd.f32 %v5706, %v5820
        %v5822 = vpop.f32.mrb[0].mxu0
        %5823 = vmatprep.mubr.f32.mxu0 0.0
        %v5824 = vand.u32 %v5723, 4294901760
        %v5825 = vsub.f32 %v5723, %v5824
        %v5826 = vand.u32 %v5825, 4294901760
        %v5827 = vsub.f32 %v5825, %v5826
        %v5828 = vand.u32 %v5827, 4294901760
        %5829 = vmatmul.mubr.f32.gmra.mrb[0].mxu0 %v5828
        %v5830 = vpop.f32.mrb[0].mxu0
        %v5831 = vadd.f32 %v5711, %v5830
        %v5832 = vpop.f32.mrb[0].mxu0
        %5833 = vdwg.mxu0
        %5834 = vmatprep.subr.mxu0 0.0
        %v5835 = vand.u32 %v5676, 4294901760
        %v5836 = vsub.f32 %v5676, %v5835
        %v5837 = vand.u32 %v5836, 4294901760
        %v5838 = vsub.f32 %v5836, %v5837
        %v5839 = vand.u32 %v5838, 4294901760
        %5840 = vmatpush1.msra.mxu0 %v5839
        %5841 = vmatprep.subr.mxu0 0.0
        %v5842 = vand.u32 %v5678, 4294901760
        %v5843 = vsub.f32 %v5678, %v5842
        %v5844 = vand.u32 %v5843, 4294901760
        %v5845 = vsub.f32 %v5843, %v5844
        %v5846 = vand.u32 %v5845, 4294901760
        %5847 = vmatpush1.msra.mxu0 %v5846
        %5848 = vmatprep.subr.mxu0 0.0
        %v5849 = vand.u32 %v5680, 4294901760
        %v5850 = vsub.f32 %v5680, %v5849
        %v5851 = vand.u32 %v5850, 4294901760
        %v5852 = vsub.f32 %v5850, %v5851
        %v5853 = vand.u32 %v5852, 4294901760
        %5854 = vmatpush1.msra.mxu0 %v5853
        %5855 = vmatprep.subr.mxu0 0.0
        %v5856 = vand.u32 %v5682, 4294901760
        %v5857 = vsub.f32 %v5682, %v5856
        %v5858 = vand.u32 %v5857, 4294901760
        %v5859 = vsub.f32 %v5857, %v5858
        %v5860 = vand.u32 %v5859, 4294901760
        %5861 = vmatpush1.msra.mxu0 %v5860
        %5862 = vmatprep.subr.mxu0 0.0
        %5863 = vmatpush1.msra.mxu0 0.0
        %5864 = vmatprep.subr.mxu0 0.0
        %5865 = vmatpush1.msra.mxu0 0.0
        %5866 = vmatprep.subr.mxu0 0.0
        %5867 = vmatpush1.msra.mxu0 0.0
        %5868 = vmatprep.subr.mxu0 0.0
        %5869 = vmatpush1.msra.mxu0 0.0
        %5870 = vmatprep.subr.mxu0 0.0
        %5871 = vmatpush1.msra.mxu0 0.0
        %5872 = vmatprep.subr.mxu0 0.0
        %5873 = vmatpush1.msra.mxu0 0.0
        %5874 = vmatprep.subr.mxu0 0.0
        %5875 = vmatpush1.msra.mxu0 0.0
        %5876 = vmatprep.subr.mxu0 0.0
        %5877 = vmatpush1.msra.mxu0 0.0
        %5878 = vmatprep.subr.mxu0 0.0
        %5879 = vmatpush1.msra.mxu0 0.0
        %5880 = vmatprep.subr.mxu0 0.0
        %5881 = vmatpush1.msra.mxu0 0.0
        %5882 = vmatprep.subr.mxu0 0.0
        %5883 = vmatpush1.msra.mxu0 0.0
        %5884 = vmatprep.subr.mxu0 0.0
        %5885 = vmatpush1.msra.mxu0 0.0
        %5886 = vmatprep.subr.mxu0 0.0
        %5887 = vmatpush1.msra.mxu0 0.0
        %5888 = vmatprep.subr.mxu0 0.0
        %5889 = vmatpush1.msra.mxu0 0.0
        %5890 = vmatprep.subr.mxu0 0.0
        %5891 = vmatpush1.msra.mxu0 0.0
        %5892 = vmatprep.subr.mxu0 0.0
        %5893 = vmatpush1.msra.mxu0 0.0
        %5894 = vmatprep.subr.mxu0 0.0
        %5895 = vmatpush1.msra.mxu0 0.0
        %5896 = vmatprep.subr.mxu0 0.0
        %5897 = vmatpush1.msra.mxu0 0.0
        %5898 = vmatprep.subr.mxu0 0.0
        %5899 = vmatpush1.msra.mxu0 0.0
        %5900 = vmatprep.subr.mxu0 0.0
        %5901 = vmatpush1.msra.mxu0 0.0
        %5902 = vmatprep.subr.mxu0 0.0
        %5903 = vmatpush1.msra.mxu0 0.0
        %5904 = vmatprep.subr.mxu0 0.0
        %5905 = vmatpush1.msra.mxu0 0.0
        %5906 = vmatprep.subr.mxu0 0.0
        %5907 = vmatpush1.msra.mxu0 0.0
        %5908 = vmatprep.subr.mxu0 0.0
        %5909 = vmatpush1.msra.mxu0 0.0
        %5910 = vmatprep.subr.mxu0 0.0
        %5911 = vmatpush1.msra.mxu0 0.0
        %5912 = vmatprep.subr.mxu0 0.0
        %5913 = vmatpush1.msra.mxu0 0.0
        %5914 = vmatprep.subr.mxu0 0.0
        %5915 = vmatpush1.msra.mxu0 0.0
        %5916 = vmatprep.subr.mxu0 0.0
        %5917 = vmatpush1.msra.mxu0 0.0
        %5918 = vmatprep.mubr.f32.mxu0 0.0
        %v5919 = vand.u32 %v5714, 4294901760
        %5920 = vmatmul.mubr.f32.gmra.mrb[0].mxu0 %v5919
        %v5921 = vpop.f32.mrb[0].mxu0
        %v5922 = vadd.f32 %v5801, %v5921
        %v5923 = vpop.f32.mrb[0].mxu0
        %5924 = vmatprep.mubr.f32.mxu0 0.0
        %v5925 = vand.u32 %v5717, 4294901760
        %5926 = vmatmul.mubr.f32.gmra.mrb[0].mxu0 %v5925
        %v5927 = vpop.f32.mrb[0].mxu0
        %v5928 = vadd.f32 %v5811, %v5927
        %v5929 = vpop.f32.mrb[0].mxu0
        %5930 = vmatprep.mubr.f32.mxu0 0.0
        %v5931 = vand.u32 %v5720, 4294901760
        %5932 = vmatmul.mubr.f32.gmra.mrb[0].mxu0 %v5931
        %v5933 = vpop.f32.mrb[0].mxu0
        %v5934 = vadd.f32 %v5821, %v5933
        %v5935 = vpop.f32.mrb[0].mxu0
        %5936 = vmatprep.mubr.f32.mxu0 0.0
        %v5937 = vand.u32 %v5723, 4294901760
        %5938 = vmatmul.mubr.f32.gmra.mrb[0].mxu0 %v5937
        %v5939 = vpop.f32.mrb[0].mxu0
        %v5940 = vadd.f32 %v5831, %v5939
        %v5941 = vpop.f32.mrb[0].mxu0
        %5942 = vdwg.mxu0
        %5943 = vmatprep.subr.mxu0 0.0
        %v5944 = vand.u32 %v5676, 4294901760
        %v5945 = vsub.f32 %v5676, %v5944
        %5946 = vmatpush1.msra.mxu0 %v5945
        %5947 = vmatprep.subr.mxu0 0.0
        %v5948 = vand.u32 %v5678, 4294901760
        %v5949 = vsub.f32 %v5678, %v5948
        %5950 = vmatpush1.msra.mxu0 %v5949
        %5951 = vmatprep.subr.mxu0 0.0
        %v5952 = vand.u32 %v5680, 4294901760
        %v5953 = vsub.f32 %v5680, %v5952
        %5954 = vmatpush1.msra.mxu0 %v5953
        %5955 = vmatprep.subr.mxu0 0.0
        %v5956 = vand.u32 %v5682, 4294901760
        %v5957 = vsub.f32 %v5682, %v5956
        %5958 = vmatpush1.msra.mxu0 %v5957
        %5959 = vmatprep.subr.mxu0 0.0
        %5960 = vmatpush1.msra.mxu0 0.0
        %5961 = vmatprep.subr.mxu0 0.0
        %5962 = vmatpush1.msra.mxu0 0.0
        %5963 = vmatprep.subr.mxu0 0.0
        %5964 = vmatpush1.msra.mxu0 0.0
        %5965 = vmatprep.subr.mxu0 0.0
        %5966 = vmatpush1.msra.mxu0 0.0
        %5967 = vmatprep.subr.mxu0 0.0
        %5968 = vmatpush1.msra.mxu0 0.0
        %5969 = vmatprep.subr.mxu0 0.0
        %5970 = vmatpush1.msra.mxu0 0.0
        %5971 = vmatprep.subr.mxu0 0.0
        %5972 = vmatpush1.msra.mxu0 0.0
        %5973 = vmatprep.subr.mxu0 0.0
        %5974 = vmatpush1.msra.mxu0 0.0
        %5975 = vmatprep.subr.mxu0 0.0
        %5976 = vmatpush1.msra.mxu0 0.0
        %5977 = vmatprep.subr.mxu0 0.0
        %5978 = vmatpush1.msra.mxu0 0.0
        %5979 = vmatprep.subr.mxu0 0.0
        %5980 = vmatpush1.msra.mxu0 0.0
        %5981 = vmatprep.subr.mxu0 0.0
        %5982 = vmatpush1.msra.mxu0 0.0
        %5983 = vmatprep.subr.mxu0 0.0
        %5984 = vmatpush1.msra.mxu0 0.0
        %5985 = vmatprep.subr.mxu0 0.0
        %5986 = vmatpush1.msra.mxu0 0.0
        %5987 = vmatprep.subr.mxu0 0.0
        %5988 = vmatpush1.msra.mxu0 0.0
        %5989 = vmatprep.subr.mxu0 0.0
        %5990 = vmatpush1.msra.mxu0 0.0
        %5991 = vmatprep.subr.mxu0 0.0
        %5992 = vmatpush1.msra.mxu0 0.0
        %5993 = vmatprep.subr.mxu0 0.0
        %5994 = vmatpush1.msra.mxu0 0.0
        %5995 = vmatprep.subr.mxu0 0.0
        %5996 = vmatpush1.msra.mxu0 0.0
        %5997 = vmatprep.subr.mxu0 0.0
        %5998 = vmatpush1.msra.mxu0 0.0
        %5999 = vmatprep.subr.mxu0 0.0
        %6000 = vmatpush1.msra.mxu0 0.0
        %6001 = vmatprep.subr.mxu0 0.0
        %6002 = vmatpush1.msra.mxu0 0.0
        %6003 = vmatprep.subr.mxu0 0.0
        %6004 = vmatpush1.msra.mxu0 0.0
        %6005 = vmatprep.subr.mxu0 0.0
        %6006 = vmatpush1.msra.mxu0 0.0
        %6007 = vmatprep.subr.mxu0 0.0
        %6008 = vmatpush1.msra.mxu0 0.0
        %6009 = vmatprep.subr.mxu0 0.0
        %6010 = vmatpush1.msra.mxu0 0.0
        %6011 = vmatprep.subr.mxu0 0.0
        %6012 = vmatpush1.msra.mxu0 0.0
        %6013 = vmatprep.subr.mxu0 0.0
        %6014 = vmatpush1.msra.mxu0 0.0
        %6015 = vmatprep.mubr.f32.mxu0 0.0
        %v6016 = vand.u32 %v5714, 4294901760
        %v6017 = vsub.f32 %v5714, %v6016
        %6018 = vmatmul.mubr.f32.gmra.mrb[0].mxu0 %v6017
        %v6019 = vpop.f32.mrb[0].mxu0
        %v6020 = vadd.f32 %v5922, %v6019
        %v6021 = vpop.f32.mrb[0].mxu0
        %6022 = vmatprep.mubr.f32.mxu0 0.0
        %v6023 = vand.u32 %v5717, 4294901760
        %v6024 = vsub.f32 %v5717, %v6023
        %6025 = vmatmul.mubr.f32.gmra.mrb[0].mxu0 %v6024
        %v6026 = vpop.f32.mrb[0].mxu0
        %v6027 = vadd.f32 %v5928, %v6026
        %v6028 = vpop.f32.mrb[0].mxu0
        %6029 = vmatprep.mubr.f32.mxu0 0.0
        %v6030 = vand.u32 %v5720, 4294901760
        %v6031 = vsub.f32 %v5720, %v6030
        %6032 = vmatmul.mubr.f32.gmra.mrb[0].mxu0 %v6031
        %v6033 = vpop.f32.mrb[0].mxu0
        %v6034 = vadd.f32 %v5934, %v6033
        %v6035 = vpop.f32.mrb[0].mxu0
        %6036 = vmatprep.mubr.f32.mxu0 0.0
        %v6037 = vand.u32 %v5723, 4294901760
        %v6038 = vsub.f32 %v5723, %v6037
        %6039 = vmatmul.mubr.f32.gmra.mrb[0].mxu0 %v6038
        %v6040 = vpop.f32.mrb[0].mxu0
        %v6041 = vadd.f32 %v5940, %v6040
        %v6042 = vpop.f32.mrb[0].mxu0
        %6043 = vdwg.mxu0
        %6044 = vmatprep.subr.mxu0 0.0
        %v6045 = vand.u32 %v5676, 4294901760
        %6046 = vmatpush1.msra.mxu0 %v6045
        %6047 = vmatprep.subr.mxu0 0.0
        %v6048 = vand.u32 %v5678, 4294901760
        %6049 = vmatpush1.msra.mxu0 %v6048
        %6050 = vmatprep.subr.mxu0 0.0
        %v6051 = vand.u32 %v5680, 4294901760
        %6052 = vmatpush1.msra.mxu0 %v6051
        %6053 = vmatprep.subr.mxu0 0.0
        %v6054 = vand.u32 %v5682, 4294901760
        %6055 = vmatpush1.msra.mxu0 %v6054
        %6056 = vmatprep.subr.mxu0 0.0
        %6057 = vmatpush1.msra.mxu0 0.0
        %6058 = vmatprep.subr.mxu0 0.0
        %6059 = vmatpush1.msra.mxu0 0.0
        %6060 = vmatprep.subr.mxu0 0.0
        %6061 = vmatpush1.msra.mxu0 0.0
        %6062 = vmatprep.subr.mxu0 0.0
        %6063 = vmatpush1.msra.mxu0 0.0
        %6064 = vmatprep.subr.mxu0 0.0
        %6065 = vmatpush1.msra.mxu0 0.0
        %6066 = vmatprep.subr.mxu0 0.0
        %6067 = vmatpush1.msra.mxu0 0.0
        %6068 = vmatprep.subr.mxu0 0.0
        %6069 = vmatpush1.msra.mxu0 0.0
        %6070 = vmatprep.subr.mxu0 0.0
        %6071 = vmatpush1.msra.mxu0 0.0
        %6072 = vmatprep.subr.mxu0 0.0
        %6073 = vmatpush1.msra.mxu0 0.0
        %6074 = vmatprep.subr.mxu0 0.0
        %6075 = vmatpush1.msra.mxu0 0.0
        %6076 = vmatprep.subr.mxu0 0.0
        %6077 = vmatpush1.msra.mxu0 0.0
        %6078 = vmatprep.subr.mxu0 0.0
        %6079 = vmatpush1.msra.mxu0 0.0
        %6080 = vmatprep.subr.mxu0 0.0
        %6081 = vmatpush1.msra.mxu0 0.0
        %6082 = vmatprep.subr.mxu0 0.0
        %6083 = vmatpush1.msra.mxu0 0.0
        %6084 = vmatprep.subr.mxu0 0.0
        %6085 = vmatpush1.msra.mxu0 0.0
        %6086 = vmatprep.subr.mxu0 0.0
        %6087 = vmatpush1.msra.mxu0 0.0
        %6088 = vmatprep.subr.mxu0 0.0
        %6089 = vmatpush1.msra.mxu0 0.0
        %6090 = vmatprep.subr.mxu0 0.0
        %6091 = vmatpush1.msra.mxu0 0.0
        %6092 = vmatprep.subr.mxu0 0.0
        %6093 = vmatpush1.msra.mxu0 0.0
        %6094 = vmatprep.subr.mxu0 0.0
        %6095 = vmatpush1.msra.mxu0 0.0
        %6096 = vmatprep.subr.mxu0 0.0
        %6097 = vmatpush1.msra.mxu0 0.0
        %6098 = vmatprep.subr.mxu0 0.0
        %6099 = vmatpush1.msra.mxu0 0.0
        %6100 = vmatprep.subr.mxu0 0.0
        %6101 = vmatpush1.msra.mxu0 0.0
        %6102 = vmatprep.subr.mxu0 0.0
        %6103 = vmatpush1.msra.mxu0 0.0
        %6104 = vmatprep.subr.mxu0 0.0
        %6105 = vmatpush1.msra.mxu0 0.0
        %6106 = vmatprep.subr.mxu0 0.0
        %6107 = vmatpush1.msra.mxu0 0.0
        %6108 = vmatprep.subr.mxu0 0.0
        %6109 = vmatpush1.msra.mxu0 0.0
        %6110 = vmatprep.subr.mxu0 0.0
        %6111 = vmatpush1.msra.mxu0 0.0
        %6112 = vmatprep.mubr.f32.mxu0 0.0
        %v6113 = vand.u32 %v5714, 4294901760
        %v6114 = vsub.f32 %v5714, %v6113
        %v6115 = vand.u32 %v6114, 4294901760
        %6116 = vmatmul.mubr.f32.gmra.mrb[0].mxu0 %v6115
        %v6117 = vpop.f32.mrb[0].mxu0
        %v6118 = vadd.f32 %v6020, %v6117
        %v6119 = vpop.f32.mrb[0].mxu0
        %6120 = vmatprep.mubr.f32.mxu0 0.0
        %v6121 = vand.u32 %v5717, 4294901760
        %v6122 = vsub.f32 %v5717, %v6121
        %v6123 = vand.u32 %v6122, 4294901760
        %6124 = vmatmul.mubr.f32.gmra.mrb[0].mxu0 %v6123
        %v6125 = vpop.f32.mrb[0].mxu0
        %v6126 = vadd.f32 %v6027, %v6125
        %v6127 = vpop.f32.mrb[0].mxu0
        %6128 = vmatprep.mubr.f32.mxu0 0.0
        %v6129 = vand.u32 %v5720, 4294901760
        %v6130 = vsub.f32 %v5720, %v6129
        %v6131 = vand.u32 %v6130, 4294901760
        %6132 = vmatmul.mubr.f32.gmra.mrb[0].mxu0 %v6131
        %v6133 = vpop.f32.mrb[0].mxu0
        %v6134 = vadd.f32 %v6034, %v6133
        %v6135 = vpop.f32.mrb[0].mxu0
        %6136 = vmatprep.mubr.f32.mxu0 0.0
        %v6137 = vand.u32 %v5723, 4294901760
        %v6138 = vsub.f32 %v5723, %v6137
        %v6139 = vand.u32 %v6138, 4294901760
        %6140 = vmatmul.mubr.f32.gmra.mrb[0].mxu0 %v6139
        %v6141 = vpop.f32.mrb[0].mxu0
        %v6142 = vadd.f32 %v6041, %v6141
        %v6143 = vpop.f32.mrb[0].mxu0
        %6144 = vdwg.mxu0
        %6145 = vmatprep.subr.mxu0 0.0
        %v6146 = vand.u32 %v5676, 4294901760
        %v6147 = vsub.f32 %v5676, %v6146
        %v6148 = vand.u32 %v6147, 4294901760
        %6149 = vmatpush1.msra.mxu0 %v6148
        %6150 = vmatprep.subr.mxu0 0.0
        %v6151 = vand.u32 %v5678, 4294901760
        %v6152 = vsub.f32 %v5678, %v6151
        %v6153 = vand.u32 %v6152, 4294901760
        %6154 = vmatpush1.msra.mxu0 %v6153
        %6155 = vmatprep.subr.mxu0 0.0
        %v6156 = vand.u32 %v5680, 4294901760
        %v6157 = vsub.f32 %v5680, %v6156
        %v6158 = vand.u32 %v6157, 4294901760
        %6159 = vmatpush1.msra.mxu0 %v6158
        %6160 = vmatprep.subr.mxu0 0.0
        %v6161 = vand.u32 %v5682, 4294901760
        %v6162 = vsub.f32 %v5682, %v6161
        %v6163 = vand.u32 %v6162, 4294901760
        %6164 = vmatpush1.msra.mxu0 %v6163
        %6165 = vmatprep.subr.mxu0 0.0
        %6166 = vmatpush1.msra.mxu0 0.0
        %6167 = vmatprep.subr.mxu0 0.0
        %6168 = vmatpush1.msra.mxu0 0.0
        %6169 = vmatprep.subr.mxu0 0.0
        %6170 = vmatpush1.msra.mxu0 0.0
        %6171 = vmatprep.subr.mxu0 0.0
        %6172 = vmatpush1.msra.mxu0 0.0
        %6173 = vmatprep.subr.mxu0 0.0
        %6174 = vmatpush1.msra.mxu0 0.0
        %6175 = vmatprep.subr.mxu0 0.0
        %6176 = vmatpush1.msra.mxu0 0.0
        %6177 = vmatprep.subr.mxu0 0.0
        %6178 = vmatpush1.msra.mxu0 0.0
        %6179 = vmatprep.subr.mxu0 0.0
        %6180 = vmatpush1.msra.mxu0 0.0
        %6181 = vmatprep.subr.mxu0 0.0
        %6182 = vmatpush1.msra.mxu0 0.0
        %6183 = vmatprep.subr.mxu0 0.0
        %6184 = vmatpush1.msra.mxu0 0.0
        %6185 = vmatprep.subr.mxu0 0.0
        %6186 = vmatpush1.msra.mxu0 0.0
        %6187 = vmatprep.subr.mxu0 0.0
        %6188 = vmatpush1.msra.mxu0 0.0
        %6189 = vmatprep.subr.mxu0 0.0
        %6190 = vmatpush1.msra.mxu0 0.0
        %6191 = vmatprep.subr.mxu0 0.0
        %6192 = vmatpush1.msra.mxu0 0.0
        %6193 = vmatprep.subr.mxu0 0.0
        %6194 = vmatpush1.msra.mxu0 0.0
        %6195 = vmatprep.subr.mxu0 0.0
        %6196 = vmatpush1.msra.mxu0 0.0
        %6197 = vmatprep.subr.mxu0 0.0
        %6198 = vmatpush1.msra.mxu0 0.0
        %6199 = vmatprep.subr.mxu0 0.0
        %6200 = vmatpush1.msra.mxu0 0.0
        %6201 = vmatprep.subr.mxu0 0.0
        %6202 = vmatpush1.msra.mxu0 0.0
        %6203 = vmatprep.subr.mxu0 0.0
        %6204 = vmatpush1.msra.mxu0 0.0
        %6205 = vmatprep.subr.mxu0 0.0
        %6206 = vmatpush1.msra.mxu0 0.0
        %6207 = vmatprep.subr.mxu0 0.0
        %6208 = vmatpush1.msra.mxu0 0.0
        %6209 = vmatprep.subr.mxu0 0.0
        %6210 = vmatpush1.msra.mxu0 0.0
        %6211 = vmatprep.subr.mxu0 0.0
        %6212 = vmatpush1.msra.mxu0 0.0
        %6213 = vmatprep.subr.mxu0 0.0
        %6214 = vmatpush1.msra.mxu0 0.0
        %6215 = vmatprep.subr.mxu0 0.0
        %6216 = vmatpush1.msra.mxu0 0.0
        %6217 = vmatprep.subr.mxu0 0.0
        %6218 = vmatpush1.msra.mxu0 0.0
        %6219 = vmatprep.subr.mxu0 0.0
        %6220 = vmatpush1.msra.mxu0 0.0
        %6221 = vmatprep.mubr.f32.mxu0 0.0
        %v6222 = vand.u32 %v5714, 4294901760
        %6223 = vmatmul.mubr.f32.gmra.mrb[0].mxu0 %v6222
        %v6224 = vpop.f32.mrb[0].mxu0
        %v6225 = vadd.f32 %v6118, %v6224
        %v6226 = vpop.f32.mrb[0].mxu0
        %6227 = vmatprep.mubr.f32.mxu0 0.0
        %v6228 = vand.u32 %v5717, 4294901760
        %6229 = vmatmul.mubr.f32.gmra.mrb[0].mxu0 %v6228
        %v6230 = vpop.f32.mrb[0].mxu0
        %v6231 = vadd.f32 %v6126, %v6230
        %v6232 = vpop.f32.mrb[0].mxu0
        %6233 = vmatprep.mubr.f32.mxu0 0.0
        %v6234 = vand.u32 %v5720, 4294901760
        %6235 = vmatmul.mubr.f32.gmra.mrb[0].mxu0 %v6234
        %v6236 = vpop.f32.mrb[0].mxu0
        %v6237 = vadd.f32 %v6134, %v6236
        %v6238 = vpop.f32.mrb[0].mxu0
        %6239 = vmatprep.mubr.f32.mxu0 0.0
        %v6240 = vand.u32 %v5723, 4294901760
        %6241 = vmatmul.mubr.f32.gmra.mrb[0].mxu0 %v6240
        %v6242 = vpop.f32.mrb[0].mxu0
        %v6243 = vadd.f32 %v6142, %v6242
        %v6244 = vpop.f32.mrb[0].mxu0
        %6245 = vdwg.mxu0
        %6246 = vmatprep.subr.mxu0 0.0
        %v6247 = vand.u32 %v5676, 4294901760
        %6248 = vmatpush1.msra.mxu0 %v6247
        %6249 = vmatprep.subr.mxu0 0.0
        %v6250 = vand.u32 %v5678, 4294901760
        %6251 = vmatpush1.msra.mxu0 %v6250
        %6252 = vmatprep.subr.mxu0 0.0
        %v6253 = vand.u32 %v5680, 4294901760
        %6254 = vmatpush1.msra.mxu0 %v6253
        %6255 = vmatprep.subr.mxu0 0.0
        %v6256 = vand.u32 %v5682, 4294901760
        %6257 = vmatpush1.msra.mxu0 %v6256
        %6258 = vmatprep.subr.mxu0 0.0
        %6259 = vmatpush1.msra.mxu0 0.0
        %6260 = vmatprep.subr.mxu0 0.0
        %6261 = vmatpush1.msra.mxu0 0.0
        %6262 = vmatprep.subr.mxu0 0.0
        %6263 = vmatpush1.msra.mxu0 0.0
        %6264 = vmatprep.subr.mxu0 0.0
        %6265 = vmatpush1.msra.mxu0 0.0
        %6266 = vmatprep.subr.mxu0 0.0
        %6267 = vmatpush1.msra.mxu0 0.0
        %6268 = vmatprep.subr.mxu0 0.0
        %6269 = vmatpush1.msra.mxu0 0.0
        %6270 = vmatprep.subr.mxu0 0.0
        %6271 = vmatpush1.msra.mxu0 0.0
        %6272 = vmatprep.subr.mxu0 0.0
        %6273 = vmatpush1.msra.mxu0 0.0
        %6274 = vmatprep.subr.mxu0 0.0
        %6275 = vmatpush1.msra.mxu0 0.0
        %6276 = vmatprep.subr.mxu0 0.0
        %6277 = vmatpush1.msra.mxu0 0.0
        %6278 = vmatprep.subr.mxu0 0.0
        %6279 = vmatpush1.msra.mxu0 0.0
        %6280 = vmatprep.subr.mxu0 0.0
        %6281 = vmatpush1.msra.mxu0 0.0
        %6282 = vmatprep.subr.mxu0 0.0
        %6283 = vmatpush1.msra.mxu0 0.0
        %6284 = vmatprep.subr.mxu0 0.0
        %6285 = vmatpush1.msra.mxu0 0.0
        %6286 = vmatprep.subr.mxu0 0.0
        %6287 = vmatpush1.msra.mxu0 0.0
        %6288 = vmatprep.subr.mxu0 0.0
        %6289 = vmatpush1.msra.mxu0 0.0
        %6290 = vmatprep.subr.mxu0 0.0
        %6291 = vmatpush1.msra.mxu0 0.0
        %6292 = vmatprep.subr.mxu0 0.0
        %6293 = vmatpush1.msra.mxu0 0.0
        %6294 = vmatprep.subr.mxu0 0.0
        %6295 = vmatpush1.msra.mxu0 0.0
        %6296 = vmatprep.subr.mxu0 0.0
        %6297 = vmatpush1.msra.mxu0 0.0
        %6298 = vmatprep.subr.mxu0 0.0
        %6299 = vmatpush1.msra.mxu0 0.0
        %6300 = vmatprep.subr.mxu0 0.0
        %6301 = vmatpush1.msra.mxu0 0.0
        %6302 = vmatprep.subr.mxu0 0.0
        %6303 = vmatpush1.msra.mxu0 0.0
        %6304 = vmatprep.subr.mxu0 0.0
        %6305 = vmatpush1.msra.mxu0 0.0
        %6306 = vmatprep.subr.mxu0 0.0
        %6307 = vmatpush1.msra.mxu0 0.0
        %6308 = vmatprep.subr.mxu0 0.0
        %6309 = vmatpush1.msra.mxu0 0.0
        %6310 = vmatprep.subr.mxu0 0.0
        %6311 = vmatpush1.msra.mxu0 0.0
        %6312 = vmatprep.subr.mxu0 0.0
        %6313 = vmatpush1.msra.mxu0 0.0
        %6314 = vmatprep.mubr.f32.mxu0 0.0
        %v6315 = vand.u32 %v5714, 4294901760
        %6316 = vmatmul.mubr.f32.gmra.mrb[0].mxu0 %v6315
        %v6317 = vpop.f32.mrb[0].mxu0
        %v6318 = vadd.f32 %v6225, %v6317
        %v6319 = vpop.f32.mrb[0].mxu0
        %6320 = vmatprep.mubr.f32.mxu0 0.0
        %v6321 = vand.u32 %v5717, 4294901760
        %6322 = vmatmul.mubr.f32.gmra.mrb[0].mxu0 %v6321
        %v6323 = vpop.f32.mrb[0].mxu0
        %v6324 = vadd.f32 %v6231, %v6323
        %v6325 = vpop.f32.mrb[0].mxu0
        %6326 = vmatprep.mubr.f32.mxu0 0.0
        %v6327 = vand.u32 %v5720, 4294901760
        %6328 = vmatmul.mubr.f32.gmra.mrb[0].mxu0 %v6327
        %v6329 = vpop.f32.mrb[0].mxu0
        %v6330 = vadd.f32 %v6237, %v6329
        %v6331 = vpop.f32.mrb[0].mxu0
        %6332 = vmatprep.mubr.f32.mxu0 0.0
        %v6333 = vand.u32 %v5723, 4294901760
        %6334 = vmatmul.mubr.f32.gmra.mrb[0].mxu0 %v6333
        %v6335 = vpop.f32.mrb[0].mxu0
        %v6336 = vadd.f32 %v6243, %v6335
        %v6337 = vpop.f32.mrb[0].mxu0
        %6338 = vdwg.mxu0
        %v6339 = vxor.u32 %v6318, 2147483648
        %v6340 = vxor.u32 %v6324, 2147483648
        %v6341 = vxor.u32 %v6330, 2147483648
        %v6342 = vxor.u32 %v6336, 2147483648
        %v6343 = vmul.f32 %v6339, 1.442695
        %v6344 = vpow.pop %v6343
        %v6345 = vmul.f32 %v6340, 1.442695
        %v6346 = vpow.pop %v6345
        %v6347 = vmul.f32 %v6341, 1.442695
        %v6348 = vpow.pop %v6347
        %v6349 = vmul.f32 %v6342, 1.442695
        %v6350 = vpow.pop %v6349
        %v6351 = vadd.f32 %v6344, 1.0
        %v6352 = vadd.f32 %v6346, 1.0
        %v6353 = vadd.f32 %v6348, 1.0
        %v6354 = vadd.f32 %v6350, 1.0
        %v6355 = vrcp.pop %v6351
        %v6356 = vmul.f32 1.0, %v6355
        %v6357 = vrcp.pop %v6352
        %v6358 = vmul.f32 1.0, %v6357
        %v6359 = vrcp.pop %v6353
        %v6360 = vmul.f32 1.0, %v6359
        %v6361 = vrcp.pop %v6354
        %v6362 = vmul.f32 1.0, %v6361
        %s6363 = scalar_lea.vmem %s11, 32
        %v6364 = vld [vmem:[%s6363] sm:$0xff]
        %v6365 = vld [vmem:[%s6363 + $0x8] sm:$0xff]
        %v6366 = vld [vmem:[%s6363 + $0x10] sm:$0xff]
        %v6367 = vld [vmem:[%s6363 + $0x18] sm:$0xff]
        %s6368 = scalar_lea.vmem %s12, 32
        %v6369 = vld [vmem:[%s6368] sm:$0xff]
        %v6370 = vld [vmem:[%s6368 + $0x8] sm:$0xff]
        %v6371 = vld [vmem:[%s6368 + $0x10] sm:$0xff]
        %v6372 = vld [vmem:[%s6368 + $0x18] sm:$0xff]
        %6374 = vset.pattern.permute.xlu0 0
        %6375 = vperm.xlu0 %6374, %v6369
        %v6376 = vpop.permute.xlu0 %6375
        %6379 = vset.pattern.permute.xlu0 0
        %6380 = vperm.xlu0 %6379, %v6370
        %v6381 = vpop.permute.xlu0 %6380
        %6384 = vset.pattern.permute.xlu0 0
        %6385 = vperm.xlu0 %6384, %v6371
        %v6386 = vpop.permute.xlu0 %6385
        %6389 = vset.pattern.permute.xlu0 0
        %6390 = vperm.xlu0 %6389, %v6372
        %v6391 = vpop.permute.xlu0 %6390
        %v6394 = vsel %vm3701, %v6364, 0
        %v6397 = vsel %vm3701, %v6365, 0
        %v6400 = vsel %vm3701, %v6366, 0
        %v6403 = vsel %vm3701, %v6367, 0
        %6405 = vmatprep.subr.mxu0 0.0
        %v6406 = vand.u32 %v6356, 4294901760
        %6407 = vmatpush1.msra.mxu0 %v6406
        %6408 = vmatprep.subr.mxu0 0.0
        %v6409 = vand.u32 %v6358, 4294901760
        %6410 = vmatpush1.msra.mxu0 %v6409
        %6411 = vmatprep.subr.mxu0 0.0
        %v6412 = vand.u32 %v6360, 4294901760
        %6413 = vmatpush1.msra.mxu0 %v6412
        %6414 = vmatprep.subr.mxu0 0.0
        %v6415 = vand.u32 %v6362, 4294901760
        %6416 = vmatpush1.msra.mxu0 %v6415
        %6417 = vmatprep.subr.mxu0 0.0
        %6418 = vmatpush1.msra.mxu0 0.0
        %6419 = vmatprep.subr.mxu0 0.0
        %6420 = vmatpush1.msra.mxu0 0.0
        %6421 = vmatprep.subr.mxu0 0.0
        %6422 = vmatpush1.msra.mxu0 0.0
        %6423 = vmatprep.subr.mxu0 0.0
        %6424 = vmatpush1.msra.mxu0 0.0
        %6425 = vmatprep.subr.mxu0 0.0
        %6426 = vmatpush1.msra.mxu0 0.0
        %6427 = vmatprep.subr.mxu0 0.0
        %6428 = vmatpush1.msra.mxu0 0.0
        %6429 = vmatprep.subr.mxu0 0.0
        %6430 = vmatpush1.msra.mxu0 0.0
        %6431 = vmatprep.subr.mxu0 0.0
        %6432 = vmatpush1.msra.mxu0 0.0
        %6433 = vmatprep.subr.mxu0 0.0
        %6434 = vmatpush1.msra.mxu0 0.0
        %6435 = vmatprep.subr.mxu0 0.0
        %6436 = vmatpush1.msra.mxu0 0.0
        %6437 = vmatprep.subr.mxu0 0.0
        %6438 = vmatpush1.msra.mxu0 0.0
        %6439 = vmatprep.subr.mxu0 0.0
        %6440 = vmatpush1.msra.mxu0 0.0
        %6441 = vmatprep.subr.mxu0 0.0
        %6442 = vmatpush1.msra.mxu0 0.0
        %6443 = vmatprep.subr.mxu0 0.0
        %6444 = vmatpush1.msra.mxu0 0.0
        %6445 = vmatprep.subr.mxu0 0.0
        %6446 = vmatpush1.msra.mxu0 0.0
        %6447 = vmatprep.subr.mxu0 0.0
        %6448 = vmatpush1.msra.mxu0 0.0
        %6449 = vmatprep.subr.mxu0 0.0
        %6450 = vmatpush1.msra.mxu0 0.0
        %6451 = vmatprep.subr.mxu0 0.0
        %6452 = vmatpush1.msra.mxu0 0.0
        %6453 = vmatprep.subr.mxu0 0.0
        %6454 = vmatpush1.msra.mxu0 0.0
        %6455 = vmatprep.subr.mxu0 0.0
        %6456 = vmatpush1.msra.mxu0 0.0
        %6457 = vmatprep.subr.mxu0 0.0
        %6458 = vmatpush1.msra.mxu0 0.0
        %6459 = vmatprep.subr.mxu0 0.0
        %6460 = vmatpush1.msra.mxu0 0.0
        %6461 = vmatprep.subr.mxu0 0.0
        %6462 = vmatpush1.msra.mxu0 0.0
        %6463 = vmatprep.subr.mxu0 0.0
        %6464 = vmatpush1.msra.mxu0 0.0
        %6465 = vmatprep.subr.mxu0 0.0
        %6466 = vmatpush1.msra.mxu0 0.0
        %6467 = vmatprep.subr.mxu0 0.0
        %6468 = vmatpush1.msra.mxu0 0.0
        %6469 = vmatprep.subr.mxu0 0.0
        %6470 = vmatpush1.msra.mxu0 0.0
        %6471 = vmatprep.subr.mxu0 0.0
        %6472 = vmatpush1.msra.mxu0 0.0
        %6473 = vmatprep.mubr.f32.mxu0 0.0
        %v6474 = vand.u32 %v6394, 4294901760
        %v6475 = vsub.f32 %v6394, %v6474
        %v6476 = vand.u32 %v6475, 4294901760
        %v6477 = vsub.f32 %v6475, %v6476
        %v6478 = vand.u32 %v6477, 4294901760
        %6479 = vmatmul.mubr.f32.gmra.mrb[0].mxu0 %v6478
        %v6480 = vpop.f32.mrb[0].mxu0
        %v6481 = vadd.f32 %v6376, %v6480
        %v6482 = vpop.f32.mrb[0].mxu0
        %6483 = vmatprep.mubr.f32.mxu0 0.0
        %v6484 = vand.u32 %v6397, 4294901760
        %v6485 = vsub.f32 %v6397, %v6484
        %v6486 = vand.u32 %v6485, 4294901760
        %v6487 = vsub.f32 %v6485, %v6486
        %v6488 = vand.u32 %v6487, 4294901760
        %6489 = vmatmul.mubr.f32.gmra.mrb[0].mxu0 %v6488
        %v6490 = vpop.f32.mrb[0].mxu0
        %v6491 = vadd.f32 %v6381, %v6490
        %v6492 = vpop.f32.mrb[0].mxu0
        %6493 = vmatprep.mubr.f32.mxu0 0.0
        %v6494 = vand.u32 %v6400, 4294901760
        %v6495 = vsub.f32 %v6400, %v6494
        %v6496 = vand.u32 %v6495, 4294901760
        %v6497 = vsub.f32 %v6495, %v6496
        %v6498 = vand.u32 %v6497, 4294901760
        %6499 = vmatmul.mubr.f32.gmra.mrb[0].mxu0 %v6498
        %v6500 = vpop.f32.mrb[0].mxu0
        %v6501 = vadd.f32 %v6386, %v6500
        %v6502 = vpop.f32.mrb[0].mxu0
        %6503 = vmatprep.mubr.f32.mxu0 0.0
        %v6504 = vand.u32 %v6403, 4294901760
        %v6505 = vsub.f32 %v6403, %v6504
        %v6506 = vand.u32 %v6505, 4294901760
        %v6507 = vsub.f32 %v6505, %v6506
        %v6508 = vand.u32 %v6507, 4294901760
        %6509 = vmatmul.mubr.f32.gmra.mrb[0].mxu0 %v6508
        %v6510 = vpop.f32.mrb[0].mxu0
        %v6511 = vadd.f32 %v6391, %v6510
        %v6512 = vpop.f32.mrb[0].mxu0
        %6513 = vdwg.mxu0
        %6514 = vmatprep.subr.mxu0 0.0
        %v6515 = vand.u32 %v6356, 4294901760
        %v6516 = vsub.f32 %v6356, %v6515
        %v6517 = vand.u32 %v6516, 4294901760
        %v6518 = vsub.f32 %v6516, %v6517
        %v6519 = vand.u32 %v6518, 4294901760
        %6520 = vmatpush1.msra.mxu0 %v6519
        %6521 = vmatprep.subr.mxu0 0.0
        %v6522 = vand.u32 %v6358, 4294901760
        %v6523 = vsub.f32 %v6358, %v6522
        %v6524 = vand.u32 %v6523, 4294901760
        %v6525 = vsub.f32 %v6523, %v6524
        %v6526 = vand.u32 %v6525, 4294901760
        %6527 = vmatpush1.msra.mxu0 %v6526
        %6528 = vmatprep.subr.mxu0 0.0
        %v6529 = vand.u32 %v6360, 4294901760
        %v6530 = vsub.f32 %v6360, %v6529
        %v6531 = vand.u32 %v6530, 4294901760
        %v6532 = vsub.f32 %v6530, %v6531
        %v6533 = vand.u32 %v6532, 4294901760
        %6534 = vmatpush1.msra.mxu0 %v6533
        %6535 = vmatprep.subr.mxu0 0.0
        %v6536 = vand.u32 %v6362, 4294901760
        %v6537 = vsub.f32 %v6362, %v6536
        %v6538 = vand.u32 %v6537, 4294901760
        %v6539 = vsub.f32 %v6537, %v6538
        %v6540 = vand.u32 %v6539, 4294901760
        %6541 = vmatpush1.msra.mxu0 %v6540
        %6542 = vmatprep.subr.mxu0 0.0
        %6543 = vmatpush1.msra.mxu0 0.0
        %6544 = vmatprep.subr.mxu0 0.0
        %6545 = vmatpush1.msra.mxu0 0.0
        %6546 = vmatprep.subr.mxu0 0.0
        %6547 = vmatpush1.msra.mxu0 0.0
        %6548 = vmatprep.subr.mxu0 0.0
        %6549 = vmatpush1.msra.mxu0 0.0
        %6550 = vmatprep.subr.mxu0 0.0
        %6551 = vmatpush1.msra.mxu0 0.0
        %6552 = vmatprep.subr.mxu0 0.0
        %6553 = vmatpush1.msra.mxu0 0.0
        %6554 = vmatprep.subr.mxu0 0.0
        %6555 = vmatpush1.msra.mxu0 0.0
        %6556 = vmatprep.subr.mxu0 0.0
        %6557 = vmatpush1.msra.mxu0 0.0
        %6558 = vmatprep.subr.mxu0 0.0
        %6559 = vmatpush1.msra.mxu0 0.0
        %6560 = vmatprep.subr.mxu0 0.0
        %6561 = vmatpush1.msra.mxu0 0.0
        %6562 = vmatprep.subr.mxu0 0.0
        %6563 = vmatpush1.msra.mxu0 0.0
        %6564 = vmatprep.subr.mxu0 0.0
        %6565 = vmatpush1.msra.mxu0 0.0
        %6566 = vmatprep.subr.mxu0 0.0
        %6567 = vmatpush1.msra.mxu0 0.0
        %6568 = vmatprep.subr.mxu0 0.0
        %6569 = vmatpush1.msra.mxu0 0.0
        %6570 = vmatprep.subr.mxu0 0.0
        %6571 = vmatpush1.msra.mxu0 0.0
        %6572 = vmatprep.subr.mxu0 0.0
        %6573 = vmatpush1.msra.mxu0 0.0
        %6574 = vmatprep.subr.mxu0 0.0
        %6575 = vmatpush1.msra.mxu0 0.0
        %6576 = vmatprep.subr.mxu0 0.0
        %6577 = vmatpush1.msra.mxu0 0.0
        %6578 = vmatprep.subr.mxu0 0.0
        %6579 = vmatpush1.msra.mxu0 0.0
        %6580 = vmatprep.subr.mxu0 0.0
        %6581 = vmatpush1.msra.mxu0 0.0
        %6582 = vmatprep.subr.mxu0 0.0
        %6583 = vmatpush1.msra.mxu0 0.0
        %6584 = vmatprep.subr.mxu0 0.0
        %6585 = vmatpush1.msra.mxu0 0.0
        %6586 = vmatprep.subr.mxu0 0.0
        %6587 = vmatpush1.msra.mxu0 0.0
        %6588 = vmatprep.subr.mxu0 0.0
        %6589 = vmatpush1.msra.mxu0 0.0
        %6590 = vmatprep.subr.mxu0 0.0
        %6591 = vmatpush1.msra.mxu0 0.0
        %6592 = vmatprep.subr.mxu0 0.0
        %6593 = vmatpush1.msra.mxu0 0.0
        %6594 = vmatprep.subr.mxu0 0.0
        %6595 = vmatpush1.msra.mxu0 0.0
        %6596 = vmatprep.subr.mxu0 0.0
        %6597 = vmatpush1.msra.mxu0 0.0
        %6598 = vmatprep.mubr.f32.mxu0 0.0
        %v6599 = vand.u32 %v6394, 4294901760
        %6600 = vmatmul.mubr.f32.gmra.mrb[0].mxu0 %v6599
        %v6601 = vpop.f32.mrb[0].mxu0
        %v6602 = vadd.f32 %v6481, %v6601
        %v6603 = vpop.f32.mrb[0].mxu0
        %6604 = vmatprep.mubr.f32.mxu0 0.0
        %v6605 = vand.u32 %v6397, 4294901760
        %6606 = vmatmul.mubr.f32.gmra.mrb[0].mxu0 %v6605
        %v6607 = vpop.f32.mrb[0].mxu0
        %v6608 = vadd.f32 %v6491, %v6607
        %v6609 = vpop.f32.mrb[0].mxu0
        %6610 = vmatprep.mubr.f32.mxu0 0.0
        %v6611 = vand.u32 %v6400, 4294901760
        %6612 = vmatmul.mubr.f32.gmra.mrb[0].mxu0 %v6611
        %v6613 = vpop.f32.mrb[0].mxu0
        %v6614 = vadd.f32 %v6501, %v6613
        %v6615 = vpop.f32.mrb[0].mxu0
        %6616 = vmatprep.mubr.f32.mxu0 0.0
        %v6617 = vand.u32 %v6403, 4294901760
        %6618 = vmatmul.mubr.f32.gmra.mrb[0].mxu0 %v6617
        %v6619 = vpop.f32.mrb[0].mxu0
        %v6620 = vadd.f32 %v6511, %v6619
        %v6621 = vpop.f32.mrb[0].mxu0
        %6622 = vdwg.mxu0
        %6623 = vmatprep.subr.mxu0 0.0
        %v6624 = vand.u32 %v6356, 4294901760
        %v6625 = vsub.f32 %v6356, %v6624
        %6626 = vmatpush1.msra.mxu0 %v6625
        %6627 = vmatprep.subr.mxu0 0.0
        %v6628 = vand.u32 %v6358, 4294901760
        %v6629 = vsub.f32 %v6358, %v6628
        %6630 = vmatpush1.msra.mxu0 %v6629
        %6631 = vmatprep.subr.mxu0 0.0
        %v6632 = vand.u32 %v6360, 4294901760
        %v6633 = vsub.f32 %v6360, %v6632
        %6634 = vmatpush1.msra.mxu0 %v6633
        %6635 = vmatprep.subr.mxu0 0.0
        %v6636 = vand.u32 %v6362, 4294901760
        %v6637 = vsub.f32 %v6362, %v6636
        %6638 = vmatpush1.msra.mxu0 %v6637
        %6639 = vmatprep.subr.mxu0 0.0
        %6640 = vmatpush1.msra.mxu0 0.0
        %6641 = vmatprep.subr.mxu0 0.0
        %6642 = vmatpush1.msra.mxu0 0.0
        %6643 = vmatprep.subr.mxu0 0.0
        %6644 = vmatpush1.msra.mxu0 0.0
        %6645 = vmatprep.subr.mxu0 0.0
        %6646 = vmatpush1.msra.mxu0 0.0
        %6647 = vmatprep.subr.mxu0 0.0
        %6648 = vmatpush1.msra.mxu0 0.0
        %6649 = vmatprep.subr.mxu0 0.0
        %6650 = vmatpush1.msra.mxu0 0.0
        %6651 = vmatprep.subr.mxu0 0.0
        %6652 = vmatpush1.msra.mxu0 0.0
        %6653 = vmatprep.subr.mxu0 0.0
        %6654 = vmatpush1.msra.mxu0 0.0
        %6655 = vmatprep.subr.mxu0 0.0
        %6656 = vmatpush1.msra.mxu0 0.0
        %6657 = vmatprep.subr.mxu0 0.0
        %6658 = vmatpush1.msra.mxu0 0.0
        %6659 = vmatprep.subr.mxu0 0.0
        %6660 = vmatpush1.msra.mxu0 0.0
        %6661 = vmatprep.subr.mxu0 0.0
        %6662 = vmatpush1.msra.mxu0 0.0
        %6663 = vmatprep.subr.mxu0 0.0
        %6664 = vmatpush1.msra.mxu0 0.0
        %6665 = vmatprep.subr.mxu0 0.0
        %6666 = vmatpush1.msra.mxu0 0.0
        %6667 = vmatprep.subr.mxu0 0.0
        %6668 = vmatpush1.msra.mxu0 0.0
        %6669 = vmatprep.subr.mxu0 0.0
        %6670 = vmatpush1.msra.mxu0 0.0
        %6671 = vmatprep.subr.mxu0 0.0
        %6672 = vmatpush1.msra.mxu0 0.0
        %6673 = vmatprep.subr.mxu0 0.0
        %6674 = vmatpush1.msra.mxu0 0.0
        %6675 = vmatprep.subr.mxu0 0.0
        %6676 = vmatpush1.msra.mxu0 0.0
        %6677 = vmatprep.subr.mxu0 0.0
        %6678 = vmatpush1.msra.mxu0 0.0
        %6679 = vmatprep.subr.mxu0 0.0
        %6680 = vmatpush1.msra.mxu0 0.0
        %6681 = vmatprep.subr.mxu0 0.0
        %6682 = vmatpush1.msra.mxu0 0.0
        %6683 = vmatprep.subr.mxu0 0.0
        %6684 = vmatpush1.msra.mxu0 0.0
        %6685 = vmatprep.subr.mxu0 0.0
        %6686 = vmatpush1.msra.mxu0 0.0
        %6687 = vmatprep.subr.mxu0 0.0
        %6688 = vmatpush1.msra.mxu0 0.0
        %6689 = vmatprep.subr.mxu0 0.0
        %6690 = vmatpush1.msra.mxu0 0.0
        %6691 = vmatprep.subr.mxu0 0.0
        %6692 = vmatpush1.msra.mxu0 0.0
        %6693 = vmatprep.subr.mxu0 0.0
        %6694 = vmatpush1.msra.mxu0 0.0
        %6695 = vmatprep.mubr.f32.mxu0 0.0
        %v6696 = vand.u32 %v6394, 4294901760
        %v6697 = vsub.f32 %v6394, %v6696
        %6698 = vmatmul.mubr.f32.gmra.mrb[0].mxu0 %v6697
        %v6699 = vpop.f32.mrb[0].mxu0
        %v6700 = vadd.f32 %v6602, %v6699
        %v6701 = vpop.f32.mrb[0].mxu0
        %6702 = vmatprep.mubr.f32.mxu0 0.0
        %v6703 = vand.u32 %v6397, 4294901760
        %v6704 = vsub.f32 %v6397, %v6703
        %6705 = vmatmul.mubr.f32.gmra.mrb[0].mxu0 %v6704
        %v6706 = vpop.f32.mrb[0].mxu0
        %v6707 = vadd.f32 %v6608, %v6706
        %v6708 = vpop.f32.mrb[0].mxu0
        %6709 = vmatprep.mubr.f32.mxu0 0.0
        %v6710 = vand.u32 %v6400, 4294901760
        %v6711 = vsub.f32 %v6400, %v6710
        %6712 = vmatmul.mubr.f32.gmra.mrb[0].mxu0 %v6711
        %v6713 = vpop.f32.mrb[0].mxu0
        %v6714 = vadd.f32 %v6614, %v6713
        %v6715 = vpop.f32.mrb[0].mxu0
        %6716 = vmatprep.mubr.f32.mxu0 0.0
        %v6717 = vand.u32 %v6403, 4294901760
        %v6718 = vsub.f32 %v6403, %v6717
        %6719 = vmatmul.mubr.f32.gmra.mrb[0].mxu0 %v6718
        %v6720 = vpop.f32.mrb[0].mxu0
        %v6721 = vadd.f32 %v6620, %v6720
        %v6722 = vpop.f32.mrb[0].mxu0
        %6723 = vdwg.mxu0
        %6724 = vmatprep.subr.mxu0 0.0
        %v6725 = vand.u32 %v6356, 4294901760
        %6726 = vmatpush1.msra.mxu0 %v6725
        %6727 = vmatprep.subr.mxu0 0.0
        %v6728 = vand.u32 %v6358, 4294901760
        %6729 = vmatpush1.msra.mxu0 %v6728
        %6730 = vmatprep.subr.mxu0 0.0
        %v6731 = vand.u32 %v6360, 4294901760
        %6732 = vmatpush1.msra.mxu0 %v6731
        %6733 = vmatprep.subr.mxu0 0.0
        %v6734 = vand.u32 %v6362, 4294901760
        %6735 = vmatpush1.msra.mxu0 %v6734
        %6736 = vmatprep.subr.mxu0 0.0
        %6737 = vmatpush1.msra.mxu0 0.0
        %6738 = vmatprep.subr.mxu0 0.0
        %6739 = vmatpush1.msra.mxu0 0.0
        %6740 = vmatprep.subr.mxu0 0.0
        %6741 = vmatpush1.msra.mxu0 0.0
        %6742 = vmatprep.subr.mxu0 0.0
        %6743 = vmatpush1.msra.mxu0 0.0
        %6744 = vmatprep.subr.mxu0 0.0
        %6745 = vmatpush1.msra.mxu0 0.0
        %6746 = vmatprep.subr.mxu0 0.0
        %6747 = vmatpush1.msra.mxu0 0.0
        %6748 = vmatprep.subr.mxu0 0.0
        %6749 = vmatpush1.msra.mxu0 0.0
        %6750 = vmatprep.subr.mxu0 0.0
        %6751 = vmatpush1.msra.mxu0 0.0
        %6752 = vmatprep.subr.mxu0 0.0
        %6753 = vmatpush1.msra.mxu0 0.0
        %6754 = vmatprep.subr.mxu0 0.0
        %6755 = vmatpush1.msra.mxu0 0.0
        %6756 = vmatprep.subr.mxu0 0.0
        %6757 = vmatpush1.msra.mxu0 0.0
        %6758 = vmatprep.subr.mxu0 0.0
        %6759 = vmatpush1.msra.mxu0 0.0
        %6760 = vmatprep.subr.mxu0 0.0
        %6761 = vmatpush1.msra.mxu0 0.0
        %6762 = vmatprep.subr.mxu0 0.0
        %6763 = vmatpush1.msra.mxu0 0.0
        %6764 = vmatprep.subr.mxu0 0.0
        %6765 = vmatpush1.msra.mxu0 0.0
        %6766 = vmatprep.subr.mxu0 0.0
        %6767 = vmatpush1.msra.mxu0 0.0
        %6768 = vmatprep.subr.mxu0 0.0
        %6769 = vmatpush1.msra.mxu0 0.0
        %6770 = vmatprep.subr.mxu0 0.0
        %6771 = vmatpush1.msra.mxu0 0.0
        %6772 = vmatprep.subr.mxu0 0.0
        %6773 = vmatpush1.msra.mxu0 0.0
        %6774 = vmatprep.subr.mxu0 0.0
        %6775 = vmatpush1.msra.mxu0 0.0
        %6776 = vmatprep.subr.mxu0 0.0
        %6777 = vmatpush1.msra.mxu0 0.0
        %6778 = vmatprep.subr.mxu0 0.0
        %6779 = vmatpush1.msra.mxu0 0.0
        %6780 = vmatprep.subr.mxu0 0.0
        %6781 = vmatpush1.msra.mxu0 0.0
        %6782 = vmatprep.subr.mxu0 0.0
        %6783 = vmatpush1.msra.mxu0 0.0
        %6784 = vmatprep.subr.mxu0 0.0
        %6785 = vmatpush1.msra.mxu0 0.0
        %6786 = vmatprep.subr.mxu0 0.0
        %6787 = vmatpush1.msra.mxu0 0.0
        %6788 = vmatprep.subr.mxu0 0.0
        %6789 = vmatpush1.msra.mxu0 0.0
        %6790 = vmatprep.subr.mxu0 0.0
        %6791 = vmatpush1.msra.mxu0 0.0
        %6792 = vmatprep.mubr.f32.mxu0 0.0
        %v6793 = vand.u32 %v6394, 4294901760
        %v6794 = vsub.f32 %v6394, %v6793
        %v6795 = vand.u32 %v6794, 4294901760
        %6796 = vmatmul.mubr.f32.gmra.mrb[0].mxu0 %v6795
        %v6797 = vpop.f32.mrb[0].mxu0
        %v6798 = vadd.f32 %v6700, %v6797
        %v6799 = vpop.f32.mrb[0].mxu0
        %6800 = vmatprep.mubr.f32.mxu0 0.0
        %v6801 = vand.u32 %v6397, 4294901760
        %v6802 = vsub.f32 %v6397, %v6801
        %v6803 = vand.u32 %v6802, 4294901760
        %6804 = vmatmul.mubr.f32.gmra.mrb[0].mxu0 %v6803
        %v6805 = vpop.f32.mrb[0].mxu0
        %v6806 = vadd.f32 %v6707, %v6805
        %v6807 = vpop.f32.mrb[0].mxu0
        %6808 = vmatprep.mubr.f32.mxu0 0.0
        %v6809 = vand.u32 %v6400, 4294901760
        %v6810 = vsub.f32 %v6400, %v6809
        %v6811 = vand.u32 %v6810, 4294901760
        %6812 = vmatmul.mubr.f32.gmra.mrb[0].mxu0 %v6811
        %v6813 = vpop.f32.mrb[0].mxu0
        %v6814 = vadd.f32 %v6714, %v6813
        %v6815 = vpop.f32.mrb[0].mxu0
        %6816 = vmatprep.mubr.f32.mxu0 0.0
        %v6817 = vand.u32 %v6403, 4294901760
        %v6818 = vsub.f32 %v6403, %v6817
        %v6819 = vand.u32 %v6818, 4294901760
        %6820 = vmatmul.mubr.f32.gmra.mrb[0].mxu0 %v6819
        %v6821 = vpop.f32.mrb[0].mxu0
        %v6822 = vadd.f32 %v6721, %v6821
        %v6823 = vpop.f32.mrb[0].mxu0
        %6824 = vdwg.mxu0
        %6825 = vmatprep.subr.mxu0 0.0
        %v6826 = vand.u32 %v6356, 4294901760
        %v6827 = vsub.f32 %v6356, %v6826
        %v6828 = vand.u32 %v6827, 4294901760
        %6829 = vmatpush1.msra.mxu0 %v6828
        %6830 = vmatprep.subr.mxu0 0.0
        %v6831 = vand.u32 %v6358, 4294901760
        %v6832 = vsub.f32 %v6358, %v6831
        %v6833 = vand.u32 %v6832, 4294901760
        %6834 = vmatpush1.msra.mxu0 %v6833
        %6835 = vmatprep.subr.mxu0 0.0
        %v6836 = vand.u32 %v6360, 4294901760
        %v6837 = vsub.f32 %v6360, %v6836
        %v6838 = vand.u32 %v6837, 4294901760
        %6839 = vmatpush1.msra.mxu0 %v6838
        %6840 = vmatprep.subr.mxu0 0.0
        %v6841 = vand.u32 %v6362, 4294901760
        %v6842 = vsub.f32 %v6362, %v6841
        %v6843 = vand.u32 %v6842, 4294901760
        %6844 = vmatpush1.msra.mxu0 %v6843
        %6845 = vmatprep.subr.mxu0 0.0
        %6846 = vmatpush1.msra.mxu0 0.0
        %6847 = vmatprep.subr.mxu0 0.0
        %6848 = vmatpush1.msra.mxu0 0.0
        %6849 = vmatprep.subr.mxu0 0.0
        %6850 = vmatpush1.msra.mxu0 0.0
        %6851 = vmatprep.subr.mxu0 0.0
        %6852 = vmatpush1.msra.mxu0 0.0
        %6853 = vmatprep.subr.mxu0 0.0
        %6854 = vmatpush1.msra.mxu0 0.0
        %6855 = vmatprep.subr.mxu0 0.0
        %6856 = vmatpush1.msra.mxu0 0.0
        %6857 = vmatprep.subr.mxu0 0.0
        %6858 = vmatpush1.msra.mxu0 0.0
        %6859 = vmatprep.subr.mxu0 0.0
        %6860 = vmatpush1.msra.mxu0 0.0
        %6861 = vmatprep.subr.mxu0 0.0
        %6862 = vmatpush1.msra.mxu0 0.0
        %6863 = vmatprep.subr.mxu0 0.0
        %6864 = vmatpush1.msra.mxu0 0.0
        %6865 = vmatprep.subr.mxu0 0.0
        %6866 = vmatpush1.msra.mxu0 0.0
        %6867 = vmatprep.subr.mxu0 0.0
        %6868 = vmatpush1.msra.mxu0 0.0
        %6869 = vmatprep.subr.mxu0 0.0
        %6870 = vmatpush1.msra.mxu0 0.0
        %6871 = vmatprep.subr.mxu0 0.0
        %6872 = vmatpush1.msra.mxu0 0.0
        %6873 = vmatprep.subr.mxu0 0.0
        %6874 = vmatpush1.msra.mxu0 0.0
        %6875 = vmatprep.subr.mxu0 0.0
        %6876 = vmatpush1.msra.mxu0 0.0
        %6877 = vmatprep.subr.mxu0 0.0
        %6878 = vmatpush1.msra.mxu0 0.0
        %6879 = vmatprep.subr.mxu0 0.0
        %6880 = vmatpush1.msra.mxu0 0.0
        %6881 = vmatprep.subr.mxu0 0.0
        %6882 = vmatpush1.msra.mxu0 0.0
        %6883 = vmatprep.subr.mxu0 0.0
        %6884 = vmatpush1.msra.mxu0 0.0
        %6885 = vmatprep.subr.mxu0 0.0
        %6886 = vmatpush1.msra.mxu0 0.0
        %6887 = vmatprep.subr.mxu0 0.0
        %6888 = vmatpush1.msra.mxu0 0.0
        %6889 = vmatprep.subr.mxu0 0.0
        %6890 = vmatpush1.msra.mxu0 0.0
        %6891 = vmatprep.subr.mxu0 0.0
        %6892 = vmatpush1.msra.mxu0 0.0
        %6893 = vmatprep.subr.mxu0 0.0
        %6894 = vmatpush1.msra.mxu0 0.0
        %6895 = vmatprep.subr.mxu0 0.0
        %6896 = vmatpush1.msra.mxu0 0.0
        %6897 = vmatprep.subr.mxu0 0.0
        %6898 = vmatpush1.msra.mxu0 0.0
        %6899 = vmatprep.subr.mxu0 0.0
        %6900 = vmatpush1.msra.mxu0 0.0
        %6901 = vmatprep.mubr.f32.mxu0 0.0
        %v6902 = vand.u32 %v6394, 4294901760
        %6903 = vmatmul.mubr.f32.gmra.mrb[0].mxu0 %v6902
        %v6904 = vpop.f32.mrb[0].mxu0
        %v6905 = vadd.f32 %v6798, %v6904
        %v6906 = vpop.f32.mrb[0].mxu0
        %6907 = vmatprep.mubr.f32.mxu0 0.0
        %v6908 = vand.u32 %v6397, 4294901760
        %6909 = vmatmul.mubr.f32.gmra.mrb[0].mxu0 %v6908
        %v6910 = vpop.f32.mrb[0].mxu0
        %v6911 = vadd.f32 %v6806, %v6910
        %v6912 = vpop.f32.mrb[0].mxu0
        %6913 = vmatprep.mubr.f32.mxu0 0.0
        %v6914 = vand.u32 %v6400, 4294901760
        %6915 = vmatmul.mubr.f32.gmra.mrb[0].mxu0 %v6914
        %v6916 = vpop.f32.mrb[0].mxu0
        %v6917 = vadd.f32 %v6814, %v6916
        %v6918 = vpop.f32.mrb[0].mxu0
        %6919 = vmatprep.mubr.f32.mxu0 0.0
        %v6920 = vand.u32 %v6403, 4294901760
        %6921 = vmatmul.mubr.f32.gmra.mrb[0].mxu0 %v6920
        %v6922 = vpop.f32.mrb[0].mxu0
        %v6923 = vadd.f32 %v6822, %v6922
        %v6924 = vpop.f32.mrb[0].mxu0
        %6925 = vdwg.mxu0
        %6926 = vmatprep.subr.mxu0 0.0
        %v6927 = vand.u32 %v6356, 4294901760
        %6928 = vmatpush1.msra.mxu0 %v6927
        %6929 = vmatprep.subr.mxu0 0.0
        %v6930 = vand.u32 %v6358, 4294901760
        %6931 = vmatpush1.msra.mxu0 %v6930
        %6932 = vmatprep.subr.mxu0 0.0
        %v6933 = vand.u32 %v6360, 4294901760
        %6934 = vmatpush1.msra.mxu0 %v6933
        %6935 = vmatprep.subr.mxu0 0.0
        %v6936 = vand.u32 %v6362, 4294901760
        %6937 = vmatpush1.msra.mxu0 %v6936
        %6938 = vmatprep.subr.mxu0 0.0
        %6939 = vmatpush1.msra.mxu0 0.0
        %6940 = vmatprep.subr.mxu0 0.0
        %6941 = vmatpush1.msra.mxu0 0.0
        %6942 = vmatprep.subr.mxu0 0.0
        %6943 = vmatpush1.msra.mxu0 0.0
        %6944 = vmatprep.subr.mxu0 0.0
        %6945 = vmatpush1.msra.mxu0 0.0
        %6946 = vmatprep.subr.mxu0 0.0
        %6947 = vmatpush1.msra.mxu0 0.0
        %6948 = vmatprep.subr.mxu0 0.0
        %6949 = vmatpush1.msra.mxu0 0.0
        %6950 = vmatprep.subr.mxu0 0.0
        %6951 = vmatpush1.msra.mxu0 0.0
        %6952 = vmatprep.subr.mxu0 0.0
        %6953 = vmatpush1.msra.mxu0 0.0
        %6954 = vmatprep.subr.mxu0 0.0
        %6955 = vmatpush1.msra.mxu0 0.0
        %6956 = vmatprep.subr.mxu0 0.0
        %6957 = vmatpush1.msra.mxu0 0.0
        %6958 = vmatprep.subr.mxu0 0.0
        %6959 = vmatpush1.msra.mxu0 0.0
        %6960 = vmatprep.subr.mxu0 0.0
        %6961 = vmatpush1.msra.mxu0 0.0
        %6962 = vmatprep.subr.mxu0 0.0
        %6963 = vmatpush1.msra.mxu0 0.0
        %6964 = vmatprep.subr.mxu0 0.0
        %6965 = vmatpush1.msra.mxu0 0.0
        %6966 = vmatprep.subr.mxu0 0.0
        %6967 = vmatpush1.msra.mxu0 0.0
        %6968 = vmatprep.subr.mxu0 0.0
        %6969 = vmatpush1.msra.mxu0 0.0
        %6970 = vmatprep.subr.mxu0 0.0
        %6971 = vmatpush1.msra.mxu0 0.0
        %6972 = vmatprep.subr.mxu0 0.0
        %6973 = vmatpush1.msra.mxu0 0.0
        %6974 = vmatprep.subr.mxu0 0.0
        %6975 = vmatpush1.msra.mxu0 0.0
        %6976 = vmatprep.subr.mxu0 0.0
        %6977 = vmatpush1.msra.mxu0 0.0
        %6978 = vmatprep.subr.mxu0 0.0
        %6979 = vmatpush1.msra.mxu0 0.0
        %6980 = vmatprep.subr.mxu0 0.0
        %6981 = vmatpush1.msra.mxu0 0.0
        %6982 = vmatprep.subr.mxu0 0.0
        %6983 = vmatpush1.msra.mxu0 0.0
        %6984 = vmatprep.subr.mxu0 0.0
        %6985 = vmatpush1.msra.mxu0 0.0
        %6986 = vmatprep.subr.mxu0 0.0
        %6987 = vmatpush1.msra.mxu0 0.0
        %6988 = vmatprep.subr.mxu0 0.0
        %6989 = vmatpush1.msra.mxu0 0.0
        %6990 = vmatprep.subr.mxu0 0.0
        %6991 = vmatpush1.msra.mxu0 0.0
        %6992 = vmatprep.subr.mxu0 0.0
        %6993 = vmatpush1.msra.mxu0 0.0
        %6994 = vmatprep.mubr.f32.mxu0 0.0
        %v6995 = vand.u32 %v6394, 4294901760
        %6996 = vmatmul.mubr.f32.gmra.mrb[0].mxu0 %v6995
        %v6997 = vpop.f32.mrb[0].mxu0
        %v6998 = vadd.f32 %v6905, %v6997
        %v6999 = vpop.f32.mrb[0].mxu0
        %7000 = vmatprep.mubr.f32.mxu0 0.0
        %v7001 = vand.u32 %v6397, 4294901760
        %7002 = vmatmul.mubr.f32.gmra.mrb[0].mxu0 %v7001
        %v7003 = vpop.f32.mrb[0].mxu0
        %v7004 = vadd.f32 %v6911, %v7003
        %v7005 = vpop.f32.mrb[0].mxu0
        %7006 = vmatprep.mubr.f32.mxu0 0.0
        %v7007 = vand.u32 %v6400, 4294901760
        %7008 = vmatmul.mubr.f32.gmra.mrb[0].mxu0 %v7007
        %v7009 = vpop.f32.mrb[0].mxu0
        %v7010 = vadd.f32 %v6917, %v7009
        %v7011 = vpop.f32.mrb[0].mxu0
        %7012 = vmatprep.mubr.f32.mxu0 0.0
        %v7013 = vand.u32 %v6403, 4294901760
        %7014 = vmatmul.mubr.f32.gmra.mrb[0].mxu0 %v7013
        %v7015 = vpop.f32.mrb[0].mxu0
        %v7016 = vadd.f32 %v6923, %v7015
        %v7017 = vpop.f32.mrb[0].mxu0
        %7018 = vdwg.mxu0
        %v7019 = vmul.f32 %v6998, 1.442695
        %v7020 = vpow.pop %v7019
        %v7021 = vmul.f32 %v7004, 1.442695
        %v7022 = vpow.pop %v7021
        %v7023 = vmul.f32 %v7010, 1.442695
        %v7024 = vpow.pop %v7023
        %v7025 = vmul.f32 %v7016, 1.442695
        %v7026 = vpow.pop %v7025
        %v7027 = vxor.u32 %v7020, 2147483648
        %v7028 = vxor.u32 %v7022, 2147483648
        %v7029 = vxor.u32 %v7024, 2147483648
        %v7030 = vxor.u32 %v7026, 2147483648
        %v7031 = vmul.f32 %v7027, 1.442695
        %v7032 = vpow.pop %v7031
        %v7033 = vmul.f32 %v7028, 1.442695
        %v7034 = vpow.pop %v7033
        %v7035 = vmul.f32 %v7029, 1.442695
        %v7036 = vpow.pop %v7035
        %v7037 = vmul.f32 %v7030, 1.442695
        %v7038 = vpow.pop %v7037
        %v7039 = vadd.f32 %v7032, 1.0
        %v7040 = vadd.f32 %v7034, 1.0
        %v7041 = vadd.f32 %v7036, 1.0
        %v7042 = vadd.f32 %v7038, 1.0
        %v7043 = vrcp.pop %v7039
        %v7044 = vmul.f32 1.0, %v7043
        %v7045 = vrcp.pop %v7040
        %v7046 = vmul.f32 1.0, %v7045
        %v7047 = vrcp.pop %v7041
        %v7048 = vmul.f32 1.0, %v7047
        %v7049 = vrcp.pop %v7042
        %v7050 = vmul.f32 1.0, %v7049
        %v7051 = vmul.f32 %v7044, 10.0
        %v7052 = vmul.f32 %v7046, 10.0
        %v7053 = vmul.f32 %v7048, 10.0
        %v7054 = vmul.f32 %v7050, 10.0
        %s7055 = scalar_lea.vmem %s7, 64
        %v7056 = vld [vmem:[%s7055] sm:$0xff]
        %v7057 = vld [vmem:[%s7055 + $0x8] sm:$0xff]
        %v7058 = vld [vmem:[%s7055 + $0x10] sm:$0xff]
        %v7059 = vld [vmem:[%s7055 + $0x18] sm:$0xff]
        %s7060 = scalar_lea.vmem %s8, 64
        %v7061 = vld [vmem:[%s7060] sm:$0xff]
        %v7062 = vld [vmem:[%s7060 + $0x8] sm:$0xff]
        %v7063 = vld [vmem:[%s7060 + $0x10] sm:$0xff]
        %v7064 = vld [vmem:[%s7060 + $0x18] sm:$0xff]
        %7066 = vset.pattern.permute.xlu0 0
        %7067 = vperm.xlu0 %7066, %v7061
        %v7068 = vpop.permute.xlu0 %7067
        %7071 = vset.pattern.permute.xlu0 0
        %7072 = vperm.xlu0 %7071, %v7062
        %v7073 = vpop.permute.xlu0 %7072
        %7076 = vset.pattern.permute.xlu0 0
        %7077 = vperm.xlu0 %7076, %v7063
        %v7078 = vpop.permute.xlu0 %7077
        %7081 = vset.pattern.permute.xlu0 0
        %7082 = vperm.xlu0 %7081, %v7064
        %v7083 = vpop.permute.xlu0 %7082
        %v7086 = vsel %vm3058, %v7056, 0
        %v7089 = vsel %vm3058, %v7057, 0
        %v7092 = vsel %vm3058, %v7058, 0
        %v7095 = vsel %vm3058, %v7059, 0
        %7097 = vmatprep.subr.mxu0 0.0
        %v7098 = vand.u32 %v3072, 4294901760
        %7099 = vmatpush1.msra.mxu0 %v7098
        %7100 = vmatprep.subr.mxu0 0.0
        %7101 = vmatpush1.msra.mxu0 0.0
        %7102 = vmatprep.subr.mxu0 0.0
        %7103 = vmatpush1.msra.mxu0 0.0
        %7104 = vmatprep.subr.mxu0 0.0
        %7105 = vmatpush1.msra.mxu0 0.0
        %7106 = vmatprep.subr.mxu0 0.0
        %7107 = vmatpush1.msra.mxu0 0.0
        %7108 = vmatprep.subr.mxu0 0.0
        %7109 = vmatpush1.msra.mxu0 0.0
        %7110 = vmatprep.subr.mxu0 0.0
        %7111 = vmatpush1.msra.mxu0 0.0
        %7112 = vmatprep.subr.mxu0 0.0
        %7113 = vmatpush1.msra.mxu0 0.0
        %7114 = vmatprep.subr.mxu0 0.0
        %7115 = vmatpush1.msra.mxu0 0.0
        %7116 = vmatprep.subr.mxu0 0.0
        %7117 = vmatpush1.msra.mxu0 0.0
        %7118 = vmatprep.subr.mxu0 0.0
        %7119 = vmatpush1.msra.mxu0 0.0
        %7120 = vmatprep.subr.mxu0 0.0
        %7121 = vmatpush1.msra.mxu0 0.0
        %7122 = vmatprep.subr.mxu0 0.0
        %7123 = vmatpush1.msra.mxu0 0.0
        %7124 = vmatprep.subr.mxu0 0.0
        %7125 = vmatpush1.msra.mxu0 0.0
        %7126 = vmatprep.subr.mxu0 0.0
        %7127 = vmatpush1.msra.mxu0 0.0
        %7128 = vmatprep.subr.mxu0 0.0
        %7129 = vmatpush1.msra.mxu0 0.0
        %7130 = vmatprep.subr.mxu0 0.0
        %7131 = vmatpush1.msra.mxu0 0.0
        %7132 = vmatprep.subr.mxu0 0.0
        %7133 = vmatpush1.msra.mxu0 0.0
        %7134 = vmatprep.subr.mxu0 0.0
        %7135 = vmatpush1.msra.mxu0 0.0
        %7136 = vmatprep.subr.mxu0 0.0
        %7137 = vmatpush1.msra.mxu0 0.0
        %7138 = vmatprep.subr.mxu0 0.0
        %7139 = vmatpush1.msra.mxu0 0.0
        %7140 = vmatprep.subr.mxu0 0.0
        %7141 = vmatpush1.msra.mxu0 0.0
        %7142 = vmatprep.subr.mxu0 0.0
        %7143 = vmatpush1.msra.mxu0 0.0
        %7144 = vmatprep.subr.mxu0 0.0
        %7145 = vmatpush1.msra.mxu0 0.0
        %7146 = vmatprep.subr.mxu0 0.0
        %7147 = vmatpush1.msra.mxu0 0.0
        %7148 = vmatprep.subr.mxu0 0.0
        %7149 = vmatpush1.msra.mxu0 0.0
        %7150 = vmatprep.subr.mxu0 0.0
        %7151 = vmatpush1.msra.mxu0 0.0
        %7152 = vmatprep.subr.mxu0 0.0
        %7153 = vmatpush1.msra.mxu0 0.0
        %7154 = vmatprep.subr.mxu0 0.0
        %7155 = vmatpush1.msra.mxu0 0.0
        %7156 = vmatprep.subr.mxu0 0.0
        %7157 = vmatpush1.msra.mxu0 0.0
        %7158 = vmatprep.subr.mxu0 0.0
        %7159 = vmatpush1.msra.mxu0 0.0
        %7160 = vmatprep.subr.mxu0 0.0
        %7161 = vmatpush1.msra.mxu0 0.0
        %7162 = vmatprep.mubr.f32.mxu0 0.0
        %v7163 = vand.u32 %v7086, 4294901760
        %v7164 = vsub.f32 %v7086, %v7163
        %v7165 = vand.u32 %v7164, 4294901760
        %v7166 = vsub.f32 %v7164, %v7165
        %v7167 = vand.u32 %v7166, 4294901760
        %7168 = vmatmul.mubr.f32.gmra.mrb[0].mxu0 %v7167
        %v7169 = vpop.f32.mrb[0].mxu0
        %v7170 = vadd.f32 %v7068, %v7169
        %v7171 = vpop.f32.mrb[0].mxu0
        %7172 = vmatprep.mubr.f32.mxu0 0.0
        %v7173 = vand.u32 %v7089, 4294901760
        %v7174 = vsub.f32 %v7089, %v7173
        %v7175 = vand.u32 %v7174, 4294901760
        %v7176 = vsub.f32 %v7174, %v7175
        %v7177 = vand.u32 %v7176, 4294901760
        %7178 = vmatmul.mubr.f32.gmra.mrb[0].mxu0 %v7177
        %v7179 = vpop.f32.mrb[0].mxu0
        %v7180 = vadd.f32 %v7073, %v7179
        %v7181 = vpop.f32.mrb[0].mxu0
        %7182 = vmatprep.mubr.f32.mxu0 0.0
        %v7183 = vand.u32 %v7092, 4294901760
        %v7184 = vsub.f32 %v7092, %v7183
        %v7185 = vand.u32 %v7184, 4294901760
        %v7186 = vsub.f32 %v7184, %v7185
        %v7187 = vand.u32 %v7186, 4294901760
        %7188 = vmatmul.mubr.f32.gmra.mrb[0].mxu0 %v7187
        %v7189 = vpop.f32.mrb[0].mxu0
        %v7190 = vadd.f32 %v7078, %v7189
        %v7191 = vpop.f32.mrb[0].mxu0
        %7192 = vmatprep.mubr.f32.mxu0 0.0
        %v7193 = vand.u32 %v7095, 4294901760
        %v7194 = vsub.f32 %v7095, %v7193
        %v7195 = vand.u32 %v7194, 4294901760
        %v7196 = vsub.f32 %v7194, %v7195
        %v7197 = vand.u32 %v7196, 4294901760
        %7198 = vmatmul.mubr.f32.gmra.mrb[0].mxu0 %v7197
        %v7199 = vpop.f32.mrb[0].mxu0
        %v7200 = vadd.f32 %v7083, %v7199
        %v7201 = vpop.f32.mrb[0].mxu0
        %7202 = vdwg.mxu0
        %7203 = vmatprep.subr.mxu0 0.0
        %v7204 = vand.u32 %v3072, 4294901760
        %v7205 = vsub.f32 %v3072, %v7204
        %v7206 = vand.u32 %v7205, 4294901760
        %v7207 = vsub.f32 %v7205, %v7206
        %v7208 = vand.u32 %v7207, 4294901760
        %7209 = vmatpush1.msra.mxu0 %v7208
        %7210 = vmatprep.subr.mxu0 0.0
        %7211 = vmatpush1.msra.mxu0 0.0
        %7212 = vmatprep.subr.mxu0 0.0
        %7213 = vmatpush1.msra.mxu0 0.0
        %7214 = vmatprep.subr.mxu0 0.0
        %7215 = vmatpush1.msra.mxu0 0.0
        %7216 = vmatprep.subr.mxu0 0.0
        %7217 = vmatpush1.msra.mxu0 0.0
        %7218 = vmatprep.subr.mxu0 0.0
        %7219 = vmatpush1.msra.mxu0 0.0
        %7220 = vmatprep.subr.mxu0 0.0
        %7221 = vmatpush1.msra.mxu0 0.0
        %7222 = vmatprep.subr.mxu0 0.0
        %7223 = vmatpush1.msra.mxu0 0.0
        %7224 = vmatprep.subr.mxu0 0.0
        %7225 = vmatpush1.msra.mxu0 0.0
        %7226 = vmatprep.subr.mxu0 0.0
        %7227 = vmatpush1.msra.mxu0 0.0
        %7228 = vmatprep.subr.mxu0 0.0
        %7229 = vmatpush1.msra.mxu0 0.0
        %7230 = vmatprep.subr.mxu0 0.0
        %7231 = vmatpush1.msra.mxu0 0.0
        %7232 = vmatprep.subr.mxu0 0.0
        %7233 = vmatpush1.msra.mxu0 0.0
        %7234 = vmatprep.subr.mxu0 0.0
        %7235 = vmatpush1.msra.mxu0 0.0
        %7236 = vmatprep.subr.mxu0 0.0
        %7237 = vmatpush1.msra.mxu0 0.0
        %7238 = vmatprep.subr.mxu0 0.0
        %7239 = vmatpush1.msra.mxu0 0.0
        %7240 = vmatprep.subr.mxu0 0.0
        %7241 = vmatpush1.msra.mxu0 0.0
        %7242 = vmatprep.subr.mxu0 0.0
        %7243 = vmatpush1.msra.mxu0 0.0
        %7244 = vmatprep.subr.mxu0 0.0
        %7245 = vmatpush1.msra.mxu0 0.0
        %7246 = vmatprep.subr.mxu0 0.0
        %7247 = vmatpush1.msra.mxu0 0.0
        %7248 = vmatprep.subr.mxu0 0.0
        %7249 = vmatpush1.msra.mxu0 0.0
        %7250 = vmatprep.subr.mxu0 0.0
        %7251 = vmatpush1.msra.mxu0 0.0
        %7252 = vmatprep.subr.mxu0 0.0
        %7253 = vmatpush1.msra.mxu0 0.0
        %7254 = vmatprep.subr.mxu0 0.0
        %7255 = vmatpush1.msra.mxu0 0.0
        %7256 = vmatprep.subr.mxu0 0.0
        %7257 = vmatpush1.msra.mxu0 0.0
        %7258 = vmatprep.subr.mxu0 0.0
        %7259 = vmatpush1.msra.mxu0 0.0
        %7260 = vmatprep.subr.mxu0 0.0
        %7261 = vmatpush1.msra.mxu0 0.0
        %7262 = vmatprep.subr.mxu0 0.0
        %7263 = vmatpush1.msra.mxu0 0.0
        %7264 = vmatprep.subr.mxu0 0.0
        %7265 = vmatpush1.msra.mxu0 0.0
        %7266 = vmatprep.subr.mxu0 0.0
        %7267 = vmatpush1.msra.mxu0 0.0
        %7268 = vmatprep.subr.mxu0 0.0
        %7269 = vmatpush1.msra.mxu0 0.0
        %7270 = vmatprep.subr.mxu0 0.0
        %7271 = vmatpush1.msra.mxu0 0.0
        %7272 = vmatprep.mubr.f32.mxu0 0.0
        %v7273 = vand.u32 %v7086, 4294901760
        %7274 = vmatmul.mubr.f32.gmra.mrb[0].mxu0 %v7273
        %v7275 = vpop.f32.mrb[0].mxu0
        %v7276 = vadd.f32 %v7170, %v7275
        %v7277 = vpop.f32.mrb[0].mxu0
        %7278 = vmatprep.mubr.f32.mxu0 0.0
        %v7279 = vand.u32 %v7089, 4294901760
        %7280 = vmatmul.mubr.f32.gmra.mrb[0].mxu0 %v7279
        %v7281 = vpop.f32.mrb[0].mxu0
        %v7282 = vadd.f32 %v7180, %v7281
        %v7283 = vpop.f32.mrb[0].mxu0
        %7284 = vmatprep.mubr.f32.mxu0 0.0
        %v7285 = vand.u32 %v7092, 4294901760
        %7286 = vmatmul.mubr.f32.gmra.mrb[0].mxu0 %v7285
        %v7287 = vpop.f32.mrb[0].mxu0
        %v7288 = vadd.f32 %v7190, %v7287
        %v7289 = vpop.f32.mrb[0].mxu0
        %7290 = vmatprep.mubr.f32.mxu0 0.0
        %v7291 = vand.u32 %v7095, 4294901760
        %7292 = vmatmul.mubr.f32.gmra.mrb[0].mxu0 %v7291
        %v7293 = vpop.f32.mrb[0].mxu0
        %v7294 = vadd.f32 %v7200, %v7293
        %v7295 = vpop.f32.mrb[0].mxu0
        %7296 = vdwg.mxu0
        %7297 = vmatprep.subr.mxu0 0.0
        %v7298 = vand.u32 %v3072, 4294901760
        %v7299 = vsub.f32 %v3072, %v7298
        %7300 = vmatpush1.msra.mxu0 %v7299
        %7301 = vmatprep.subr.mxu0 0.0
        %7302 = vmatpush1.msra.mxu0 0.0
        %7303 = vmatprep.subr.mxu0 0.0
        %7304 = vmatpush1.msra.mxu0 0.0
        %7305 = vmatprep.subr.mxu0 0.0
        %7306 = vmatpush1.msra.mxu0 0.0
        %7307 = vmatprep.subr.mxu0 0.0
        %7308 = vmatpush1.msra.mxu0 0.0
        %7309 = vmatprep.subr.mxu0 0.0
        %7310 = vmatpush1.msra.mxu0 0.0
        %7311 = vmatprep.subr.mxu0 0.0
        %7312 = vmatpush1.msra.mxu0 0.0
        %7313 = vmatprep.subr.mxu0 0.0
        %7314 = vmatpush1.msra.mxu0 0.0
        %7315 = vmatprep.subr.mxu0 0.0
        %7316 = vmatpush1.msra.mxu0 0.0
        %7317 = vmatprep.subr.mxu0 0.0
        %7318 = vmatpush1.msra.mxu0 0.0
        %7319 = vmatprep.subr.mxu0 0.0
        %7320 = vmatpush1.msra.mxu0 0.0
        %7321 = vmatprep.subr.mxu0 0.0
        %7322 = vmatpush1.msra.mxu0 0.0
        %7323 = vmatprep.subr.mxu0 0.0
        %7324 = vmatpush1.msra.mxu0 0.0
        %7325 = vmatprep.subr.mxu0 0.0
        %7326 = vmatpush1.msra.mxu0 0.0
        %7327 = vmatprep.subr.mxu0 0.0
        %7328 = vmatpush1.msra.mxu0 0.0
        %7329 = vmatprep.subr.mxu0 0.0
        %7330 = vmatpush1.msra.mxu0 0.0
        %7331 = vmatprep.subr.mxu0 0.0
        %7332 = vmatpush1.msra.mxu0 0.0
        %7333 = vmatprep.subr.mxu0 0.0
        %7334 = vmatpush1.msra.mxu0 0.0
        %7335 = vmatprep.subr.mxu0 0.0
        %7336 = vmatpush1.msra.mxu0 0.0
        %7337 = vmatprep.subr.mxu0 0.0
        %7338 = vmatpush1.msra.mxu0 0.0
        %7339 = vmatprep.subr.mxu0 0.0
        %7340 = vmatpush1.msra.mxu0 0.0
        %7341 = vmatprep.subr.mxu0 0.0
        %7342 = vmatpush1.msra.mxu0 0.0
        %7343 = vmatprep.subr.mxu0 0.0
        %7344 = vmatpush1.msra.mxu0 0.0
        %7345 = vmatprep.subr.mxu0 0.0
        %7346 = vmatpush1.msra.mxu0 0.0
        %7347 = vmatprep.subr.mxu0 0.0
        %7348 = vmatpush1.msra.mxu0 0.0
        %7349 = vmatprep.subr.mxu0 0.0
        %7350 = vmatpush1.msra.mxu0 0.0
        %7351 = vmatprep.subr.mxu0 0.0
        %7352 = vmatpush1.msra.mxu0 0.0
        %7353 = vmatprep.subr.mxu0 0.0
        %7354 = vmatpush1.msra.mxu0 0.0
        %7355 = vmatprep.subr.mxu0 0.0
        %7356 = vmatpush1.msra.mxu0 0.0
        %7357 = vmatprep.subr.mxu0 0.0
        %7358 = vmatpush1.msra.mxu0 0.0
        %7359 = vmatprep.subr.mxu0 0.0
        %7360 = vmatpush1.msra.mxu0 0.0
        %7361 = vmatprep.subr.mxu0 0.0
        %7362 = vmatpush1.msra.mxu0 0.0
        %7363 = vmatprep.mubr.f32.mxu0 0.0
        %v7364 = vand.u32 %v7086, 4294901760
        %v7365 = vsub.f32 %v7086, %v7364
        %7366 = vmatmul.mubr.f32.gmra.mrb[0].mxu0 %v7365
        %v7367 = vpop.f32.mrb[0].mxu0
        %v7368 = vadd.f32 %v7276, %v7367
        %v7369 = vpop.f32.mrb[0].mxu0
        %7370 = vmatprep.mubr.f32.mxu0 0.0
        %v7371 = vand.u32 %v7089, 4294901760
        %v7372 = vsub.f32 %v7089, %v7371
        %7373 = vmatmul.mubr.f32.gmra.mrb[0].mxu0 %v7372
        %v7374 = vpop.f32.mrb[0].mxu0
        %v7375 = vadd.f32 %v7282, %v7374
        %v7376 = vpop.f32.mrb[0].mxu0
        %7377 = vmatprep.mubr.f32.mxu0 0.0
        %v7378 = vand.u32 %v7092, 4294901760
        %v7379 = vsub.f32 %v7092, %v7378
        %7380 = vmatmul.mubr.f32.gmra.mrb[0].mxu0 %v7379
        %v7381 = vpop.f32.mrb[0].mxu0
        %v7382 = vadd.f32 %v7288, %v7381
        %v7383 = vpop.f32.mrb[0].mxu0
        %7384 = vmatprep.mubr.f32.mxu0 0.0
        %v7385 = vand.u32 %v7095, 4294901760
        %v7386 = vsub.f32 %v7095, %v7385
        %7387 = vmatmul.mubr.f32.gmra.mrb[0].mxu0 %v7386
        %v7388 = vpop.f32.mrb[0].mxu0
        %v7389 = vadd.f32 %v7294, %v7388
        %v7390 = vpop.f32.mrb[0].mxu0
        %7391 = vdwg.mxu0
        %7392 = vmatprep.subr.mxu0 0.0
        %v7393 = vand.u32 %v3072, 4294901760
        %7394 = vmatpush1.msra.mxu0 %v7393
        %7395 = vmatprep.subr.mxu0 0.0
        %7396 = vmatpush1.msra.mxu0 0.0
        %7397 = vmatprep.subr.mxu0 0.0
        %7398 = vmatpush1.msra.mxu0 0.0
        %7399 = vmatprep.subr.mxu0 0.0
        %7400 = vmatpush1.msra.mxu0 0.0
        %7401 = vmatprep.subr.mxu0 0.0
        %7402 = vmatpush1.msra.mxu0 0.0
        %7403 = vmatprep.subr.mxu0 0.0
        %7404 = vmatpush1.msra.mxu0 0.0
        %7405 = vmatprep.subr.mxu0 0.0
        %7406 = vmatpush1.msra.mxu0 0.0
        %7407 = vmatprep.subr.mxu0 0.0
        %7408 = vmatpush1.msra.mxu0 0.0
        %7409 = vmatprep.subr.mxu0 0.0
        %7410 = vmatpush1.msra.mxu0 0.0
        %7411 = vmatprep.subr.mxu0 0.0
        %7412 = vmatpush1.msra.mxu0 0.0
        %7413 = vmatprep.subr.mxu0 0.0
        %7414 = vmatpush1.msra.mxu0 0.0
        %7415 = vmatprep.subr.mxu0 0.0
        %7416 = vmatpush1.msra.mxu0 0.0
        %7417 = vmatprep.subr.mxu0 0.0
        %7418 = vmatpush1.msra.mxu0 0.0
        %7419 = vmatprep.subr.mxu0 0.0
        %7420 = vmatpush1.msra.mxu0 0.0
        %7421 = vmatprep.subr.mxu0 0.0
        %7422 = vmatpush1.msra.mxu0 0.0
        %7423 = vmatprep.subr.mxu0 0.0
        %7424 = vmatpush1.msra.mxu0 0.0
        %7425 = vmatprep.subr.mxu0 0.0
        %7426 = vmatpush1.msra.mxu0 0.0
        %7427 = vmatprep.subr.mxu0 0.0
        %7428 = vmatpush1.msra.mxu0 0.0
        %7429 = vmatprep.subr.mxu0 0.0
        %7430 = vmatpush1.msra.mxu0 0.0
        %7431 = vmatprep.subr.mxu0 0.0
        %7432 = vmatpush1.msra.mxu0 0.0
        %7433 = vmatprep.subr.mxu0 0.0
        %7434 = vmatpush1.msra.mxu0 0.0
        %7435 = vmatprep.subr.mxu0 0.0
        %7436 = vmatpush1.msra.mxu0 0.0
        %7437 = vmatprep.subr.mxu0 0.0
        %7438 = vmatpush1.msra.mxu0 0.0
        %7439 = vmatprep.subr.mxu0 0.0
        %7440 = vmatpush1.msra.mxu0 0.0
        %7441 = vmatprep.subr.mxu0 0.0
        %7442 = vmatpush1.msra.mxu0 0.0
        %7443 = vmatprep.subr.mxu0 0.0
        %7444 = vmatpush1.msra.mxu0 0.0
        %7445 = vmatprep.subr.mxu0 0.0
        %7446 = vmatpush1.msra.mxu0 0.0
        %7447 = vmatprep.subr.mxu0 0.0
        %7448 = vmatpush1.msra.mxu0 0.0
        %7449 = vmatprep.subr.mxu0 0.0
        %7450 = vmatpush1.msra.mxu0 0.0
        %7451 = vmatprep.subr.mxu0 0.0
        %7452 = vmatpush1.msra.mxu0 0.0
        %7453 = vmatprep.subr.mxu0 0.0
        %7454 = vmatpush1.msra.mxu0 0.0
        %7455 = vmatprep.subr.mxu0 0.0
        %7456 = vmatpush1.msra.mxu0 0.0
        %7457 = vmatprep.mubr.f32.mxu0 0.0
        %v7458 = vand.u32 %v7086, 4294901760
        %v7459 = vsub.f32 %v7086, %v7458
        %v7460 = vand.u32 %v7459, 4294901760
        %7461 = vmatmul.mubr.f32.gmra.mrb[0].mxu0 %v7460
        %v7462 = vpop.f32.mrb[0].mxu0
        %v7463 = vadd.f32 %v7368, %v7462
        %v7464 = vpop.f32.mrb[0].mxu0
        %7465 = vmatprep.mubr.f32.mxu0 0.0
        %v7466 = vand.u32 %v7089, 4294901760
        %v7467 = vsub.f32 %v7089, %v7466
        %v7468 = vand.u32 %v7467, 4294901760
        %7469 = vmatmul.mubr.f32.gmra.mrb[0].mxu0 %v7468
        %v7470 = vpop.f32.mrb[0].mxu0
        %v7471 = vadd.f32 %v7375, %v7470
        %v7472 = vpop.f32.mrb[0].mxu0
        %7473 = vmatprep.mubr.f32.mxu0 0.0
        %v7474 = vand.u32 %v7092, 4294901760
        %v7475 = vsub.f32 %v7092, %v7474
        %v7476 = vand.u32 %v7475, 4294901760
        %7477 = vmatmul.mubr.f32.gmra.mrb[0].mxu0 %v7476
        %v7478 = vpop.f32.mrb[0].mxu0
        %v7479 = vadd.f32 %v7382, %v7478
        %v7480 = vpop.f32.mrb[0].mxu0
        %7481 = vmatprep.mubr.f32.mxu0 0.0
        %v7482 = vand.u32 %v7095, 4294901760
        %v7483 = vsub.f32 %v7095, %v7482
        %v7484 = vand.u32 %v7483, 4294901760
        %7485 = vmatmul.mubr.f32.gmra.mrb[0].mxu0 %v7484
        %v7486 = vpop.f32.mrb[0].mxu0
        %v7487 = vadd.f32 %v7389, %v7486
        %v7488 = vpop.f32.mrb[0].mxu0
        %7489 = vdwg.mxu0
        %7490 = vmatprep.subr.mxu0 0.0
        %v7491 = vand.u32 %v3072, 4294901760
        %v7492 = vsub.f32 %v3072, %v7491
        %v7493 = vand.u32 %v7492, 4294901760
        %7494 = vmatpush1.msra.mxu0 %v7493
        %7495 = vmatprep.subr.mxu0 0.0
        %7496 = vmatpush1.msra.mxu0 0.0
        %7497 = vmatprep.subr.mxu0 0.0
        %7498 = vmatpush1.msra.mxu0 0.0
        %7499 = vmatprep.subr.mxu0 0.0
        %7500 = vmatpush1.msra.mxu0 0.0
        %7501 = vmatprep.subr.mxu0 0.0
        %7502 = vmatpush1.msra.mxu0 0.0
        %7503 = vmatprep.subr.mxu0 0.0
        %7504 = vmatpush1.msra.mxu0 0.0
        %7505 = vmatprep.subr.mxu0 0.0
        %7506 = vmatpush1.msra.mxu0 0.0
        %7507 = vmatprep.subr.mxu0 0.0
        %7508 = vmatpush1.msra.mxu0 0.0
        %7509 = vmatprep.subr.mxu0 0.0
        %7510 = vmatpush1.msra.mxu0 0.0
        %7511 = vmatprep.subr.mxu0 0.0
        %7512 = vmatpush1.msra.mxu0 0.0
        %7513 = vmatprep.subr.mxu0 0.0
        %7514 = vmatpush1.msra.mxu0 0.0
        %7515 = vmatprep.subr.mxu0 0.0
        %7516 = vmatpush1.msra.mxu0 0.0
        %7517 = vmatprep.subr.mxu0 0.0
        %7518 = vmatpush1.msra.mxu0 0.0
        %7519 = vmatprep.subr.mxu0 0.0
        %7520 = vmatpush1.msra.mxu0 0.0
        %7521 = vmatprep.subr.mxu0 0.0
        %7522 = vmatpush1.msra.mxu0 0.0
        %7523 = vmatprep.subr.mxu0 0.0
        %7524 = vmatpush1.msra.mxu0 0.0
        %7525 = vmatprep.subr.mxu0 0.0
        %7526 = vmatpush1.msra.mxu0 0.0
        %7527 = vmatprep.subr.mxu0 0.0
        %7528 = vmatpush1.msra.mxu0 0.0
        %7529 = vmatprep.subr.mxu0 0.0
        %7530 = vmatpush1.msra.mxu0 0.0
        %7531 = vmatprep.subr.mxu0 0.0
        %7532 = vmatpush1.msra.mxu0 0.0
        %7533 = vmatprep.subr.mxu0 0.0
        %7534 = vmatpush1.msra.mxu0 0.0
        %7535 = vmatprep.subr.mxu0 0.0
        %7536 = vmatpush1.msra.mxu0 0.0
        %7537 = vmatprep.subr.mxu0 0.0
        %7538 = vmatpush1.msra.mxu0 0.0
        %7539 = vmatprep.subr.mxu0 0.0
        %7540 = vmatpush1.msra.mxu0 0.0
        %7541 = vmatprep.subr.mxu0 0.0
        %7542 = vmatpush1.msra.mxu0 0.0
        %7543 = vmatprep.subr.mxu0 0.0
        %7544 = vmatpush1.msra.mxu0 0.0
        %7545 = vmatprep.subr.mxu0 0.0
        %7546 = vmatpush1.msra.mxu0 0.0
        %7547 = vmatprep.subr.mxu0 0.0
        %7548 = vmatpush1.msra.mxu0 0.0
        %7549 = vmatprep.subr.mxu0 0.0
        %7550 = vmatpush1.msra.mxu0 0.0
        %7551 = vmatprep.subr.mxu0 0.0
        %7552 = vmatpush1.msra.mxu0 0.0
        %7553 = vmatprep.subr.mxu0 0.0
        %7554 = vmatpush1.msra.mxu0 0.0
        %7555 = vmatprep.subr.mxu0 0.0
        %7556 = vmatpush1.msra.mxu0 0.0
        %7557 = vmatprep.mubr.f32.mxu0 0.0
        %v7558 = vand.u32 %v7086, 4294901760
        %7559 = vmatmul.mubr.f32.gmra.mrb[0].mxu0 %v7558
        %v7560 = vpop.f32.mrb[0].mxu0
        %v7561 = vadd.f32 %v7463, %v7560
        %v7562 = vpop.f32.mrb[0].mxu0
        %7563 = vmatprep.mubr.f32.mxu0 0.0
        %v7564 = vand.u32 %v7089, 4294901760
        %7565 = vmatmul.mubr.f32.gmra.mrb[0].mxu0 %v7564
        %v7566 = vpop.f32.mrb[0].mxu0
        %v7567 = vadd.f32 %v7471, %v7566
        %v7568 = vpop.f32.mrb[0].mxu0
        %7569 = vmatprep.mubr.f32.mxu0 0.0
        %v7570 = vand.u32 %v7092, 4294901760
        %7571 = vmatmul.mubr.f32.gmra.mrb[0].mxu0 %v7570
        %v7572 = vpop.f32.mrb[0].mxu0
        %v7573 = vadd.f32 %v7479, %v7572
        %v7574 = vpop.f32.mrb[0].mxu0
        %7575 = vmatprep.mubr.f32.mxu0 0.0
        %v7576 = vand.u32 %v7095, 4294901760
        %7577 = vmatmul.mubr.f32.gmra.mrb[0].mxu0 %v7576
        %v7578 = vpop.f32.mrb[0].mxu0
        %v7579 = vadd.f32 %v7487, %v7578
        %v7580 = vpop.f32.mrb[0].mxu0
        %7581 = vdwg.mxu0
        %7582 = vmatprep.subr.mxu0 0.0
        %v7583 = vand.u32 %v3072, 4294901760
        %7584 = vmatpush1.msra.mxu0 %v7583
        %7585 = vmatprep.subr.mxu0 0.0
        %7586 = vmatpush1.msra.mxu0 0.0
        %7587 = vmatprep.subr.mxu0 0.0
        %7588 = vmatpush1.msra.mxu0 0.0
        %7589 = vmatprep.subr.mxu0 0.0
        %7590 = vmatpush1.msra.mxu0 0.0
        %7591 = vmatprep.subr.mxu0 0.0
        %7592 = vmatpush1.msra.mxu0 0.0
        %7593 = vmatprep.subr.mxu0 0.0
        %7594 = vmatpush1.msra.mxu0 0.0
        %7595 = vmatprep.subr.mxu0 0.0
        %7596 = vmatpush1.msra.mxu0 0.0
        %7597 = vmatprep.subr.mxu0 0.0
        %7598 = vmatpush1.msra.mxu0 0.0
        %7599 = vmatprep.subr.mxu0 0.0
        %7600 = vmatpush1.msra.mxu0 0.0
        %7601 = vmatprep.subr.mxu0 0.0
        %7602 = vmatpush1.msra.mxu0 0.0
        %7603 = vmatprep.subr.mxu0 0.0
        %7604 = vmatpush1.msra.mxu0 0.0
        %7605 = vmatprep.subr.mxu0 0.0
        %7606 = vmatpush1.msra.mxu0 0.0
        %7607 = vmatprep.subr.mxu0 0.0
        %7608 = vmatpush1.msra.mxu0 0.0
        %7609 = vmatprep.subr.mxu0 0.0
        %7610 = vmatpush1.msra.mxu0 0.0
        %7611 = vmatprep.subr.mxu0 0.0
        %7612 = vmatpush1.msra.mxu0 0.0
        %7613 = vmatprep.subr.mxu0 0.0
        %7614 = vmatpush1.msra.mxu0 0.0
        %7615 = vmatprep.subr.mxu0 0.0
        %7616 = vmatpush1.msra.mxu0 0.0
        %7617 = vmatprep.subr.mxu0 0.0
        %7618 = vmatpush1.msra.mxu0 0.0
        %7619 = vmatprep.subr.mxu0 0.0
        %7620 = vmatpush1.msra.mxu0 0.0
        %7621 = vmatprep.subr.mxu0 0.0
        %7622 = vmatpush1.msra.mxu0 0.0
        %7623 = vmatprep.subr.mxu0 0.0
        %7624 = vmatpush1.msra.mxu0 0.0
        %7625 = vmatprep.subr.mxu0 0.0
        %7626 = vmatpush1.msra.mxu0 0.0
        %7627 = vmatprep.subr.mxu0 0.0
        %7628 = vmatpush1.msra.mxu0 0.0
        %7629 = vmatprep.subr.mxu0 0.0
        %7630 = vmatpush1.msra.mxu0 0.0
        %7631 = vmatprep.subr.mxu0 0.0
        %7632 = vmatpush1.msra.mxu0 0.0
        %7633 = vmatprep.subr.mxu0 0.0
        %7634 = vmatpush1.msra.mxu0 0.0
        %7635 = vmatprep.subr.mxu0 0.0
        %7636 = vmatpush1.msra.mxu0 0.0
        %7637 = vmatprep.subr.mxu0 0.0
        %7638 = vmatpush1.msra.mxu0 0.0
        %7639 = vmatprep.subr.mxu0 0.0
        %7640 = vmatpush1.msra.mxu0 0.0
        %7641 = vmatprep.subr.mxu0 0.0
        %7642 = vmatpush1.msra.mxu0 0.0
        %7643 = vmatprep.subr.mxu0 0.0
        %7644 = vmatpush1.msra.mxu0 0.0
        %7645 = vmatprep.subr.mxu0 0.0
        %7646 = vmatpush1.msra.mxu0 0.0
        %7647 = vmatprep.mubr.f32.mxu0 0.0
        %v7648 = vand.u32 %v7086, 4294901760
        %7649 = vmatmul.mubr.f32.gmra.mrb[0].mxu0 %v7648
        %v7650 = vpop.f32.mrb[0].mxu0
        %v7651 = vadd.f32 %v7561, %v7650
        %v7652 = vpop.f32.mrb[0].mxu0
        %7653 = vmatprep.mubr.f32.mxu0 0.0
        %v7654 = vand.u32 %v7089, 4294901760
        %7655 = vmatmul.mubr.f32.gmra.mrb[0].mxu0 %v7654
        %v7656 = vpop.f32.mrb[0].mxu0
        %v7657 = vadd.f32 %v7567, %v7656
        %v7658 = vpop.f32.mrb[0].mxu0
        %7659 = vmatprep.mubr.f32.mxu0 0.0
        %v7660 = vand.u32 %v7092, 4294901760
        %7661 = vmatmul.mubr.f32.gmra.mrb[0].mxu0 %v7660
        %v7662 = vpop.f32.mrb[0].mxu0
        %v7663 = vadd.f32 %v7573, %v7662
        %v7664 = vpop.f32.mrb[0].mxu0
        %7665 = vmatprep.mubr.f32.mxu0 0.0
        %v7666 = vand.u32 %v7095, 4294901760
        %7667 = vmatmul.mubr.f32.gmra.mrb[0].mxu0 %v7666
        %v7668 = vpop.f32.mrb[0].mxu0
        %v7669 = vadd.f32 %v7579, %v7668
        %v7670 = vpop.f32.mrb[0].mxu0
        %7671 = vdwg.mxu0
        %v7672 = vxor.u32 %v7651, 2147483648
        %v7673 = vxor.u32 %v7657, 2147483648
        %v7674 = vxor.u32 %v7663, 2147483648
        %v7675 = vxor.u32 %v7669, 2147483648
        %v7676 = vmul.f32 %v7672, 1.442695
        %v7677 = vpow.pop %v7676
        %v7678 = vmul.f32 %v7673, 1.442695
        %v7679 = vpow.pop %v7678
        %v7680 = vmul.f32 %v7674, 1.442695
        %v7681 = vpow.pop %v7680
        %v7682 = vmul.f32 %v7675, 1.442695
        %v7683 = vpow.pop %v7682
        %v7684 = vadd.f32 %v7677, 1.0
        %v7685 = vadd.f32 %v7679, 1.0
        %v7686 = vadd.f32 %v7681, 1.0
        %v7687 = vadd.f32 %v7683, 1.0
        %v7688 = vrcp.pop %v7684
        %v7689 = vmul.f32 1.0, %v7688
        %v7690 = vrcp.pop %v7685
        %v7691 = vmul.f32 1.0, %v7690
        %v7692 = vrcp.pop %v7686
        %v7693 = vmul.f32 1.0, %v7692
        %v7694 = vrcp.pop %v7687
        %v7695 = vmul.f32 1.0, %v7694
        %s7696 = scalar_lea.vmem %s9, 64
        %v7697 = vld [vmem:[%s7696] sm:$0xff]
        %v7698 = vld [vmem:[%s7696 + $0x8] sm:$0xff]
        %v7699 = vld [vmem:[%s7696 + $0x10] sm:$0xff]
        %v7700 = vld [vmem:[%s7696 + $0x18] sm:$0xff]
        %s7701 = scalar_lea.vmem %s10, 64
        %v7702 = vld [vmem:[%s7701] sm:$0xff]
        %v7703 = vld [vmem:[%s7701 + $0x8] sm:$0xff]
        %v7704 = vld [vmem:[%s7701 + $0x10] sm:$0xff]
        %v7705 = vld [vmem:[%s7701 + $0x18] sm:$0xff]
        %7707 = vset.pattern.permute.xlu0 0
        %7708 = vperm.xlu0 %7707, %v7702
        %v7709 = vpop.permute.xlu0 %7708
        %7712 = vset.pattern.permute.xlu0 0
        %7713 = vperm.xlu0 %7712, %v7703
        %v7714 = vpop.permute.xlu0 %7713
        %7717 = vset.pattern.permute.xlu0 0
        %7718 = vperm.xlu0 %7717, %v7704
        %v7719 = vpop.permute.xlu0 %7718
        %7722 = vset.pattern.permute.xlu0 0
        %7723 = vperm.xlu0 %7722, %v7705
        %v7724 = vpop.permute.xlu0 %7723
        %v7727 = vsel %vm3701, %v7697, 0
        %v7730 = vsel %vm3701, %v7698, 0
        %v7733 = vsel %vm3701, %v7699, 0
        %v7736 = vsel %vm3701, %v7700, 0
        %7738 = vmatprep.subr.mxu0 0.0
        %v7739 = vand.u32 %v7689, 4294901760
        %7740 = vmatpush1.msra.mxu0 %v7739
        %7741 = vmatprep.subr.mxu0 0.0
        %v7742 = vand.u32 %v7691, 4294901760
        %7743 = vmatpush1.msra.mxu0 %v7742
        %7744 = vmatprep.subr.mxu0 0.0
        %v7745 = vand.u32 %v7693, 4294901760
        %7746 = vmatpush1.msra.mxu0 %v7745
        %7747 = vmatprep.subr.mxu0 0.0
        %v7748 = vand.u32 %v7695, 4294901760
        %7749 = vmatpush1.msra.mxu0 %v7748
        %7750 = vmatprep.subr.mxu0 0.0
        %7751 = vmatpush1.msra.mxu0 0.0
        %7752 = vmatprep.subr.mxu0 0.0
        %7753 = vmatpush1.msra.mxu0 0.0
        %7754 = vmatprep.subr.mxu0 0.0
        %7755 = vmatpush1.msra.mxu0 0.0
        %7756 = vmatprep.subr.mxu0 0.0
        %7757 = vmatpush1.msra.mxu0 0.0
        %7758 = vmatprep.subr.mxu0 0.0
        %7759 = vmatpush1.msra.mxu0 0.0
        %7760 = vmatprep.subr.mxu0 0.0
        %7761 = vmatpush1.msra.mxu0 0.0
        %7762 = vmatprep.subr.mxu0 0.0
        %7763 = vmatpush1.msra.mxu0 0.0
        %7764 = vmatprep.subr.mxu0 0.0
        %7765 = vmatpush1.msra.mxu0 0.0
        %7766 = vmatprep.subr.mxu0 0.0
        %7767 = vmatpush1.msra.mxu0 0.0
        %7768 = vmatprep.subr.mxu0 0.0
        %7769 = vmatpush1.msra.mxu0 0.0
        %7770 = vmatprep.subr.mxu0 0.0
        %7771 = vmatpush1.msra.mxu0 0.0
        %7772 = vmatprep.subr.mxu0 0.0
        %7773 = vmatpush1.msra.mxu0 0.0
        %7774 = vmatprep.subr.mxu0 0.0
        %7775 = vmatpush1.msra.mxu0 0.0
        %7776 = vmatprep.subr.mxu0 0.0
        %7777 = vmatpush1.msra.mxu0 0.0
        %7778 = vmatprep.subr.mxu0 0.0
        %7779 = vmatpush1.msra.mxu0 0.0
        %7780 = vmatprep.subr.mxu0 0.0
        %7781 = vmatpush1.msra.mxu0 0.0
        %7782 = vmatprep.subr.mxu0 0.0
        %7783 = vmatpush1.msra.mxu0 0.0
        %7784 = vmatprep.subr.mxu0 0.0
        %7785 = vmatpush1.msra.mxu0 0.0
        %7786 = vmatprep.subr.mxu0 0.0
        %7787 = vmatpush1.msra.mxu0 0.0
        %7788 = vmatprep.subr.mxu0 0.0
        %7789 = vmatpush1.msra.mxu0 0.0
        %7790 = vmatprep.subr.mxu0 0.0
        %7791 = vmatpush1.msra.mxu0 0.0
        %7792 = vmatprep.subr.mxu0 0.0
        %7793 = vmatpush1.msra.mxu0 0.0
        %7794 = vmatprep.subr.mxu0 0.0
        %7795 = vmatpush1.msra.mxu0 0.0
        %7796 = vmatprep.subr.mxu0 0.0
        %7797 = vmatpush1.msra.mxu0 0.0
        %7798 = vmatprep.subr.mxu0 0.0
        %7799 = vmatpush1.msra.mxu0 0.0
        %7800 = vmatprep.subr.mxu0 0.0
        %7801 = vmatpush1.msra.mxu0 0.0
        %7802 = vmatprep.subr.mxu0 0.0
        %7803 = vmatpush1.msra.mxu0 0.0
        %7804 = vmatprep.subr.mxu0 0.0
        %7805 = vmatpush1.msra.mxu0 0.0
        %7806 = vmatprep.mubr.f32.mxu0 0.0
        %v7807 = vand.u32 %v7727, 4294901760
        %v7808 = vsub.f32 %v7727, %v7807
        %v7809 = vand.u32 %v7808, 4294901760
        %v7810 = vsub.f32 %v7808, %v7809
        %v7811 = vand.u32 %v7810, 4294901760
        %7812 = vmatmul.mubr.f32.gmra.mrb[0].mxu0 %v7811
        %v7813 = vpop.f32.mrb[0].mxu0
        %v7814 = vadd.f32 %v7709, %v7813
        %v7815 = vpop.f32.mrb[0].mxu0
        %7816 = vmatprep.mubr.f32.mxu0 0.0
        %v7817 = vand.u32 %v7730, 4294901760
        %v7818 = vsub.f32 %v7730, %v7817
        %v7819 = vand.u32 %v7818, 4294901760
        %v7820 = vsub.f32 %v7818, %v7819
        %v7821 = vand.u32 %v7820, 4294901760
        %7822 = vmatmul.mubr.f32.gmra.mrb[0].mxu0 %v7821
        %v7823 = vpop.f32.mrb[0].mxu0
        %v7824 = vadd.f32 %v7714, %v7823
        %v7825 = vpop.f32.mrb[0].mxu0
        %7826 = vmatprep.mubr.f32.mxu0 0.0
        %v7827 = vand.u32 %v7733, 4294901760
        %v7828 = vsub.f32 %v7733, %v7827
        %v7829 = vand.u32 %v7828, 4294901760
        %v7830 = vsub.f32 %v7828, %v7829
        %v7831 = vand.u32 %v7830, 4294901760
        %7832 = vmatmul.mubr.f32.gmra.mrb[0].mxu0 %v7831
        %v7833 = vpop.f32.mrb[0].mxu0
        %v7834 = vadd.f32 %v7719, %v7833
        %v7835 = vpop.f32.mrb[0].mxu0
        %7836 = vmatprep.mubr.f32.mxu0 0.0
        %v7837 = vand.u32 %v7736, 4294901760
        %v7838 = vsub.f32 %v7736, %v7837
        %v7839 = vand.u32 %v7838, 4294901760
        %v7840 = vsub.f32 %v7838, %v7839
        %v7841 = vand.u32 %v7840, 4294901760
        %7842 = vmatmul.mubr.f32.gmra.mrb[0].mxu0 %v7841
        %v7843 = vpop.f32.mrb[0].mxu0
        %v7844 = vadd.f32 %v7724, %v7843
        %v7845 = vpop.f32.mrb[0].mxu0
        %7846 = vdwg.mxu0
        %7847 = vmatprep.subr.mxu0 0.0
        %v7848 = vand.u32 %v7689, 4294901760
        %v7849 = vsub.f32 %v7689, %v7848
        %v7850 = vand.u32 %v7849, 4294901760
        %v7851 = vsub.f32 %v7849, %v7850
        %v7852 = vand.u32 %v7851, 4294901760
        %7853 = vmatpush1.msra.mxu0 %v7852
        %7854 = vmatprep.subr.mxu0 0.0
        %v7855 = vand.u32 %v7691, 4294901760
        %v7856 = vsub.f32 %v7691, %v7855
        %v7857 = vand.u32 %v7856, 4294901760
        %v7858 = vsub.f32 %v7856, %v7857
        %v7859 = vand.u32 %v7858, 4294901760
        %7860 = vmatpush1.msra.mxu0 %v7859
        %7861 = vmatprep.subr.mxu0 0.0
        %v7862 = vand.u32 %v7693, 4294901760
        %v7863 = vsub.f32 %v7693, %v7862
        %v7864 = vand.u32 %v7863, 4294901760
        %v7865 = vsub.f32 %v7863, %v7864
        %v7866 = vand.u32 %v7865, 4294901760
        %7867 = vmatpush1.msra.mxu0 %v7866
        %7868 = vmatprep.subr.mxu0 0.0
        %v7869 = vand.u32 %v7695, 4294901760
        %v7870 = vsub.f32 %v7695, %v7869
        %v7871 = vand.u32 %v7870, 4294901760
        %v7872 = vsub.f32 %v7870, %v7871
        %v7873 = vand.u32 %v7872, 4294901760
        %7874 = vmatpush1.msra.mxu0 %v7873
        %7875 = vmatprep.subr.mxu0 0.0
        %7876 = vmatpush1.msra.mxu0 0.0
        %7877 = vmatprep.subr.mxu0 0.0
        %7878 = vmatpush1.msra.mxu0 0.0
        %7879 = vmatprep.subr.mxu0 0.0
        %7880 = vmatpush1.msra.mxu0 0.0
        %7881 = vmatprep.subr.mxu0 0.0
        %7882 = vmatpush1.msra.mxu0 0.0
        %7883 = vmatprep.subr.mxu0 0.0
        %7884 = vmatpush1.msra.mxu0 0.0
        %7885 = vmatprep.subr.mxu0 0.0
        %7886 = vmatpush1.msra.mxu0 0.0
        %7887 = vmatprep.subr.mxu0 0.0
        %7888 = vmatpush1.msra.mxu0 0.0
        %7889 = vmatprep.subr.mxu0 0.0
        %7890 = vmatpush1.msra.mxu0 0.0
        %7891 = vmatprep.subr.mxu0 0.0
        %7892 = vmatpush1.msra.mxu0 0.0
        %7893 = vmatprep.subr.mxu0 0.0
        %7894 = vmatpush1.msra.mxu0 0.0
        %7895 = vmatprep.subr.mxu0 0.0
        %7896 = vmatpush1.msra.mxu0 0.0
        %7897 = vmatprep.subr.mxu0 0.0
        %7898 = vmatpush1.msra.mxu0 0.0
        %7899 = vmatprep.subr.mxu0 0.0
        %7900 = vmatpush1.msra.mxu0 0.0
        %7901 = vmatprep.subr.mxu0 0.0
        %7902 = vmatpush1.msra.mxu0 0.0
        %7903 = vmatprep.subr.mxu0 0.0
        %7904 = vmatpush1.msra.mxu0 0.0
        %7905 = vmatprep.subr.mxu0 0.0
        %7906 = vmatpush1.msra.mxu0 0.0
        %7907 = vmatprep.subr.mxu0 0.0
        %7908 = vmatpush1.msra.mxu0 0.0
        %7909 = vmatprep.subr.mxu0 0.0
        %7910 = vmatpush1.msra.mxu0 0.0
        %7911 = vmatprep.subr.mxu0 0.0
        %7912 = vmatpush1.msra.mxu0 0.0
        %7913 = vmatprep.subr.mxu0 0.0
        %7914 = vmatpush1.msra.mxu0 0.0
        %7915 = vmatprep.subr.mxu0 0.0
        %7916 = vmatpush1.msra.mxu0 0.0
        %7917 = vmatprep.subr.mxu0 0.0
        %7918 = vmatpush1.msra.mxu0 0.0
        %7919 = vmatprep.subr.mxu0 0.0
        %7920 = vmatpush1.msra.mxu0 0.0
        %7921 = vmatprep.subr.mxu0 0.0
        %7922 = vmatpush1.msra.mxu0 0.0
        %7923 = vmatprep.subr.mxu0 0.0
        %7924 = vmatpush1.msra.mxu0 0.0
        %7925 = vmatprep.subr.mxu0 0.0
        %7926 = vmatpush1.msra.mxu0 0.0
        %7927 = vmatprep.subr.mxu0 0.0
        %7928 = vmatpush1.msra.mxu0 0.0
        %7929 = vmatprep.subr.mxu0 0.0
        %7930 = vmatpush1.msra.mxu0 0.0
        %7931 = vmatprep.mubr.f32.mxu0 0.0
        %v7932 = vand.u32 %v7727, 4294901760
        %7933 = vmatmul.mubr.f32.gmra.mrb[0].mxu0 %v7932
        %v7934 = vpop.f32.mrb[0].mxu0
        %v7935 = vadd.f32 %v7814, %v7934
        %v7936 = vpop.f32.mrb[0].mxu0
        %7937 = vmatprep.mubr.f32.mxu0 0.0
        %v7938 = vand.u32 %v7730, 4294901760
        %7939 = vmatmul.mubr.f32.gmra.mrb[0].mxu0 %v7938
        %v7940 = vpop.f32.mrb[0].mxu0
        %v7941 = vadd.f32 %v7824, %v7940
        %v7942 = vpop.f32.mrb[0].mxu0
        %7943 = vmatprep.mubr.f32.mxu0 0.0
        %v7944 = vand.u32 %v7733, 4294901760
        %7945 = vmatmul.mubr.f32.gmra.mrb[0].mxu0 %v7944
        %v7946 = vpop.f32.mrb[0].mxu0
        %v7947 = vadd.f32 %v7834, %v7946
        %v7948 = vpop.f32.mrb[0].mxu0
        %7949 = vmatprep.mubr.f32.mxu0 0.0
        %v7950 = vand.u32 %v7736, 4294901760
        %7951 = vmatmul.mubr.f32.gmra.mrb[0].mxu0 %v7950
        %v7952 = vpop.f32.mrb[0].mxu0
        %v7953 = vadd.f32 %v7844, %v7952
        %v7954 = vpop.f32.mrb[0].mxu0
        %7955 = vdwg.mxu0
        %7956 = vmatprep.subr.mxu0 0.0
        %v7957 = vand.u32 %v7689, 4294901760
        %v7958 = vsub.f32 %v7689, %v7957
        %7959 = vmatpush1.msra.mxu0 %v7958
        %7960 = vmatprep.subr.mxu0 0.0
        %v7961 = vand.u32 %v7691, 4294901760
        %v7962 = vsub.f32 %v7691, %v7961
        %7963 = vmatpush1.msra.mxu0 %v7962
        %7964 = vmatprep.subr.mxu0 0.0
        %v7965 = vand.u32 %v7693, 4294901760
        %v7966 = vsub.f32 %v7693, %v7965
        %7967 = vmatpush1.msra.mxu0 %v7966
        %7968 = vmatprep.subr.mxu0 0.0
        %v7969 = vand.u32 %v7695, 4294901760
        %v7970 = vsub.f32 %v7695, %v7969
        %7971 = vmatpush1.msra.mxu0 %v7970
        %7972 = vmatprep.subr.mxu0 0.0
        %7973 = vmatpush1.msra.mxu0 0.0
        %7974 = vmatprep.subr.mxu0 0.0
        %7975 = vmatpush1.msra.mxu0 0.0
        %7976 = vmatprep.subr.mxu0 0.0
        %7977 = vmatpush1.msra.mxu0 0.0
        %7978 = vmatprep.subr.mxu0 0.0
        %7979 = vmatpush1.msra.mxu0 0.0
        %7980 = vmatprep.subr.mxu0 0.0
        %7981 = vmatpush1.msra.mxu0 0.0
        %7982 = vmatprep.subr.mxu0 0.0
        %7983 = vmatpush1.msra.mxu0 0.0
        %7984 = vmatprep.subr.mxu0 0.0
        %7985 = vmatpush1.msra.mxu0 0.0
        %7986 = vmatprep.subr.mxu0 0.0
        %7987 = vmatpush1.msra.mxu0 0.0
        %7988 = vmatprep.subr.mxu0 0.0
        %7989 = vmatpush1.msra.mxu0 0.0
        %7990 = vmatprep.subr.mxu0 0.0
        %7991 = vmatpush1.msra.mxu0 0.0
        %7992 = vmatprep.subr.mxu0 0.0
        %7993 = vmatpush1.msra.mxu0 0.0
        %7994 = vmatprep.subr.mxu0 0.0
        %7995 = vmatpush1.msra.mxu0 0.0
        %7996 = vmatprep.subr.mxu0 0.0
        %7997 = vmatpush1.msra.mxu0 0.0
        %7998 = vmatprep.subr.mxu0 0.0
        %7999 = vmatpush1.msra.mxu0 0.0
        %8000 = vmatprep.subr.mxu0 0.0
        %8001 = vmatpush1.msra.mxu0 0.0
        %8002 = vmatprep.subr.mxu0 0.0
        %8003 = vmatpush1.msra.mxu0 0.0
        %8004 = vmatprep.subr.mxu0 0.0
        %8005 = vmatpush1.msra.mxu0 0.0
        %8006 = vmatprep.subr.mxu0 0.0
        %8007 = vmatpush1.msra.mxu0 0.0
        %8008 = vmatprep.subr.mxu0 0.0
        %8009 = vmatpush1.msra.mxu0 0.0
        %8010 = vmatprep.subr.mxu0 0.0
        %8011 = vmatpush1.msra.mxu0 0.0
        %8012 = vmatprep.subr.mxu0 0.0
        %8013 = vmatpush1.msra.mxu0 0.0
        %8014 = vmatprep.subr.mxu0 0.0
        %8015 = vmatpush1.msra.mxu0 0.0
        %8016 = vmatprep.subr.mxu0 0.0
        %8017 = vmatpush1.msra.mxu0 0.0
        %8018 = vmatprep.subr.mxu0 0.0
        %8019 = vmatpush1.msra.mxu0 0.0
        %8020 = vmatprep.subr.mxu0 0.0
        %8021 = vmatpush1.msra.mxu0 0.0
        %8022 = vmatprep.subr.mxu0 0.0
        %8023 = vmatpush1.msra.mxu0 0.0
        %8024 = vmatprep.subr.mxu0 0.0
        %8025 = vmatpush1.msra.mxu0 0.0
        %8026 = vmatprep.subr.mxu0 0.0
        %8027 = vmatpush1.msra.mxu0 0.0
        %8028 = vmatprep.mubr.f32.mxu0 0.0
        %v8029 = vand.u32 %v7727, 4294901760
        %v8030 = vsub.f32 %v7727, %v8029
        %8031 = vmatmul.mubr.f32.gmra.mrb[0].mxu0 %v8030
        %v8032 = vpop.f32.mrb[0].mxu0
        %v8033 = vadd.f32 %v7935, %v8032
        %v8034 = vpop.f32.mrb[0].mxu0
        %8035 = vmatprep.mubr.f32.mxu0 0.0
        %v8036 = vand.u32 %v7730, 4294901760
        %v8037 = vsub.f32 %v7730, %v8036
        %8038 = vmatmul.mubr.f32.gmra.mrb[0].mxu0 %v8037
        %v8039 = vpop.f32.mrb[0].mxu0
        %v8040 = vadd.f32 %v7941, %v8039
        %v8041 = vpop.f32.mrb[0].mxu0
        %8042 = vmatprep.mubr.f32.mxu0 0.0
        %v8043 = vand.u32 %v7733, 4294901760
        %v8044 = vsub.f32 %v7733, %v8043
        %8045 = vmatmul.mubr.f32.gmra.mrb[0].mxu0 %v8044
        %v8046 = vpop.f32.mrb[0].mxu0
        %v8047 = vadd.f32 %v7947, %v8046
        %v8048 = vpop.f32.mrb[0].mxu0
        %8049 = vmatprep.mubr.f32.mxu0 0.0
        %v8050 = vand.u32 %v7736, 4294901760
        %v8051 = vsub.f32 %v7736, %v8050
        %8052 = vmatmul.mubr.f32.gmra.mrb[0].mxu0 %v8051
        %v8053 = vpop.f32.mrb[0].mxu0
        %v8054 = vadd.f32 %v7953, %v8053
        %v8055 = vpop.f32.mrb[0].mxu0
        %8056 = vdwg.mxu0
        %8057 = vmatprep.subr.mxu0 0.0
        %v8058 = vand.u32 %v7689, 4294901760
        %8059 = vmatpush1.msra.mxu0 %v8058
        %8060 = vmatprep.subr.mxu0 0.0
        %v8061 = vand.u32 %v7691, 4294901760
        %8062 = vmatpush1.msra.mxu0 %v8061
        %8063 = vmatprep.subr.mxu0 0.0
        %v8064 = vand.u32 %v7693, 4294901760
        %8065 = vmatpush1.msra.mxu0 %v8064
        %8066 = vmatprep.subr.mxu0 0.0
        %v8067 = vand.u32 %v7695, 4294901760
        %8068 = vmatpush1.msra.mxu0 %v8067
        %8069 = vmatprep.subr.mxu0 0.0
        %8070 = vmatpush1.msra.mxu0 0.0
        %8071 = vmatprep.subr.mxu0 0.0
        %8072 = vmatpush1.msra.mxu0 0.0
        %8073 = vmatprep.subr.mxu0 0.0
        %8074 = vmatpush1.msra.mxu0 0.0
        %8075 = vmatprep.subr.mxu0 0.0
        %8076 = vmatpush1.msra.mxu0 0.0
        %8077 = vmatprep.subr.mxu0 0.0
        %8078 = vmatpush1.msra.mxu0 0.0
        %8079 = vmatprep.subr.mxu0 0.0
        %8080 = vmatpush1.msra.mxu0 0.0
        %8081 = vmatprep.subr.mxu0 0.0
        %8082 = vmatpush1.msra.mxu0 0.0
        %8083 = vmatprep.subr.mxu0 0.0
        %8084 = vmatpush1.msra.mxu0 0.0
        %8085 = vmatprep.subr.mxu0 0.0
        %8086 = vmatpush1.msra.mxu0 0.0
        %8087 = vmatprep.subr.mxu0 0.0
        %8088 = vmatpush1.msra.mxu0 0.0
        %8089 = vmatprep.subr.mxu0 0.0
        %8090 = vmatpush1.msra.mxu0 0.0
        %8091 = vmatprep.subr.mxu0 0.0
        %8092 = vmatpush1.msra.mxu0 0.0
        %8093 = vmatprep.subr.mxu0 0.0
        %8094 = vmatpush1.msra.mxu0 0.0
        %8095 = vmatprep.subr.mxu0 0.0
        %8096 = vmatpush1.msra.mxu0 0.0
        %8097 = vmatprep.subr.mxu0 0.0
        %8098 = vmatpush1.msra.mxu0 0.0
        %8099 = vmatprep.subr.mxu0 0.0
        %8100 = vmatpush1.msra.mxu0 0.0
        %8101 = vmatprep.subr.mxu0 0.0
        %8102 = vmatpush1.msra.mxu0 0.0
        %8103 = vmatprep.subr.mxu0 0.0
        %8104 = vmatpush1.msra.mxu0 0.0
        %8105 = vmatprep.subr.mxu0 0.0
        %8106 = vmatpush1.msra.mxu0 0.0
        %8107 = vmatprep.subr.mxu0 0.0
        %8108 = vmatpush1.msra.mxu0 0.0
        %8109 = vmatprep.subr.mxu0 0.0
        %8110 = vmatpush1.msra.mxu0 0.0
        %8111 = vmatprep.subr.mxu0 0.0
        %8112 = vmatpush1.msra.mxu0 0.0
        %8113 = vmatprep.subr.mxu0 0.0
        %8114 = vmatpush1.msra.mxu0 0.0
        %8115 = vmatprep.subr.mxu0 0.0
        %8116 = vmatpush1.msra.mxu0 0.0
        %8117 = vmatprep.subr.mxu0 0.0
        %8118 = vmatpush1.msra.mxu0 0.0
        %8119 = vmatprep.subr.mxu0 0.0
        %8120 = vmatpush1.msra.mxu0 0.0
        %8121 = vmatprep.subr.mxu0 0.0
        %8122 = vmatpush1.msra.mxu0 0.0
        %8123 = vmatprep.subr.mxu0 0.0
        %8124 = vmatpush1.msra.mxu0 0.0
        %8125 = vmatprep.mubr.f32.mxu0 0.0
        %v8126 = vand.u32 %v7727, 4294901760
        %v8127 = vsub.f32 %v7727, %v8126
        %v8128 = vand.u32 %v8127, 4294901760
        %8129 = vmatmul.mubr.f32.gmra.mrb[0].mxu0 %v8128
        %v8130 = vpop.f32.mrb[0].mxu0
        %v8131 = vadd.f32 %v8033, %v8130
        %v8132 = vpop.f32.mrb[0].mxu0
        %8133 = vmatprep.mubr.f32.mxu0 0.0
        %v8134 = vand.u32 %v7730, 4294901760
        %v8135 = vsub.f32 %v7730, %v8134
        %v8136 = vand.u32 %v8135, 4294901760
        %8137 = vmatmul.mubr.f32.gmra.mrb[0].mxu0 %v8136
        %v8138 = vpop.f32.mrb[0].mxu0
        %v8139 = vadd.f32 %v8040, %v8138
        %v8140 = vpop.f32.mrb[0].mxu0
        %8141 = vmatprep.mubr.f32.mxu0 0.0
        %v8142 = vand.u32 %v7733, 4294901760
        %v8143 = vsub.f32 %v7733, %v8142
        %v8144 = vand.u32 %v8143, 4294901760
        %8145 = vmatmul.mubr.f32.gmra.mrb[0].mxu0 %v8144
        %v8146 = vpop.f32.mrb[0].mxu0
        %v8147 = vadd.f32 %v8047, %v8146
        %v8148 = vpop.f32.mrb[0].mxu0
        %8149 = vmatprep.mubr.f32.mxu0 0.0
        %v8150 = vand.u32 %v7736, 4294901760
        %v8151 = vsub.f32 %v7736, %v8150
        %v8152 = vand.u32 %v8151, 4294901760
        %8153 = vmatmul.mubr.f32.gmra.mrb[0].mxu0 %v8152
        %v8154 = vpop.f32.mrb[0].mxu0
        %v8155 = vadd.f32 %v8054, %v8154
        %v8156 = vpop.f32.mrb[0].mxu0
        %8157 = vdwg.mxu0
        %8158 = vmatprep.subr.mxu0 0.0
        %v8159 = vand.u32 %v7689, 4294901760
        %v8160 = vsub.f32 %v7689, %v8159
        %v8161 = vand.u32 %v8160, 4294901760
        %8162 = vmatpush1.msra.mxu0 %v8161
        %8163 = vmatprep.subr.mxu0 0.0
        %v8164 = vand.u32 %v7691, 4294901760
        %v8165 = vsub.f32 %v7691, %v8164
        %v8166 = vand.u32 %v8165, 4294901760
        %8167 = vmatpush1.msra.mxu0 %v8166
        %8168 = vmatprep.subr.mxu0 0.0
        %v8169 = vand.u32 %v7693, 4294901760
        %v8170 = vsub.f32 %v7693, %v8169
        %v8171 = vand.u32 %v8170, 4294901760
        %8172 = vmatpush1.msra.mxu0 %v8171
        %8173 = vmatprep.subr.mxu0 0.0
        %v8174 = vand.u32 %v7695, 4294901760
        %v8175 = vsub.f32 %v7695, %v8174
        %v8176 = vand.u32 %v8175, 4294901760
        %8177 = vmatpush1.msra.mxu0 %v8176
        %8178 = vmatprep.subr.mxu0 0.0
        %8179 = vmatpush1.msra.mxu0 0.0
        %8180 = vmatprep.subr.mxu0 0.0
        %8181 = vmatpush1.msra.mxu0 0.0
        %8182 = vmatprep.subr.mxu0 0.0
        %8183 = vmatpush1.msra.mxu0 0.0
        %8184 = vmatprep.subr.mxu0 0.0
        %8185 = vmatpush1.msra.mxu0 0.0
        %8186 = vmatprep.subr.mxu0 0.0
        %8187 = vmatpush1.msra.mxu0 0.0
        %8188 = vmatprep.subr.mxu0 0.0
        %8189 = vmatpush1.msra.mxu0 0.0
        %8190 = vmatprep.subr.mxu0 0.0
        %8191 = vmatpush1.msra.mxu0 0.0
        %8192 = vmatprep.subr.mxu0 0.0
        %8193 = vmatpush1.msra.mxu0 0.0
        %8194 = vmatprep.subr.mxu0 0.0
        %8195 = vmatpush1.msra.mxu0 0.0
        %8196 = vmatprep.subr.mxu0 0.0
        %8197 = vmatpush1.msra.mxu0 0.0
        %8198 = vmatprep.subr.mxu0 0.0
        %8199 = vmatpush1.msra.mxu0 0.0
        %8200 = vmatprep.subr.mxu0 0.0
        %8201 = vmatpush1.msra.mxu0 0.0
        %8202 = vmatprep.subr.mxu0 0.0
        %8203 = vmatpush1.msra.mxu0 0.0
        %8204 = vmatprep.subr.mxu0 0.0
        %8205 = vmatpush1.msra.mxu0 0.0
        %8206 = vmatprep.subr.mxu0 0.0
        %8207 = vmatpush1.msra.mxu0 0.0
        %8208 = vmatprep.subr.mxu0 0.0
        %8209 = vmatpush1.msra.mxu0 0.0
        %8210 = vmatprep.subr.mxu0 0.0
        %8211 = vmatpush1.msra.mxu0 0.0
        %8212 = vmatprep.subr.mxu0 0.0
        %8213 = vmatpush1.msra.mxu0 0.0
        %8214 = vmatprep.subr.mxu0 0.0
        %8215 = vmatpush1.msra.mxu0 0.0
        %8216 = vmatprep.subr.mxu0 0.0
        %8217 = vmatpush1.msra.mxu0 0.0
        %8218 = vmatprep.subr.mxu0 0.0
        %8219 = vmatpush1.msra.mxu0 0.0
        %8220 = vmatprep.subr.mxu0 0.0
        %8221 = vmatpush1.msra.mxu0 0.0
        %8222 = vmatprep.subr.mxu0 0.0
        %8223 = vmatpush1.msra.mxu0 0.0
        %8224 = vmatprep.subr.mxu0 0.0
        %8225 = vmatpush1.msra.mxu0 0.0
        %8226 = vmatprep.subr.mxu0 0.0
        %8227 = vmatpush1.msra.mxu0 0.0
        %8228 = vmatprep.subr.mxu0 0.0
        %8229 = vmatpush1.msra.mxu0 0.0
        %8230 = vmatprep.subr.mxu0 0.0
        %8231 = vmatpush1.msra.mxu0 0.0
        %8232 = vmatprep.subr.mxu0 0.0
        %8233 = vmatpush1.msra.mxu0 0.0
        %8234 = vmatprep.mubr.f32.mxu0 0.0
        %v8235 = vand.u32 %v7727, 4294901760
        %8236 = vmatmul.mubr.f32.gmra.mrb[0].mxu0 %v8235
        %v8237 = vpop.f32.mrb[0].mxu0
        %v8238 = vadd.f32 %v8131, %v8237
        %v8239 = vpop.f32.mrb[0].mxu0
        %8240 = vmatprep.mubr.f32.mxu0 0.0
        %v8241 = vand.u32 %v7730, 4294901760
        %8242 = vmatmul.mubr.f32.gmra.mrb[0].mxu0 %v8241
        %v8243 = vpop.f32.mrb[0].mxu0
        %v8244 = vadd.f32 %v8139, %v8243
        %v8245 = vpop.f32.mrb[0].mxu0
        %8246 = vmatprep.mubr.f32.mxu0 0.0
        %v8247 = vand.u32 %v7733, 4294901760
        %8248 = vmatmul.mubr.f32.gmra.mrb[0].mxu0 %v8247
        %v8249 = vpop.f32.mrb[0].mxu0
        %v8250 = vadd.f32 %v8147, %v8249
        %v8251 = vpop.f32.mrb[0].mxu0
        %8252 = vmatprep.mubr.f32.mxu0 0.0
        %v8253 = vand.u32 %v7736, 4294901760
        %8254 = vmatmul.mubr.f32.gmra.mrb[0].mxu0 %v8253
        %v8255 = vpop.f32.mrb[0].mxu0
        %v8256 = vadd.f32 %v8155, %v8255
        %v8257 = vpop.f32.mrb[0].mxu0
        %8258 = vdwg.mxu0
        %8259 = vmatprep.subr.mxu0 0.0
        %v8260 = vand.u32 %v7689, 4294901760
        %8261 = vmatpush1.msra.mxu0 %v8260
        %8262 = vmatprep.subr.mxu0 0.0
        %v8263 = vand.u32 %v7691, 4294901760
        %8264 = vmatpush1.msra.mxu0 %v8263
        %8265 = vmatprep.subr.mxu0 0.0
        %v8266 = vand.u32 %v7693, 4294901760
        %8267 = vmatpush1.msra.mxu0 %v8266
        %8268 = vmatprep.subr.mxu0 0.0
        %v8269 = vand.u32 %v7695, 4294901760
        %8270 = vmatpush1.msra.mxu0 %v8269
        %8271 = vmatprep.subr.mxu0 0.0
        %8272 = vmatpush1.msra.mxu0 0.0
        %8273 = vmatprep.subr.mxu0 0.0
        %8274 = vmatpush1.msra.mxu0 0.0
        %8275 = vmatprep.subr.mxu0 0.0
        %8276 = vmatpush1.msra.mxu0 0.0
        %8277 = vmatprep.subr.mxu0 0.0
        %8278 = vmatpush1.msra.mxu0 0.0
        %8279 = vmatprep.subr.mxu0 0.0
        %8280 = vmatpush1.msra.mxu0 0.0
        %8281 = vmatprep.subr.mxu0 0.0
        %8282 = vmatpush1.msra.mxu0 0.0
        %8283 = vmatprep.subr.mxu0 0.0
        %8284 = vmatpush1.msra.mxu0 0.0
        %8285 = vmatprep.subr.mxu0 0.0
        %8286 = vmatpush1.msra.mxu0 0.0
        %8287 = vmatprep.subr.mxu0 0.0
        %8288 = vmatpush1.msra.mxu0 0.0
        %8289 = vmatprep.subr.mxu0 0.0
        %8290 = vmatpush1.msra.mxu0 0.0
        %8291 = vmatprep.subr.mxu0 0.0
        %8292 = vmatpush1.msra.mxu0 0.0
        %8293 = vmatprep.subr.mxu0 0.0
        %8294 = vmatpush1.msra.mxu0 0.0
        %8295 = vmatprep.subr.mxu0 0.0
        %8296 = vmatpush1.msra.mxu0 0.0
        %8297 = vmatprep.subr.mxu0 0.0
        %8298 = vmatpush1.msra.mxu0 0.0
        %8299 = vmatprep.subr.mxu0 0.0
        %8300 = vmatpush1.msra.mxu0 0.0
        %8301 = vmatprep.subr.mxu0 0.0
        %8302 = vmatpush1.msra.mxu0 0.0
        %8303 = vmatprep.subr.mxu0 0.0
        %8304 = vmatpush1.msra.mxu0 0.0
        %8305 = vmatprep.subr.mxu0 0.0
        %8306 = vmatpush1.msra.mxu0 0.0
        %8307 = vmatprep.subr.mxu0 0.0
        %8308 = vmatpush1.msra.mxu0 0.0
        %8309 = vmatprep.subr.mxu0 0.0
        %8310 = vmatpush1.msra.mxu0 0.0
        %8311 = vmatprep.subr.mxu0 0.0
        %8312 = vmatpush1.msra.mxu0 0.0
        %8313 = vmatprep.subr.mxu0 0.0
        %8314 = vmatpush1.msra.mxu0 0.0
        %8315 = vmatprep.subr.mxu0 0.0
        %8316 = vmatpush1.msra.mxu0 0.0
        %8317 = vmatprep.subr.mxu0 0.0
        %8318 = vmatpush1.msra.mxu0 0.0
        %8319 = vmatprep.subr.mxu0 0.0
        %8320 = vmatpush1.msra.mxu0 0.0
        %8321 = vmatprep.subr.mxu0 0.0
        %8322 = vmatpush1.msra.mxu0 0.0
        %8323 = vmatprep.subr.mxu0 0.0
        %8324 = vmatpush1.msra.mxu0 0.0
        %8325 = vmatprep.subr.mxu0 0.0
        %8326 = vmatpush1.msra.mxu0 0.0
        %8327 = vmatprep.mubr.f32.mxu0 0.0
        %v8328 = vand.u32 %v7727, 4294901760
        %8329 = vmatmul.mubr.f32.gmra.mrb[0].mxu0 %v8328
        %v8330 = vpop.f32.mrb[0].mxu0
        %v8331 = vadd.f32 %v8238, %v8330
        %v8332 = vpop.f32.mrb[0].mxu0
        %8333 = vmatprep.mubr.f32.mxu0 0.0
        %v8334 = vand.u32 %v7730, 4294901760
        %8335 = vmatmul.mubr.f32.gmra.mrb[0].mxu0 %v8334
        %v8336 = vpop.f32.mrb[0].mxu0
        %v8337 = vadd.f32 %v8244, %v8336
        %v8338 = vpop.f32.mrb[0].mxu0
        %8339 = vmatprep.mubr.f32.mxu0 0.0
        %v8340 = vand.u32 %v7733, 4294901760
        %8341 = vmatmul.mubr.f32.gmra.mrb[0].mxu0 %v8340
        %v8342 = vpop.f32.mrb[0].mxu0
        %v8343 = vadd.f32 %v8250, %v8342
        %v8344 = vpop.f32.mrb[0].mxu0
        %8345 = vmatprep.mubr.f32.mxu0 0.0
        %v8346 = vand.u32 %v7736, 4294901760
        %8347 = vmatmul.mubr.f32.gmra.mrb[0].mxu0 %v8346
        %v8348 = vpop.f32.mrb[0].mxu0
        %v8349 = vadd.f32 %v8256, %v8348
        %v8350 = vpop.f32.mrb[0].mxu0
        %8351 = vdwg.mxu0
        %v8352 = vxor.u32 %v8331, 2147483648
        %v8353 = vxor.u32 %v8337, 2147483648
        %v8354 = vxor.u32 %v8343, 2147483648
        %v8355 = vxor.u32 %v8349, 2147483648
        %v8356 = vmul.f32 %v8352, 1.442695
        %v8357 = vpow.pop %v8356
        %v8358 = vmul.f32 %v8353, 1.442695
        %v8359 = vpow.pop %v8358
        %v8360 = vmul.f32 %v8354, 1.442695
        %v8361 = vpow.pop %v8360
        %v8362 = vmul.f32 %v8355, 1.442695
        %v8363 = vpow.pop %v8362
        %v8364 = vadd.f32 %v8357, 1.0
        %v8365 = vadd.f32 %v8359, 1.0
        %v8366 = vadd.f32 %v8361, 1.0
        %v8367 = vadd.f32 %v8363, 1.0
        %v8368 = vrcp.pop %v8364
        %v8369 = vmul.f32 1.0, %v8368
        %v8370 = vrcp.pop %v8365
        %v8371 = vmul.f32 1.0, %v8370
        %v8372 = vrcp.pop %v8366
        %v8373 = vmul.f32 1.0, %v8372
        %v8374 = vrcp.pop %v8367
        %v8375 = vmul.f32 1.0, %v8374
        %s8376 = scalar_lea.vmem %s11, 64
        %v8377 = vld [vmem:[%s8376] sm:$0xff]
        %v8378 = vld [vmem:[%s8376 + $0x8] sm:$0xff]
        %v8379 = vld [vmem:[%s8376 + $0x10] sm:$0xff]
        %v8380 = vld [vmem:[%s8376 + $0x18] sm:$0xff]
        %s8381 = scalar_lea.vmem %s12, 64
        %v8382 = vld [vmem:[%s8381] sm:$0xff]
        %v8383 = vld [vmem:[%s8381 + $0x8] sm:$0xff]
        %v8384 = vld [vmem:[%s8381 + $0x10] sm:$0xff]
        %v8385 = vld [vmem:[%s8381 + $0x18] sm:$0xff]
        %8387 = vset.pattern.permute.xlu0 0
        %8388 = vperm.xlu0 %8387, %v8382
        %v8389 = vpop.permute.xlu0 %8388
        %8392 = vset.pattern.permute.xlu0 0
        %8393 = vperm.xlu0 %8392, %v8383
        %v8394 = vpop.permute.xlu0 %8393
        %8397 = vset.pattern.permute.xlu0 0
        %8398 = vperm.xlu0 %8397, %v8384
        %v8399 = vpop.permute.xlu0 %8398
        %8402 = vset.pattern.permute.xlu0 0
        %8403 = vperm.xlu0 %8402, %v8385
        %v8404 = vpop.permute.xlu0 %8403
        %v8407 = vsel %vm3701, %v8377, 0
        %v8410 = vsel %vm3701, %v8378, 0
        %v8413 = vsel %vm3701, %v8379, 0
        %v8416 = vsel %vm3701, %v8380, 0
        %8418 = vmatprep.subr.mxu0 0.0
        %v8419 = vand.u32 %v8369, 4294901760
        %8420 = vmatpush1.msra.mxu0 %v8419
        %8421 = vmatprep.subr.mxu0 0.0
        %v8422 = vand.u32 %v8371, 4294901760
        %8423 = vmatpush1.msra.mxu0 %v8422
        %8424 = vmatprep.subr.mxu0 0.0
        %v8425 = vand.u32 %v8373, 4294901760
        %8426 = vmatpush1.msra.mxu0 %v8425
        %8427 = vmatprep.subr.mxu0 0.0
        %v8428 = vand.u32 %v8375, 4294901760
        %8429 = vmatpush1.msra.mxu0 %v8428
        %8430 = vmatprep.subr.mxu0 0.0
        %8431 = vmatpush1.msra.mxu0 0.0
        %8432 = vmatprep.subr.mxu0 0.0
        %8433 = vmatpush1.msra.mxu0 0.0
        %8434 = vmatprep.subr.mxu0 0.0
        %8435 = vmatpush1.msra.mxu0 0.0
        %8436 = vmatprep.subr.mxu0 0.0
        %8437 = vmatpush1.msra.mxu0 0.0
        %8438 = vmatprep.subr.mxu0 0.0
        %8439 = vmatpush1.msra.mxu0 0.0
        %8440 = vmatprep.subr.mxu0 0.0
        %8441 = vmatpush1.msra.mxu0 0.0
        %8442 = vmatprep.subr.mxu0 0.0
        %8443 = vmatpush1.msra.mxu0 0.0
        %8444 = vmatprep.subr.mxu0 0.0
        %8445 = vmatpush1.msra.mxu0 0.0
        %8446 = vmatprep.subr.mxu0 0.0
        %8447 = vmatpush1.msra.mxu0 0.0
        %8448 = vmatprep.subr.mxu0 0.0
        %8449 = vmatpush1.msra.mxu0 0.0
        %8450 = vmatprep.subr.mxu0 0.0
        %8451 = vmatpush1.msra.mxu0 0.0
        %8452 = vmatprep.subr.mxu0 0.0
        %8453 = vmatpush1.msra.mxu0 0.0
        %8454 = vmatprep.subr.mxu0 0.0
        %8455 = vmatpush1.msra.mxu0 0.0
        %8456 = vmatprep.subr.mxu0 0.0
        %8457 = vmatpush1.msra.mxu0 0.0
        %8458 = vmatprep.subr.mxu0 0.0
        %8459 = vmatpush1.msra.mxu0 0.0
        %8460 = vmatprep.subr.mxu0 0.0
        %8461 = vmatpush1.msra.mxu0 0.0
        %8462 = vmatprep.subr.mxu0 0.0
        %8463 = vmatpush1.msra.mxu0 0.0
        %8464 = vmatprep.subr.mxu0 0.0
        %8465 = vmatpush1.msra.mxu0 0.0
        %8466 = vmatprep.subr.mxu0 0.0
        %8467 = vmatpush1.msra.mxu0 0.0
        %8468 = vmatprep.subr.mxu0 0.0
        %8469 = vmatpush1.msra.mxu0 0.0
        %8470 = vmatprep.subr.mxu0 0.0
        %8471 = vmatpush1.msra.mxu0 0.0
        %8472 = vmatprep.subr.mxu0 0.0
        %8473 = vmatpush1.msra.mxu0 0.0
        %8474 = vmatprep.subr.mxu0 0.0
        %8475 = vmatpush1.msra.mxu0 0.0
        %8476 = vmatprep.subr.mxu0 0.0
        %8477 = vmatpush1.msra.mxu0 0.0
        %8478 = vmatprep.subr.mxu0 0.0
        %8479 = vmatpush1.msra.mxu0 0.0
        %8480 = vmatprep.subr.mxu0 0.0
        %8481 = vmatpush1.msra.mxu0 0.0
        %8482 = vmatprep.subr.mxu0 0.0
        %8483 = vmatpush1.msra.mxu0 0.0
        %8484 = vmatprep.subr.mxu0 0.0
        %8485 = vmatpush1.msra.mxu0 0.0
        %8486 = vmatprep.mubr.f32.mxu0 0.0
        %v8487 = vand.u32 %v8407, 4294901760
        %v8488 = vsub.f32 %v8407, %v8487
        %v8489 = vand.u32 %v8488, 4294901760
        %v8490 = vsub.f32 %v8488, %v8489
        %v8491 = vand.u32 %v8490, 4294901760
        %8492 = vmatmul.mubr.f32.gmra.mrb[0].mxu0 %v8491
        %v8493 = vpop.f32.mrb[0].mxu0
        %v8494 = vadd.f32 %v8389, %v8493
        %v8495 = vpop.f32.mrb[0].mxu0
        %8496 = vmatprep.mubr.f32.mxu0 0.0
        %v8497 = vand.u32 %v8410, 4294901760
        %v8498 = vsub.f32 %v8410, %v8497
        %v8499 = vand.u32 %v8498, 4294901760
        %v8500 = vsub.f32 %v8498, %v8499
        %v8501 = vand.u32 %v8500, 4294901760
        %8502 = vmatmul.mubr.f32.gmra.mrb[0].mxu0 %v8501
        %v8503 = vpop.f32.mrb[0].mxu0
        %v8504 = vadd.f32 %v8394, %v8503
        %v8505 = vpop.f32.mrb[0].mxu0
        %8506 = vmatprep.mubr.f32.mxu0 0.0
        %v8507 = vand.u32 %v8413, 4294901760
        %v8508 = vsub.f32 %v8413, %v8507
        %v8509 = vand.u32 %v8508, 4294901760
        %v8510 = vsub.f32 %v8508, %v8509
        %v8511 = vand.u32 %v8510, 4294901760
        %8512 = vmatmul.mubr.f32.gmra.mrb[0].mxu0 %v8511
        %v8513 = vpop.f32.mrb[0].mxu0
        %v8514 = vadd.f32 %v8399, %v8513
        %v8515 = vpop.f32.mrb[0].mxu0
        %8516 = vmatprep.mubr.f32.mxu0 0.0
        %v8517 = vand.u32 %v8416, 4294901760
        %v8518 = vsub.f32 %v8416, %v8517
        %v8519 = vand.u32 %v8518, 4294901760
        %v8520 = vsub.f32 %v8518, %v8519
        %v8521 = vand.u32 %v8520, 4294901760
        %8522 = vmatmul.mubr.f32.gmra.mrb[0].mxu0 %v8521
        %v8523 = vpop.f32.mrb[0].mxu0
        %v8524 = vadd.f32 %v8404, %v8523
        %v8525 = vpop.f32.mrb[0].mxu0
        %8526 = vdwg.mxu0
        %8527 = vmatprep.subr.mxu0 0.0
        %v8528 = vand.u32 %v8369, 4294901760
        %v8529 = vsub.f32 %v8369, %v8528
        %v8530 = vand.u32 %v8529, 4294901760
        %v8531 = vsub.f32 %v8529, %v8530
        %v8532 = vand.u32 %v8531, 4294901760
        %8533 = vmatpush1.msra.mxu0 %v8532
        %8534 = vmatprep.subr.mxu0 0.0
        %v8535 = vand.u32 %v8371, 4294901760
        %v8536 = vsub.f32 %v8371, %v8535
        %v8537 = vand.u32 %v8536, 4294901760
        %v8538 = vsub.f32 %v8536, %v8537
        %v8539 = vand.u32 %v8538, 4294901760
        %8540 = vmatpush1.msra.mxu0 %v8539
        %8541 = vmatprep.subr.mxu0 0.0
        %v8542 = vand.u32 %v8373, 4294901760
        %v8543 = vsub.f32 %v8373, %v8542
        %v8544 = vand.u32 %v8543, 4294901760
        %v8545 = vsub.f32 %v8543, %v8544
        %v8546 = vand.u32 %v8545, 4294901760
        %8547 = vmatpush1.msra.mxu0 %v8546
        %8548 = vmatprep.subr.mxu0 0.0
        %v8549 = vand.u32 %v8375, 4294901760
        %v8550 = vsub.f32 %v8375, %v8549
        %v8551 = vand.u32 %v8550, 4294901760
        %v8552 = vsub.f32 %v8550, %v8551
        %v8553 = vand.u32 %v8552, 4294901760
        %8554 = vmatpush1.msra.mxu0 %v8553
        %8555 = vmatprep.subr.mxu0 0.0
        %8556 = vmatpush1.msra.mxu0 0.0
        %8557 = vmatprep.subr.mxu0 0.0
        %8558 = vmatpush1.msra.mxu0 0.0
        %8559 = vmatprep.subr.mxu0 0.0
        %8560 = vmatpush1.msra.mxu0 0.0
        %8561 = vmatprep.subr.mxu0 0.0
        %8562 = vmatpush1.msra.mxu0 0.0
        %8563 = vmatprep.subr.mxu0 0.0
        %8564 = vmatpush1.msra.mxu0 0.0
        %8565 = vmatprep.subr.mxu0 0.0
        %8566 = vmatpush1.msra.mxu0 0.0
        %8567 = vmatprep.subr.mxu0 0.0
        %8568 = vmatpush1.msra.mxu0 0.0
        %8569 = vmatprep.subr.mxu0 0.0
        %8570 = vmatpush1.msra.mxu0 0.0
        %8571 = vmatprep.subr.mxu0 0.0
        %8572 = vmatpush1.msra.mxu0 0.0
        %8573 = vmatprep.subr.mxu0 0.0
        %8574 = vmatpush1.msra.mxu0 0.0
        %8575 = vmatprep.subr.mxu0 0.0
        %8576 = vmatpush1.msra.mxu0 0.0
        %8577 = vmatprep.subr.mxu0 0.0
        %8578 = vmatpush1.msra.mxu0 0.0
        %8579 = vmatprep.subr.mxu0 0.0
        %8580 = vmatpush1.msra.mxu0 0.0
        %8581 = vmatprep.subr.mxu0 0.0
        %8582 = vmatpush1.msra.mxu0 0.0
        %8583 = vmatprep.subr.mxu0 0.0
        %8584 = vmatpush1.msra.mxu0 0.0
        %8585 = vmatprep.subr.mxu0 0.0
        %8586 = vmatpush1.msra.mxu0 0.0
        %8587 = vmatprep.subr.mxu0 0.0
        %8588 = vmatpush1.msra.mxu0 0.0
        %8589 = vmatprep.subr.mxu0 0.0
        %8590 = vmatpush1.msra.mxu0 0.0
        %8591 = vmatprep.subr.mxu0 0.0
        %8592 = vmatpush1.msra.mxu0 0.0
        %8593 = vmatprep.subr.mxu0 0.0
        %8594 = vmatpush1.msra.mxu0 0.0
        %8595 = vmatprep.subr.mxu0 0.0
        %8596 = vmatpush1.msra.mxu0 0.0
        %8597 = vmatprep.subr.mxu0 0.0
        %8598 = vmatpush1.msra.mxu0 0.0
        %8599 = vmatprep.subr.mxu0 0.0
        %8600 = vmatpush1.msra.mxu0 0.0
        %8601 = vmatprep.subr.mxu0 0.0
        %8602 = vmatpush1.msra.mxu0 0.0
        %8603 = vmatprep.subr.mxu0 0.0
        %8604 = vmatpush1.msra.mxu0 0.0
        %8605 = vmatprep.subr.mxu0 0.0
        %8606 = vmatpush1.msra.mxu0 0.0
        %8607 = vmatprep.subr.mxu0 0.0
        %8608 = vmatpush1.msra.mxu0 0.0
        %8609 = vmatprep.subr.mxu0 0.0
        %8610 = vmatpush1.msra.mxu0 0.0
        %8611 = vmatprep.mubr.f32.mxu0 0.0
        %v8612 = vand.u32 %v8407, 4294901760
        %8613 = vmatmul.mubr.f32.gmra.mrb[0].mxu0 %v8612
        %v8614 = vpop.f32.mrb[0].mxu0
        %v8615 = vadd.f32 %v8494, %v8614
        %v8616 = vpop.f32.mrb[0].mxu0
        %8617 = vmatprep.mubr.f32.mxu0 0.0
        %v8618 = vand.u32 %v8410, 4294901760
        %8619 = vmatmul.mubr.f32.gmra.mrb[0].mxu0 %v8618
        %v8620 = vpop.f32.mrb[0].mxu0
        %v8621 = vadd.f32 %v8504, %v8620
        %v8622 = vpop.f32.mrb[0].mxu0
        %8623 = vmatprep.mubr.f32.mxu0 0.0
        %v8624 = vand.u32 %v8413, 4294901760
        %8625 = vmatmul.mubr.f32.gmra.mrb[0].mxu0 %v8624
        %v8626 = vpop.f32.mrb[0].mxu0
        %v8627 = vadd.f32 %v8514, %v8626
        %v8628 = vpop.f32.mrb[0].mxu0
        %8629 = vmatprep.mubr.f32.mxu0 0.0
        %v8630 = vand.u32 %v8416, 4294901760
        %8631 = vmatmul.mubr.f32.gmra.mrb[0].mxu0 %v8630
        %v8632 = vpop.f32.mrb[0].mxu0
        %v8633 = vadd.f32 %v8524, %v8632
        %v8634 = vpop.f32.mrb[0].mxu0
        %8635 = vdwg.mxu0
        %8636 = vmatprep.subr.mxu0 0.0
        %v8637 = vand.u32 %v8369, 4294901760
        %v8638 = vsub.f32 %v8369, %v8637
        %8639 = vmatpush1.msra.mxu0 %v8638
        %8640 = vmatprep.subr.mxu0 0.0
        %v8641 = vand.u32 %v8371, 4294901760
        %v8642 = vsub.f32 %v8371, %v8641
        %8643 = vmatpush1.msra.mxu0 %v8642
        %8644 = vmatprep.subr.mxu0 0.0
        %v8645 = vand.u32 %v8373, 4294901760
        %v8646 = vsub.f32 %v8373, %v8645
        %8647 = vmatpush1.msra.mxu0 %v8646
        %8648 = vmatprep.subr.mxu0 0.0
        %v8649 = vand.u32 %v8375, 4294901760
        %v8650 = vsub.f32 %v8375, %v8649
        %8651 = vmatpush1.msra.mxu0 %v8650
        %8652 = vmatprep.subr.mxu0 0.0
        %8653 = vmatpush1.msra.mxu0 0.0
        %8654 = vmatprep.subr.mxu0 0.0
        %8655 = vmatpush1.msra.mxu0 0.0
        %8656 = vmatprep.subr.mxu0 0.0
        %8657 = vmatpush1.msra.mxu0 0.0
        %8658 = vmatprep.subr.mxu0 0.0
        %8659 = vmatpush1.msra.mxu0 0.0
        %8660 = vmatprep.subr.mxu0 0.0
        %8661 = vmatpush1.msra.mxu0 0.0
        %8662 = vmatprep.subr.mxu0 0.0
        %8663 = vmatpush1.msra.mxu0 0.0
        %8664 = vmatprep.subr.mxu0 0.0
        %8665 = vmatpush1.msra.mxu0 0.0
        %8666 = vmatprep.subr.mxu0 0.0
        %8667 = vmatpush1.msra.mxu0 0.0
        %8668 = vmatprep.subr.mxu0 0.0
        %8669 = vmatpush1.msra.mxu0 0.0
        %8670 = vmatprep.subr.mxu0 0.0
        %8671 = vmatpush1.msra.mxu0 0.0
        %8672 = vmatprep.subr.mxu0 0.0
        %8673 = vmatpush1.msra.mxu0 0.0
        %8674 = vmatprep.subr.mxu0 0.0
        %8675 = vmatpush1.msra.mxu0 0.0
        %8676 = vmatprep.subr.mxu0 0.0
        %8677 = vmatpush1.msra.mxu0 0.0
        %8678 = vmatprep.subr.mxu0 0.0
        %8679 = vmatpush1.msra.mxu0 0.0
        %8680 = vmatprep.subr.mxu0 0.0
        %8681 = vmatpush1.msra.mxu0 0.0
        %8682 = vmatprep.subr.mxu0 0.0
        %8683 = vmatpush1.msra.mxu0 0.0
        %8684 = vmatprep.subr.mxu0 0.0
        %8685 = vmatpush1.msra.mxu0 0.0
        %8686 = vmatprep.subr.mxu0 0.0
        %8687 = vmatpush1.msra.mxu0 0.0
        %8688 = vmatprep.subr.mxu0 0.0
        %8689 = vmatpush1.msra.mxu0 0.0
        %8690 = vmatprep.subr.mxu0 0.0
        %8691 = vmatpush1.msra.mxu0 0.0
        %8692 = vmatprep.subr.mxu0 0.0
        %8693 = vmatpush1.msra.mxu0 0.0
        %8694 = vmatprep.subr.mxu0 0.0
        %8695 = vmatpush1.msra.mxu0 0.0
        %8696 = vmatprep.subr.mxu0 0.0
        %8697 = vmatpush1.msra.mxu0 0.0
        %8698 = vmatprep.subr.mxu0 0.0
        %8699 = vmatpush1.msra.mxu0 0.0
        %8700 = vmatprep.subr.mxu0 0.0
        %8701 = vmatpush1.msra.mxu0 0.0
        %8702 = vmatprep.subr.mxu0 0.0
        %8703 = vmatpush1.msra.mxu0 0.0
        %8704 = vmatprep.subr.mxu0 0.0
        %8705 = vmatpush1.msra.mxu0 0.0
        %8706 = vmatprep.subr.mxu0 0.0
        %8707 = vmatpush1.msra.mxu0 0.0
        %8708 = vmatprep.mubr.f32.mxu0 0.0
        %v8709 = vand.u32 %v8407, 4294901760
        %v8710 = vsub.f32 %v8407, %v8709
        %8711 = vmatmul.mubr.f32.gmra.mrb[0].mxu0 %v8710
        %v8712 = vpop.f32.mrb[0].mxu0
        %v8713 = vadd.f32 %v8615, %v8712
        %v8714 = vpop.f32.mrb[0].mxu0
        %8715 = vmatprep.mubr.f32.mxu0 0.0
        %v8716 = vand.u32 %v8410, 4294901760
        %v8717 = vsub.f32 %v8410, %v8716
        %8718 = vmatmul.mubr.f32.gmra.mrb[0].mxu0 %v8717
        %v8719 = vpop.f32.mrb[0].mxu0
        %v8720 = vadd.f32 %v8621, %v8719
        %v8721 = vpop.f32.mrb[0].mxu0
        %8722 = vmatprep.mubr.f32.mxu0 0.0
        %v8723 = vand.u32 %v8413, 4294901760
        %v8724 = vsub.f32 %v8413, %v8723
        %8725 = vmatmul.mubr.f32.gmra.mrb[0].mxu0 %v8724
        %v8726 = vpop.f32.mrb[0].mxu0
        %v8727 = vadd.f32 %v8627, %v8726
        %v8728 = vpop.f32.mrb[0].mxu0
        %8729 = vmatprep.mubr.f32.mxu0 0.0
        %v8730 = vand.u32 %v8416, 4294901760
        %v8731 = vsub.f32 %v8416, %v8730
        %8732 = vmatmul.mubr.f32.gmra.mrb[0].mxu0 %v8731
        %v8733 = vpop.f32.mrb[0].mxu0
        %v8734 = vadd.f32 %v8633, %v8733
        %v8735 = vpop.f32.mrb[0].mxu0
        %8736 = vdwg.mxu0
        %8737 = vmatprep.subr.mxu0 0.0
        %v8738 = vand.u32 %v8369, 4294901760
        %8739 = vmatpush1.msra.mxu0 %v8738
        %8740 = vmatprep.subr.mxu0 0.0
        %v8741 = vand.u32 %v8371, 4294901760
        %8742 = vmatpush1.msra.mxu0 %v8741
        %8743 = vmatprep.subr.mxu0 0.0
        %v8744 = vand.u32 %v8373, 4294901760
        %8745 = vmatpush1.msra.mxu0 %v8744
        %8746 = vmatprep.subr.mxu0 0.0
        %v8747 = vand.u32 %v8375, 4294901760
        %8748 = vmatpush1.msra.mxu0 %v8747
        %8749 = vmatprep.subr.mxu0 0.0
        %8750 = vmatpush1.msra.mxu0 0.0
        %8751 = vmatprep.subr.mxu0 0.0
        %8752 = vmatpush1.msra.mxu0 0.0
        %8753 = vmatprep.subr.mxu0 0.0
        %8754 = vmatpush1.msra.mxu0 0.0
        %8755 = vmatprep.subr.mxu0 0.0
        %8756 = vmatpush1.msra.mxu0 0.0
        %8757 = vmatprep.subr.mxu0 0.0
        %8758 = vmatpush1.msra.mxu0 0.0
        %8759 = vmatprep.subr.mxu0 0.0
        %8760 = vmatpush1.msra.mxu0 0.0
        %8761 = vmatprep.subr.mxu0 0.0
        %8762 = vmatpush1.msra.mxu0 0.0
        %8763 = vmatprep.subr.mxu0 0.0
        %8764 = vmatpush1.msra.mxu0 0.0
        %8765 = vmatprep.subr.mxu0 0.0
        %8766 = vmatpush1.msra.mxu0 0.0
        %8767 = vmatprep.subr.mxu0 0.0
        %8768 = vmatpush1.msra.mxu0 0.0
        %8769 = vmatprep.subr.mxu0 0.0
        %8770 = vmatpush1.msra.mxu0 0.0
        %8771 = vmatprep.subr.mxu0 0.0
        %8772 = vmatpush1.msra.mxu0 0.0
        %8773 = vmatprep.subr.mxu0 0.0
        %8774 = vmatpush1.msra.mxu0 0.0
        %8775 = vmatprep.subr.mxu0 0.0
        %8776 = vmatpush1.msra.mxu0 0.0
        %8777 = vmatprep.subr.mxu0 0.0
        %8778 = vmatpush1.msra.mxu0 0.0
        %8779 = vmatprep.subr.mxu0 0.0
        %8780 = vmatpush1.msra.mxu0 0.0
        %8781 = vmatprep.subr.mxu0 0.0
        %8782 = vmatpush1.msra.mxu0 0.0
        %8783 = vmatprep.subr.mxu0 0.0
        %8784 = vmatpush1.msra.mxu0 0.0
        %8785 = vmatprep.subr.mxu0 0.0
        %8786 = vmatpush1.msra.mxu0 0.0
        %8787 = vmatprep.subr.mxu0 0.0
        %8788 = vmatpush1.msra.mxu0 0.0
        %8789 = vmatprep.subr.mxu0 0.0
        %8790 = vmatpush1.msra.mxu0 0.0
        %8791 = vmatprep.subr.mxu0 0.0
        %8792 = vmatpush1.msra.mxu0 0.0
        %8793 = vmatprep.subr.mxu0 0.0
        %8794 = vmatpush1.msra.mxu0 0.0
        %8795 = vmatprep.subr.mxu0 0.0
        %8796 = vmatpush1.msra.mxu0 0.0
        %8797 = vmatprep.subr.mxu0 0.0
        %8798 = vmatpush1.msra.mxu0 0.0
        %8799 = vmatprep.subr.mxu0 0.0
        %8800 = vmatpush1.msra.mxu0 0.0
        %8801 = vmatprep.subr.mxu0 0.0
        %8802 = vmatpush1.msra.mxu0 0.0
        %8803 = vmatprep.subr.mxu0 0.0
        %8804 = vmatpush1.msra.mxu0 0.0
        %8805 = vmatprep.mubr.f32.mxu0 0.0
        %v8806 = vand.u32 %v8407, 4294901760
        %v8807 = vsub.f32 %v8407, %v8806
        %v8808 = vand.u32 %v8807, 4294901760
        %8809 = vmatmul.mubr.f32.gmra.mrb[0].mxu0 %v8808
        %v8810 = vpop.f32.mrb[0].mxu0
        %v8811 = vadd.f32 %v8713, %v8810
        %v8812 = vpop.f32.mrb[0].mxu0
        %8813 = vmatprep.mubr.f32.mxu0 0.0
        %v8814 = vand.u32 %v8410, 4294901760
        %v8815 = vsub.f32 %v8410, %v8814
        %v8816 = vand.u32 %v8815, 4294901760
        %8817 = vmatmul.mubr.f32.gmra.mrb[0].mxu0 %v8816
        %v8818 = vpop.f32.mrb[0].mxu0
        %v8819 = vadd.f32 %v8720, %v8818
        %v8820 = vpop.f32.mrb[0].mxu0
        %8821 = vmatprep.mubr.f32.mxu0 0.0
        %v8822 = vand.u32 %v8413, 4294901760
        %v8823 = vsub.f32 %v8413, %v8822
        %v8824 = vand.u32 %v8823, 4294901760
        %8825 = vmatmul.mubr.f32.gmra.mrb[0].mxu0 %v8824
        %v8826 = vpop.f32.mrb[0].mxu0
        %v8827 = vadd.f32 %v8727, %v8826
        %v8828 = vpop.f32.mrb[0].mxu0
        %8829 = vmatprep.mubr.f32.mxu0 0.0
        %v8830 = vand.u32 %v8416, 4294901760
        %v8831 = vsub.f32 %v8416, %v8830
        %v8832 = vand.u32 %v8831, 4294901760
        %8833 = vmatmul.mubr.f32.gmra.mrb[0].mxu0 %v8832
        %v8834 = vpop.f32.mrb[0].mxu0
        %v8835 = vadd.f32 %v8734, %v8834
        %v8836 = vpop.f32.mrb[0].mxu0
        %8837 = vdwg.mxu0
        %8838 = vmatprep.subr.mxu0 0.0
        %v8839 = vand.u32 %v8369, 4294901760
        %v8840 = vsub.f32 %v8369, %v8839
        %v8841 = vand.u32 %v8840, 4294901760
        %8842 = vmatpush1.msra.mxu0 %v8841
        %8843 = vmatprep.subr.mxu0 0.0
        %v8844 = vand.u32 %v8371, 4294901760
        %v8845 = vsub.f32 %v8371, %v8844
        %v8846 = vand.u32 %v8845, 4294901760
        %8847 = vmatpush1.msra.mxu0 %v8846
        %8848 = vmatprep.subr.mxu0 0.0
        %v8849 = vand.u32 %v8373, 4294901760
        %v8850 = vsub.f32 %v8373, %v8849
        %v8851 = vand.u32 %v8850, 4294901760
        %8852 = vmatpush1.msra.mxu0 %v8851
        %8853 = vmatprep.subr.mxu0 0.0
        %v8854 = vand.u32 %v8375, 4294901760
        %v8855 = vsub.f32 %v8375, %v8854
        %v8856 = vand.u32 %v8855, 4294901760
        %8857 = vmatpush1.msra.mxu0 %v8856
        %8858 = vmatprep.subr.mxu0 0.0
        %8859 = vmatpush1.msra.mxu0 0.0
        %8860 = vmatprep.subr.mxu0 0.0
        %8861 = vmatpush1.msra.mxu0 0.0
        %8862 = vmatprep.subr.mxu0 0.0
        %8863 = vmatpush1.msra.mxu0 0.0
        %8864 = vmatprep.subr.mxu0 0.0
        %8865 = vmatpush1.msra.mxu0 0.0
        %8866 = vmatprep.subr.mxu0 0.0
        %8867 = vmatpush1.msra.mxu0 0.0
        %8868 = vmatprep.subr.mxu0 0.0
        %8869 = vmatpush1.msra.mxu0 0.0
        %8870 = vmatprep.subr.mxu0 0.0
        %8871 = vmatpush1.msra.mxu0 0.0
        %8872 = vmatprep.subr.mxu0 0.0
        %8873 = vmatpush1.msra.mxu0 0.0
        %8874 = vmatprep.subr.mxu0 0.0
        %8875 = vmatpush1.msra.mxu0 0.0
        %8876 = vmatprep.subr.mxu0 0.0
        %8877 = vmatpush1.msra.mxu0 0.0
        %8878 = vmatprep.subr.mxu0 0.0
        %8879 = vmatpush1.msra.mxu0 0.0
        %8880 = vmatprep.subr.mxu0 0.0
        %8881 = vmatpush1.msra.mxu0 0.0
        %8882 = vmatprep.subr.mxu0 0.0
        %8883 = vmatpush1.msra.mxu0 0.0
        %8884 = vmatprep.subr.mxu0 0.0
        %8885 = vmatpush1.msra.mxu0 0.0
        %8886 = vmatprep.subr.mxu0 0.0
        %8887 = vmatpush1.msra.mxu0 0.0
        %8888 = vmatprep.subr.mxu0 0.0
        %8889 = vmatpush1.msra.mxu0 0.0
        %8890 = vmatprep.subr.mxu0 0.0
        %8891 = vmatpush1.msra.mxu0 0.0
        %8892 = vmatprep.subr.mxu0 0.0
        %8893 = vmatpush1.msra.mxu0 0.0
        %8894 = vmatprep.subr.mxu0 0.0
        %8895 = vmatpush1.msra.mxu0 0.0
        %8896 = vmatprep.subr.mxu0 0.0
        %8897 = vmatpush1.msra.mxu0 0.0
        %8898 = vmatprep.subr.mxu0 0.0
        %8899 = vmatpush1.msra.mxu0 0.0
        %8900 = vmatprep.subr.mxu0 0.0
        %8901 = vmatpush1.msra.mxu0 0.0
        %8902 = vmatprep.subr.mxu0 0.0
        %8903 = vmatpush1.msra.mxu0 0.0
        %8904 = vmatprep.subr.mxu0 0.0
        %8905 = vmatpush1.msra.mxu0 0.0
        %8906 = vmatprep.subr.mxu0 0.0
        %8907 = vmatpush1.msra.mxu0 0.0
        %8908 = vmatprep.subr.mxu0 0.0
        %8909 = vmatpush1.msra.mxu0 0.0
        %8910 = vmatprep.subr.mxu0 0.0
        %8911 = vmatpush1.msra.mxu0 0.0
        %8912 = vmatprep.subr.mxu0 0.0
        %8913 = vmatpush1.msra.mxu0 0.0
        %8914 = vmatprep.mubr.f32.mxu0 0.0
        %v8915 = vand.u32 %v8407, 4294901760
        %8916 = vmatmul.mubr.f32.gmra.mrb[0].mxu0 %v8915
        %v8917 = vpop.f32.mrb[0].mxu0
        %v8918 = vadd.f32 %v8811, %v8917
        %v8919 = vpop.f32.mrb[0].mxu0
        %8920 = vmatprep.mubr.f32.mxu0 0.0
        %v8921 = vand.u32 %v8410, 4294901760
        %8922 = vmatmul.mubr.f32.gmra.mrb[0].mxu0 %v8921
        %v8923 = vpop.f32.mrb[0].mxu0
        %v8924 = vadd.f32 %v8819, %v8923
        %v8925 = vpop.f32.mrb[0].mxu0
        %8926 = vmatprep.mubr.f32.mxu0 0.0
        %v8927 = vand.u32 %v8413, 4294901760
        %8928 = vmatmul.mubr.f32.gmra.mrb[0].mxu0 %v8927
        %v8929 = vpop.f32.mrb[0].mxu0
        %v8930 = vadd.f32 %v8827, %v8929
        %v8931 = vpop.f32.mrb[0].mxu0
        %8932 = vmatprep.mubr.f32.mxu0 0.0
        %v8933 = vand.u32 %v8416, 4294901760
        %8934 = vmatmul.mubr.f32.gmra.mrb[0].mxu0 %v8933
        %v8935 = vpop.f32.mrb[0].mxu0
        %v8936 = vadd.f32 %v8835, %v8935
        %v8937 = vpop.f32.mrb[0].mxu0
        %8938 = vdwg.mxu0
        %8939 = vmatprep.subr.mxu0 0.0
        %v8940 = vand.u32 %v8369, 4294901760
        %8941 = vmatpush1.msra.mxu0 %v8940
        %8942 = vmatprep.subr.mxu0 0.0
        %v8943 = vand.u32 %v8371, 4294901760
        %8944 = vmatpush1.msra.mxu0 %v8943
        %8945 = vmatprep.subr.mxu0 0.0
        %v8946 = vand.u32 %v8373, 4294901760
        %8947 = vmatpush1.msra.mxu0 %v8946
        %8948 = vmatprep.subr.mxu0 0.0
        %v8949 = vand.u32 %v8375, 4294901760
        %8950 = vmatpush1.msra.mxu0 %v8949
        %8951 = vmatprep.subr.mxu0 0.0
        %8952 = vmatpush1.msra.mxu0 0.0
        %8953 = vmatprep.subr.mxu0 0.0
        %8954 = vmatpush1.msra.mxu0 0.0
        %8955 = vmatprep.subr.mxu0 0.0
        %8956 = vmatpush1.msra.mxu0 0.0
        %8957 = vmatprep.subr.mxu0 0.0
        %8958 = vmatpush1.msra.mxu0 0.0
        %8959 = vmatprep.subr.mxu0 0.0
        %8960 = vmatpush1.msra.mxu0 0.0
        %8961 = vmatprep.subr.mxu0 0.0
        %8962 = vmatpush1.msra.mxu0 0.0
        %8963 = vmatprep.subr.mxu0 0.0
        %8964 = vmatpush1.msra.mxu0 0.0
        %8965 = vmatprep.subr.mxu0 0.0
        %8966 = vmatpush1.msra.mxu0 0.0
        %8967 = vmatprep.subr.mxu0 0.0
        %8968 = vmatpush1.msra.mxu0 0.0
        %8969 = vmatprep.subr.mxu0 0.0
        %8970 = vmatpush1.msra.mxu0 0.0
        %8971 = vmatprep.subr.mxu0 0.0
        %8972 = vmatpush1.msra.mxu0 0.0
        %8973 = vmatprep.subr.mxu0 0.0
        %8974 = vmatpush1.msra.mxu0 0.0
        %8975 = vmatprep.subr.mxu0 0.0
        %8976 = vmatpush1.msra.mxu0 0.0
        %8977 = vmatprep.subr.mxu0 0.0
        %8978 = vmatpush1.msra.mxu0 0.0
        %8979 = vmatprep.subr.mxu0 0.0
        %8980 = vmatpush1.msra.mxu0 0.0
        %8981 = vmatprep.subr.mxu0 0.0
        %8982 = vmatpush1.msra.mxu0 0.0
        %8983 = vmatprep.subr.mxu0 0.0
        %8984 = vmatpush1.msra.mxu0 0.0
        %8985 = vmatprep.subr.mxu0 0.0
        %8986 = vmatpush1.msra.mxu0 0.0
        %8987 = vmatprep.subr.mxu0 0.0
        %8988 = vmatpush1.msra.mxu0 0.0
        %8989 = vmatprep.subr.mxu0 0.0
        %8990 = vmatpush1.msra.mxu0 0.0
        %8991 = vmatprep.subr.mxu0 0.0
        %8992 = vmatpush1.msra.mxu0 0.0
        %8993 = vmatprep.subr.mxu0 0.0
        %8994 = vmatpush1.msra.mxu0 0.0
        %8995 = vmatprep.subr.mxu0 0.0
        %8996 = vmatpush1.msra.mxu0 0.0
        %8997 = vmatprep.subr.mxu0 0.0
        %8998 = vmatpush1.msra.mxu0 0.0
        %8999 = vmatprep.subr.mxu0 0.0
        %9000 = vmatpush1.msra.mxu0 0.0
        %9001 = vmatprep.subr.mxu0 0.0
        %9002 = vmatpush1.msra.mxu0 0.0
        %9003 = vmatprep.subr.mxu0 0.0
        %9004 = vmatpush1.msra.mxu0 0.0
        %9005 = vmatprep.subr.mxu0 0.0
        %9006 = vmatpush1.msra.mxu0 0.0
        %9007 = vmatprep.mubr.f32.mxu0 0.0
        %v9008 = vand.u32 %v8407, 4294901760
        %9009 = vmatmul.mubr.f32.gmra.mrb[0].mxu0 %v9008
        %v9010 = vpop.f32.mrb[0].mxu0
        %v9011 = vadd.f32 %v8918, %v9010
        %v9012 = vpop.f32.mrb[0].mxu0
        %9013 = vmatprep.mubr.f32.mxu0 0.0
        %v9014 = vand.u32 %v8410, 4294901760
        %9015 = vmatmul.mubr.f32.gmra.mrb[0].mxu0 %v9014
        %v9016 = vpop.f32.mrb[0].mxu0
        %v9017 = vadd.f32 %v8924, %v9016
        %v9018 = vpop.f32.mrb[0].mxu0
        %9019 = vmatprep.mubr.f32.mxu0 0.0
        %v9020 = vand.u32 %v8413, 4294901760
        %9021 = vmatmul.mubr.f32.gmra.mrb[0].mxu0 %v9020
        %v9022 = vpop.f32.mrb[0].mxu0
        %v9023 = vadd.f32 %v8930, %v9022
        %v9024 = vpop.f32.mrb[0].mxu0
        %9025 = vmatprep.mubr.f32.mxu0 0.0
        %v9026 = vand.u32 %v8416, 4294901760
        %9027 = vmatmul.mubr.f32.gmra.mrb[0].mxu0 %v9026
        %v9028 = vpop.f32.mrb[0].mxu0
        %v9029 = vadd.f32 %v8936, %v9028
        %v9030 = vpop.f32.mrb[0].mxu0
        %9031 = vdwg.mxu0
        %v9032 = vmul.f32 %v7051, %v3027
        %v9033 = vmul.f32 %v7052, %v3027
        %v9034 = vmul.f32 %v7053, %v3027
        %v9035 = vmul.f32 %v7054, %v3027
        %v9036 = vadd.f32 %v9032, %v9011
        %v9037 = vadd.f32 %v9033, %v9017
        %v9038 = vadd.f32 %v9034, %v9023
        %v9039 = vadd.f32 %v9035, %v9029
        %v9040 = vtanh.pop %v9036
        %v9041 = vtanh.pop %v9037
        %v9042 = vtanh.pop %v9038
        %v9043 = vtanh.pop %v9039
        %v9044 = vmul.f32 %v5038, %v9040
        %v9045 = vmul.f32 %v5039, %v9041
        %v9046 = vmul.f32 %v5040, %v9042
        %v9047 = vmul.f32 %v5041, %v9043
        %v9048 = vadd.f32 %v9044, %v9045
        %v9049 = vadd.f32 %v9048, %v9046
        %v9050 = vadd.f32 %v9049, %v9047
        %v9051 = vrot.slane %v9050, 4
        %v9052 = vadd.f32 %v9050, %v9051
        %v9053 = vrot.slane %v9052, 2
        %v9054 = vadd.f32 %v9052, %v9053
        %v9055 = vrot.slane %v9054, 1
        %v9056 = vadd.f32 %v9054, %v9055
        %v9057 = vtanh.pop %v9011
        %v9058 = vtanh.pop %v9017
        %v9059 = vtanh.pop %v9023
        %v9060 = vtanh.pop %v9029
        %v9061 = vmul.f32 %v5038, %v9057
        %v9062 = vmul.f32 %v5039, %v9058
        %v9063 = vmul.f32 %v5040, %v9059
        %v9064 = vmul.f32 %v5041, %v9060
        %v9065 = vadd.f32 %v9061, %v9062
        %v9066 = vadd.f32 %v9065, %v9063
        %v9067 = vadd.f32 %v9066, %v9064
        %v9068 = vrot.slane %v9067, 4
        %v9069 = vadd.f32 %v9067, %v9068
        %v9070 = vrot.slane %v9069, 2
        %v9071 = vadd.f32 %v9069, %v9070
        %v9072 = vrot.slane %v9071, 1
        %v9073 = vadd.f32 %v9071, %v9072
        %v9074 = vsub.f32 %v9056, %v9073
        %v9075 = vmul.f32 %v9074, %v3011
        %v9076 = vmul.f32 %v9075, %v9075
        %v9077 = vsel %vm3013, %v9076, 0.0
        %v9078 = vrot.slane %v9077, 4
        %v9079 = vadd.f32 %v9077, %v9078
        %v9080 = vrot.slane %v9079, 2
        %v9081 = vadd.f32 %v9079, %v9080
        %v9082 = vrot.slane %v9081, 1
        %v9083 = vadd.f32 %v9081, %v9082
        %v9084 = vlog2.pop %v9083
        %v9085 = vmul.f32 %v9084, 0.6931472
        %v9086 = vmul.f32 %v9085, 0.1
        %v9087 = vmul.f32 %v9086, 1.442695
        %v9088 = vpow.pop %v9087
        %9089 = vst [vmem:[%s430] sm:$0x1] %v9088
        %s9090 = sand.u32 %s313, 1
        %s9091 = scalar_lea.sflag [#allocation3], %s9090
        %s9092 = sand.u32 %s313, 1
        %s9093 = scalar_lea.vmem [#allocation2], %s9092
        // Predicated region
        $region73: #{energy_forward.1} parent=71 // pred_check
          %p9094 = pneg %p323
        $region74: #{energy_forward.1} parent=71 // pred_check_branch
          %9096 = sbr.rel (%p9094) target = $region76
        $region75: #{energy_forward.1} parent=71 // pred_region
          %s9098 = ssub.s32 16, 16
          %9099 = vsyncadd %s9091, %s9098
          %s9100 = smul.addr %s27, 16
          %s9101 = scalar_lea.hbm %s13, %s9100
          %s9103 = sshll.u32 %s9093, 4
          %s9104 = int_to_ptr.vmem [resolvable:$true] %s9103
          %9106 = dma.vmem_to_hbm [thread:$0]  %s9104, 16, %s9101, %s9091
        $region76: #{energy_forward.1} parent=71 // pred_fallthru
          _
      $region72: #{energy_forward.1} parent=5 // pred_fallthru
        _
      %p9107 = scmp.le.s32.totalorder 2, %s22
      // Predicated region
      $region77: #{energy_forward.1} parent=5 // pred_check
        %p9108 = pneg %p9107
      $region78: #{energy_forward.1} parent=5 // pred_check_branch
        %9110 = sbr.rel (%p9108) target = $region80
      $region79: #{energy_forward.1} parent=5 // pred_region
        %s9111 = ssub.s32 %s22, 2
        // Predicated region
        $region81: #{energy_forward.1} parent=79 // pred_check
          %p9112 = pneg %p329
        $region82: #{energy_forward.1} parent=79 // pred_check_branch
          %9114 = sbr.rel (%p9112) target = $region84
        $region83: #{energy_forward.1} parent=79 // pred_region
          %s9115 = sand.u32 %s314, 1
          %s9116 = scalar_lea.sflag [#allocation3], %s9115
          %s9117 = sand.u32 %s314, 1
          %s9118 = scalar_lea.vmem [#allocation2], %s9117
          %9119 = dma.done %s9116, 16
        $region84: #{energy_forward.1} parent=79 // pred_fallthru
          _
      $region80: #{energy_forward.1} parent=5 // pred_fallthru
        _
    $region6: #{energy_forward.1} parent=1 // loop_footer
      %s26 = sadd.s32 1, %s22
    $region7: #{energy_forward.1} parent=1 // loop_footer_branch
      %21 = sbr.rel target = $region3
    $region8: #{energy_forward.1} parent=1 // loop_exit
      _
    %9120 = vsyncpa [#allocation3], 1
    %s9121 = scalar_lea.sflag [#allocation3], 1
    %9122 = vsyncpa %s9121, 1

</llo_original>
